<compile_context>
chip_gen: v5e
topology: v5e:2x2
jax: 0.10.0
libtpu: 0.0.40
codegen_flags: <defaults>
</compile_context>

<pallas_src>
import jax
import jax.numpy as jnp
from jax import lax
from jax.experimental import pallas as pl
from jax.experimental.pallas import tpu as pltpu

N_FRAMES = 5                 # ff * 2 + 1
CENTER = 2                   # ff
BRANCH_IDS = (0, 1, 3, 4)    # non-center frames, PyTorch loop order
N_BRANCH = len(BRANCH_IDS)
C_FRAME = 80                 # 5 * n_feats
C_CAT = 2 * C_FRAME          # 160
C_HID = C_CAT // 5           # 32 (in_planes // 5)
C_OUT = N_FRAMES * C_FRAME   # 400
K = 7
PAD = 3
LANE = 128
C_PACK = N_FRAMES * LANE     # 640 (conv2 K-packed width)


def _fusion_kernel(x_ref, ma_ref, mm_ref, fc1r_ref, fc1i_ref,
                   fc2r_ref, fc2i_ref, c1wr_ref, c1wi_ref, c1b_ref,
                   c2wp_ref, c2b_ref, out_ref, kpack_ref):
    # x_ref: (F, HW, 80) bf16; weights bf16, biases f32; kpack_ref: (HW,640) bf16.
    HW = x_ref.shape[1]
    bf16 = jnp.bfloat16
    f32 = jnp.float32
    inv_hw = 1.0 / HW

    def bdot(a, b):                      # bf16 x bf16 -> f32 accumulate (MXU)
        return jnp.dot(a, b, preferred_element_type=f32)

    f_r_bf = x_ref[CENTER]                                  # (HW, 80) bf16
    fi_bf = [x_ref[i] for i in BRANCH_IDS]                  # 4 x (HW, 80) bf16

    # Zero the conv2 K-pack scratch every step: the pad lanes multiply zero
    # weight rows, but stale NaN bit-patterns would still poison the f32
    # accumulator, and with a "parallel" batch axis a core may never run
    # program_id == 0, so a one-time init is not safe.
    kpack_ref[...] = jnp.zeros((HW, C_PACK), bf16)

    # ---- ChannelAttention: f32 pooling, batched shared MLP ----------------
    def pool(frame_bf):
        f = frame_bf.astype(f32)
        return (jnp.sum(f, axis=0, keepdims=True) * inv_hw,     # (1, 80)
                jnp.max(f, axis=0, keepdims=True))               # (1, 80)

    avg_r, max_r = pool(f_r_bf)
    pools_i = [pool(f) for f in fi_bf]
    avg_fi = jnp.concatenate([p[0] for p in pools_i], axis=0)    # (4, 80)
    max_fi = jnp.concatenate([p[1] for p in pools_i], axis=0)    # (4, 80)

    pooled_fi = jnp.concatenate([avg_fi, max_fi], axis=0)        # (8, 80)
    pooled_r2 = jnp.concatenate([avg_r, max_r], axis=0)          # (2, 80)
    h_fi = bdot(pooled_fi.astype(bf16), fc1i_ref[...])           # (8, 32)
    h_r2 = bdot(pooled_r2.astype(bf16), fc1r_ref[...])           # (2, 32)
    h_r = jnp.concatenate(
        [jnp.broadcast_to(h_r2[0:1, :], (N_BRANCH, C_HID)),
         jnp.broadcast_to(h_r2[1:2, :], (N_BRANCH, C_HID))], axis=0)  # (8, 32)
    h = jnp.maximum(h_fi + h_r, 0.0).astype(bf16)
    o_r = bdot(h, fc2r_ref[...])                                 # (8, 80)
    o_i = bdot(h, fc2i_ref[...])                                 # (8, 80)
    ca_r = jax.nn.sigmoid(o_r[0:N_BRANCH] + o_r[N_BRANCH:]).astype(bf16)  # (4,80)
    ca_i = jax.nn.sigmoid(o_i[0:N_BRANCH] + o_i[N_BRANCH:]).astype(bf16)  # (4,80)

    # ---- per-branch CA scaling + conv1 (sum column folded into conv1) -----
    p_list, sum_cols, max_cols = [], [], []
    for k in range(N_BRANCH):
        a_r = f_r_bf * ca_r[k:k + 1, :]                          # bf16 (HW, 80)
        a_i = fi_bf[k] * ca_i[k:k + 1, :]                        # bf16 (HW, 80)
        # c1w*_ext carry an extra ones-column, so column 80 of pe is the
        # channel sum over all 160 CA-scaled channels (SA avg input * 160)
        # at zero extra MXU cost.
        pe = bdot(a_r, c1wr_ref[...]) + bdot(a_i, c1wi_ref[...])  # (HW, 81) f32
        p_list.append(pe[:, :C_FRAME])
        sum_cols.append(pe[:, C_FRAME:C_FRAME + 1])
        max_cols.append(
            jnp.max(jnp.maximum(a_r, a_i).astype(f32), axis=1, keepdims=True))

    sum_maps = jnp.concatenate(sum_cols, axis=1).astype(bf16)    # (HW, 4)
    max_maps = jnp.concatenate(max_cols, axis=1).astype(bf16)    # (HW, 4)

    # ---- SpatialAttention 7x7 conv as dense pixel-operator matmuls --------
    # ma_ref already includes the /160 of the channel mean.
    logits = bdot(ma_ref[...], sum_maps) + bdot(mm_ref[...], max_maps)
    sa = jax.nn.sigmoid(logits)                                  # (HW, 4) f32

    # ---- K-pack conv1 outputs + center frame into the (HW, 640) buffer ----
    c1b = c1b_ref[...]                                           # (1, 80) f32
    for k in range(N_BRANCH):
        # sa is a per-pixel scalar, so it commutes with the 1x1 conv:
        # conv1(sa*m) + b = sa*conv1(m) + b.
        bout = sa[:, k:k + 1] * p_list[k] + c1b
        kpack_ref[:, k * LANE:k * LANE + C_FRAME] = bout.astype(bf16)
    kpack_ref[:, N_BRANCH * LANE:N_BRANCH * LANE + C_FRAME] = f_r_bf

    # ---- conv2 (1x1, 400->400) as a single K=640 packed matmul ------------
    out_ref[...] = bdot(kpack_ref[...], c2wp_ref[...]) + c2b_ref[...]


def _build_sa_operators(sa_w, H, W):
    """Dense (HW, HW) operators for the 2-in/1-out 7x7 pad-3 cross-correlation."""
    HW = H * W
    idx = jnp.arange(HW, dtype=jnp.int32)
    ph, pw = idx // W, idx % W
    dh = ph[None, :] - ph[:, None] + PAD       # tap row of source q for dest p
    dw = pw[None, :] - pw[:, None] + PAD
    valid = (dh >= 0) & (dh < K) & (dw >= 0) & (dw < K)
    dh_c = jnp.clip(dh, 0, K - 1)
    dw_c = jnp.clip(dw, 0, K - 1)
    m_avg = jnp.where(valid, sa_w[0][dh_c, dw_c], 0.0) / C_CAT   # fold /160
    m_max = jnp.where(valid, sa_w[1][dh_c, dw_c], 0.0)
    return m_avg.astype(jnp.bfloat16), m_max.astype(jnp.bfloat16)


def fusion_new_forward(x, sa_w, fc1, fc2, c1w, c1b, c2w, c2b):
    """x: (B, 5, H, W, 80) f32 frames; returns (B, H, W, 400) f32."""
    B, F, H, W, C = x.shape
    HW = H * W
    bf16 = jnp.bfloat16

    # Frames travel as bf16 (intentional precision change: halves the dominant
    # HBM read); pooling is accumulated in f32 inside the kernel.
    x3 = x.astype(bf16).reshape(B, F, HW, C)

    m_avg, m_max = _build_sa_operators(sa_w, H, W)

    # Split weights at the 80-channel boundary (once, host-side) so the kernel
    # never builds a lane-misaligned 160/400-wide concat.
    fc1_r = fc1[:C_FRAME].astype(bf16)             # (80, 32) - f_ref half
    fc1_i = fc1[C_FRAME:].astype(bf16)             # (80, 32) - frame half
    fc2_r = fc2[:, :C_FRAME].astype(bf16)          # (32, 80)
    fc2_i = fc2[:, C_FRAME:].astype(bf16)          # (32, 80)
    ones_col = jnp.ones((C_FRAME, 1), jnp.float32)
    c1w_r_ext = jnp.concatenate([c1w[:C_FRAME], ones_col], axis=1).astype(bf16)
    c1w_i_ext = jnp.concatenate([c1w[C_FRAME:], ones_col], axis=1).astype(bf16)

    # conv2 weight K-packed: rows [b*128, b*128+80) hold c2w rows
    # [b*80, (b+1)*80); the rest are zeros.  One K=640 matmul then replaces
    # five K=80 block matmuls.
    c2w_pack = jnp.zeros((C_PACK, C_OUT), jnp.float32)
    for b in range(N_FRAMES):
        c2w_pack = c2w_pack.at[b * LANE:b * LANE + C_FRAME].set(
            c2w[b * C_FRAME:(b + 1) * C_FRAME])
    c2w_pack = c2w_pack.astype(bf16)

    def full_spec(a):
        nd = a.ndim
        return pl.BlockSpec(a.shape, lambda b, _nd=nd: (0,) * _nd)

    invariants = [m_avg, m_max, fc1_r, fc1_i, fc2_r, fc2_i,
                  c1w_r_ext, c1w_i_ext, c1b, c2w_pack, c2b]
    inv_bytes = sum(a.size * a.dtype.itemsize for a in invariants)
    vmem_needed = (2 * F * HW * C * 2          # double-buffered bf16 x block
                   + 2 * HW * C_OUT * 4        # double-buffered f32 out block
                   + 2 * inv_bytes             # (conservatively) x2 invariants
                   + HW * C_PACK * 2)          # K-pack scratch
    vmem_limit = int(min(64 * 2**20, max(32 * 2**20, 3 * vmem_needed)))

    flops = 2 * B * ((8 + 2) * C_FRAME * C_HID          # CA fc1
                     + 2 * 8 * C_HID * C_FRAME          # CA fc2 (both halves)
                     + N_BRANCH * HW * C_CAT * (C_FRAME + 1)   # conv1 + sum col
                     + 2 * HW * HW * N_BRANCH           # SA operator matmuls
                     + HW * C_PACK * C_OUT)             # K-packed conv2
    transcendentals = B * (2 * N_BRANCH * C_FRAME + N_BRANCH * HW)
    bytes_accessed = int(B * (F * HW * C * 2 + HW * C_OUT * 4) + inv_bytes)

    out3 = pl.pallas_call(
        _fusion_kernel,
        out_shape=jax.ShapeDtypeStruct((B, HW, C_OUT), jnp.float32),
        grid=(B,),
        in_specs=[
            pl.BlockSpec((pl.Squeezed(), F, HW, C), lambda b: (b, 0, 0, 0)),
            full_spec(m_avg), full_spec(m_max),
            full_spec(fc1_r), full_spec(fc1_i),
            full_spec(fc2_r), full_spec(fc2_i),
            full_spec(c1w_r_ext), full_spec(c1w_i_ext),
            full_spec(c1b),
            full_spec(c2w_pack), full_spec(c2b),
        ],
        out_specs=pl.BlockSpec((pl.Squeezed(), HW, C_OUT), lambda b: (b, 0, 0)),
        scratch_shapes=[pltpu.VMEM((HW, C_PACK), bf16)],
        compiler_params=pltpu.CompilerParams(
            dimension_semantics=("parallel",),
            vmem_limit_bytes=vmem_limit),
        cost_estimate=pl.CostEstimate(
            flops=int(flops),
            transcendentals=int(transcendentals),
            bytes_accessed=bytes_accessed),
    )(x3, m_avg, m_max, fc1_r, fc1_i, fc2_r, fc2_i,
      c1w_r_ext, c1w_i_ext, c1b, c2w_pack, c2b)
    return out3.reshape(B, H, W, C_OUT)


def reference(x, sa_w, fc1, fc2, c1w, c1b, c2w, c2b):
    """Plain-JAX channels-last reference of the PyTorch forward.  Frames are
    quantized to bf16 first (mirrors the kernel's intentional input cast) and
    matmuls are mirrored as bf16-in / f32-accumulate."""
    x = x.astype(jnp.bfloat16).astype(jnp.float32)
    B, F, H, W, C = x.shape
    f_ref = x[:, CENTER]

    def bdot(a, b):
        return jnp.dot(a.astype(jnp.bfloat16), b.astype(jnp.bfloat16),
                       preferred_element_type=jnp.float32)

    def mlp(v):
        return bdot(jnp.maximum(bdot(v, fc1), 0.0), fc2)

    w_hwio = jnp.transpose(sa_w, (1, 2, 0))[..., None]     # (7, 7, 2, 1)
    outs = []
    for i in range(F):
        if i == CENTER:
            continue
        m = jnp.concatenate([f_ref, x[:, i]], axis=-1)     # (B, H, W, 160)
        avg = m.mean(axis=(1, 2))
        mx = m.max(axis=(1, 2))
        ca = jax.nn.sigmoid(mlp(avg) + mlp(mx))            # (B, 160)
        m = m * ca[:, None, None, :]
        sa_in = jnp.stack([m.mean(axis=-1), m.max(axis=-1)], axis=-1)
        conv = lax.conv_general_dilated(
            sa_in, w_hwio, (1, 1), [(PAD, PAD), (PAD, PAD)],
            dimension_numbers=("NHWC", "HWIO", "NHWC"))
        sa = jax.nn.sigmoid(conv)                          # (B, H, W, 1)
        m = m * sa
        outs.append(bdot(m, c1w) + c1b)
    outs.append(f_ref)
    cat = jnp.concatenate(outs, axis=-1)                   # (B, H, W, 400)
    return bdot(cat, c2w) + c2b


if __name__ == "__main__":
    key = jax.random.PRNGKey(0)
    ks = jax.random.split(key, 8)
    B, H, W = 2, 16, 16

    # 5 frames, each equivalent to a PyTorch (B, 80, H, W) tensor, stacked NHWC.
    x = jax.random.normal(ks[0], (B, N_FRAMES, H, W, C_FRAME), jnp.float32)

    # Deterministic synthetic parameters (shapes from the module __init__).
    fc1 = 0.05 * jax.random.normal(ks[1], (C_CAT, C_HID), jnp.float32)   # CA fc1
    fc2 = 0.05 * jax.random.normal(ks[2], (C_HID, C_CAT), jnp.float32)   # CA fc2
    sa_w = 0.05 * jax.random.normal(ks[3], (2, K, K), jnp.float32)       # SA 7x7
    c1w = 0.05 * jax.random.normal(ks[4], (C_CAT, C_FRAME), jnp.float32) # conv1
    c1b = 0.05 * jax.random.normal(ks[5], (1, C_FRAME), jnp.float32)
    c2w = 0.05 * jax.random.normal(ks[6], (C_OUT, C_OUT), jnp.float32)   # conv2
    c2b = 0.05 * jax.random.normal(ks[7], (1, C_OUT), jnp.float32)

    out = fusion_new_forward(x, sa_w, fc1, fc2, c1w, c1b, c2w, c2b)
    out = jax.block_until_ready(out)

    ref = reference(x, sa_w, fc1, fc2, c1w, c1b, c2w, c2b)
    assert out.shape == (B, H, W, C_OUT)
    if not jnp.allclose(out, ref, rtol=1e-2, atol=1e-2):
        err = float(jnp.max(jnp.abs(out - ref)))
        raise AssertionError(f"Pallas kernel mismatch vs reference, max|err|={err}")
    print("KERNEL_OK")
</pallas_src>

<mosaic_0001>
module attributes {stable_mosaic.version = 11 : i64} {
  func.func @_fusion_kernel(%arg0: i32, %arg1: memref<1x5x256x80xbf16, #tpu.memory_space<vmem>>, %arg2: memref<256x256xbf16, #tpu.memory_space<vmem>>, %arg3: memref<256x256xbf16, #tpu.memory_space<vmem>>, %arg4: memref<80x32xbf16, #tpu.memory_space<vmem>>, %arg5: memref<80x32xbf16, #tpu.memory_space<vmem>>, %arg6: memref<32x80xbf16, #tpu.memory_space<vmem>>, %arg7: memref<32x80xbf16, #tpu.memory_space<vmem>>, %arg8: memref<80x81xbf16, #tpu.memory_space<vmem>>, %arg9: memref<80x81xbf16, #tpu.memory_space<vmem>>, %arg10: memref<1x80xf32, #tpu.memory_space<vmem>>, %arg11: memref<640x400xbf16, #tpu.memory_space<vmem>>, %arg12: memref<1x400xf32, #tpu.memory_space<vmem>>, %arg13: memref<1x256x400xf32, #tpu.memory_space<vmem>>, %arg14: memref<256x640xbf16, #tpu.memory_space<vmem>>) attributes {dimension_semantics = [#tpu.dimension_semantics<parallel>], iteration_bounds = array<i64: 2>, scalar_prefetch = 0 : i64, scratch_operands = 1 : i64, tpu.core_type = #tpu.core_type<tc>, window_params = [{transform_indices = @transform_0, window_bounds = array<i64: 1, 5, 256, 80>}, {pipeline_mode = #tpu.pipeline_mode<synchronous>, transform_indices = @transform_1, window_bounds = array<i64: 256, 256>}, {pipeline_mode = #tpu.pipeline_mode<synchronous>, transform_indices = @transform_2, window_bounds = array<i64: 256, 256>}, {pipeline_mode = #tpu.pipeline_mode<synchronous>, transform_indices = @transform_3, window_bounds = array<i64: 80, 32>}, {pipeline_mode = #tpu.pipeline_mode<synchronous>, transform_indices = @transform_4, window_bounds = array<i64: 80, 32>}, {pipeline_mode = #tpu.pipeline_mode<synchronous>, transform_indices = @transform_5, window_bounds = array<i64: 32, 80>}, {pipeline_mode = #tpu.pipeline_mode<synchronous>, transform_indices = @transform_6, window_bounds = array<i64: 32, 80>}, {pipeline_mode = #tpu.pipeline_mode<synchronous>, transform_indices = @transform_7, window_bounds = array<i64: 80, 81>}, {pipeline_mode = #tpu.pipeline_mode<synchronous>, transform_indices = @transform_8, window_bounds = array<i64: 80, 81>}, {pipeline_mode = #tpu.pipeline_mode<synchronous>, transform_indices = @transform_9, window_bounds = array<i64: 1, 80>}, {pipeline_mode = #tpu.pipeline_mode<synchronous>, transform_indices = @transform_10, window_bounds = array<i64: 640, 400>}, {pipeline_mode = #tpu.pipeline_mode<synchronous>, transform_indices = @transform_11, window_bounds = array<i64: 1, 400>}, {transform_indices = @transform_12, window_bounds = array<i64: 1, 256, 400>}]} {
    %c0 = arith.constant 0 : index
    %c2 = arith.constant 2 : index
    %c0_0 = arith.constant 0 : index
    %c0_1 = arith.constant 0 : index
    %0 = vector.load %arg1[%c0, %c2, %c0_0, %c0_1] : memref<1x5x256x80xbf16, #tpu.memory_space<vmem>>, vector<1x1x256x80xbf16>
    %1 = vector.shape_cast %0 : vector<1x1x256x80xbf16> to vector<256x80xbf16>
    %c0_2 = arith.constant 0 : index
    %c0_3 = arith.constant 0 : index
    %c0_4 = arith.constant 0 : index
    %c0_5 = arith.constant 0 : index
    %2 = vector.load %arg1[%c0_2, %c0_3, %c0_4, %c0_5] : memref<1x5x256x80xbf16, #tpu.memory_space<vmem>>, vector<1x1x256x80xbf16>
    %3 = vector.shape_cast %2 : vector<1x1x256x80xbf16> to vector<256x80xbf16>
    %c0_6 = arith.constant 0 : index
    %c1 = arith.constant 1 : index
    %c0_7 = arith.constant 0 : index
    %c0_8 = arith.constant 0 : index
    %4 = vector.load %arg1[%c0_6, %c1, %c0_7, %c0_8] : memref<1x5x256x80xbf16, #tpu.memory_space<vmem>>, vector<1x1x256x80xbf16>
    %5 = vector.shape_cast %4 : vector<1x1x256x80xbf16> to vector<256x80xbf16>
    %c0_9 = arith.constant 0 : index
    %c3 = arith.constant 3 : index
    %c0_10 = arith.constant 0 : index
    %c0_11 = arith.constant 0 : index
    %6 = vector.load %arg1[%c0_9, %c3, %c0_10, %c0_11] : memref<1x5x256x80xbf16, #tpu.memory_space<vmem>>, vector<1x1x256x80xbf16>
    %7 = vector.shape_cast %6 : vector<1x1x256x80xbf16> to vector<256x80xbf16>
    %c0_12 = arith.constant 0 : index
    %c4 = arith.constant 4 : index
    %c0_13 = arith.constant 0 : index
    %c0_14 = arith.constant 0 : index
    %8 = vector.load %arg1[%c0_12, %c4, %c0_13, %c0_14] : memref<1x5x256x80xbf16, #tpu.memory_space<vmem>>, vector<1x1x256x80xbf16>
    %9 = vector.shape_cast %8 : vector<1x1x256x80xbf16> to vector<256x80xbf16>
    %cst = arith.constant 0.000000e+00 : bf16
    %10 = vector.broadcast %cst : bf16 to vector<256x640xbf16>
    %c0_15 = arith.constant 0 : index
    %c0_16 = arith.constant 0 : index
    %11 = vector.load %arg14[%c0_15, %c0_16] : memref<256x640xbf16, #tpu.memory_space<vmem>>, vector<256x640xbf16>
    tpu.vector_store %arg14[%c0_15, %c0_16], %10 {strides = array<i32>} : memref<256x640xbf16, #tpu.memory_space<vmem>>, vector<256x640xbf16>,
    %12 = arith.extf %1 : vector<256x80xbf16> to vector<256x80xf32>
    %cst_17 = arith.constant dense<0.000000e+00> : vector<80xf32>
    %13 = vector.multi_reduction <add>, %12, %cst_17 [0] : vector<256x80xf32> to vector<80xf32>
    %14 = vector.shape_cast %13 : vector<80xf32> to vector<1x80xf32>
    %cst_18 = arith.constant 3.906250e-03 : f32
    %15 = vector.broadcast %cst_18 : f32 to vector<1x80xf32>
    %16 = arith.mulf %14, %15 : vector<1x80xf32>
    %cst_19 = arith.constant dense<0xFF800000> : vector<80xf32>
    %17 = vector.multi_reduction <maximumf>, %12, %cst_19 [0] : vector<256x80xf32> to vector<80xf32>
    %18 = vector.shape_cast %17 : vector<80xf32> to vector<1x80xf32>
    %19 = arith.extf %3 : vector<256x80xbf16> to vector<256x80xf32>
    %cst_20 = arith.constant dense<0.000000e+00> : vector<80xf32>
    %20 = vector.multi_reduction <add>, %19, %cst_20 [0] : vector<256x80xf32> to vector<80xf32>
    %21 = vector.shape_cast %20 : vector<80xf32> to vector<1x80xf32>
    %cst_21 = arith.constant 3.906250e-03 : f32
    %22 = vector.broadcast %cst_21 : f32 to vector<1x80xf32>
    %23 = arith.mulf %21, %22 : vector<1x80xf32>
    %cst_22 = arith.constant dense<0xFF800000> : vector<80xf32>
    %24 = vector.multi_reduction <maximumf>, %19, %cst_22 [0] : vector<256x80xf32> to vector<80xf32>
    %25 = vector.shape_cast %24 : vector<80xf32> to vector<1x80xf32>
    %26 = arith.extf %5 : vector<256x80xbf16> to vector<256x80xf32>
    %cst_23 = arith.constant dense<0.000000e+00> : vector<80xf32>
    %27 = vector.multi_reduction <add>, %26, %cst_23 [0] : vector<256x80xf32> to vector<80xf32>
    %28 = vector.shape_cast %27 : vector<80xf32> to vector<1x80xf32>
    %cst_24 = arith.constant 3.906250e-03 : f32
    %29 = vector.broadcast %cst_24 : f32 to vector<1x80xf32>
    %30 = arith.mulf %28, %29 : vector<1x80xf32>
    %cst_25 = arith.constant dense<0xFF800000> : vector<80xf32>
    %31 = vector.multi_reduction <maximumf>, %26, %cst_25 [0] : vector<256x80xf32> to vector<80xf32>
    %32 = vector.shape_cast %31 : vector<80xf32> to vector<1x80xf32>
    %33 = arith.extf %7 : vector<256x80xbf16> to vector<256x80xf32>
    %cst_26 = arith.constant dense<0.000000e+00> : vector<80xf32>
    %34 = vector.multi_reduction <add>, %33, %cst_26 [0] : vector<256x80xf32> to vector<80xf32>
    %35 = vector.shape_cast %34 : vector<80xf32> to vector<1x80xf32>
    %cst_27 = arith.constant 3.906250e-03 : f32
    %36 = vector.broadcast %cst_27 : f32 to vector<1x80xf32>
    %37 = arith.mulf %35, %36 : vector<1x80xf32>
    %cst_28 = arith.constant dense<0xFF800000> : vector<80xf32>
    %38 = vector.multi_reduction <maximumf>, %33, %cst_28 [0] : vector<256x80xf32> to vector<80xf32>
    %39 = vector.shape_cast %38 : vector<80xf32> to vector<1x80xf32>
    %40 = arith.extf %9 : vector<256x80xbf16> to vector<256x80xf32>
    %cst_29 = arith.constant dense<0.000000e+00> : vector<80xf32>
    %41 = vector.multi_reduction <add>, %40, %cst_29 [0] : vector<256x80xf32> to vector<80xf32>
    %42 = vector.shape_cast %41 : vector<80xf32> to vector<1x80xf32>
    %cst_30 = arith.constant 3.906250e-03 : f32
    %43 = vector.broadcast %cst_30 : f32 to vector<1x80xf32>
    %44 = arith.mulf %42, %43 : vector<1x80xf32>
    %cst_31 = arith.constant dense<0xFF800000> : vector<80xf32>
    %45 = vector.multi_reduction <maximumf>, %40, %cst_31 [0] : vector<256x80xf32> to vector<80xf32>
    %46 = vector.shape_cast %45 : vector<80xf32> to vector<1x80xf32>
    %47 = tpu.concatenate %23, %30, %37, %44 in 0 : vector<1x80xf32>, vector<1x80xf32>, vector<1x80xf32>, vector<1x80xf32> -> vector<4x80xf32>
    %48 = tpu.concatenate %25, %32, %39, %46 in 0 : vector<1x80xf32>, vector<1x80xf32>, vector<1x80xf32>, vector<1x80xf32> -> vector<4x80xf32>
    %49 = tpu.concatenate %47, %48 in 0 : vector<4x80xf32>, vector<4x80xf32> -> vector<8x80xf32>
    %50 = tpu.concatenate %16, %18 in 0 : vector<1x80xf32>, vector<1x80xf32> -> vector<2x80xf32>
    %51 = arith.truncf %49 : vector<8x80xf32> to vector<8x80xbf16>
    %c0_32 = arith.constant 0 : index
    %c0_33 = arith.constant 0 : index
    %52 = vector.load %arg5[%c0_32, %c0_33] : memref<80x32xbf16, #tpu.memory_space<vmem>>, vector<80x32xbf16>
    %cst_34 = arith.constant dense<0.000000e+00> : vector<8x32xf32>
    %53 = tpu.matmul %51, %52, %cst_34 {dimension_numbers = #tpu.dot_dimension_numbers<[1], [0], [0], [1], [0, 0, 1, 1], [], []>} : vector<8x80xbf16>, vector<80x32xbf16>, vector<8x32xf32> -> vector<8x32xf32>
    %54 = arith.truncf %50 : vector<2x80xf32> to vector<2x80xbf16>
    %c0_35 = arith.constant 0 : index
    %c0_36 = arith.constant 0 : index
    %55 = vector.load %arg4[%c0_35, %c0_36] : memref<80x32xbf16, #tpu.memory_space<vmem>>, vector<80x32xbf16>
    %cst_37 = arith.constant dense<0.000000e+00> : vector<2x32xf32>
    %56 = tpu.matmul %54, %55, %cst_37 {dimension_numbers = #tpu.dot_dimension_numbers<[1], [0], [0], [1], [0, 0, 1, 1], [], []>} : vector<2x80xbf16>, vector<80x32xbf16>, vector<2x32xf32> -> vector<2x32xf32>
    %57 = vector.extract_strided_slice %56 {offsets = [0, 0], sizes = [1, 32], strides = [1, 1]} : vector<2x32xf32> to vector<1x32xf32>
    %58 = vector.shape_cast %57 : vector<1x32xf32> to vector<1x32xf32>
    %59 = vector.broadcast %58 : vector<1x32xf32> to vector<4x32xf32>
    %60 = vector.extract_strided_slice %56 {offsets = [1, 0], sizes = [1, 32], strides = [1, 1]} : vector<2x32xf32> to vector<1x32xf32>
    %61 = vector.shape_cast %60 : vector<1x32xf32> to vector<1x32xf32>
    %62 = vector.broadcast %61 : vector<1x32xf32> to vector<4x32xf32>
    %63 = tpu.concatenate %59, %62 in 0 : vector<4x32xf32>, vector<4x32xf32> -> vector<8x32xf32>
    %64 = arith.addf %53, %63 : vector<8x32xf32>
    %cst_38 = arith.constant 0.000000e+00 : f32
    %65 = vector.broadcast %cst_38 : f32 to vector<8x32xf32>
    %66 = arith.maximumf %64, %65 : vector<8x32xf32>
    %67 = arith.truncf %66 : vector<8x32xf32> to vector<8x32xbf16>
    %c0_39 = arith.constant 0 : index
    %c0_40 = arith.constant 0 : index
    %68 = vector.load %arg6[%c0_39, %c0_40] : memref<32x80xbf16, #tpu.memory_space<vmem>>, vector<32x80xbf16>
    %cst_41 = arith.constant dense<0.000000e+00> : vector<8x80xf32>
    %69 = tpu.matmul %67, %68, %cst_41 {dimension_numbers = #tpu.dot_dimension_numbers<[1], [0], [0], [1], [0, 0, 1, 1], [], []>} : vector<8x32xbf16>, vector<32x80xbf16>, vector<8x80xf32> -> vector<8x80xf32>
    %c0_42 = arith.constant 0 : index
    %c0_43 = arith.constant 0 : index
    %70 = vector.load %arg7[%c0_42, %c0_43] : memref<32x80xbf16, #tpu.memory_space<vmem>>, vector<32x80xbf16>
    %cst_44 = arith.constant dense<0.000000e+00> : vector<8x80xf32>
    %71 = tpu.matmul %67, %70, %cst_44 {dimension_numbers = #tpu.dot_dimension_numbers<[1], [0], [0], [1], [0, 0, 1, 1], [], []>} : vector<8x32xbf16>, vector<32x80xbf16>, vector<8x80xf32> -> vector<8x80xf32>
    %72 = vector.extract_strided_slice %69 {offsets = [0, 0], sizes = [4, 80], strides = [1, 1]} : vector<8x80xf32> to vector<4x80xf32>
    %73 = vector.extract_strided_slice %69 {offsets = [4, 0], sizes = [4, 80], strides = [1, 1]} : vector<8x80xf32> to vector<4x80xf32>
    %74 = arith.addf %72, %73 : vector<4x80xf32>
    %75 = arith.negf %74 : vector<4x80xf32>
    %76 = math.exp %75 : vector<4x80xf32>
    %cst_45 = arith.constant 1.000000e+00 : f32
    %77 = vector.broadcast %cst_45 : f32 to vector<4x80xf32>
    %78 = arith.addf %77, %76 : vector<4x80xf32>
    %79 = arith.divf %77, %78 : vector<4x80xf32>
    %80 = arith.truncf %79 : vector<4x80xf32> to vector<4x80xbf16>
    %81 = vector.extract_strided_slice %71 {offsets = [0, 0], sizes = [4, 80], strides = [1, 1]} : vector<8x80xf32> to vector<4x80xf32>
    %82 = vector.extract_strided_slice %71 {offsets = [4, 0], sizes = [4, 80], strides = [1, 1]} : vector<8x80xf32> to vector<4x80xf32>
    %83 = arith.addf %81, %82 : vector<4x80xf32>
    %84 = arith.negf %83 : vector<4x80xf32>
    %85 = math.exp %84 : vector<4x80xf32>
    %cst_46 = arith.constant 1.000000e+00 : f32
    %86 = vector.broadcast %cst_46 : f32 to vector<4x80xf32>
    %87 = arith.addf %86, %85 : vector<4x80xf32>
    %88 = arith.divf %86, %87 : vector<4x80xf32>
    %89 = arith.truncf %88 : vector<4x80xf32> to vector<4x80xbf16>
    %90 = vector.extract_strided_slice %80 {offsets = [0, 0], sizes = [1, 80], strides = [1, 1]} : vector<4x80xbf16> to vector<1x80xbf16>
    %91 = vector.broadcast %90 : vector<1x80xbf16> to vector<256x80xbf16>
    %92 = arith.mulf %1, %91 : vector<256x80xbf16>
    %93 = vector.extract_strided_slice %89 {offsets = [0, 0], sizes = [1, 80], strides = [1, 1]} : vector<4x80xbf16> to vector<1x80xbf16>
    %94 = vector.broadcast %93 : vector<1x80xbf16> to vector<256x80xbf16>
    %95 = arith.mulf %3, %94 : vector<256x80xbf16>
    %c0_47 = arith.constant 0 : index
    %c0_48 = arith.constant 0 : index
    %96 = vector.load %arg8[%c0_47, %c0_48] : memref<80x81xbf16, #tpu.memory_space<vmem>>, vector<80x81xbf16>
    %cst_49 = arith.constant dense<0.000000e+00> : vector<256x81xf32>
    %97 = tpu.matmul %92, %96, %cst_49 {dimension_numbers = #tpu.dot_dimension_numbers<[1], [0], [0], [1], [0, 0, 1, 1], [], []>} : vector<256x80xbf16>, vector<80x81xbf16>, vector<256x81xf32> -> vector<256x81xf32>
    %c0_50 = arith.constant 0 : index
    %c0_51 = arith.constant 0 : index
    %98 = vector.load %arg9[%c0_50, %c0_51] : memref<80x81xbf16, #tpu.memory_space<vmem>>, vector<80x81xbf16>
    %cst_52 = arith.constant dense<0.000000e+00> : vector<256x81xf32>
    %99 = tpu.matmul %95, %98, %cst_52 {dimension_numbers = #tpu.dot_dimension_numbers<[1], [0], [0], [1], [0, 0, 1, 1], [], []>} : vector<256x80xbf16>, vector<80x81xbf16>, vector<256x81xf32> -> vector<256x81xf32>
    %100 = arith.addf %97, %99 : vector<256x81xf32>
    %101 = vector.extract_strided_slice %100 {offsets = [0, 0], sizes = [256, 80], strides = [1, 1]} : vector<256x81xf32> to vector<256x80xf32>
    %102 = vector.extract_strided_slice %100 {offsets = [0, 80], sizes = [256, 1], strides = [1, 1]} : vector<256x81xf32> to vector<256x1xf32>
    %103 = arith.maximumf %92, %95 : vector<256x80xbf16>
    %104 = arith.extf %103 : vector<256x80xbf16> to vector<256x80xf32>
    %cst_53 = arith.constant dense<0xFF800000> : vector<256xf32>
    %105 = vector.multi_reduction <maximumf>, %104, %cst_53 [1] : vector<256x80xf32> to vector<256xf32>
    %106 = vector.shape_cast %105 : vector<256xf32> to vector<256x1xf32>
    %107 = vector.extract_strided_slice %80 {offsets = [1, 0], sizes = [1, 80], strides = [1, 1]} : vector<4x80xbf16> to vector<1x80xbf16>
    %108 = vector.broadcast %107 : vector<1x80xbf16> to vector<256x80xbf16>
    %109 = arith.mulf %1, %108 : vector<256x80xbf16>
    %110 = vector.extract_strided_slice %89 {offsets = [1, 0], sizes = [1, 80], strides = [1, 1]} : vector<4x80xbf16> to vector<1x80xbf16>
    %111 = vector.broadcast %110 : vector<1x80xbf16> to vector<256x80xbf16>
    %112 = arith.mulf %5, %111 : vector<256x80xbf16>
    %c0_54 = arith.constant 0 : index
    %c0_55 = arith.constant 0 : index
    %113 = vector.load %arg8[%c0_54, %c0_55] : memref<80x81xbf16, #tpu.memory_space<vmem>>, vector<80x81xbf16>
    %cst_56 = arith.constant dense<0.000000e+00> : vector<256x81xf32>
    %114 = tpu.matmul %109, %113, %cst_56 {dimension_numbers = #tpu.dot_dimension_numbers<[1], [0], [0], [1], [0, 0, 1, 1], [], []>} : vector<256x80xbf16>, vector<80x81xbf16>, vector<256x81xf32> -> vector<256x81xf32>
    %c0_57 = arith.constant 0 : index
    %c0_58 = arith.constant 0 : index
    %115 = vector.load %arg9[%c0_57, %c0_58] : memref<80x81xbf16, #tpu.memory_space<vmem>>, vector<80x81xbf16>
    %cst_59 = arith.constant dense<0.000000e+00> : vector<256x81xf32>
    %116 = tpu.matmul %112, %115, %cst_59 {dimension_numbers = #tpu.dot_dimension_numbers<[1], [0], [0], [1], [0, 0, 1, 1], [], []>} : vector<256x80xbf16>, vector<80x81xbf16>, vector<256x81xf32> -> vector<256x81xf32>
    %117 = arith.addf %114, %116 : vector<256x81xf32>
    %118 = vector.extract_strided_slice %117 {offsets = [0, 0], sizes = [256, 80], strides = [1, 1]} : vector<256x81xf32> to vector<256x80xf32>
    %119 = vector.extract_strided_slice %117 {offsets = [0, 80], sizes = [256, 1], strides = [1, 1]} : vector<256x81xf32> to vector<256x1xf32>
    %120 = arith.maximumf %109, %112 : vector<256x80xbf16>
    %121 = arith.extf %120 : vector<256x80xbf16> to vector<256x80xf32>
    %cst_60 = arith.constant dense<0xFF800000> : vector<256xf32>
    %122 = vector.multi_reduction <maximumf>, %121, %cst_60 [1] : vector<256x80xf32> to vector<256xf32>
    %123 = vector.shape_cast %122 : vector<256xf32> to vector<256x1xf32>
    %124 = vector.extract_strided_slice %80 {offsets = [2, 0], sizes = [1, 80], strides = [1, 1]} : vector<4x80xbf16> to vector<1x80xbf16>
    %125 = vector.broadcast %124 : vector<1x80xbf16> to vector<256x80xbf16>
    %126 = arith.mulf %1, %125 : vector<256x80xbf16>
    %127 = vector.extract_strided_slice %89 {offsets = [2, 0], sizes = [1, 80], strides = [1, 1]} : vector<4x80xbf16> to vector<1x80xbf16>
    %128 = vector.broadcast %127 : vector<1x80xbf16> to vector<256x80xbf16>
    %129 = arith.mulf %7, %128 : vector<256x80xbf16>
    %c0_61 = arith.constant 0 : index
    %c0_62 = arith.constant 0 : index
    %130 = vector.load %arg8[%c0_61, %c0_62] : memref<80x81xbf16, #tpu.memory_space<vmem>>, vector<80x81xbf16>
    %cst_63 = arith.constant dense<0.000000e+00> : vector<256x81xf32>
    %131 = tpu.matmul %126, %130, %cst_63 {dimension_numbers = #tpu.dot_dimension_numbers<[1], [0], [0], [1], [0, 0, 1, 1], [], []>} : vector<256x80xbf16>, vector<80x81xbf16>, vector<256x81xf32> -> vector<256x81xf32>
    %c0_64 = arith.constant 0 : index
    %c0_65 = arith.constant 0 : index
    %132 = vector.load %arg9[%c0_64, %c0_65] : memref<80x81xbf16, #tpu.memory_space<vmem>>, vector<80x81xbf16>
    %cst_66 = arith.constant dense<0.000000e+00> : vector<256x81xf32>
    %133 = tpu.matmul %129, %132, %cst_66 {dimension_numbers = #tpu.dot_dimension_numbers<[1], [0], [0], [1], [0, 0, 1, 1], [], []>} : vector<256x80xbf16>, vector<80x81xbf16>, vector<256x81xf32> -> vector<256x81xf32>
    %134 = arith.addf %131, %133 : vector<256x81xf32>
    %135 = vector.extract_strided_slice %134 {offsets = [0, 0], sizes = [256, 80], strides = [1, 1]} : vector<256x81xf32> to vector<256x80xf32>
    %136 = vector.extract_strided_slice %134 {offsets = [0, 80], sizes = [256, 1], strides = [1, 1]} : vector<256x81xf32> to vector<256x1xf32>
    %137 = arith.maximumf %126, %129 : vector<256x80xbf16>
    %138 = arith.extf %137 : vector<256x80xbf16> to vector<256x80xf32>
    %cst_67 = arith.constant dense<0xFF800000> : vector<256xf32>
    %139 = vector.multi_reduction <maximumf>, %138, %cst_67 [1] : vector<256x80xf32> to vector<256xf32>
    %140 = vector.shape_cast %139 : vector<256xf32> to vector<256x1xf32>
    %141 = vector.extract_strided_slice %80 {offsets = [3, 0], sizes = [1, 80], strides = [1, 1]} : vector<4x80xbf16> to vector<1x80xbf16>
    %142 = vector.broadcast %141 : vector<1x80xbf16> to vector<256x80xbf16>
    %143 = arith.mulf %1, %142 : vector<256x80xbf16>
    %144 = vector.extract_strided_slice %89 {offsets = [3, 0], sizes = [1, 80], strides = [1, 1]} : vector<4x80xbf16> to vector<1x80xbf16>
    %145 = vector.broadcast %144 : vector<1x80xbf16> to vector<256x80xbf16>
    %146 = arith.mulf %9, %145 : vector<256x80xbf16>
    %c0_68 = arith.constant 0 : index
    %c0_69 = arith.constant 0 : index
    %147 = vector.load %arg8[%c0_68, %c0_69] : memref<80x81xbf16, #tpu.memory_space<vmem>>, vector<80x81xbf16>
    %cst_70 = arith.constant dense<0.000000e+00> : vector<256x81xf32>
    %148 = tpu.matmul %143, %147, %cst_70 {dimension_numbers = #tpu.dot_dimension_numbers<[1], [0], [0], [1], [0, 0, 1, 1], [], []>} : vector<256x80xbf16>, vector<80x81xbf16>, vector<256x81xf32> -> vector<256x81xf32>
    %c0_71 = arith.constant 0 : index
    %c0_72 = arith.constant 0 : index
    %149 = vector.load %arg9[%c0_71, %c0_72] : memref<80x81xbf16, #tpu.memory_space<vmem>>, vector<80x81xbf16>
    %cst_73 = arith.constant dense<0.000000e+00> : vector<256x81xf32>
    %150 = tpu.matmul %146, %149, %cst_73 {dimension_numbers = #tpu.dot_dimension_numbers<[1], [0], [0], [1], [0, 0, 1, 1], [], []>} : vector<256x80xbf16>, vector<80x81xbf16>, vector<256x81xf32> -> vector<256x81xf32>
    %151 = arith.addf %148, %150 : vector<256x81xf32>
    %152 = vector.extract_strided_slice %151 {offsets = [0, 0], sizes = [256, 80], strides = [1, 1]} : vector<256x81xf32> to vector<256x80xf32>
    %153 = vector.extract_strided_slice %151 {offsets = [0, 80], sizes = [256, 1], strides = [1, 1]} : vector<256x81xf32> to vector<256x1xf32>
    %154 = arith.maximumf %143, %146 : vector<256x80xbf16>
    %155 = arith.extf %154 : vector<256x80xbf16> to vector<256x80xf32>
    %cst_74 = arith.constant dense<0xFF800000> : vector<256xf32>
    %156 = vector.multi_reduction <maximumf>, %155, %cst_74 [1] : vector<256x80xf32> to vector<256xf32>
    %157 = vector.shape_cast %156 : vector<256xf32> to vector<256x1xf32>
    %158 = tpu.concatenate %102, %119, %136, %153 in 1 : vector<256x1xf32>, vector<256x1xf32>, vector<256x1xf32>, vector<256x1xf32> -> vector<256x4xf32>
    %159 = arith.truncf %158 : vector<256x4xf32> to vector<256x4xbf16>
    %160 = tpu.concatenate %106, %123, %140, %157 in 1 : vector<256x1xf32>, vector<256x1xf32>, vector<256x1xf32>, vector<256x1xf32> -> vector<256x4xf32>
    %161 = arith.truncf %160 : vector<256x4xf32> to vector<256x4xbf16>
    %c0_75 = arith.constant 0 : index
    %c0_76 = arith.constant 0 : index
    %162 = vector.load %arg2[%c0_75, %c0_76] : memref<256x256xbf16, #tpu.memory_space<vmem>>, vector<256x256xbf16>
    %cst_77 = arith.constant dense<0.000000e+00> : vector<256x4xf32>
    %163 = tpu.matmul %162, %159, %cst_77 {dimension_numbers = #tpu.dot_dimension_numbers<[1], [0], [0], [1], [0, 0, 1, 1], [], []>} : vector<256x256xbf16>, vector<256x4xbf16>, vector<256x4xf32> -> vector<256x4xf32>
    %c0_78 = arith.constant 0 : index
    %c0_79 = arith.constant 0 : index
    %164 = vector.load %arg3[%c0_78, %c0_79] : memref<256x256xbf16, #tpu.memory_space<vmem>>, vector<256x256xbf16>
    %cst_80 = arith.constant dense<0.000000e+00> : vector<256x4xf32>
    %165 = tpu.matmul %164, %161, %cst_80 {dimension_numbers = #tpu.dot_dimension_numbers<[1], [0], [0], [1], [0, 0, 1, 1], [], []>} : vector<256x256xbf16>, vector<256x4xbf16>, vector<256x4xf32> -> vector<256x4xf32>
    %166 = arith.addf %163, %165 : vector<256x4xf32>
    %167 = arith.negf %166 : vector<256x4xf32>
    %168 = math.exp %167 : vector<256x4xf32>
    %cst_81 = arith.constant 1.000000e+00 : f32
    %169 = vector.broadcast %cst_81 : f32 to vector<256x4xf32>
    %170 = arith.addf %169, %168 : vector<256x4xf32>
    %171 = arith.divf %169, %170 : vector<256x4xf32>
    %c0_82 = arith.constant 0 : index
    %c0_83 = arith.constant 0 : index
    %172 = vector.load %arg10[%c0_82, %c0_83] : memref<1x80xf32, #tpu.memory_space<vmem>>, vector<1x80xf32>
    %173 = vector.extract_strided_slice %171 {offsets = [0, 0], sizes = [256, 1], strides = [1, 1]} : vector<256x4xf32> to vector<256x1xf32>
    %174 = vector.broadcast %173 : vector<256x1xf32> to vector<256x80xf32>
    %175 = arith.mulf %174, %101 : vector<256x80xf32>
    %176 = vector.broadcast %172 : vector<1x80xf32> to vector<256x80xf32>
    %177 = arith.addf %175, %176 : vector<256x80xf32>
    %178 = arith.truncf %177 : vector<256x80xf32> to vector<256x80xbf16>
    %c0_84 = arith.constant 0 : index
    %c0_85 = arith.constant 0 : index
    %179 = vector.load %arg14[%c0_84, %c0_85] : memref<256x640xbf16, #tpu.memory_space<vmem>>, vector<256x80xbf16>
    tpu.vector_store %arg14[%c0_84, %c0_85], %178 {strides = array<i32>} : memref<256x640xbf16, #tpu.memory_space<vmem>>, vector<256x80xbf16>,
    %180 = vector.extract_strided_slice %171 {offsets = [0, 1], sizes = [256, 1], strides = [1, 1]} : vector<256x4xf32> to vector<256x1xf32>
    %181 = vector.broadcast %180 : vector<256x1xf32> to vector<256x80xf32>
    %182 = arith.mulf %181, %118 : vector<256x80xf32>
    %183 = vector.broadcast %172 : vector<1x80xf32> to vector<256x80xf32>
    %184 = arith.addf %182, %183 : vector<256x80xf32>
    %185 = arith.truncf %184 : vector<256x80xf32> to vector<256x80xbf16>
    %c0_86 = arith.constant 0 : index
    %c128 = arith.constant 128 : index
    %186 = vector.load %arg14[%c0_86, %c128] : memref<256x640xbf16, #tpu.memory_space<vmem>>, vector<256x80xbf16>
    tpu.vector_store %arg14[%c0_86, %c128], %185 {strides = array<i32>} : memref<256x640xbf16, #tpu.memory_space<vmem>>, vector<256x80xbf16>,
    %187 = vector.extract_strided_slice %171 {offsets = [0, 2], sizes = [256, 1], strides = [1, 1]} : vector<256x4xf32> to vector<256x1xf32>
    %188 = vector.broadcast %187 : vector<256x1xf32> to vector<256x80xf32>
    %189 = arith.mulf %188, %135 : vector<256x80xf32>
    %190 = vector.broadcast %172 : vector<1x80xf32> to vector<256x80xf32>
    %191 = arith.addf %189, %190 : vector<256x80xf32>
    %192 = arith.truncf %191 : vector<256x80xf32> to vector<256x80xbf16>
    %c0_87 = arith.constant 0 : index
    %c256 = arith.constant 256 : index
    %193 = vector.load %arg14[%c0_87, %c256] : memref<256x640xbf16, #tpu.memory_space<vmem>>, vector<256x80xbf16>
    tpu.vector_store %arg14[%c0_87, %c256], %192 {strides = array<i32>} : memref<256x640xbf16, #tpu.memory_space<vmem>>, vector<256x80xbf16>,
    %194 = vector.extract_strided_slice %171 {offsets = [0, 3], sizes = [256, 1], strides = [1, 1]} : vector<256x4xf32> to vector<256x1xf32>
    %195 = vector.broadcast %194 : vector<256x1xf32> to vector<256x80xf32>
    %196 = arith.mulf %195, %152 : vector<256x80xf32>
    %197 = vector.broadcast %172 : vector<1x80xf32> to vector<256x80xf32>
    %198 = arith.addf %196, %197 : vector<256x80xf32>
    %199 = arith.truncf %198 : vector<256x80xf32> to vector<256x80xbf16>
    %c0_88 = arith.constant 0 : index
    %c384 = arith.constant 384 : index
    %200 = vector.load %arg14[%c0_88, %c384] : memref<256x640xbf16, #tpu.memory_space<vmem>>, vector<256x80xbf16>
    tpu.vector_store %arg14[%c0_88, %c384], %199 {strides = array<i32>} : memref<256x640xbf16, #tpu.memory_space<vmem>>, vector<256x80xbf16>,
    %c0_89 = arith.constant 0 : index
    %c512 = arith.constant 512 : index
    %201 = vector.load %arg14[%c0_89, %c512] : memref<256x640xbf16, #tpu.memory_space<vmem>>, vector<256x80xbf16>
    tpu.vector_store %arg14[%c0_89, %c512], %1 {strides = array<i32>} : memref<256x640xbf16, #tpu.memory_space<vmem>>, vector<256x80xbf16>,
    %c0_90 = arith.constant 0 : index
    %c0_91 = arith.constant 0 : index
    %202 = vector.load %arg14[%c0_90, %c0_91] : memref<256x640xbf16, #tpu.memory_space<vmem>>, vector<256x640xbf16>
    %c0_92 = arith.constant 0 : index
    %c0_93 = arith.constant 0 : index
    %203 = vector.load %arg11[%c0_92, %c0_93] : memref<640x400xbf16, #tpu.memory_space<vmem>>, vector<640x400xbf16>
    %cst_94 = arith.constant dense<0.000000e+00> : vector<256x400xf32>
    %204 = tpu.matmul %202, %203, %cst_94 {dimension_numbers = #tpu.dot_dimension_numbers<[1], [0], [0], [1], [0, 0, 1, 1], [], []>} : vector<256x640xbf16>, vector<640x400xbf16>, vector<256x400xf32> -> vector<256x400xf32>
    %c0_95 = arith.constant 0 : index
    %c0_96 = arith.constant 0 : index
    %205 = vector.load %arg12[%c0_95, %c0_96] : memref<1x400xf32, #tpu.memory_space<vmem>>, vector<1x400xf32>
    %206 = vector.broadcast %205 : vector<1x400xf32> to vector<256x400xf32>
    %207 = arith.addf %204, %206 : vector<256x400xf32>
    %c0_97 = arith.constant 0 : index
    %c0_98 = arith.constant 0 : index
    %c0_99 = arith.constant 0 : index
    %208 = vector.load %arg13[%c0_97, %c0_98, %c0_99] : memref<1x256x400xf32, #tpu.memory_space<vmem>>, vector<1x256x400xf32>
    %209 = vector.shape_cast %208 : vector<1x256x400xf32> to vector<256x400xf32>
    %210 = vector.shape_cast %207 : vector<256x400xf32> to vector<1x256x400xf32>
    tpu.vector_store %arg13[%c0_97, %c0_98, %c0_99], %210 {strides = array<i32>} : memref<1x256x400xf32, #tpu.memory_space<vmem>>, vector<1x256x400xf32>,
    return
  }
  func.func @transform_0(%arg0: i32) -> (i32, i32, i32, i32) {
    %c0_i32 = arith.constant 0 : i32
    %c0_i32_0 = arith.constant 0 : i32
    %c0_i32_1 = arith.constant 0 : i32
    %c0_i32_2 = arith.constant 0 : i32
    return %arg0, %c0_i32, %c0_i32_0, %c0_i32_1 : i32, i32, i32, i32
  }
  func.func @transform_1(%arg0: i32) -> (i32, i32) {
    %c0_i32 = arith.constant 0 : i32
    %c0_i32_0 = arith.constant 0 : i32
    %c0_i32_1 = arith.constant 0 : i32
    return %c0_i32, %c0_i32_0 : i32, i32
  }
  func.func @transform_2(%arg0: i32) -> (i32, i32) {
    %c0_i32 = arith.constant 0 : i32
    %c0_i32_0 = arith.constant 0 : i32
    %c0_i32_1 = arith.constant 0 : i32
    return %c0_i32, %c0_i32_0 : i32, i32
  }
  func.func @transform_3(%arg0: i32) -> (i32, i32) {
    %c0_i32 = arith.constant 0 : i32
    %c0_i32_0 = arith.constant 0 : i32
    %c0_i32_1 = arith.constant 0 : i32
    return %c0_i32, %c0_i32_0 : i32, i32
  }
  func.func @transform_4(%arg0: i32) -> (i32, i32) {
    %c0_i32 = arith.constant 0 : i32
    %c0_i32_0 = arith.constant 0 : i32
    %c0_i32_1 = arith.constant 0 : i32
    return %c0_i32, %c0_i32_0 : i32, i32
  }
  func.func @transform_5(%arg0: i32) -> (i32, i32) {
    %c0_i32 = arith.constant 0 : i32
    %c0_i32_0 = arith.constant 0 : i32
    %c0_i32_1 = arith.constant 0 : i32
    return %c0_i32, %c0_i32_0 : i32, i32
  }
  func.func @transform_6(%arg0: i32) -> (i32, i32) {
    %c0_i32 = arith.constant 0 : i32
    %c0_i32_0 = arith.constant 0 : i32
    %c0_i32_1 = arith.constant 0 : i32
    return %c0_i32, %c0_i32_0 : i32, i32
  }
  func.func @transform_7(%arg0: i32) -> (i32, i32) {
    %c0_i32 = arith.constant 0 : i32
    %c0_i32_0 = arith.constant 0 : i32
    %c0_i32_1 = arith.constant 0 : i32
    return %c0_i32, %c0_i32_0 : i32, i32
  }
  func.func @transform_8(%arg0: i32) -> (i32, i32) {
    %c0_i32 = arith.constant 0 : i32
    %c0_i32_0 = arith.constant 0 : i32
    %c0_i32_1 = arith.constant 0 : i32
    return %c0_i32, %c0_i32_0 : i32, i32
  }
  func.func @transform_9(%arg0: i32) -> (i32, i32) {
    %c0_i32 = arith.constant 0 : i32
    %c0_i32_0 = arith.constant 0 : i32
    %c0_i32_1 = arith.constant 0 : i32
    return %c0_i32, %c0_i32_0 : i32, i32
  }
  func.func @transform_10(%arg0: i32) -> (i32, i32) {
    %c0_i32 = arith.constant 0 : i32
    %c0_i32_0 = arith.constant 0 : i32
    %c0_i32_1 = arith.constant 0 : i32
    return %c0_i32, %c0_i32_0 : i32, i32
  }
  func.func @transform_11(%arg0: i32) -> (i32, i32) {
    %c0_i32 = arith.constant 0 : i32
    %c0_i32_0 = arith.constant 0 : i32
    %c0_i32_1 = arith.constant 0 : i32
    return %c0_i32, %c0_i32_0 : i32, i32
  }
  func.func @transform_12(%arg0: i32) -> (i32, i32, i32) {
    %c0_i32 = arith.constant 0 : i32
    %c0_i32_0 = arith.constant 0 : i32
    %c0_i32_1 = arith.constant 0 : i32
    return %arg0, %c0_i32, %c0_i32_0 : i32, i32, i32
  }
}

</mosaic_0001>

<llo_original>
// kernel: tpu_custom_call.1
$region0: #{tpu_custom_call.1}
  #allocation0 [shape = 'u32[]', space=smem, size = 0x4, offset = 0x4, fixed_abs, tag = 'smem constant byte address 0x4 - core index']
  #allocation1 [shape = 'u32[72,128]{1,0:T(1,128)}', space=vmem, size = 0x9000, scoped, tag = 'internal scratch']
  #allocation2 [shape = 'bf16[256,640]{1,0:T(8,128)(2,1)}', space=vmem, size = 0x50000, scoped, tag = 'scratch operand']
  %s0 = inlined_call_operand.vmem [shape: bf16[2,5,256,80], index: 0, kind: input, shape index: {}]
  %s1 = inlined_call_operand.vmem [shape: bf16[256,256], index: 1, kind: input, shape index: {}]
  %s2 = inlined_call_operand.vmem [shape: bf16[256,256], index: 2, kind: input, shape index: {}]
  %s3 = inlined_call_operand.vmem [shape: bf16[80,32], index: 3, kind: input, shape index: {}]
  %s4 = inlined_call_operand.vmem [shape: bf16[80,32], index: 4, kind: input, shape index: {}]
  %s5 = inlined_call_operand.vmem [shape: bf16[32,80], index: 5, kind: input, shape index: {}]
  %s6 = inlined_call_operand.vmem [shape: bf16[32,80], index: 6, kind: input, shape index: {}]
  %s7 = inlined_call_operand.vmem [shape: bf16[80,81], index: 7, kind: input, shape index: {}]
  %s8 = inlined_call_operand.vmem [shape: bf16[80,81], index: 8, kind: input, shape index: {}]
  %s9 = inlined_call_operand.vmem [shape: f32[1,80], index: 9, kind: input, shape index: {}]
  %s10 = inlined_call_operand.vmem [shape: bf16[640,400], index: 10, kind: input, shape index: {}]
  %s11 = inlined_call_operand.vmem [shape: f32[1,400], index: 11, kind: input, shape index: {}]
  %s12 = inlined_call_operand.vmem [shape: f32[2,256,400], index: 12, kind: output, shape index: {}]
  %s13 = sld [smem:[#allocation0]]
  $region81: #{tpu_custom_call.1} parent=0
    _
  %s15 = ssub.s32 1, %s13
  %s16 = scalar_select 0, %s15, %s13
  loop: start=0, step=1, limit=4
  $region2: #{tpu_custom_call.1} parent=0 // loop_pre_header
    _
  $region3: #{tpu_custom_call.1} parent=0 // loop_header
    %s18 = sphi 0, %s22
    %p19 = scmp.ge.s32.totalorder %s18, 4
    %s28 = sphi 0, %s30
    %s31 = sphi 0, %s28
    %s32 = sphi 0, %s31
    %s48 = sphi 0, %s32
    %s52 = sphi 0, %s52
    %s54 = sphi 0, %s52
    %s55 = sphi 0, %s54
    %s69 = sphi 0, %s55
    %s73 = sphi 0, %s73
    %s75 = sphi 0, %s73
    %s76 = sphi 0, %s75
    %s90 = sphi 0, %s76
    %s94 = sphi 0, %s94
    %s96 = sphi 0, %s94
    %s97 = sphi 0, %s96
    %s111 = sphi 0, %s97
    %s115 = sphi 0, %s115
    %s117 = sphi 0, %s115
    %s118 = sphi 0, %s117
    %s132 = sphi 0, %s118
    %s136 = sphi 0, %s136
    %s138 = sphi 0, %s136
    %s139 = sphi 0, %s138
    %s153 = sphi 0, %s139
    %s157 = sphi 0, %s157
    %s159 = sphi 0, %s157
    %s160 = sphi 0, %s159
    %s174 = sphi 0, %s160
    %s178 = sphi 0, %s178
    %s180 = sphi 0, %s178
    %s181 = sphi 0, %s180
    %s195 = sphi 0, %s181
    %s199 = sphi 0, %s199
    %s201 = sphi 0, %s199
    %s202 = sphi 0, %s201
    %s216 = sphi 0, %s202
    %s220 = sphi 0, %s220
    %s222 = sphi 0, %s220
    %s223 = sphi 0, %s222
    %s237 = sphi 0, %s223
    %s241 = sphi 0, %s241
    %s243 = sphi 0, %s241
    %s244 = sphi 0, %s243
    %s258 = sphi 0, %s244
    %s262 = sphi 0, %s262
    %s264 = sphi 0, %s262
    %s265 = sphi 0, %s264
    %s279 = sphi 0, %s265
    %s285 = sphi 0, %s287
    %s288 = sphi 0, %s285
    %s289 = sphi 0, %s288
    %s305 = sphi 0, %s289
  $region4: #{tpu_custom_call.1} parent=0 // loop_header_branch
    %21 = sbr.rel (%p19) target = $region8
  $region5: #{tpu_custom_call.1} parent=0 // loop_body
    %s23 = ssub.s32 %s18, 1
    %s24 = ssub.s32 %s18, 2
    %s25 = sadd.s32 %s18, 1
    %s26 = ssub.s32 %s18, %s25
    %p27 = scmp.eq.s32.totalorder %s26, 0
    %s29 = sadd.s32 %s28, 1
    %s30 = scalar_select %p27, %s28, %s29
    %p33 = pneg %p27
    %p34 = scmp.eq.s32.totalorder %s18, 1
    %p35 = por %p33, %p34
    %p36 = scmp.ne.s32.totalorder %s28, %s31
    %p37 = scmp.eq.s32.totalorder %s18, 0
    %p38 = por %p36, %p37
    %p39 = scmp.ne.s32.totalorder %s28, %s31
    %p40 = scmp.eq.s32.totalorder %s23, 1
    %p41 = por %p39, %p40
    %p42 = scmp.ne.s32.totalorder %s31, %s32
    %p43 = scmp.eq.s32.totalorder %s23, 0
    %p44 = por %p42, %p43
    %p45 = scmp.ne.s32.totalorder %s31, %s32
    %p46 = scmp.eq.s32.totalorder %s24, 1
    %p47 = por %p45, %p46
    %p49 = scmp.ne.s32.totalorder %s32, %s48
    %p50 = scmp.eq.s32.totalorder %s24, 0
    %p51 = por %p49, %p50
    %s53 = sadd.s32 %s52, 1
    %p56 = scmp.eq.s32.totalorder %s18, 1
    %p57 = scmp.ne.s32.totalorder %s52, %s54
    %p58 = scmp.eq.s32.totalorder %s18, 0
    %p59 = por %p57, %p58
    %p60 = scmp.ne.s32.totalorder %s52, %s54
    %p61 = scmp.eq.s32.totalorder %s23, 1
    %p62 = por %p60, %p61
    %p63 = scmp.ne.s32.totalorder %s54, %s55
    %p64 = scmp.eq.s32.totalorder %s23, 0
    %p65 = por %p63, %p64
    %p66 = scmp.ne.s32.totalorder %s54, %s55
    %p67 = scmp.eq.s32.totalorder %s24, 1
    %p68 = por %p66, %p67
    %p70 = scmp.ne.s32.totalorder %s55, %s69
    %p71 = scmp.eq.s32.totalorder %s24, 0
    %p72 = por %p70, %p71
    %s74 = sadd.s32 %s73, 1
    %p77 = scmp.eq.s32.totalorder %s18, 1
    %p78 = scmp.ne.s32.totalorder %s73, %s75
    %p79 = scmp.eq.s32.totalorder %s18, 0
    %p80 = por %p78, %p79
    %p81 = scmp.ne.s32.totalorder %s73, %s75
    %p82 = scmp.eq.s32.totalorder %s23, 1
    %p83 = por %p81, %p82
    %p84 = scmp.ne.s32.totalorder %s75, %s76
    %p85 = scmp.eq.s32.totalorder %s23, 0
    %p86 = por %p84, %p85
    %p87 = scmp.ne.s32.totalorder %s75, %s76
    %p88 = scmp.eq.s32.totalorder %s24, 1
    %p89 = por %p87, %p88
    %p91 = scmp.ne.s32.totalorder %s76, %s90
    %p92 = scmp.eq.s32.totalorder %s24, 0
    %p93 = por %p91, %p92
    %s95 = sadd.s32 %s94, 1
    %p98 = scmp.eq.s32.totalorder %s18, 1
    %p99 = scmp.ne.s32.totalorder %s94, %s96
    %p100 = scmp.eq.s32.totalorder %s18, 0
    %p101 = por %p99, %p100
    %p102 = scmp.ne.s32.totalorder %s94, %s96
    %p103 = scmp.eq.s32.totalorder %s23, 1
    %p104 = por %p102, %p103
    %p105 = scmp.ne.s32.totalorder %s96, %s97
    %p106 = scmp.eq.s32.totalorder %s23, 0
    %p107 = por %p105, %p106
    %p108 = scmp.ne.s32.totalorder %s96, %s97
    %p109 = scmp.eq.s32.totalorder %s24, 1
    %p110 = por %p108, %p109
    %p112 = scmp.ne.s32.totalorder %s97, %s111
    %p113 = scmp.eq.s32.totalorder %s24, 0
    %p114 = por %p112, %p113
    %s116 = sadd.s32 %s115, 1
    %p119 = scmp.eq.s32.totalorder %s18, 1
    %p120 = scmp.ne.s32.totalorder %s115, %s117
    %p121 = scmp.eq.s32.totalorder %s18, 0
    %p122 = por %p120, %p121
    %p123 = scmp.ne.s32.totalorder %s115, %s117
    %p124 = scmp.eq.s32.totalorder %s23, 1
    %p125 = por %p123, %p124
    %p126 = scmp.ne.s32.totalorder %s117, %s118
    %p127 = scmp.eq.s32.totalorder %s23, 0
    %p128 = por %p126, %p127
    %p129 = scmp.ne.s32.totalorder %s117, %s118
    %p130 = scmp.eq.s32.totalorder %s24, 1
    %p131 = por %p129, %p130
    %p133 = scmp.ne.s32.totalorder %s118, %s132
    %p134 = scmp.eq.s32.totalorder %s24, 0
    %p135 = por %p133, %p134
    %s137 = sadd.s32 %s136, 1
    %p140 = scmp.eq.s32.totalorder %s18, 1
    %p141 = scmp.ne.s32.totalorder %s136, %s138
    %p142 = scmp.eq.s32.totalorder %s18, 0
    %p143 = por %p141, %p142
    %p144 = scmp.ne.s32.totalorder %s136, %s138
    %p145 = scmp.eq.s32.totalorder %s23, 1
    %p146 = por %p144, %p145
    %p147 = scmp.ne.s32.totalorder %s138, %s139
    %p148 = scmp.eq.s32.totalorder %s23, 0
    %p149 = por %p147, %p148
    %p150 = scmp.ne.s32.totalorder %s138, %s139
    %p151 = scmp.eq.s32.totalorder %s24, 1
    %p152 = por %p150, %p151
    %p154 = scmp.ne.s32.totalorder %s139, %s153
    %p155 = scmp.eq.s32.totalorder %s24, 0
    %p156 = por %p154, %p155
    %s158 = sadd.s32 %s157, 1
    %p161 = scmp.eq.s32.totalorder %s18, 1
    %p162 = scmp.ne.s32.totalorder %s157, %s159
    %p163 = scmp.eq.s32.totalorder %s18, 0
    %p164 = por %p162, %p163
    %p165 = scmp.ne.s32.totalorder %s157, %s159
    %p166 = scmp.eq.s32.totalorder %s23, 1
    %p167 = por %p165, %p166
    %p168 = scmp.ne.s32.totalorder %s159, %s160
    %p169 = scmp.eq.s32.totalorder %s23, 0
    %p170 = por %p168, %p169
    %p171 = scmp.ne.s32.totalorder %s159, %s160
    %p172 = scmp.eq.s32.totalorder %s24, 1
    %p173 = por %p171, %p172
    %p175 = scmp.ne.s32.totalorder %s160, %s174
    %p176 = scmp.eq.s32.totalorder %s24, 0
    %p177 = por %p175, %p176
    %s179 = sadd.s32 %s178, 1
    %p182 = scmp.eq.s32.totalorder %s18, 1
    %p183 = scmp.ne.s32.totalorder %s178, %s180
    %p184 = scmp.eq.s32.totalorder %s18, 0
    %p185 = por %p183, %p184
    %p186 = scmp.ne.s32.totalorder %s178, %s180
    %p187 = scmp.eq.s32.totalorder %s23, 1
    %p188 = por %p186, %p187
    %p189 = scmp.ne.s32.totalorder %s180, %s181
    %p190 = scmp.eq.s32.totalorder %s23, 0
    %p191 = por %p189, %p190
    %p192 = scmp.ne.s32.totalorder %s180, %s181
    %p193 = scmp.eq.s32.totalorder %s24, 1
    %p194 = por %p192, %p193
    %p196 = scmp.ne.s32.totalorder %s181, %s195
    %p197 = scmp.eq.s32.totalorder %s24, 0
    %p198 = por %p196, %p197
    %s200 = sadd.s32 %s199, 1
    %p203 = scmp.eq.s32.totalorder %s18, 1
    %p204 = scmp.ne.s32.totalorder %s199, %s201
    %p205 = scmp.eq.s32.totalorder %s18, 0
    %p206 = por %p204, %p205
    %p207 = scmp.ne.s32.totalorder %s199, %s201
    %p208 = scmp.eq.s32.totalorder %s23, 1
    %p209 = por %p207, %p208
    %p210 = scmp.ne.s32.totalorder %s201, %s202
    %p211 = scmp.eq.s32.totalorder %s23, 0
    %p212 = por %p210, %p211
    %p213 = scmp.ne.s32.totalorder %s201, %s202
    %p214 = scmp.eq.s32.totalorder %s24, 1
    %p215 = por %p213, %p214
    %p217 = scmp.ne.s32.totalorder %s202, %s216
    %p218 = scmp.eq.s32.totalorder %s24, 0
    %p219 = por %p217, %p218
    %s221 = sadd.s32 %s220, 1
    %p224 = scmp.eq.s32.totalorder %s18, 1
    %p225 = scmp.ne.s32.totalorder %s220, %s222
    %p226 = scmp.eq.s32.totalorder %s18, 0
    %p227 = por %p225, %p226
    %p228 = scmp.ne.s32.totalorder %s220, %s222
    %p229 = scmp.eq.s32.totalorder %s23, 1
    %p230 = por %p228, %p229
    %p231 = scmp.ne.s32.totalorder %s222, %s223
    %p232 = scmp.eq.s32.totalorder %s23, 0
    %p233 = por %p231, %p232
    %p234 = scmp.ne.s32.totalorder %s222, %s223
    %p235 = scmp.eq.s32.totalorder %s24, 1
    %p236 = por %p234, %p235
    %p238 = scmp.ne.s32.totalorder %s223, %s237
    %p239 = scmp.eq.s32.totalorder %s24, 0
    %p240 = por %p238, %p239
    %s242 = sadd.s32 %s241, 1
    %p245 = scmp.eq.s32.totalorder %s18, 1
    %p246 = scmp.ne.s32.totalorder %s241, %s243
    %p247 = scmp.eq.s32.totalorder %s18, 0
    %p248 = por %p246, %p247
    %p249 = scmp.ne.s32.totalorder %s241, %s243
    %p250 = scmp.eq.s32.totalorder %s23, 1
    %p251 = por %p249, %p250
    %p252 = scmp.ne.s32.totalorder %s243, %s244
    %p253 = scmp.eq.s32.totalorder %s23, 0
    %p254 = por %p252, %p253
    %p255 = scmp.ne.s32.totalorder %s243, %s244
    %p256 = scmp.eq.s32.totalorder %s24, 1
    %p257 = por %p255, %p256
    %p259 = scmp.ne.s32.totalorder %s244, %s258
    %p260 = scmp.eq.s32.totalorder %s24, 0
    %p261 = por %p259, %p260
    %s263 = sadd.s32 %s262, 1
    %p266 = scmp.eq.s32.totalorder %s18, 1
    %p267 = scmp.ne.s32.totalorder %s262, %s264
    %p268 = scmp.eq.s32.totalorder %s18, 0
    %p269 = por %p267, %p268
    %p270 = scmp.ne.s32.totalorder %s262, %s264
    %p271 = scmp.eq.s32.totalorder %s23, 1
    %p272 = por %p270, %p271
    %p273 = scmp.ne.s32.totalorder %s264, %s265
    %p274 = scmp.eq.s32.totalorder %s23, 0
    %p275 = por %p273, %p274
    %p276 = scmp.ne.s32.totalorder %s264, %s265
    %p277 = scmp.eq.s32.totalorder %s24, 1
    %p278 = por %p276, %p277
    %p280 = scmp.ne.s32.totalorder %s265, %s279
    %p281 = scmp.eq.s32.totalorder %s24, 0
    %p282 = por %p280, %p281
    %s283 = ssub.s32 %s18, %s25
    %p284 = scmp.eq.s32.totalorder %s283, 0
    %s286 = sadd.s32 %s285, 1
    %s287 = scalar_select %p284, %s285, %s286
    %p290 = pneg %p284
    %p291 = scmp.eq.s32.totalorder %s18, 1
    %p292 = por %p290, %p291
    %p293 = scmp.ne.s32.totalorder %s285, %s288
    %p294 = scmp.eq.s32.totalorder %s18, 0
    %p295 = por %p293, %p294
    %p296 = scmp.ne.s32.totalorder %s285, %s288
    %p297 = scmp.eq.s32.totalorder %s23, 1
    %p298 = por %p296, %p297
    %p299 = scmp.ne.s32.totalorder %s288, %s289
    %p300 = scmp.eq.s32.totalorder %s23, 0
    %p301 = por %p299, %p300
    %p302 = scmp.ne.s32.totalorder %s288, %s289
    %p303 = scmp.eq.s32.totalorder %s24, 1
    %p304 = por %p302, %p303
    %p306 = scmp.ne.s32.totalorder %s289, %s305
    %p307 = scmp.eq.s32.totalorder %s24, 0
    %p308 = por %p306, %p307
    %p309 = scmp.le.s32.totalorder 1, %s18
    %p310 = scmp.lt.s32.totalorder %s18, 3
    %p311 = pnand %p309, %p310
    %p312 = pneg %p311
    // Predicated region
    $region9: #{tpu_custom_call.1} parent=5 // pred_check
      _
    $region10: #{tpu_custom_call.1} parent=5 // pred_check_branch
      %314 = sbr.rel (%p311) target = $region12
    $region11: #{tpu_custom_call.1} parent=5 // pred_region
      %s315 = ssub.s32 %s18, 1
      // Predicated region
      $region13: #{tpu_custom_call.1} parent=11 // pred_check
        %p316 = pneg %p65
      $region14: #{tpu_custom_call.1} parent=11 // pred_check_branch
        %318 = sbr.rel (%p316) target = $region16
      $region15: #{tpu_custom_call.1} parent=11 // pred_region
        _
      $region16: #{tpu_custom_call.1} parent=11 // pred_fallthru
        _
      // Predicated region
      $region17: #{tpu_custom_call.1} parent=11 // pred_check
        %p319 = pneg %p86
      $region18: #{tpu_custom_call.1} parent=11 // pred_check_branch
        %321 = sbr.rel (%p319) target = $region20
      $region19: #{tpu_custom_call.1} parent=11 // pred_region
        _
      $region20: #{tpu_custom_call.1} parent=11 // pred_fallthru
        _
      // Predicated region
      $region21: #{tpu_custom_call.1} parent=11 // pred_check
        %p322 = pneg %p107
      $region22: #{tpu_custom_call.1} parent=11 // pred_check_branch
        %324 = sbr.rel (%p322) target = $region24
      $region23: #{tpu_custom_call.1} parent=11 // pred_region
        _
      $region24: #{tpu_custom_call.1} parent=11 // pred_fallthru
        _
      // Predicated region
      $region25: #{tpu_custom_call.1} parent=11 // pred_check
        %p325 = pneg %p128
      $region26: #{tpu_custom_call.1} parent=11 // pred_check_branch
        %327 = sbr.rel (%p325) target = $region28
      $region27: #{tpu_custom_call.1} parent=11 // pred_region
        _
      $region28: #{tpu_custom_call.1} parent=11 // pred_fallthru
        _
      // Predicated region
      $region29: #{tpu_custom_call.1} parent=11 // pred_check
        %p328 = pneg %p149
      $region30: #{tpu_custom_call.1} parent=11 // pred_check_branch
        %330 = sbr.rel (%p328) target = $region32
      $region31: #{tpu_custom_call.1} parent=11 // pred_region
        _
      $region32: #{tpu_custom_call.1} parent=11 // pred_fallthru
        _
      // Predicated region
      $region33: #{tpu_custom_call.1} parent=11 // pred_check
        %p331 = pneg %p170
      $region34: #{tpu_custom_call.1} parent=11 // pred_check_branch
        %333 = sbr.rel (%p331) target = $region36
      $region35: #{tpu_custom_call.1} parent=11 // pred_region
        _
      $region36: #{tpu_custom_call.1} parent=11 // pred_fallthru
        _
      // Predicated region
      $region37: #{tpu_custom_call.1} parent=11 // pred_check
        %p334 = pneg %p191
      $region38: #{tpu_custom_call.1} parent=11 // pred_check_branch
        %336 = sbr.rel (%p334) target = $region40
      $region39: #{tpu_custom_call.1} parent=11 // pred_region
        _
      $region40: #{tpu_custom_call.1} parent=11 // pred_fallthru
        _
      // Predicated region
      $region41: #{tpu_custom_call.1} parent=11 // pred_check
        %p337 = pneg %p212
      $region42: #{tpu_custom_call.1} parent=11 // pred_check_branch
        %339 = sbr.rel (%p337) target = $region44
      $region43: #{tpu_custom_call.1} parent=11 // pred_region
        _
      $region44: #{tpu_custom_call.1} parent=11 // pred_fallthru
        _
      // Predicated region
      $region45: #{tpu_custom_call.1} parent=11 // pred_check
        %p340 = pneg %p233
      $region46: #{tpu_custom_call.1} parent=11 // pred_check_branch
        %342 = sbr.rel (%p340) target = $region48
      $region47: #{tpu_custom_call.1} parent=11 // pred_region
        _
      $region48: #{tpu_custom_call.1} parent=11 // pred_fallthru
        _
      // Predicated region
      $region49: #{tpu_custom_call.1} parent=11 // pred_check
        %p343 = pneg %p254
      $region50: #{tpu_custom_call.1} parent=11 // pred_check_branch
        %345 = sbr.rel (%p343) target = $region52
      $region51: #{tpu_custom_call.1} parent=11 // pred_region
        _
      $region52: #{tpu_custom_call.1} parent=11 // pred_fallthru
        _
      // Predicated region
      $region53: #{tpu_custom_call.1} parent=11 // pred_check
        %p346 = pneg %p275
      $region54: #{tpu_custom_call.1} parent=11 // pred_check_branch
        %348 = sbr.rel (%p346) target = $region56
      $region55: #{tpu_custom_call.1} parent=11 // pred_region
        _
      $region56: #{tpu_custom_call.1} parent=11 // pred_fallthru
        _
    $region12: #{tpu_custom_call.1} parent=5 // pred_fallthru
      _
    %p349 = scmp.lt.s32.totalorder %s18, 2
    // Predicated region
    $region57: #{tpu_custom_call.1} parent=5 // pred_check
      %p350 = pneg %p349
    $region58: #{tpu_custom_call.1} parent=5 // pred_check_branch
      %352 = sbr.rel (%p350) target = $region60
    $region59: #{tpu_custom_call.1} parent=5 // pred_region
      // Predicated region
      $region61: #{tpu_custom_call.1} parent=59 // pred_check
        %p353 = pneg %p38
      $region62: #{tpu_custom_call.1} parent=59 // pred_check_branch
        %355 = sbr.rel (%p353) target = $region64
      $region63: #{tpu_custom_call.1} parent=59 // pred_region
        %p356 = scmp.lt.s32.totalorder %s18, 1
        %s357 = scalar_select %p356, %s18, 1
        %s358 = smul.addr %s357, 160
        %s359 = smul.addr %s358, 4
        %s360 = scalar_lea.vmem %s0, %s359
      $region64: #{tpu_custom_call.1} parent=59 // pred_fallthru
        _
    $region60: #{tpu_custom_call.1} parent=5 // pred_fallthru
      _
    %p361 = scmp.le.s32.totalorder 1, %s18
    %p362 = scmp.lt.s32.totalorder %s18, 3
    %p363 = pnand %p361, %p362
    %p364 = pneg %p363
    // Predicated region
    $region65: #{tpu_custom_call.1} parent=5 // pred_check
      _
    $region66: #{tpu_custom_call.1} parent=5 // pred_check_branch
      %366 = sbr.rel (%p363) target = $region68
    $region67: #{tpu_custom_call.1} parent=5 // pred_region
      %s367 = ssub.s32 %s18, 1
      %p368 = scmp.lt.s32.totalorder %s23, 1
      %s369 = scalar_select %p368, %s23, 1
      %s370 = smul.addr %s369, 160
      %s371 = smul.addr %s370, 4
      %s372 = scalar_lea.vmem %s0, %s371
      %p373 = pneg %p44
      %p374 = pneg %p41
      %p375 = pneg %p65
      %p376 = pneg %p62
      %p377 = pneg %p86
      %p378 = pneg %p83
      %p379 = pneg %p107
      %p380 = pneg %p104
      %p381 = pneg %p128
      %p382 = pneg %p125
      %p383 = pneg %p149
      %p384 = pneg %p146
      %p385 = pneg %p170
      %p386 = pneg %p167
      %p387 = pneg %p191
      %p388 = pneg %p188
      %p389 = pneg %p212
      %p390 = pneg %p209
      %p391 = pneg %p233
      %p392 = pneg %p230
      %p393 = pneg %p254
      %p394 = pneg %p251
      %p395 = pneg %p275
      %p396 = pneg %p272
      %p397 = pneg %p301
      %p398 = pneg %p298
      %p399 = scmp.lt.s32.totalorder %s23, 1
      %s400 = scalar_select %p399, %s23, 1
      %s401 = smul.addr %s400, 128
      %s402 = smul.addr %s401, 8
      %s403 = scalar_lea.vmem %s12, %s402
      %p404 = scmp.lt.s32.totalorder %s23, 1
      %s405 = scalar_select %p404, %s23, 1
      %s406 = smul.addr %s405, 160
      %s407 = smul.addr %s406, 4
      %s408 = scalar_lea.vmem %s0, %s407
      %p409 = scmp.lt.s32.totalorder %s23, 1
      %s410 = scalar_select %p409, %s23, 1
      %s411 = smul.addr %s410, 128
      %s412 = smul.addr %s411, 8
      %s413 = scalar_lea.vmem %s12, %s412
      %s415 = scalar_lea.vmem %s408, 256
      %v416 = vld [vmem:[%s415] sm:$0xf]
      %v417 = vld [vmem:[%s415 + $0x4] sm:$0xf]
      %v418 = vld [vmem:[%s415 + $0x8] sm:$0xf]
      %v419 = vld [vmem:[%s415 + $0xc] sm:$0xf]
      %v420 = vld [vmem:[%s415 + $0x10] sm:$0xf]
      %v421 = vld [vmem:[%s415 + $0x14] sm:$0xf]
      %v422 = vld [vmem:[%s415 + $0x18] sm:$0xf]
      %v423 = vld [vmem:[%s415 + $0x1c] sm:$0xf]
      %v424 = vld [vmem:[%s415 + $0x20] sm:$0xf]
      %v425 = vld [vmem:[%s415 + $0x24] sm:$0xf]
      %v426 = vld [vmem:[%s415 + $0x28] sm:$0xf]
      %v427 = vld [vmem:[%s415 + $0x2c] sm:$0xf]
      %v428 = vld [vmem:[%s415 + $0x30] sm:$0xf]
      %v429 = vld [vmem:[%s415 + $0x34] sm:$0xf]
      %v430 = vld [vmem:[%s415 + $0x38] sm:$0xf]
      %v431 = vld [vmem:[%s415 + $0x3c] sm:$0xf]
      %v432 = vld [vmem:[%s415 + $0x40] sm:$0xf]
      %v433 = vld [vmem:[%s415 + $0x44] sm:$0xf]
      %v434 = vld [vmem:[%s415 + $0x48] sm:$0xf]
      %v435 = vld [vmem:[%s415 + $0x4c] sm:$0xf]
      %v436 = vld [vmem:[%s415 + $0x50] sm:$0xf]
      %v437 = vld [vmem:[%s415 + $0x54] sm:$0xf]
      %v438 = vld [vmem:[%s415 + $0x58] sm:$0xf]
      %v439 = vld [vmem:[%s415 + $0x5c] sm:$0xf]
      %v440 = vld [vmem:[%s415 + $0x60] sm:$0xf]
      %v441 = vld [vmem:[%s415 + $0x64] sm:$0xf]
      %v442 = vld [vmem:[%s415 + $0x68] sm:$0xf]
      %v443 = vld [vmem:[%s415 + $0x6c] sm:$0xf]
      %v444 = vld [vmem:[%s415 + $0x70] sm:$0xf]
      %v445 = vld [vmem:[%s415 + $0x74] sm:$0xf]
      %v446 = vld [vmem:[%s415 + $0x78] sm:$0xf]
      %v447 = vld [vmem:[%s415 + $0x7c] sm:$0xf]
      %v448 = vld [vmem:[%s408] sm:$0xf]
      %v449 = vld [vmem:[%s408 + $0x4] sm:$0xf]
      %v450 = vld [vmem:[%s408 + $0x8] sm:$0xf]
      %v451 = vld [vmem:[%s408 + $0xc] sm:$0xf]
      %v452 = vld [vmem:[%s408 + $0x10] sm:$0xf]
      %v453 = vld [vmem:[%s408 + $0x14] sm:$0xf]
      %v454 = vld [vmem:[%s408 + $0x18] sm:$0xf]
      %v455 = vld [vmem:[%s408 + $0x1c] sm:$0xf]
      %v456 = vld [vmem:[%s408 + $0x20] sm:$0xf]
      %v457 = vld [vmem:[%s408 + $0x24] sm:$0xf]
      %v458 = vld [vmem:[%s408 + $0x28] sm:$0xf]
      %v459 = vld [vmem:[%s408 + $0x2c] sm:$0xf]
      %v460 = vld [vmem:[%s408 + $0x30] sm:$0xf]
      %v461 = vld [vmem:[%s408 + $0x34] sm:$0xf]
      %v462 = vld [vmem:[%s408 + $0x38] sm:$0xf]
      %v463 = vld [vmem:[%s408 + $0x3c] sm:$0xf]
      %v464 = vld [vmem:[%s408 + $0x40] sm:$0xf]
      %v465 = vld [vmem:[%s408 + $0x44] sm:$0xf]
      %v466 = vld [vmem:[%s408 + $0x48] sm:$0xf]
      %v467 = vld [vmem:[%s408 + $0x4c] sm:$0xf]
      %v468 = vld [vmem:[%s408 + $0x50] sm:$0xf]
      %v469 = vld [vmem:[%s408 + $0x54] sm:$0xf]
      %v470 = vld [vmem:[%s408 + $0x58] sm:$0xf]
      %v471 = vld [vmem:[%s408 + $0x5c] sm:$0xf]
      %v472 = vld [vmem:[%s408 + $0x60] sm:$0xf]
      %v473 = vld [vmem:[%s408 + $0x64] sm:$0xf]
      %v474 = vld [vmem:[%s408 + $0x68] sm:$0xf]
      %v475 = vld [vmem:[%s408 + $0x6c] sm:$0xf]
      %v476 = vld [vmem:[%s408 + $0x70] sm:$0xf]
      %v477 = vld [vmem:[%s408 + $0x74] sm:$0xf]
      %v478 = vld [vmem:[%s408 + $0x78] sm:$0xf]
      %v479 = vld [vmem:[%s408 + $0x7c] sm:$0xf]
      %s480 = scalar_lea.vmem %s408, 128
      %v481 = vld [vmem:[%s480] sm:$0xf]
      %v482 = vld [vmem:[%s480 + $0x4] sm:$0xf]
      %v483 = vld [vmem:[%s480 + $0x8] sm:$0xf]
      %v484 = vld [vmem:[%s480 + $0xc] sm:$0xf]
      %v485 = vld [vmem:[%s480 + $0x10] sm:$0xf]
      %v486 = vld [vmem:[%s480 + $0x14] sm:$0xf]
      %v487 = vld [vmem:[%s480 + $0x18] sm:$0xf]
      %v488 = vld [vmem:[%s480 + $0x1c] sm:$0xf]
      %v489 = vld [vmem:[%s480 + $0x20] sm:$0xf]
      %v490 = vld [vmem:[%s480 + $0x24] sm:$0xf]
      %v491 = vld [vmem:[%s480 + $0x28] sm:$0xf]
      %v492 = vld [vmem:[%s480 + $0x2c] sm:$0xf]
      %v493 = vld [vmem:[%s480 + $0x30] sm:$0xf]
      %v494 = vld [vmem:[%s480 + $0x34] sm:$0xf]
      %v495 = vld [vmem:[%s480 + $0x38] sm:$0xf]
      %v496 = vld [vmem:[%s480 + $0x3c] sm:$0xf]
      %v497 = vld [vmem:[%s480 + $0x40] sm:$0xf]
      %v498 = vld [vmem:[%s480 + $0x44] sm:$0xf]
      %v499 = vld [vmem:[%s480 + $0x48] sm:$0xf]
      %v500 = vld [vmem:[%s480 + $0x4c] sm:$0xf]
      %v501 = vld [vmem:[%s480 + $0x50] sm:$0xf]
      %v502 = vld [vmem:[%s480 + $0x54] sm:$0xf]
      %v503 = vld [vmem:[%s480 + $0x58] sm:$0xf]
      %v504 = vld [vmem:[%s480 + $0x5c] sm:$0xf]
      %v505 = vld [vmem:[%s480 + $0x60] sm:$0xf]
      %v506 = vld [vmem:[%s480 + $0x64] sm:$0xf]
      %v507 = vld [vmem:[%s480 + $0x68] sm:$0xf]
      %v508 = vld [vmem:[%s480 + $0x6c] sm:$0xf]
      %v509 = vld [vmem:[%s480 + $0x70] sm:$0xf]
      %v510 = vld [vmem:[%s480 + $0x74] sm:$0xf]
      %v511 = vld [vmem:[%s480 + $0x78] sm:$0xf]
      %v512 = vld [vmem:[%s480 + $0x7c] sm:$0xf]
      %s513 = scalar_lea.vmem %s408, 384
      %v514 = vld [vmem:[%s513] sm:$0xf]
      %v515 = vld [vmem:[%s513 + $0x4] sm:$0xf]
      %v516 = vld [vmem:[%s513 + $0x8] sm:$0xf]
      %v517 = vld [vmem:[%s513 + $0xc] sm:$0xf]
      %v518 = vld [vmem:[%s513 + $0x10] sm:$0xf]
      %v519 = vld [vmem:[%s513 + $0x14] sm:$0xf]
      %v520 = vld [vmem:[%s513 + $0x18] sm:$0xf]
      %v521 = vld [vmem:[%s513 + $0x1c] sm:$0xf]
      %v522 = vld [vmem:[%s513 + $0x20] sm:$0xf]
      %v523 = vld [vmem:[%s513 + $0x24] sm:$0xf]
      %v524 = vld [vmem:[%s513 + $0x28] sm:$0xf]
      %v525 = vld [vmem:[%s513 + $0x2c] sm:$0xf]
      %v526 = vld [vmem:[%s513 + $0x30] sm:$0xf]
      %v527 = vld [vmem:[%s513 + $0x34] sm:$0xf]
      %v528 = vld [vmem:[%s513 + $0x38] sm:$0xf]
      %v529 = vld [vmem:[%s513 + $0x3c] sm:$0xf]
      %v530 = vld [vmem:[%s513 + $0x40] sm:$0xf]
      %v531 = vld [vmem:[%s513 + $0x44] sm:$0xf]
      %v532 = vld [vmem:[%s513 + $0x48] sm:$0xf]
      %v533 = vld [vmem:[%s513 + $0x4c] sm:$0xf]
      %v534 = vld [vmem:[%s513 + $0x50] sm:$0xf]
      %v535 = vld [vmem:[%s513 + $0x54] sm:$0xf]
      %v536 = vld [vmem:[%s513 + $0x58] sm:$0xf]
      %v537 = vld [vmem:[%s513 + $0x5c] sm:$0xf]
      %v538 = vld [vmem:[%s513 + $0x60] sm:$0xf]
      %v539 = vld [vmem:[%s513 + $0x64] sm:$0xf]
      %v540 = vld [vmem:[%s513 + $0x68] sm:$0xf]
      %v541 = vld [vmem:[%s513 + $0x6c] sm:$0xf]
      %v542 = vld [vmem:[%s513 + $0x70] sm:$0xf]
      %v543 = vld [vmem:[%s513 + $0x74] sm:$0xf]
      %v544 = vld [vmem:[%s513 + $0x78] sm:$0xf]
      %v545 = vld [vmem:[%s513 + $0x7c] sm:$0xf]
      %s546 = scalar_lea.vmem %s408, 512
      %v547 = vld [vmem:[%s546] sm:$0xf]
      %v548 = vld [vmem:[%s546 + $0x4] sm:$0xf]
      %v549 = vld [vmem:[%s546 + $0x8] sm:$0xf]
      %v550 = vld [vmem:[%s546 + $0xc] sm:$0xf]
      %v551 = vld [vmem:[%s546 + $0x10] sm:$0xf]
      %v552 = vld [vmem:[%s546 + $0x14] sm:$0xf]
      %v553 = vld [vmem:[%s546 + $0x18] sm:$0xf]
      %v554 = vld [vmem:[%s546 + $0x1c] sm:$0xf]
      %v555 = vld [vmem:[%s546 + $0x20] sm:$0xf]
      %v556 = vld [vmem:[%s546 + $0x24] sm:$0xf]
      %v557 = vld [vmem:[%s546 + $0x28] sm:$0xf]
      %v558 = vld [vmem:[%s546 + $0x2c] sm:$0xf]
      %v559 = vld [vmem:[%s546 + $0x30] sm:$0xf]
      %v560 = vld [vmem:[%s546 + $0x34] sm:$0xf]
      %v561 = vld [vmem:[%s546 + $0x38] sm:$0xf]
      %v562 = vld [vmem:[%s546 + $0x3c] sm:$0xf]
      %v563 = vld [vmem:[%s546 + $0x40] sm:$0xf]
      %v564 = vld [vmem:[%s546 + $0x44] sm:$0xf]
      %v565 = vld [vmem:[%s546 + $0x48] sm:$0xf]
      %v566 = vld [vmem:[%s546 + $0x4c] sm:$0xf]
      %v567 = vld [vmem:[%s546 + $0x50] sm:$0xf]
      %v568 = vld [vmem:[%s546 + $0x54] sm:$0xf]
      %v569 = vld [vmem:[%s546 + $0x58] sm:$0xf]
      %v570 = vld [vmem:[%s546 + $0x5c] sm:$0xf]
      %v571 = vld [vmem:[%s546 + $0x60] sm:$0xf]
      %v572 = vld [vmem:[%s546 + $0x64] sm:$0xf]
      %v573 = vld [vmem:[%s546 + $0x68] sm:$0xf]
      %v574 = vld [vmem:[%s546 + $0x6c] sm:$0xf]
      %v575 = vld [vmem:[%s546 + $0x70] sm:$0xf]
      %v576 = vld [vmem:[%s546 + $0x74] sm:$0xf]
      %v577 = vld [vmem:[%s546 + $0x78] sm:$0xf]
      %v578 = vld [vmem:[%s546 + $0x7c] sm:$0xf]
      %579 = vst [vmem:[#allocation2] sm:$0xff] 0
      %580 = vst [vmem:[#allocation2 + $0x8] sm:$0xff] 0
      %581 = vst [vmem:[#allocation2 + $0x10] sm:$0xf] 0
      %582 = vst [vmem:[#allocation2 + $0x14] sm:$0xff] 0
      %583 = vst [vmem:[#allocation2 + $0x1c] sm:$0xff] 0
      %584 = vst [vmem:[#allocation2 + $0x24] sm:$0xf] 0
      %585 = vst [vmem:[#allocation2 + $0x28] sm:$0xff] 0
      %586 = vst [vmem:[#allocation2 + $0x30] sm:$0xff] 0
      %587 = vst [vmem:[#allocation2 + $0x38] sm:$0xf] 0
      %588 = vst [vmem:[#allocation2 + $0x3c] sm:$0xff] 0
      %589 = vst [vmem:[#allocation2 + $0x44] sm:$0xff] 0
      %590 = vst [vmem:[#allocation2 + $0x4c] sm:$0xf] 0
      %591 = vst [vmem:[#allocation2 + $0x50] sm:$0xff] 0
      %592 = vst [vmem:[#allocation2 + $0x58] sm:$0xff] 0
      %593 = vst [vmem:[#allocation2 + $0x60] sm:$0xf] 0
      %594 = vst [vmem:[#allocation2 + $0x64] sm:$0xff] 0
      %595 = vst [vmem:[#allocation2 + $0x6c] sm:$0xff] 0
      %596 = vst [vmem:[#allocation2 + $0x74] sm:$0xf] 0
      %597 = vst [vmem:[#allocation2 + $0x78] sm:$0xff] 0
      %598 = vst [vmem:[#allocation2 + $0x80] sm:$0xff] 0
      %599 = vst [vmem:[#allocation2 + $0x88] sm:$0xf] 0
      %600 = vst [vmem:[#allocation2 + $0x8c] sm:$0xff] 0
      %601 = vst [vmem:[#allocation2 + $0x94] sm:$0xff] 0
      %602 = vst [vmem:[#allocation2 + $0x9c] sm:$0xf] 0
      %603 = vst [vmem:[#allocation2 + $0xa0] sm:$0xff] 0
      %604 = vst [vmem:[#allocation2 + $0xa8] sm:$0xff] 0
      %605 = vst [vmem:[#allocation2 + $0xb0] sm:$0xf] 0
      %606 = vst [vmem:[#allocation2 + $0xb4] sm:$0xff] 0
      %607 = vst [vmem:[#allocation2 + $0xbc] sm:$0xff] 0
      %608 = vst [vmem:[#allocation2 + $0xc4] sm:$0xf] 0
      %609 = vst [vmem:[#allocation2 + $0xc8] sm:$0xff] 0
      %610 = vst [vmem:[#allocation2 + $0xd0] sm:$0xff] 0
      %611 = vst [vmem:[#allocation2 + $0xd8] sm:$0xf] 0
      %612 = vst [vmem:[#allocation2 + $0xdc] sm:$0xff] 0
      %613 = vst [vmem:[#allocation2 + $0xe4] sm:$0xff] 0
      %614 = vst [vmem:[#allocation2 + $0xec] sm:$0xf] 0
      %615 = vst [vmem:[#allocation2 + $0xf0] sm:$0xff] 0
      %616 = vst [vmem:[#allocation2 + $0xf8] sm:$0xff] 0
      %617 = vst [vmem:[#allocation2 + $0x100] sm:$0xf] 0
      %618 = vst [vmem:[#allocation2 + $0x104] sm:$0xff] 0
      %619 = vst [vmem:[#allocation2 + $0x10c] sm:$0xff] 0
      %620 = vst [vmem:[#allocation2 + $0x114] sm:$0xf] 0
      %621 = vst [vmem:[#allocation2 + $0x118] sm:$0xff] 0
      %622 = vst [vmem:[#allocation2 + $0x120] sm:$0xff] 0
      %623 = vst [vmem:[#allocation2 + $0x128] sm:$0xf] 0
      %624 = vst [vmem:[#allocation2 + $0x12c] sm:$0xff] 0
      %625 = vst [vmem:[#allocation2 + $0x134] sm:$0xff] 0
      %626 = vst [vmem:[#allocation2 + $0x13c] sm:$0xf] 0
      %627 = vst [vmem:[#allocation2 + $0x140] sm:$0xff] 0
      %628 = vst [vmem:[#allocation2 + $0x148] sm:$0xff] 0
      %629 = vst [vmem:[#allocation2 + $0x150] sm:$0xf] 0
      %630 = vst [vmem:[#allocation2 + $0x154] sm:$0xff] 0
      %631 = vst [vmem:[#allocation2 + $0x15c] sm:$0xff] 0
      %632 = vst [vmem:[#allocation2 + $0x164] sm:$0xf] 0
      %633 = vst [vmem:[#allocation2 + $0x168] sm:$0xff] 0
      %634 = vst [vmem:[#allocation2 + $0x170] sm:$0xff] 0
      %635 = vst [vmem:[#allocation2 + $0x178] sm:$0xf] 0
      %636 = vst [vmem:[#allocation2 + $0x17c] sm:$0xff] 0
      %637 = vst [vmem:[#allocation2 + $0x184] sm:$0xff] 0
      %638 = vst [vmem:[#allocation2 + $0x18c] sm:$0xf] 0
      %639 = vst [vmem:[#allocation2 + $0x190] sm:$0xff] 0
      %640 = vst [vmem:[#allocation2 + $0x198] sm:$0xff] 0
      %641 = vst [vmem:[#allocation2 + $0x1a0] sm:$0xf] 0
      %642 = vst [vmem:[#allocation2 + $0x1a4] sm:$0xff] 0
      %643 = vst [vmem:[#allocation2 + $0x1ac] sm:$0xff] 0
      %644 = vst [vmem:[#allocation2 + $0x1b4] sm:$0xf] 0
      %645 = vst [vmem:[#allocation2 + $0x1b8] sm:$0xff] 0
      %646 = vst [vmem:[#allocation2 + $0x1c0] sm:$0xff] 0
      %647 = vst [vmem:[#allocation2 + $0x1c8] sm:$0xf] 0
      %648 = vst [vmem:[#allocation2 + $0x1cc] sm:$0xff] 0
      %649 = vst [vmem:[#allocation2 + $0x1d4] sm:$0xff] 0
      %650 = vst [vmem:[#allocation2 + $0x1dc] sm:$0xf] 0
      %651 = vst [vmem:[#allocation2 + $0x1e0] sm:$0xff] 0
      %652 = vst [vmem:[#allocation2 + $0x1e8] sm:$0xff] 0
      %653 = vst [vmem:[#allocation2 + $0x1f0] sm:$0xf] 0
      %654 = vst [vmem:[#allocation2 + $0x1f4] sm:$0xff] 0
      %655 = vst [vmem:[#allocation2 + $0x1fc] sm:$0xff] 0
      %656 = vst [vmem:[#allocation2 + $0x204] sm:$0xf] 0
      %657 = vst [vmem:[#allocation2 + $0x208] sm:$0xff] 0
      %658 = vst [vmem:[#allocation2 + $0x210] sm:$0xff] 0
      %659 = vst [vmem:[#allocation2 + $0x218] sm:$0xf] 0
      %660 = vst [vmem:[#allocation2 + $0x21c] sm:$0xff] 0
      %661 = vst [vmem:[#allocation2 + $0x224] sm:$0xff] 0
      %662 = vst [vmem:[#allocation2 + $0x22c] sm:$0xf] 0
      %663 = vst [vmem:[#allocation2 + $0x230] sm:$0xff] 0
      %664 = vst [vmem:[#allocation2 + $0x238] sm:$0xff] 0
      %665 = vst [vmem:[#allocation2 + $0x240] sm:$0xf] 0
      %666 = vst [vmem:[#allocation2 + $0x244] sm:$0xff] 0
      %667 = vst [vmem:[#allocation2 + $0x24c] sm:$0xff] 0
      %668 = vst [vmem:[#allocation2 + $0x254] sm:$0xf] 0
      %669 = vst [vmem:[#allocation2 + $0x258] sm:$0xff] 0
      %670 = vst [vmem:[#allocation2 + $0x260] sm:$0xff] 0
      %671 = vst [vmem:[#allocation2 + $0x268] sm:$0xf] 0
      %672 = vst [vmem:[#allocation2 + $0x26c] sm:$0xff] 0
      %673 = vst [vmem:[#allocation2 + $0x274] sm:$0xff] 0
      %674 = vst [vmem:[#allocation2 + $0x27c] sm:$0xf] 0
      %v675 = vunpack.c.l.bf16 %v416
      %v676 = vunpack.c.l.bf16 %v417
      %v677 = vunpack.c.l.bf16 %v418
      %v678 = vunpack.c.l.bf16 %v419
      %v679 = vunpack.c.l.bf16 %v420
      %v680 = vunpack.c.l.bf16 %v421
      %v681 = vunpack.c.l.bf16 %v422
      %v682 = vunpack.c.l.bf16 %v423
      %v683 = vunpack.c.l.bf16 %v424
      %v684 = vunpack.c.l.bf16 %v425
      %v685 = vunpack.c.l.bf16 %v426
      %v686 = vunpack.c.l.bf16 %v427
      %v687 = vunpack.c.l.bf16 %v428
      %v688 = vunpack.c.l.bf16 %v429
      %v689 = vunpack.c.l.bf16 %v430
      %v690 = vunpack.c.l.bf16 %v431
      %v691 = vunpack.c.l.bf16 %v432
      %v692 = vunpack.c.l.bf16 %v433
      %v693 = vunpack.c.l.bf16 %v434
      %v694 = vunpack.c.l.bf16 %v435
      %v695 = vunpack.c.l.bf16 %v436
      %v696 = vunpack.c.l.bf16 %v437
      %v697 = vunpack.c.l.bf16 %v438
      %v698 = vunpack.c.l.bf16 %v439
      %v699 = vunpack.c.l.bf16 %v440
      %v700 = vunpack.c.l.bf16 %v441
      %v701 = vunpack.c.l.bf16 %v442
      %v702 = vunpack.c.l.bf16 %v443
      %v703 = vunpack.c.l.bf16 %v444
      %v704 = vunpack.c.l.bf16 %v445
      %v705 = vunpack.c.l.bf16 %v446
      %v706 = vunpack.c.l.bf16 %v447
      %vm707 = vcmask 654336
      %v708 = vsel %vm707, %v675, 0.0
      %v709 = vsel %vm707, %v676, 0.0
      %v710 = vadd.f32 %v708, %v709
      %v711 = vsel %vm707, %v677, 0.0
      %v712 = vadd.f32 %v710, %v711
      %v713 = vsel %vm707, %v678, 0.0
      %v714 = vadd.f32 %v712, %v713
      %v715 = vsel %vm707, %v679, 0.0
      %v716 = vadd.f32 %v714, %v715
      %v717 = vsel %vm707, %v680, 0.0
      %v718 = vadd.f32 %v716, %v717
      %v719 = vsel %vm707, %v681, 0.0
      %v720 = vadd.f32 %v718, %v719
      %v721 = vsel %vm707, %v682, 0.0
      %v722 = vadd.f32 %v720, %v721
      %v723 = vsel %vm707, %v683, 0.0
      %v724 = vadd.f32 %v722, %v723
      %v725 = vsel %vm707, %v684, 0.0
      %v726 = vadd.f32 %v724, %v725
      %v727 = vsel %vm707, %v685, 0.0
      %v728 = vadd.f32 %v726, %v727
      %v729 = vsel %vm707, %v686, 0.0
      %v730 = vadd.f32 %v728, %v729
      %v731 = vsel %vm707, %v687, 0.0
      %v732 = vadd.f32 %v730, %v731
      %v733 = vsel %vm707, %v688, 0.0
      %v734 = vadd.f32 %v732, %v733
      %v735 = vsel %vm707, %v689, 0.0
      %v736 = vadd.f32 %v734, %v735
      %v737 = vsel %vm707, %v690, 0.0
      %v738 = vadd.f32 %v736, %v737
      %v739 = vsel %vm707, %v691, 0.0
      %v740 = vadd.f32 %v738, %v739
      %v741 = vsel %vm707, %v692, 0.0
      %v742 = vadd.f32 %v740, %v741
      %v743 = vsel %vm707, %v693, 0.0
      %v744 = vadd.f32 %v742, %v743
      %v745 = vsel %vm707, %v694, 0.0
      %v746 = vadd.f32 %v744, %v745
      %v747 = vsel %vm707, %v695, 0.0
      %v748 = vadd.f32 %v746, %v747
      %v749 = vsel %vm707, %v696, 0.0
      %v750 = vadd.f32 %v748, %v749
      %v751 = vsel %vm707, %v697, 0.0
      %v752 = vadd.f32 %v750, %v751
      %v753 = vsel %vm707, %v698, 0.0
      %v754 = vadd.f32 %v752, %v753
      %v755 = vsel %vm707, %v699, 0.0
      %v756 = vadd.f32 %v754, %v755
      %v757 = vsel %vm707, %v700, 0.0
      %v758 = vadd.f32 %v756, %v757
      %v759 = vsel %vm707, %v701, 0.0
      %v760 = vadd.f32 %v758, %v759
      %v761 = vsel %vm707, %v702, 0.0
      %v762 = vadd.f32 %v760, %v761
      %v763 = vsel %vm707, %v703, 0.0
      %v764 = vadd.f32 %v762, %v763
      %v765 = vsel %vm707, %v704, 0.0
      %v766 = vadd.f32 %v764, %v765
      %v767 = vsel %vm707, %v705, 0.0
      %v768 = vadd.f32 %v766, %v767
      %v769 = vsel %vm707, %v706, 0.0
      %v770 = vadd.f32 %v768, %v769
      %v771 = vrot.slane %v770, 4
      %v772 = vadd.f32 %v770, %v771
      %v773 = vrot.slane %v772, 2
      %v774 = vadd.f32 %v772, %v773
      %v775 = vrot.slane %v774, 1
      %v776 = vadd.f32 %v774, %v775
      %v777 = vmul.f32 %v776, 0.00390625
      %v778 = vsel %vm707, %v675, -inf
      %v779 = vsel %vm707, %v676, -inf
      %v780 = vsel %vm707, %v677, -inf
      %v781 = vsel %vm707, %v678, -inf
      %v782 = vsel %vm707, %v679, -inf
      %v783 = vmax.f32 %v778, %v782
      %v784 = vsel %vm707, %v680, -inf
      %v785 = vmax.f32 %v779, %v784
      %v786 = vsel %vm707, %v681, -inf
      %v787 = vmax.f32 %v780, %v786
      %v788 = vsel %vm707, %v682, -inf
      %v789 = vmax.f32 %v781, %v788
      %v790 = vsel %vm707, %v683, -inf
      %v791 = vmax.f32 %v783, %v790
      %v792 = vsel %vm707, %v684, -inf
      %v793 = vmax.f32 %v785, %v792
      %v794 = vsel %vm707, %v685, -inf
      %v795 = vmax.f32 %v787, %v794
      %v796 = vsel %vm707, %v686, -inf
      %v797 = vmax.f32 %v789, %v796
      %v798 = vsel %vm707, %v687, -inf
      %v799 = vmax.f32 %v791, %v798
      %v800 = vsel %vm707, %v688, -inf
      %v801 = vmax.f32 %v793, %v800
      %v802 = vsel %vm707, %v689, -inf
      %v803 = vmax.f32 %v795, %v802
      %v804 = vsel %vm707, %v690, -inf
      %v805 = vmax.f32 %v797, %v804
      %v806 = vsel %vm707, %v691, -inf
      %v807 = vmax.f32 %v799, %v806
      %v808 = vsel %vm707, %v692, -inf
      %v809 = vmax.f32 %v801, %v808
      %v810 = vsel %vm707, %v693, -inf
      %v811 = vmax.f32 %v803, %v810
      %v812 = vsel %vm707, %v694, -inf
      %v813 = vmax.f32 %v805, %v812
      %v814 = vsel %vm707, %v695, -inf
      %v815 = vmax.f32 %v807, %v814
      %v816 = vsel %vm707, %v696, -inf
      %v817 = vmax.f32 %v809, %v816
      %v818 = vsel %vm707, %v697, -inf
      %v819 = vmax.f32 %v811, %v818
      %v820 = vsel %vm707, %v698, -inf
      %v821 = vmax.f32 %v813, %v820
      %v822 = vsel %vm707, %v699, -inf
      %v823 = vmax.f32 %v815, %v822
      %v824 = vsel %vm707, %v700, -inf
      %v825 = vmax.f32 %v817, %v824
      %v826 = vsel %vm707, %v701, -inf
      %v827 = vmax.f32 %v819, %v826
      %v828 = vsel %vm707, %v702, -inf
      %v829 = vmax.f32 %v821, %v828
      %v830 = vsel %vm707, %v703, -inf
      %v831 = vmax.f32 %v823, %v830
      %v832 = vsel %vm707, %v704, -inf
      %v833 = vmax.f32 %v825, %v832
      %v834 = vsel %vm707, %v705, -inf
      %v835 = vmax.f32 %v827, %v834
      %v836 = vsel %vm707, %v706, -inf
      %v837 = vmax.f32 %v829, %v836
      %v838 = vmax.f32 %v831, %v833
      %v839 = vmax.f32 %v835, %v837
      %v840 = vmax.f32 %v838, %v839
      %v841 = vrot.slane %v840, 4
      %v842 = vmax.f32 %v840, %v841
      %v843 = vrot.slane %v842, 2
      %v844 = vmax.f32 %v842, %v843
      %v845 = vrot.slane %v844, 1
      %v846 = vmax.f32 %v844, %v845
      %v847 = vunpack.c.l.bf16 %v448
      %v848 = vunpack.c.l.bf16 %v449
      %v849 = vunpack.c.l.bf16 %v450
      %v850 = vunpack.c.l.bf16 %v451
      %v851 = vunpack.c.l.bf16 %v452
      %v852 = vunpack.c.l.bf16 %v453
      %v853 = vunpack.c.l.bf16 %v454
      %v854 = vunpack.c.l.bf16 %v455
      %v855 = vunpack.c.l.bf16 %v456
      %v856 = vunpack.c.l.bf16 %v457
      %v857 = vunpack.c.l.bf16 %v458
      %v858 = vunpack.c.l.bf16 %v459
      %v859 = vunpack.c.l.bf16 %v460
      %v860 = vunpack.c.l.bf16 %v461
      %v861 = vunpack.c.l.bf16 %v462
      %v862 = vunpack.c.l.bf16 %v463
      %v863 = vunpack.c.l.bf16 %v464
      %v864 = vunpack.c.l.bf16 %v465
      %v865 = vunpack.c.l.bf16 %v466
      %v866 = vunpack.c.l.bf16 %v467
      %v867 = vunpack.c.l.bf16 %v468
      %v868 = vunpack.c.l.bf16 %v469
      %v869 = vunpack.c.l.bf16 %v470
      %v870 = vunpack.c.l.bf16 %v471
      %v871 = vunpack.c.l.bf16 %v472
      %v872 = vunpack.c.l.bf16 %v473
      %v873 = vunpack.c.l.bf16 %v474
      %v874 = vunpack.c.l.bf16 %v475
      %v875 = vunpack.c.l.bf16 %v476
      %v876 = vunpack.c.l.bf16 %v477
      %v877 = vunpack.c.l.bf16 %v478
      %v878 = vunpack.c.l.bf16 %v479
      %v879 = vsel %vm707, %v847, 0.0
      %v880 = vsel %vm707, %v848, 0.0
      %v881 = vadd.f32 %v879, %v880
      %v882 = vsel %vm707, %v849, 0.0
      %v883 = vadd.f32 %v881, %v882
      %v884 = vsel %vm707, %v850, 0.0
      %v885 = vadd.f32 %v883, %v884
      %v886 = vsel %vm707, %v851, 0.0
      %v887 = vadd.f32 %v885, %v886
      %v888 = vsel %vm707, %v852, 0.0
      %v889 = vadd.f32 %v887, %v888
      %v890 = vsel %vm707, %v853, 0.0
      %v891 = vadd.f32 %v889, %v890
      %v892 = vsel %vm707, %v854, 0.0
      %v893 = vadd.f32 %v891, %v892
      %v894 = vsel %vm707, %v855, 0.0
      %v895 = vadd.f32 %v893, %v894
      %v896 = vsel %vm707, %v856, 0.0
      %v897 = vadd.f32 %v895, %v896
      %v898 = vsel %vm707, %v857, 0.0
      %v899 = vadd.f32 %v897, %v898
      %v900 = vsel %vm707, %v858, 0.0
      %v901 = vadd.f32 %v899, %v900
      %v902 = vsel %vm707, %v859, 0.0
      %v903 = vadd.f32 %v901, %v902
      %v904 = vsel %vm707, %v860, 0.0
      %v905 = vadd.f32 %v903, %v904
      %v906 = vsel %vm707, %v861, 0.0
      %v907 = vadd.f32 %v905, %v906
      %v908 = vsel %vm707, %v862, 0.0
      %v909 = vadd.f32 %v907, %v908
      %v910 = vsel %vm707, %v863, 0.0
      %v911 = vadd.f32 %v909, %v910
      %v912 = vsel %vm707, %v864, 0.0
      %v913 = vadd.f32 %v911, %v912
      %v914 = vsel %vm707, %v865, 0.0
      %v915 = vadd.f32 %v913, %v914
      %v916 = vsel %vm707, %v866, 0.0
      %v917 = vadd.f32 %v915, %v916
      %v918 = vsel %vm707, %v867, 0.0
      %v919 = vadd.f32 %v917, %v918
      %v920 = vsel %vm707, %v868, 0.0
      %v921 = vadd.f32 %v919, %v920
      %v922 = vsel %vm707, %v869, 0.0
      %v923 = vadd.f32 %v921, %v922
      %v924 = vsel %vm707, %v870, 0.0
      %v925 = vadd.f32 %v923, %v924
      %v926 = vsel %vm707, %v871, 0.0
      %v927 = vadd.f32 %v925, %v926
      %v928 = vsel %vm707, %v872, 0.0
      %v929 = vadd.f32 %v927, %v928
      %v930 = vsel %vm707, %v873, 0.0
      %v931 = vadd.f32 %v929, %v930
      %v932 = vsel %vm707, %v874, 0.0
      %v933 = vadd.f32 %v931, %v932
      %v934 = vsel %vm707, %v875, 0.0
      %v935 = vadd.f32 %v933, %v934
      %v936 = vsel %vm707, %v876, 0.0
      %v937 = vadd.f32 %v935, %v936
      %v938 = vsel %vm707, %v877, 0.0
      %v939 = vadd.f32 %v937, %v938
      %v940 = vsel %vm707, %v878, 0.0
      %v941 = vadd.f32 %v939, %v940
      %v942 = vrot.slane %v941, 4
      %v943 = vadd.f32 %v941, %v942
      %v944 = vrot.slane %v943, 2
      %v945 = vadd.f32 %v943, %v944
      %v946 = vrot.slane %v945, 1
      %v947 = vadd.f32 %v945, %v946
      %v948 = vmul.f32 %v947, 0.00390625
      %v949 = vsel %vm707, %v847, -inf
      %v950 = vsel %vm707, %v848, -inf
      %v951 = vsel %vm707, %v849, -inf
      %v952 = vsel %vm707, %v850, -inf
      %v953 = vsel %vm707, %v851, -inf
      %v954 = vmax.f32 %v949, %v953
      %v955 = vsel %vm707, %v852, -inf
      %v956 = vmax.f32 %v950, %v955
      %v957 = vsel %vm707, %v853, -inf
      %v958 = vmax.f32 %v951, %v957
      %v959 = vsel %vm707, %v854, -inf
      %v960 = vmax.f32 %v952, %v959
      %v961 = vsel %vm707, %v855, -inf
      %v962 = vmax.f32 %v954, %v961
      %v963 = vsel %vm707, %v856, -inf
      %v964 = vmax.f32 %v956, %v963
      %v965 = vsel %vm707, %v857, -inf
      %v966 = vmax.f32 %v958, %v965
      %v967 = vsel %vm707, %v858, -inf
      %v968 = vmax.f32 %v960, %v967
      %v969 = vsel %vm707, %v859, -inf
      %v970 = vmax.f32 %v962, %v969
      %v971 = vsel %vm707, %v860, -inf
      %v972 = vmax.f32 %v964, %v971
      %v973 = vsel %vm707, %v861, -inf
      %v974 = vmax.f32 %v966, %v973
      %v975 = vsel %vm707, %v862, -inf
      %v976 = vmax.f32 %v968, %v975
      %v977 = vsel %vm707, %v863, -inf
      %v978 = vmax.f32 %v970, %v977
      %v979 = vsel %vm707, %v864, -inf
      %v980 = vmax.f32 %v972, %v979
      %v981 = vsel %vm707, %v865, -inf
      %v982 = vmax.f32 %v974, %v981
      %v983 = vsel %vm707, %v866, -inf
      %v984 = vmax.f32 %v976, %v983
      %v985 = vsel %vm707, %v867, -inf
      %v986 = vmax.f32 %v978, %v985
      %v987 = vsel %vm707, %v868, -inf
      %v988 = vmax.f32 %v980, %v987
      %v989 = vsel %vm707, %v869, -inf
      %v990 = vmax.f32 %v982, %v989
      %v991 = vsel %vm707, %v870, -inf
      %v992 = vmax.f32 %v984, %v991
      %v993 = vsel %vm707, %v871, -inf
      %v994 = vmax.f32 %v986, %v993
      %v995 = vsel %vm707, %v872, -inf
      %v996 = vmax.f32 %v988, %v995
      %v997 = vsel %vm707, %v873, -inf
      %v998 = vmax.f32 %v990, %v997
      %v999 = vsel %vm707, %v874, -inf
      %v1000 = vmax.f32 %v992, %v999
      %v1001 = vsel %vm707, %v875, -inf
      %v1002 = vmax.f32 %v994, %v1001
      %v1003 = vsel %vm707, %v876, -inf
      %v1004 = vmax.f32 %v996, %v1003
      %v1005 = vsel %vm707, %v877, -inf
      %v1006 = vmax.f32 %v998, %v1005
      %v1007 = vsel %vm707, %v878, -inf
      %v1008 = vmax.f32 %v1000, %v1007
      %v1009 = vmax.f32 %v1002, %v1004
      %v1010 = vmax.f32 %v1006, %v1008
      %v1011 = vmax.f32 %v1009, %v1010
      %v1012 = vrot.slane %v1011, 4
      %v1013 = vmax.f32 %v1011, %v1012
      %v1014 = vrot.slane %v1013, 2
      %v1015 = vmax.f32 %v1013, %v1014
      %v1016 = vrot.slane %v1015, 1
      %v1017 = vmax.f32 %v1015, %v1016
      %v1018 = vunpack.c.l.bf16 %v481
      %v1019 = vunpack.c.l.bf16 %v482
      %v1020 = vunpack.c.l.bf16 %v483
      %v1021 = vunpack.c.l.bf16 %v484
      %v1022 = vunpack.c.l.bf16 %v485
      %v1023 = vunpack.c.l.bf16 %v486
      %v1024 = vunpack.c.l.bf16 %v487
      %v1025 = vunpack.c.l.bf16 %v488
      %v1026 = vunpack.c.l.bf16 %v489
      %v1027 = vunpack.c.l.bf16 %v490
      %v1028 = vunpack.c.l.bf16 %v491
      %v1029 = vunpack.c.l.bf16 %v492
      %v1030 = vunpack.c.l.bf16 %v493
      %v1031 = vunpack.c.l.bf16 %v494
      %v1032 = vunpack.c.l.bf16 %v495
      %v1033 = vunpack.c.l.bf16 %v496
      %v1034 = vunpack.c.l.bf16 %v497
      %v1035 = vunpack.c.l.bf16 %v498
      %v1036 = vunpack.c.l.bf16 %v499
      %v1037 = vunpack.c.l.bf16 %v500
      %v1038 = vunpack.c.l.bf16 %v501
      %v1039 = vunpack.c.l.bf16 %v502
      %v1040 = vunpack.c.l.bf16 %v503
      %v1041 = vunpack.c.l.bf16 %v504
      %v1042 = vunpack.c.l.bf16 %v505
      %v1043 = vunpack.c.l.bf16 %v506
      %v1044 = vunpack.c.l.bf16 %v507
      %v1045 = vunpack.c.l.bf16 %v508
      %v1046 = vunpack.c.l.bf16 %v509
      %v1047 = vunpack.c.l.bf16 %v510
      %v1048 = vunpack.c.l.bf16 %v511
      %v1049 = vunpack.c.l.bf16 %v512
      %v1050 = vsel %vm707, %v1018, 0.0
      %v1051 = vsel %vm707, %v1019, 0.0
      %v1052 = vadd.f32 %v1050, %v1051
      %v1053 = vsel %vm707, %v1020, 0.0
      %v1054 = vadd.f32 %v1052, %v1053
      %v1055 = vsel %vm707, %v1021, 0.0
      %v1056 = vadd.f32 %v1054, %v1055
      %v1057 = vsel %vm707, %v1022, 0.0
      %v1058 = vadd.f32 %v1056, %v1057
      %v1059 = vsel %vm707, %v1023, 0.0
      %v1060 = vadd.f32 %v1058, %v1059
      %v1061 = vsel %vm707, %v1024, 0.0
      %v1062 = vadd.f32 %v1060, %v1061
      %v1063 = vsel %vm707, %v1025, 0.0
      %v1064 = vadd.f32 %v1062, %v1063
      %v1065 = vsel %vm707, %v1026, 0.0
      %v1066 = vadd.f32 %v1064, %v1065
      %v1067 = vsel %vm707, %v1027, 0.0
      %v1068 = vadd.f32 %v1066, %v1067
      %v1069 = vsel %vm707, %v1028, 0.0
      %v1070 = vadd.f32 %v1068, %v1069
      %v1071 = vsel %vm707, %v1029, 0.0
      %v1072 = vadd.f32 %v1070, %v1071
      %v1073 = vsel %vm707, %v1030, 0.0
      %v1074 = vadd.f32 %v1072, %v1073
      %v1075 = vsel %vm707, %v1031, 0.0
      %v1076 = vadd.f32 %v1074, %v1075
      %v1077 = vsel %vm707, %v1032, 0.0
      %v1078 = vadd.f32 %v1076, %v1077
      %v1079 = vsel %vm707, %v1033, 0.0
      %v1080 = vadd.f32 %v1078, %v1079
      %v1081 = vsel %vm707, %v1034, 0.0
      %v1082 = vadd.f32 %v1080, %v1081
      %v1083 = vsel %vm707, %v1035, 0.0
      %v1084 = vadd.f32 %v1082, %v1083
      %v1085 = vsel %vm707, %v1036, 0.0
      %v1086 = vadd.f32 %v1084, %v1085
      %v1087 = vsel %vm707, %v1037, 0.0
      %v1088 = vadd.f32 %v1086, %v1087
      %v1089 = vsel %vm707, %v1038, 0.0
      %v1090 = vadd.f32 %v1088, %v1089
      %v1091 = vsel %vm707, %v1039, 0.0
      %v1092 = vadd.f32 %v1090, %v1091
      %v1093 = vsel %vm707, %v1040, 0.0
      %v1094 = vadd.f32 %v1092, %v1093
      %v1095 = vsel %vm707, %v1041, 0.0
      %v1096 = vadd.f32 %v1094, %v1095
      %v1097 = vsel %vm707, %v1042, 0.0
      %v1098 = vadd.f32 %v1096, %v1097
      %v1099 = vsel %vm707, %v1043, 0.0
      %v1100 = vadd.f32 %v1098, %v1099
      %v1101 = vsel %vm707, %v1044, 0.0
      %v1102 = vadd.f32 %v1100, %v1101
      %v1103 = vsel %vm707, %v1045, 0.0
      %v1104 = vadd.f32 %v1102, %v1103
      %v1105 = vsel %vm707, %v1046, 0.0
      %v1106 = vadd.f32 %v1104, %v1105
      %v1107 = vsel %vm707, %v1047, 0.0
      %v1108 = vadd.f32 %v1106, %v1107
      %v1109 = vsel %vm707, %v1048, 0.0
      %v1110 = vadd.f32 %v1108, %v1109
      %v1111 = vsel %vm707, %v1049, 0.0
      %v1112 = vadd.f32 %v1110, %v1111
      %v1113 = vrot.slane %v1112, 4
      %v1114 = vadd.f32 %v1112, %v1113
      %v1115 = vrot.slane %v1114, 2
      %v1116 = vadd.f32 %v1114, %v1115
      %v1117 = vrot.slane %v1116, 1
      %v1118 = vadd.f32 %v1116, %v1117
      %v1119 = vmul.f32 %v1118, 0.00390625
      %v1120 = vsel %vm707, %v1018, -inf
      %v1121 = vsel %vm707, %v1019, -inf
      %v1122 = vsel %vm707, %v1020, -inf
      %v1123 = vsel %vm707, %v1021, -inf
      %v1124 = vsel %vm707, %v1022, -inf
      %v1125 = vmax.f32 %v1120, %v1124
      %v1126 = vsel %vm707, %v1023, -inf
      %v1127 = vmax.f32 %v1121, %v1126
      %v1128 = vsel %vm707, %v1024, -inf
      %v1129 = vmax.f32 %v1122, %v1128
      %v1130 = vsel %vm707, %v1025, -inf
      %v1131 = vmax.f32 %v1123, %v1130
      %v1132 = vsel %vm707, %v1026, -inf
      %v1133 = vmax.f32 %v1125, %v1132
      %v1134 = vsel %vm707, %v1027, -inf
      %v1135 = vmax.f32 %v1127, %v1134
      %v1136 = vsel %vm707, %v1028, -inf
      %v1137 = vmax.f32 %v1129, %v1136
      %v1138 = vsel %vm707, %v1029, -inf
      %v1139 = vmax.f32 %v1131, %v1138
      %v1140 = vsel %vm707, %v1030, -inf
      %v1141 = vmax.f32 %v1133, %v1140
      %v1142 = vsel %vm707, %v1031, -inf
      %v1143 = vmax.f32 %v1135, %v1142
      %v1144 = vsel %vm707, %v1032, -inf
      %v1145 = vmax.f32 %v1137, %v1144
      %v1146 = vsel %vm707, %v1033, -inf
      %v1147 = vmax.f32 %v1139, %v1146
      %v1148 = vsel %vm707, %v1034, -inf
      %v1149 = vmax.f32 %v1141, %v1148
      %v1150 = vsel %vm707, %v1035, -inf
      %v1151 = vmax.f32 %v1143, %v1150
      %v1152 = vsel %vm707, %v1036, -inf
      %v1153 = vmax.f32 %v1145, %v1152
      %v1154 = vsel %vm707, %v1037, -inf
      %v1155 = vmax.f32 %v1147, %v1154
      %v1156 = vsel %vm707, %v1038, -inf
      %v1157 = vmax.f32 %v1149, %v1156
      %v1158 = vsel %vm707, %v1039, -inf
      %v1159 = vmax.f32 %v1151, %v1158
      %v1160 = vsel %vm707, %v1040, -inf
      %v1161 = vmax.f32 %v1153, %v1160
      %v1162 = vsel %vm707, %v1041, -inf
      %v1163 = vmax.f32 %v1155, %v1162
      %v1164 = vsel %vm707, %v1042, -inf
      %v1165 = vmax.f32 %v1157, %v1164
      %v1166 = vsel %vm707, %v1043, -inf
      %v1167 = vmax.f32 %v1159, %v1166
      %v1168 = vsel %vm707, %v1044, -inf
      %v1169 = vmax.f32 %v1161, %v1168
      %v1170 = vsel %vm707, %v1045, -inf
      %v1171 = vmax.f32 %v1163, %v1170
      %v1172 = vsel %vm707, %v1046, -inf
      %v1173 = vmax.f32 %v1165, %v1172
      %v1174 = vsel %vm707, %v1047, -inf
      %v1175 = vmax.f32 %v1167, %v1174
      %v1176 = vsel %vm707, %v1048, -inf
      %v1177 = vmax.f32 %v1169, %v1176
      %v1178 = vsel %vm707, %v1049, -inf
      %v1179 = vmax.f32 %v1171, %v1178
      %v1180 = vmax.f32 %v1173, %v1175
      %v1181 = vmax.f32 %v1177, %v1179
      %v1182 = vmax.f32 %v1180, %v1181
      %v1183 = vrot.slane %v1182, 4
      %v1184 = vmax.f32 %v1182, %v1183
      %v1185 = vrot.slane %v1184, 2
      %v1186 = vmax.f32 %v1184, %v1185
      %v1187 = vrot.slane %v1186, 1
      %v1188 = vmax.f32 %v1186, %v1187
      %v1189 = vunpack.c.l.bf16 %v514
      %v1190 = vunpack.c.l.bf16 %v515
      %v1191 = vunpack.c.l.bf16 %v516
      %v1192 = vunpack.c.l.bf16 %v517
      %v1193 = vunpack.c.l.bf16 %v518
      %v1194 = vunpack.c.l.bf16 %v519
      %v1195 = vunpack.c.l.bf16 %v520
      %v1196 = vunpack.c.l.bf16 %v521
      %v1197 = vunpack.c.l.bf16 %v522
      %v1198 = vunpack.c.l.bf16 %v523
      %v1199 = vunpack.c.l.bf16 %v524
      %v1200 = vunpack.c.l.bf16 %v525
      %v1201 = vunpack.c.l.bf16 %v526
      %v1202 = vunpack.c.l.bf16 %v527
      %v1203 = vunpack.c.l.bf16 %v528
      %v1204 = vunpack.c.l.bf16 %v529
      %v1205 = vunpack.c.l.bf16 %v530
      %v1206 = vunpack.c.l.bf16 %v531
      %v1207 = vunpack.c.l.bf16 %v532
      %v1208 = vunpack.c.l.bf16 %v533
      %v1209 = vunpack.c.l.bf16 %v534
      %v1210 = vunpack.c.l.bf16 %v535
      %v1211 = vunpack.c.l.bf16 %v536
      %v1212 = vunpack.c.l.bf16 %v537
      %v1213 = vunpack.c.l.bf16 %v538
      %v1214 = vunpack.c.l.bf16 %v539
      %v1215 = vunpack.c.l.bf16 %v540
      %v1216 = vunpack.c.l.bf16 %v541
      %v1217 = vunpack.c.l.bf16 %v542
      %v1218 = vunpack.c.l.bf16 %v543
      %v1219 = vunpack.c.l.bf16 %v544
      %v1220 = vunpack.c.l.bf16 %v545
      %v1221 = vsel %vm707, %v1189, 0.0
      %v1222 = vsel %vm707, %v1190, 0.0
      %v1223 = vadd.f32 %v1221, %v1222
      %v1224 = vsel %vm707, %v1191, 0.0
      %v1225 = vadd.f32 %v1223, %v1224
      %v1226 = vsel %vm707, %v1192, 0.0
      %v1227 = vadd.f32 %v1225, %v1226
      %v1228 = vsel %vm707, %v1193, 0.0
      %v1229 = vadd.f32 %v1227, %v1228
      %v1230 = vsel %vm707, %v1194, 0.0
      %v1231 = vadd.f32 %v1229, %v1230
      %v1232 = vsel %vm707, %v1195, 0.0
      %v1233 = vadd.f32 %v1231, %v1232
      %v1234 = vsel %vm707, %v1196, 0.0
      %v1235 = vadd.f32 %v1233, %v1234
      %v1236 = vsel %vm707, %v1197, 0.0
      %v1237 = vadd.f32 %v1235, %v1236
      %v1238 = vsel %vm707, %v1198, 0.0
      %v1239 = vadd.f32 %v1237, %v1238
      %v1240 = vsel %vm707, %v1199, 0.0
      %v1241 = vadd.f32 %v1239, %v1240
      %v1242 = vsel %vm707, %v1200, 0.0
      %v1243 = vadd.f32 %v1241, %v1242
      %v1244 = vsel %vm707, %v1201, 0.0
      %v1245 = vadd.f32 %v1243, %v1244
      %v1246 = vsel %vm707, %v1202, 0.0
      %v1247 = vadd.f32 %v1245, %v1246
      %v1248 = vsel %vm707, %v1203, 0.0
      %v1249 = vadd.f32 %v1247, %v1248
      %v1250 = vsel %vm707, %v1204, 0.0
      %v1251 = vadd.f32 %v1249, %v1250
      %v1252 = vsel %vm707, %v1205, 0.0
      %v1253 = vadd.f32 %v1251, %v1252
      %v1254 = vsel %vm707, %v1206, 0.0
      %v1255 = vadd.f32 %v1253, %v1254
      %v1256 = vsel %vm707, %v1207, 0.0
      %v1257 = vadd.f32 %v1255, %v1256
      %v1258 = vsel %vm707, %v1208, 0.0
      %v1259 = vadd.f32 %v1257, %v1258
      %v1260 = vsel %vm707, %v1209, 0.0
      %v1261 = vadd.f32 %v1259, %v1260
      %v1262 = vsel %vm707, %v1210, 0.0
      %v1263 = vadd.f32 %v1261, %v1262
      %v1264 = vsel %vm707, %v1211, 0.0
      %v1265 = vadd.f32 %v1263, %v1264
      %v1266 = vsel %vm707, %v1212, 0.0
      %v1267 = vadd.f32 %v1265, %v1266
      %v1268 = vsel %vm707, %v1213, 0.0
      %v1269 = vadd.f32 %v1267, %v1268
      %v1270 = vsel %vm707, %v1214, 0.0
      %v1271 = vadd.f32 %v1269, %v1270
      %v1272 = vsel %vm707, %v1215, 0.0
      %v1273 = vadd.f32 %v1271, %v1272
      %v1274 = vsel %vm707, %v1216, 0.0
      %v1275 = vadd.f32 %v1273, %v1274
      %v1276 = vsel %vm707, %v1217, 0.0
      %v1277 = vadd.f32 %v1275, %v1276
      %v1278 = vsel %vm707, %v1218, 0.0
      %v1279 = vadd.f32 %v1277, %v1278
      %v1280 = vsel %vm707, %v1219, 0.0
      %v1281 = vadd.f32 %v1279, %v1280
      %v1282 = vsel %vm707, %v1220, 0.0
      %v1283 = vadd.f32 %v1281, %v1282
      %v1284 = vrot.slane %v1283, 4
      %v1285 = vadd.f32 %v1283, %v1284
      %v1286 = vrot.slane %v1285, 2
      %v1287 = vadd.f32 %v1285, %v1286
      %v1288 = vrot.slane %v1287, 1
      %v1289 = vadd.f32 %v1287, %v1288
      %v1290 = vmul.f32 %v1289, 0.00390625
      %v1291 = vsel %vm707, %v1189, -inf
      %v1292 = vsel %vm707, %v1190, -inf
      %v1293 = vsel %vm707, %v1191, -inf
      %v1294 = vsel %vm707, %v1192, -inf
      %v1295 = vsel %vm707, %v1193, -inf
      %v1296 = vmax.f32 %v1291, %v1295
      %v1297 = vsel %vm707, %v1194, -inf
      %v1298 = vmax.f32 %v1292, %v1297
      %v1299 = vsel %vm707, %v1195, -inf
      %v1300 = vmax.f32 %v1293, %v1299
      %v1301 = vsel %vm707, %v1196, -inf
      %v1302 = vmax.f32 %v1294, %v1301
      %v1303 = vsel %vm707, %v1197, -inf
      %v1304 = vmax.f32 %v1296, %v1303
      %v1305 = vsel %vm707, %v1198, -inf
      %v1306 = vmax.f32 %v1298, %v1305
      %v1307 = vsel %vm707, %v1199, -inf
      %v1308 = vmax.f32 %v1300, %v1307
      %v1309 = vsel %vm707, %v1200, -inf
      %v1310 = vmax.f32 %v1302, %v1309
      %v1311 = vsel %vm707, %v1201, -inf
      %v1312 = vmax.f32 %v1304, %v1311
      %v1313 = vsel %vm707, %v1202, -inf
      %v1314 = vmax.f32 %v1306, %v1313
      %v1315 = vsel %vm707, %v1203, -inf
      %v1316 = vmax.f32 %v1308, %v1315
      %v1317 = vsel %vm707, %v1204, -inf
      %v1318 = vmax.f32 %v1310, %v1317
      %v1319 = vsel %vm707, %v1205, -inf
      %v1320 = vmax.f32 %v1312, %v1319
      %v1321 = vsel %vm707, %v1206, -inf
      %v1322 = vmax.f32 %v1314, %v1321
      %v1323 = vsel %vm707, %v1207, -inf
      %v1324 = vmax.f32 %v1316, %v1323
      %v1325 = vsel %vm707, %v1208, -inf
      %v1326 = vmax.f32 %v1318, %v1325
      %v1327 = vsel %vm707, %v1209, -inf
      %v1328 = vmax.f32 %v1320, %v1327
      %v1329 = vsel %vm707, %v1210, -inf
      %v1330 = vmax.f32 %v1322, %v1329
      %v1331 = vsel %vm707, %v1211, -inf
      %v1332 = vmax.f32 %v1324, %v1331
      %v1333 = vsel %vm707, %v1212, -inf
      %v1334 = vmax.f32 %v1326, %v1333
      %v1335 = vsel %vm707, %v1213, -inf
      %v1336 = vmax.f32 %v1328, %v1335
      %v1337 = vsel %vm707, %v1214, -inf
      %v1338 = vmax.f32 %v1330, %v1337
      %v1339 = vsel %vm707, %v1215, -inf
      %v1340 = vmax.f32 %v1332, %v1339
      %v1341 = vsel %vm707, %v1216, -inf
      %v1342 = vmax.f32 %v1334, %v1341
      %v1343 = vsel %vm707, %v1217, -inf
      %v1344 = vmax.f32 %v1336, %v1343
      %v1345 = vsel %vm707, %v1218, -inf
      %v1346 = vmax.f32 %v1338, %v1345
      %v1347 = vsel %vm707, %v1219, -inf
      %v1348 = vmax.f32 %v1340, %v1347
      %v1349 = vsel %vm707, %v1220, -inf
      %v1350 = vmax.f32 %v1342, %v1349
      %v1351 = vmax.f32 %v1344, %v1346
      %v1352 = vmax.f32 %v1348, %v1350
      %v1353 = vmax.f32 %v1351, %v1352
      %v1354 = vrot.slane %v1353, 4
      %v1355 = vmax.f32 %v1353, %v1354
      %v1356 = vrot.slane %v1355, 2
      %v1357 = vmax.f32 %v1355, %v1356
      %v1358 = vrot.slane %v1357, 1
      %v1359 = vmax.f32 %v1357, %v1358
      %v1360 = vunpack.c.l.bf16 %v547
      %v1361 = vunpack.c.l.bf16 %v548
      %v1362 = vunpack.c.l.bf16 %v549
      %v1363 = vunpack.c.l.bf16 %v550
      %v1364 = vunpack.c.l.bf16 %v551
      %v1365 = vunpack.c.l.bf16 %v552
      %v1366 = vunpack.c.l.bf16 %v553
      %v1367 = vunpack.c.l.bf16 %v554
      %v1368 = vunpack.c.l.bf16 %v555
      %v1369 = vunpack.c.l.bf16 %v556
      %v1370 = vunpack.c.l.bf16 %v557
      %v1371 = vunpack.c.l.bf16 %v558
      %v1372 = vunpack.c.l.bf16 %v559
      %v1373 = vunpack.c.l.bf16 %v560
      %v1374 = vunpack.c.l.bf16 %v561
      %v1375 = vunpack.c.l.bf16 %v562
      %v1376 = vunpack.c.l.bf16 %v563
      %v1377 = vunpack.c.l.bf16 %v564
      %v1378 = vunpack.c.l.bf16 %v565
      %v1379 = vunpack.c.l.bf16 %v566
      %v1380 = vunpack.c.l.bf16 %v567
      %v1381 = vunpack.c.l.bf16 %v568
      %v1382 = vunpack.c.l.bf16 %v569
      %v1383 = vunpack.c.l.bf16 %v570
      %v1384 = vunpack.c.l.bf16 %v571
      %v1385 = vunpack.c.l.bf16 %v572
      %v1386 = vunpack.c.l.bf16 %v573
      %v1387 = vunpack.c.l.bf16 %v574
      %v1388 = vunpack.c.l.bf16 %v575
      %v1389 = vunpack.c.l.bf16 %v576
      %v1390 = vunpack.c.l.bf16 %v577
      %v1391 = vunpack.c.l.bf16 %v578
      %v1392 = vsel %vm707, %v1360, 0.0
      %v1393 = vsel %vm707, %v1361, 0.0
      %v1394 = vadd.f32 %v1392, %v1393
      %v1395 = vsel %vm707, %v1362, 0.0
      %v1396 = vadd.f32 %v1394, %v1395
      %v1397 = vsel %vm707, %v1363, 0.0
      %v1398 = vadd.f32 %v1396, %v1397
      %v1399 = vsel %vm707, %v1364, 0.0
      %v1400 = vadd.f32 %v1398, %v1399
      %v1401 = vsel %vm707, %v1365, 0.0
      %v1402 = vadd.f32 %v1400, %v1401
      %v1403 = vsel %vm707, %v1366, 0.0
      %v1404 = vadd.f32 %v1402, %v1403
      %v1405 = vsel %vm707, %v1367, 0.0
      %v1406 = vadd.f32 %v1404, %v1405
      %v1407 = vsel %vm707, %v1368, 0.0
      %v1408 = vadd.f32 %v1406, %v1407
      %v1409 = vsel %vm707, %v1369, 0.0
      %v1410 = vadd.f32 %v1408, %v1409
      %v1411 = vsel %vm707, %v1370, 0.0
      %v1412 = vadd.f32 %v1410, %v1411
      %v1413 = vsel %vm707, %v1371, 0.0
      %v1414 = vadd.f32 %v1412, %v1413
      %v1415 = vsel %vm707, %v1372, 0.0
      %v1416 = vadd.f32 %v1414, %v1415
      %v1417 = vsel %vm707, %v1373, 0.0
      %v1418 = vadd.f32 %v1416, %v1417
      %v1419 = vsel %vm707, %v1374, 0.0
      %v1420 = vadd.f32 %v1418, %v1419
      %v1421 = vsel %vm707, %v1375, 0.0
      %v1422 = vadd.f32 %v1420, %v1421
      %v1423 = vsel %vm707, %v1376, 0.0
      %v1424 = vadd.f32 %v1422, %v1423
      %v1425 = vsel %vm707, %v1377, 0.0
      %v1426 = vadd.f32 %v1424, %v1425
      %v1427 = vsel %vm707, %v1378, 0.0
      %v1428 = vadd.f32 %v1426, %v1427
      %v1429 = vsel %vm707, %v1379, 0.0
      %v1430 = vadd.f32 %v1428, %v1429
      %v1431 = vsel %vm707, %v1380, 0.0
      %v1432 = vadd.f32 %v1430, %v1431
      %v1433 = vsel %vm707, %v1381, 0.0
      %v1434 = vadd.f32 %v1432, %v1433
      %v1435 = vsel %vm707, %v1382, 0.0
      %v1436 = vadd.f32 %v1434, %v1435
      %v1437 = vsel %vm707, %v1383, 0.0
      %v1438 = vadd.f32 %v1436, %v1437
      %v1439 = vsel %vm707, %v1384, 0.0
      %v1440 = vadd.f32 %v1438, %v1439
      %v1441 = vsel %vm707, %v1385, 0.0
      %v1442 = vadd.f32 %v1440, %v1441
      %v1443 = vsel %vm707, %v1386, 0.0
      %v1444 = vadd.f32 %v1442, %v1443
      %v1445 = vsel %vm707, %v1387, 0.0
      %v1446 = vadd.f32 %v1444, %v1445
      %v1447 = vsel %vm707, %v1388, 0.0
      %v1448 = vadd.f32 %v1446, %v1447
      %v1449 = vsel %vm707, %v1389, 0.0
      %v1450 = vadd.f32 %v1448, %v1449
      %v1451 = vsel %vm707, %v1390, 0.0
      %v1452 = vadd.f32 %v1450, %v1451
      %v1453 = vsel %vm707, %v1391, 0.0
      %v1454 = vadd.f32 %v1452, %v1453
      %v1455 = vrot.slane %v1454, 4
      %v1456 = vadd.f32 %v1454, %v1455
      %v1457 = vrot.slane %v1456, 2
      %v1458 = vadd.f32 %v1456, %v1457
      %v1459 = vrot.slane %v1458, 1
      %v1460 = vadd.f32 %v1458, %v1459
      %v1461 = vmul.f32 %v1460, 0.00390625
      %v1462 = vsel %vm707, %v1360, -inf
      %v1463 = vsel %vm707, %v1361, -inf
      %v1464 = vsel %vm707, %v1362, -inf
      %v1465 = vsel %vm707, %v1363, -inf
      %v1466 = vsel %vm707, %v1364, -inf
      %v1467 = vmax.f32 %v1462, %v1466
      %v1468 = vsel %vm707, %v1365, -inf
      %v1469 = vmax.f32 %v1463, %v1468
      %v1470 = vsel %vm707, %v1366, -inf
      %v1471 = vmax.f32 %v1464, %v1470
      %v1472 = vsel %vm707, %v1367, -inf
      %v1473 = vmax.f32 %v1465, %v1472
      %v1474 = vsel %vm707, %v1368, -inf
      %v1475 = vmax.f32 %v1467, %v1474
      %v1476 = vsel %vm707, %v1369, -inf
      %v1477 = vmax.f32 %v1469, %v1476
      %v1478 = vsel %vm707, %v1370, -inf
      %v1479 = vmax.f32 %v1471, %v1478
      %v1480 = vsel %vm707, %v1371, -inf
      %v1481 = vmax.f32 %v1473, %v1480
      %v1482 = vsel %vm707, %v1372, -inf
      %v1483 = vmax.f32 %v1475, %v1482
      %v1484 = vsel %vm707, %v1373, -inf
      %v1485 = vmax.f32 %v1477, %v1484
      %v1486 = vsel %vm707, %v1374, -inf
      %v1487 = vmax.f32 %v1479, %v1486
      %v1488 = vsel %vm707, %v1375, -inf
      %v1489 = vmax.f32 %v1481, %v1488
      %v1490 = vsel %vm707, %v1376, -inf
      %v1491 = vmax.f32 %v1483, %v1490
      %v1492 = vsel %vm707, %v1377, -inf
      %v1493 = vmax.f32 %v1485, %v1492
      %v1494 = vsel %vm707, %v1378, -inf
      %v1495 = vmax.f32 %v1487, %v1494
      %v1496 = vsel %vm707, %v1379, -inf
      %v1497 = vmax.f32 %v1489, %v1496
      %v1498 = vsel %vm707, %v1380, -inf
      %v1499 = vmax.f32 %v1491, %v1498
      %v1500 = vsel %vm707, %v1381, -inf
      %v1501 = vmax.f32 %v1493, %v1500
      %v1502 = vsel %vm707, %v1382, -inf
      %v1503 = vmax.f32 %v1495, %v1502
      %v1504 = vsel %vm707, %v1383, -inf
      %v1505 = vmax.f32 %v1497, %v1504
      %v1506 = vsel %vm707, %v1384, -inf
      %v1507 = vmax.f32 %v1499, %v1506
      %v1508 = vsel %vm707, %v1385, -inf
      %v1509 = vmax.f32 %v1501, %v1508
      %v1510 = vsel %vm707, %v1386, -inf
      %v1511 = vmax.f32 %v1503, %v1510
      %v1512 = vsel %vm707, %v1387, -inf
      %v1513 = vmax.f32 %v1505, %v1512
      %v1514 = vsel %vm707, %v1388, -inf
      %v1515 = vmax.f32 %v1507, %v1514
      %v1516 = vsel %vm707, %v1389, -inf
      %v1517 = vmax.f32 %v1509, %v1516
      %v1518 = vsel %vm707, %v1390, -inf
      %v1519 = vmax.f32 %v1511, %v1518
      %v1520 = vsel %vm707, %v1391, -inf
      %v1521 = vmax.f32 %v1513, %v1520
      %v1522 = vmax.f32 %v1515, %v1517
      %v1523 = vmax.f32 %v1519, %v1521
      %v1524 = vmax.f32 %v1522, %v1523
      %v1525 = vrot.slane %v1524, 4
      %v1526 = vmax.f32 %v1524, %v1525
      %v1527 = vrot.slane %v1526, 2
      %v1528 = vmax.f32 %v1526, %v1527
      %v1529 = vrot.slane %v1528, 1
      %v1530 = vmax.f32 %v1528, %v1529
      %vm1531 = vcmask 1040384
      %v1532 = vsel %vm1531, %v948, %v1119
      %vm1533 = vcmask 1041408
      %v1534 = vsel %vm1533, %v1532, %v1290
      %vm1535 = vcmask 1042432
      %v1536 = vsel %vm1535, %v1534, %v1461
      %v1537 = vsel %vm1531, %v1017, %v1188
      %v1538 = vsel %vm1533, %v1537, %v1359
      %v1539 = vsel %vm1535, %v1538, %v1530
      %v1541 = vrot.slane %v1539, 4
      %vm1543 = vcmask 1043456
      %v1544 = vsel %vm1543, %v1536, %v1541
      %v1545 = vsel %vm1531, %v777, %v846
      %v1546 = vpack.c.bf16 %v1544, %v1544
      %v1547 = vld [vmem:[%s4] sm:$0xf]
      %v1548 = vld [vmem:[%s4 + $0x4] sm:$0xf]
      %v1549 = vld [vmem:[%s4 + $0x8] sm:$0xf]
      %v1550 = vld [vmem:[%s4 + $0xc] sm:$0xf]
      %v1551 = vld [vmem:[%s4 + $0x10] sm:$0xf]
      %v1552 = vld [vmem:[%s4 + $0x14] sm:$0xf]
      %v1553 = vld [vmem:[%s4 + $0x18] sm:$0xf]
      %v1554 = vld [vmem:[%s4 + $0x1c] sm:$0xf]
      %v1555 = vld [vmem:[%s4 + $0x20] sm:$0xf]
      %v1556 = vld [vmem:[%s4 + $0x24] sm:$0xf]
      %v1557 = vpack.c.bf16 %v1545, %v1545
      %v1558 = vld [vmem:[%s3] sm:$0xf]
      %v1559 = vld [vmem:[%s3 + $0x4] sm:$0xf]
      %v1560 = vld [vmem:[%s3 + $0x8] sm:$0xf]
      %v1561 = vld [vmem:[%s3 + $0xc] sm:$0xf]
      %v1562 = vld [vmem:[%s3 + $0x10] sm:$0xf]
      %v1563 = vld [vmem:[%s3 + $0x14] sm:$0xf]
      %v1564 = vld [vmem:[%s3 + $0x18] sm:$0xf]
      %v1565 = vld [vmem:[%s3 + $0x1c] sm:$0xf]
      %v1566 = vld [vmem:[%s3 + $0x20] sm:$0xf]
      %v1567 = vld [vmem:[%s3 + $0x24] sm:$0xf]
      %v1578 = vunpack.c.l.b16 %v1558
      %v1579 = vunpack.c.l.b16 %v1559
      %v1580 = vunpack.c.l.b16 %v1560
      %v1581 = vunpack.c.l.b16 %v1561
      %v1582 = vunpack.c.l.b16 %v1562
      %v1583 = vunpack.c.l.b16 %v1563
      %v1584 = vunpack.c.l.b16 %v1564
      %v1585 = vunpack.c.l.b16 %v1565
      %v1586 = vunpack.c.l.b16 %v1566
      %v1587 = vunpack.c.l.b16 %v1567
      %v1588 = vpack.c.b16 %v1579, %v1578
      %v1589 = vpack.c.b16 %v1581, %v1580
      %v1590 = vpack.c.b16 %v1583, %v1582
      %v1591 = vpack.c.b16 %v1585, %v1584
      %v1592 = vpack.c.b16 %v1587, %v1586
      %v1599 = vsel %vm707, %v1557, 0
      %1601 = vmatpush.bf16.msra.mxu0 0
      %1602 = vmatpush.bf16.msra.mxu0 0
      %1603 = vmatpush.bf16.msra.mxu0 0
      %1604 = vmatpush.bf16.msra.mxu0 %v1592
      %1605 = vmatpush.bf16.msra.mxu0 %v1591
      %1606 = vmatpush.bf16.msra.mxu0 %v1590
      %1607 = vmatpush.bf16.msra.mxu0 %v1589
      %1608 = vmatpush.bf16.msra.mxu0 %v1588
      %1609 = vmatmul.bf16.gmra.mxu0 %v1599
      %v1610 = vpop.f32.mrf.mxu0
      %v1611 = vadd.f32 0.0, %v1610
      %v1612 = vpop.f32.mrf.mxu0
      %1613 = vdwg.mxu0
      %v1614 = vperm.slane %v1611, 0
      %v1615 = vperm.slane %v1611, 1
      %v1616 = vsel %vm1543, %v1614, %v1615
      %v1627 = vunpack.c.l.b16 %v1547
      %v1628 = vunpack.c.l.b16 %v1548
      %v1629 = vunpack.c.l.b16 %v1549
      %v1630 = vunpack.c.l.b16 %v1550
      %v1631 = vunpack.c.l.b16 %v1551
      %v1632 = vunpack.c.l.b16 %v1552
      %v1633 = vunpack.c.l.b16 %v1553
      %v1634 = vunpack.c.l.b16 %v1554
      %v1635 = vunpack.c.l.b16 %v1555
      %v1636 = vunpack.c.l.b16 %v1556
      %v1637 = vpack.c.b16 %v1628, %v1627
      %v1638 = vpack.c.b16 %v1630, %v1629
      %v1639 = vpack.c.b16 %v1632, %v1631
      %v1640 = vpack.c.b16 %v1634, %v1633
      %v1641 = vpack.c.b16 %v1636, %v1635
      %v1648 = vsel %vm707, %v1546, 0
      %1650 = vmatpush.bf16.msra.mxu0 0
      %1651 = vmatpush.bf16.msra.mxu0 0
      %1652 = vmatpush.bf16.msra.mxu0 0
      %1653 = vmatpush.bf16.msra.mxu0 %v1641
      %1654 = vmatpush.bf16.msra.mxu0 %v1640
      %1655 = vmatpush.bf16.msra.mxu0 %v1639
      %1656 = vmatpush.bf16.msra.mxu0 %v1638
      %1657 = vmatpush.bf16.msra.mxu0 %v1637
      %1658 = vmatmul.bf16.gmra.mxu0 %v1648
      %v1659 = vpop.f32.mrf.mxu0
      %v1660 = vadd.f32 %v1616, %v1659
      %v1661 = vpop.f32.mrf.mxu0
      %1662 = vdwg.mxu0
      %v1663 = vmax.f32 %v1660, 0.0
      %v1664 = vpack.c.bf16 %v1663, %v1663
      %v1665 = vld [vmem:[%s5] sm:$0xf]
      %v1666 = vld [vmem:[%s5 + $0x4] sm:$0xf]
      %v1667 = vld [vmem:[%s5 + $0x8] sm:$0xf]
      %v1668 = vld [vmem:[%s5 + $0xc] sm:$0xf]
      %v1673 = vunpack.c.l.b16 %v1665
      %v1674 = vunpack.c.l.b16 %v1666
      %v1675 = vunpack.c.l.b16 %v1667
      %v1676 = vunpack.c.l.b16 %v1668
      %v1677 = vpack.c.b16 %v1674, %v1673
      %v1678 = vpack.c.b16 %v1676, %v1675
      %vm1681 = vcmask 261120
      %v1683 = vsel %vm1681, %v1664, 0
      %1685 = vmatpush.bf16.msra.mxu0 0
      %1686 = vmatpush.bf16.msra.mxu0 0
      %1687 = vmatpush.bf16.msra.mxu0 0
      %1688 = vmatpush.bf16.msra.mxu0 0
      %1689 = vmatpush.bf16.msra.mxu0 0
      %1690 = vmatpush.bf16.msra.mxu0 0
      %1691 = vmatpush.bf16.msra.mxu0 %v1678
      %1692 = vmatpush.bf16.msra.mxu0 %v1677
      %1693 = vmatmul.bf16.gmra.mxu0 %v1683
      %v1694 = vpop.f32.mrf.mxu0
      %v1695 = vadd.f32 0.0, %v1694
      %v1696 = vpop.f32.mrf.mxu0
      %1697 = vdwg.mxu0
      %v1698 = vld [vmem:[%s6] sm:$0xf]
      %v1699 = vld [vmem:[%s6 + $0x4] sm:$0xf]
      %v1700 = vld [vmem:[%s6 + $0x8] sm:$0xf]
      %v1701 = vld [vmem:[%s6 + $0xc] sm:$0xf]
      %v1706 = vunpack.c.l.b16 %v1698
      %v1707 = vunpack.c.l.b16 %v1699
      %v1708 = vunpack.c.l.b16 %v1700
      %v1709 = vunpack.c.l.b16 %v1701
      %v1710 = vpack.c.b16 %v1707, %v1706
      %v1711 = vpack.c.b16 %v1709, %v1708
      %1714 = vmatpush.bf16.msra.mxu0 0
      %1715 = vmatpush.bf16.msra.mxu0 0
      %1716 = vmatpush.bf16.msra.mxu0 0
      %1717 = vmatpush.bf16.msra.mxu0 0
      %1718 = vmatpush.bf16.msra.mxu0 0
      %1719 = vmatpush.bf16.msra.mxu0 0
      %1720 = vmatpush.bf16.msra.mxu0 %v1711
      %1721 = vmatpush.bf16.msra.mxu0 %v1710
      %1722 = vmatmul.bf16.gmra.mxu0 %v1683
      %v1723 = vpop.f32.mrf.mxu0
      %v1724 = vadd.f32 0.0, %v1723
      %v1725 = vpop.f32.mrf.mxu0
      %1726 = vdwg.mxu0
      %v1728 = vrot.slane %v1695, 4
      %v1730 = vadd.f32 %v1695, %v1728
      %v1731 = vxor.u32 %v1730, 2147483648
      %v1732 = vmul.f32 %v1731, 1.442695
      %v1733 = vpow.pop %v1732
      %v1734 = vadd.f32 %v1733, 1.0
      %v1735 = vrcp.pop %v1734
      %v1736 = vmul.f32 %v1734, %v1735
      %v1737 = vsub.f32 1.0, %v1736
      %v1738 = vmul.f32 %v1735, %v1737
      %v1739 = vadd.f32 %v1735, %v1738
      %vm1740 = vweird.f32 %v1734
      %vm1741 = vweird.f32 %v1735
      %vm1742 = vmor %vm1740, %vm1741
      %v1743 = vsel %vm1742, %v1735, %v1739
      %v1744 = vand.u32 2147483647, %v1734
      %vm1745 = vcmp.eq.f32.partialorder %v1744, 8.507059e+37
      %v1746 = vand.u32 %v1734, 2147483648
      %v1747 = vor.u32 1.1754944e-38, %v1746
      %v1748 = vsel %vm1745, %v1747, %v1743
      %v1749 = vmul.f32 1.0, %v1748
      %v1750 = vpack.c.bf16 %v1749, %v1749
      %v1752 = vrot.slane %v1724, 4
      %v1754 = vadd.f32 %v1724, %v1752
      %v1755 = vxor.u32 %v1754, 2147483648
      %v1756 = vmul.f32 %v1755, 1.442695
      %v1757 = vpow.pop %v1756
      %v1758 = vadd.f32 %v1757, 1.0
      %v1759 = vrcp.pop %v1758
      %v1760 = vmul.f32 %v1758, %v1759
      %v1761 = vsub.f32 1.0, %v1760
      %v1762 = vmul.f32 %v1759, %v1761
      %v1763 = vadd.f32 %v1759, %v1762
      %vm1764 = vweird.f32 %v1758
      %vm1765 = vweird.f32 %v1759
      %vm1766 = vmor %vm1764, %vm1765
      %v1767 = vsel %vm1766, %v1759, %v1763
      %v1768 = vand.u32 2147483647, %v1758
      %vm1769 = vcmp.eq.f32.partialorder %v1768, 8.507059e+37
      %v1770 = vand.u32 %v1758, 2147483648
      %v1771 = vor.u32 1.1754944e-38, %v1770
      %v1772 = vsel %vm1769, %v1771, %v1767
      %v1773 = vmul.f32 1.0, %v1772
      %v1774 = vpack.c.bf16 %v1773, %v1773
      %v1776 = vpack.i.b16 %v1750, %v1750
      %v1778 = vperm.slane %v1776, 0
      %v1779 = vunpack.c.l.bf16 %v1778
      %v1780 = vmul.f32 %v675, %v1779
      %v1781 = vmul.f32 %v676, %v1779
      %v1782 = vmul.f32 %v677, %v1779
      %v1783 = vmul.f32 %v678, %v1779
      %v1784 = vmul.f32 %v679, %v1779
      %v1785 = vmul.f32 %v680, %v1779
      %v1786 = vmul.f32 %v681, %v1779
      %v1787 = vmul.f32 %v682, %v1779
      %v1788 = vmul.f32 %v683, %v1779
      %v1789 = vmul.f32 %v684, %v1779
      %v1790 = vmul.f32 %v685, %v1779
      %v1791 = vmul.f32 %v686, %v1779
      %v1792 = vmul.f32 %v687, %v1779
      %v1793 = vmul.f32 %v688, %v1779
      %v1794 = vmul.f32 %v689, %v1779
      %v1795 = vmul.f32 %v690, %v1779
      %v1796 = vmul.f32 %v691, %v1779
      %v1797 = vmul.f32 %v692, %v1779
      %v1798 = vmul.f32 %v693, %v1779
      %v1799 = vmul.f32 %v694, %v1779
      %v1800 = vmul.f32 %v695, %v1779
      %v1801 = vmul.f32 %v696, %v1779
      %v1802 = vmul.f32 %v697, %v1779
      %v1803 = vmul.f32 %v698, %v1779
      %v1804 = vmul.f32 %v699, %v1779
      %v1805 = vmul.f32 %v700, %v1779
      %v1806 = vmul.f32 %v701, %v1779
      %v1807 = vmul.f32 %v702, %v1779
      %v1808 = vmul.f32 %v703, %v1779
      %v1809 = vmul.f32 %v704, %v1779
      %v1810 = vmul.f32 %v705, %v1779
      %v1811 = vmul.f32 %v706, %v1779
      %v1812 = vpack.c.bf16 %v1780, %v1780
      %v1813 = vpack.c.bf16 %v1781, %v1781
      %v1814 = vpack.c.bf16 %v1782, %v1782
      %v1815 = vpack.c.bf16 %v1783, %v1783
      %v1816 = vpack.c.bf16 %v1784, %v1784
      %v1817 = vpack.c.bf16 %v1785, %v1785
      %v1818 = vpack.c.bf16 %v1786, %v1786
      %v1819 = vpack.c.bf16 %v1787, %v1787
      %v1820 = vpack.c.bf16 %v1788, %v1788
      %v1821 = vpack.c.bf16 %v1789, %v1789
      %v1822 = vpack.c.bf16 %v1790, %v1790
      %v1823 = vpack.c.bf16 %v1791, %v1791
      %v1824 = vpack.c.bf16 %v1792, %v1792
      %v1825 = vpack.c.bf16 %v1793, %v1793
      %v1826 = vpack.c.bf16 %v1794, %v1794
      %v1827 = vpack.c.bf16 %v1795, %v1795
      %v1828 = vpack.c.bf16 %v1796, %v1796
      %v1829 = vpack.c.bf16 %v1797, %v1797
      %v1830 = vpack.c.bf16 %v1798, %v1798
      %v1831 = vpack.c.bf16 %v1799, %v1799
      %v1832 = vpack.c.bf16 %v1800, %v1800
      %v1833 = vpack.c.bf16 %v1801, %v1801
      %v1834 = vpack.c.bf16 %v1802, %v1802
      %v1835 = vpack.c.bf16 %v1803, %v1803
      %v1836 = vpack.c.bf16 %v1804, %v1804
      %v1837 = vpack.c.bf16 %v1805, %v1805
      %v1838 = vpack.c.bf16 %v1806, %v1806
      %v1839 = vpack.c.bf16 %v1807, %v1807
      %v1840 = vpack.c.bf16 %v1808, %v1808
      %v1841 = vpack.c.bf16 %v1809, %v1809
      %v1842 = vpack.c.bf16 %v1810, %v1810
      %v1843 = vpack.c.bf16 %v1811, %v1811
      %v1845 = vpack.i.b16 %v1774, %v1774
      %v1847 = vperm.slane %v1845, 0
      %v1848 = vunpack.c.l.bf16 %v1847
      %v1849 = vmul.f32 %v847, %v1848
      %v1850 = vmul.f32 %v848, %v1848
      %v1851 = vmul.f32 %v849, %v1848
      %v1852 = vmul.f32 %v850, %v1848
      %v1853 = vmul.f32 %v851, %v1848
      %v1854 = vmul.f32 %v852, %v1848
      %v1855 = vmul.f32 %v853, %v1848
      %v1856 = vmul.f32 %v854, %v1848
      %v1857 = vmul.f32 %v855, %v1848
      %v1858 = vmul.f32 %v856, %v1848
      %v1859 = vmul.f32 %v857, %v1848
      %v1860 = vmul.f32 %v858, %v1848
      %v1861 = vmul.f32 %v859, %v1848
      %v1862 = vmul.f32 %v860, %v1848
      %v1863 = vmul.f32 %v861, %v1848
      %v1864 = vmul.f32 %v862, %v1848
      %v1865 = vmul.f32 %v863, %v1848
      %v1866 = vmul.f32 %v864, %v1848
      %v1867 = vmul.f32 %v865, %v1848
      %v1868 = vmul.f32 %v866, %v1848
      %v1869 = vmul.f32 %v867, %v1848
      %v1870 = vmul.f32 %v868, %v1848
      %v1871 = vmul.f32 %v869, %v1848
      %v1872 = vmul.f32 %v870, %v1848
      %v1873 = vmul.f32 %v871, %v1848
      %v1874 = vmul.f32 %v872, %v1848
      %v1875 = vmul.f32 %v873, %v1848
      %v1876 = vmul.f32 %v874, %v1848
      %v1877 = vmul.f32 %v875, %v1848
      %v1878 = vmul.f32 %v876, %v1848
      %v1879 = vmul.f32 %v877, %v1848
      %v1880 = vmul.f32 %v878, %v1848
      %v1881 = vpack.c.bf16 %v1849, %v1849
      %v1882 = vpack.c.bf16 %v1850, %v1850
      %v1883 = vpack.c.bf16 %v1851, %v1851
      %v1884 = vpack.c.bf16 %v1852, %v1852
      %v1885 = vpack.c.bf16 %v1853, %v1853
      %v1886 = vpack.c.bf16 %v1854, %v1854
      %v1887 = vpack.c.bf16 %v1855, %v1855
      %v1888 = vpack.c.bf16 %v1856, %v1856
      %v1889 = vpack.c.bf16 %v1857, %v1857
      %v1890 = vpack.c.bf16 %v1858, %v1858
      %v1891 = vpack.c.bf16 %v1859, %v1859
      %v1892 = vpack.c.bf16 %v1860, %v1860
      %v1893 = vpack.c.bf16 %v1861, %v1861
      %v1894 = vpack.c.bf16 %v1862, %v1862
      %v1895 = vpack.c.bf16 %v1863, %v1863
      %v1896 = vpack.c.bf16 %v1864, %v1864
      %v1897 = vpack.c.bf16 %v1865, %v1865
      %v1898 = vpack.c.bf16 %v1866, %v1866
      %v1899 = vpack.c.bf16 %v1867, %v1867
      %v1900 = vpack.c.bf16 %v1868, %v1868
      %v1901 = vpack.c.bf16 %v1869, %v1869
      %v1902 = vpack.c.bf16 %v1870, %v1870
      %v1903 = vpack.c.bf16 %v1871, %v1871
      %v1904 = vpack.c.bf16 %v1872, %v1872
      %v1905 = vpack.c.bf16 %v1873, %v1873
      %v1906 = vpack.c.bf16 %v1874, %v1874
      %v1907 = vpack.c.bf16 %v1875, %v1875
      %v1908 = vpack.c.bf16 %v1876, %v1876
      %v1909 = vpack.c.bf16 %v1877, %v1877
      %v1910 = vpack.c.bf16 %v1878, %v1878
      %v1911 = vpack.c.bf16 %v1879, %v1879
      %v1912 = vpack.c.bf16 %v1880, %v1880
      %v1913 = vld [vmem:[%s7] sm:$0xf]
      %v1914 = vld [vmem:[%s7 + $0x4] sm:$0xf]
      %v1915 = vld [vmem:[%s7 + $0x8] sm:$0xf]
      %v1916 = vld [vmem:[%s7 + $0xc] sm:$0xf]
      %v1917 = vld [vmem:[%s7 + $0x10] sm:$0xf]
      %v1918 = vld [vmem:[%s7 + $0x14] sm:$0xf]
      %v1919 = vld [vmem:[%s7 + $0x18] sm:$0xf]
      %v1920 = vld [vmem:[%s7 + $0x1c] sm:$0xf]
      %v1921 = vld [vmem:[%s7 + $0x20] sm:$0xf]
      %v1922 = vld [vmem:[%s7 + $0x24] sm:$0xf]
      %v1923 = vld [vmem:[%s8] sm:$0xf]
      %v1924 = vld [vmem:[%s8 + $0x4] sm:$0xf]
      %v1925 = vld [vmem:[%s8 + $0x8] sm:$0xf]
      %v1926 = vld [vmem:[%s8 + $0xc] sm:$0xf]
      %v1927 = vld [vmem:[%s8 + $0x10] sm:$0xf]
      %v1928 = vld [vmem:[%s8 + $0x14] sm:$0xf]
      %v1929 = vld [vmem:[%s8 + $0x18] sm:$0xf]
      %v1930 = vld [vmem:[%s8 + $0x1c] sm:$0xf]
      %v1931 = vld [vmem:[%s8 + $0x20] sm:$0xf]
      %v1932 = vld [vmem:[%s8 + $0x24] sm:$0xf]
      %v1965 = vunpack.c.l.b16 %v1881
      %v1966 = vunpack.c.l.b16 %v1882
      %v1967 = vunpack.c.l.b16 %v1883
      %v1968 = vunpack.c.l.b16 %v1884
      %v1969 = vunpack.c.l.b16 %v1885
      %v1970 = vunpack.c.l.b16 %v1886
      %v1971 = vunpack.c.l.b16 %v1887
      %v1972 = vunpack.c.l.b16 %v1888
      %v1973 = vunpack.c.l.b16 %v1889
      %v1974 = vunpack.c.l.b16 %v1890
      %v1975 = vunpack.c.l.b16 %v1891
      %v1976 = vunpack.c.l.b16 %v1892
      %v1977 = vunpack.c.l.b16 %v1893
      %v1978 = vunpack.c.l.b16 %v1894
      %v1979 = vunpack.c.l.b16 %v1895
      %v1980 = vunpack.c.l.b16 %v1896
      %v1981 = vunpack.c.l.b16 %v1897
      %v1982 = vunpack.c.l.b16 %v1898
      %v1983 = vunpack.c.l.b16 %v1899
      %v1984 = vunpack.c.l.b16 %v1900
      %v1985 = vunpack.c.l.b16 %v1901
      %v1986 = vunpack.c.l.b16 %v1902
      %v1987 = vunpack.c.l.b16 %v1903
      %v1988 = vunpack.c.l.b16 %v1904
      %v1989 = vunpack.c.l.b16 %v1905
      %v1990 = vunpack.c.l.b16 %v1906
      %v1991 = vunpack.c.l.b16 %v1907
      %v1992 = vunpack.c.l.b16 %v1908
      %v1993 = vunpack.c.l.b16 %v1909
      %v1994 = vunpack.c.l.b16 %v1910
      %v1995 = vunpack.c.l.b16 %v1911
      %v1996 = vunpack.c.l.b16 %v1912
      %v1997 = vpack.c.b16 %v1966, %v1965
      %v1998 = vpack.c.b16 %v1968, %v1967
      %v1999 = vpack.c.b16 %v1970, %v1969
      %v2000 = vpack.c.b16 %v1972, %v1971
      %v2001 = vpack.c.b16 %v1974, %v1973
      %v2002 = vpack.c.b16 %v1976, %v1975
      %v2003 = vpack.c.b16 %v1978, %v1977
      %v2004 = vpack.c.b16 %v1980, %v1979
      %v2005 = vpack.c.b16 %v1982, %v1981
      %v2006 = vpack.c.b16 %v1984, %v1983
      %v2007 = vpack.c.b16 %v1986, %v1985
      %v2008 = vpack.c.b16 %v1988, %v1987
      %v2009 = vpack.c.b16 %v1990, %v1989
      %v2010 = vpack.c.b16 %v1992, %v1991
      %v2011 = vpack.c.b16 %v1994, %v1993
      %v2012 = vpack.c.b16 %v1996, %v1995
      %v2023 = vunpack.c.l.b16 %v1923
      %v2024 = vunpack.c.l.b16 %v1924
      %v2025 = vunpack.c.l.b16 %v1925
      %v2026 = vunpack.c.l.b16 %v1926
      %v2027 = vunpack.c.l.b16 %v1927
      %v2028 = vunpack.c.l.b16 %v1928
      %v2029 = vunpack.c.l.b16 %v1929
      %v2030 = vunpack.c.l.b16 %v1930
      %v2031 = vunpack.c.l.b16 %v1931
      %v2032 = vunpack.c.l.b16 %v1932
      %v2033 = vpack.c.b16 %v2024, %v2023
      %v2034 = vpack.c.b16 %v2026, %v2025
      %v2035 = vpack.c.b16 %v2028, %v2027
      %v2036 = vpack.c.b16 %v2030, %v2029
      %v2037 = vpack.c.b16 %v2032, %v2031
      %v2044 = vsel %vm707, %v1997, 0
      %v2047 = vsel %vm707, %v1998, 0
      %v2050 = vsel %vm707, %v1999, 0
      %v2053 = vsel %vm707, %v2000, 0
      %v2056 = vsel %vm707, %v2001, 0
      %v2059 = vsel %vm707, %v2002, 0
      %v2062 = vsel %vm707, %v2003, 0
      %v2065 = vsel %vm707, %v2004, 0
      %v2068 = vsel %vm707, %v2005, 0
      %v2071 = vsel %vm707, %v2006, 0
      %v2074 = vsel %vm707, %v2007, 0
      %v2077 = vsel %vm707, %v2008, 0
      %v2080 = vsel %vm707, %v2009, 0
      %v2083 = vsel %vm707, %v2010, 0
      %v2086 = vsel %vm707, %v2011, 0
      %v2089 = vsel %vm707, %v2012, 0
      %2091 = vmatpush.bf16.msra.mxu0 0
      %2092 = vmatpush.bf16.msra.mxu0 0
      %2093 = vmatpush.bf16.msra.mxu0 0
      %2094 = vmatpush.bf16.msra.mxu0 %v2037
      %2095 = vmatpush.bf16.msra.mxu0 %v2036
      %2096 = vmatpush.bf16.msra.mxu0 %v2035
      %2097 = vmatpush.bf16.msra.mxu0 %v2034
      %2098 = vmatpush.bf16.msra.mxu0 %v2033
      %2099 = vmatmul.bf16.gmra.mxu0 %v2044
      %v2100 = vpop.f32.mrf.mxu0
      %v2101 = vadd.f32 0.0, %v2100
      %v2102 = vpop.f32.mrf.mxu0
      %v2103 = vadd.f32 0.0, %v2102
      %2104 = vmatmul.bf16.gmra.mxu0 %v2047
      %v2105 = vpop.f32.mrf.mxu0
      %v2106 = vadd.f32 0.0, %v2105
      %v2107 = vpop.f32.mrf.mxu0
      %v2108 = vadd.f32 0.0, %v2107
      %2109 = vmatmul.bf16.gmra.mxu0 %v2050
      %v2110 = vpop.f32.mrf.mxu0
      %v2111 = vadd.f32 0.0, %v2110
      %v2112 = vpop.f32.mrf.mxu0
      %v2113 = vadd.f32 0.0, %v2112
      %2114 = vmatmul.bf16.gmra.mxu0 %v2053
      %v2115 = vpop.f32.mrf.mxu0
      %v2116 = vadd.f32 0.0, %v2115
      %v2117 = vpop.f32.mrf.mxu0
      %v2118 = vadd.f32 0.0, %v2117
      %2119 = vmatmul.bf16.gmra.mxu0 %v2056
      %v2120 = vpop.f32.mrf.mxu0
      %v2121 = vadd.f32 0.0, %v2120
      %v2122 = vpop.f32.mrf.mxu0
      %v2123 = vadd.f32 0.0, %v2122
      %2124 = vmatmul.bf16.gmra.mxu0 %v2059
      %v2125 = vpop.f32.mrf.mxu0
      %v2126 = vadd.f32 0.0, %v2125
      %v2127 = vpop.f32.mrf.mxu0
      %v2128 = vadd.f32 0.0, %v2127
      %2129 = vmatmul.bf16.gmra.mxu0 %v2062
      %v2130 = vpop.f32.mrf.mxu0
      %v2131 = vadd.f32 0.0, %v2130
      %v2132 = vpop.f32.mrf.mxu0
      %v2133 = vadd.f32 0.0, %v2132
      %2134 = vmatmul.bf16.gmra.mxu0 %v2065
      %v2135 = vpop.f32.mrf.mxu0
      %v2136 = vadd.f32 0.0, %v2135
      %v2137 = vpop.f32.mrf.mxu0
      %v2138 = vadd.f32 0.0, %v2137
      %2139 = vmatmul.bf16.gmra.mxu0 %v2068
      %v2140 = vpop.f32.mrf.mxu0
      %v2141 = vadd.f32 0.0, %v2140
      %v2142 = vpop.f32.mrf.mxu0
      %v2143 = vadd.f32 0.0, %v2142
      %2144 = vmatmul.bf16.gmra.mxu0 %v2071
      %v2145 = vpop.f32.mrf.mxu0
      %v2146 = vadd.f32 0.0, %v2145
      %v2147 = vpop.f32.mrf.mxu0
      %v2148 = vadd.f32 0.0, %v2147
      %2149 = vmatmul.bf16.gmra.mxu0 %v2074
      %v2150 = vpop.f32.mrf.mxu0
      %v2151 = vadd.f32 0.0, %v2150
      %v2152 = vpop.f32.mrf.mxu0
      %v2153 = vadd.f32 0.0, %v2152
      %2154 = vmatmul.bf16.gmra.mxu0 %v2077
      %v2155 = vpop.f32.mrf.mxu0
      %v2156 = vadd.f32 0.0, %v2155
      %v2157 = vpop.f32.mrf.mxu0
      %v2158 = vadd.f32 0.0, %v2157
      %2159 = vmatmul.bf16.gmra.mxu0 %v2080
      %v2160 = vpop.f32.mrf.mxu0
      %v2161 = vadd.f32 0.0, %v2160
      %v2162 = vpop.f32.mrf.mxu0
      %v2163 = vadd.f32 0.0, %v2162
      %2164 = vmatmul.bf16.gmra.mxu0 %v2083
      %v2165 = vpop.f32.mrf.mxu0
      %v2166 = vadd.f32 0.0, %v2165
      %v2167 = vpop.f32.mrf.mxu0
      %v2168 = vadd.f32 0.0, %v2167
      %2169 = vmatmul.bf16.gmra.mxu0 %v2086
      %v2170 = vpop.f32.mrf.mxu0
      %v2171 = vadd.f32 0.0, %v2170
      %v2172 = vpop.f32.mrf.mxu0
      %v2173 = vadd.f32 0.0, %v2172
      %2174 = vmatmul.bf16.gmra.mxu0 %v2089
      %v2175 = vpop.f32.mrf.mxu0
      %v2176 = vadd.f32 0.0, %v2175
      %v2177 = vpop.f32.mrf.mxu0
      %v2178 = vadd.f32 0.0, %v2177
      %2179 = vdwg.mxu0
      %v2212 = vunpack.c.l.b16 %v1812
      %v2213 = vunpack.c.l.b16 %v1813
      %v2214 = vunpack.c.l.b16 %v1814
      %v2215 = vunpack.c.l.b16 %v1815
      %v2216 = vunpack.c.l.b16 %v1816
      %v2217 = vunpack.c.l.b16 %v1817
      %v2218 = vunpack.c.l.b16 %v1818
      %v2219 = vunpack.c.l.b16 %v1819
      %v2220 = vunpack.c.l.b16 %v1820
      %v2221 = vunpack.c.l.b16 %v1821
      %v2222 = vunpack.c.l.b16 %v1822
      %v2223 = vunpack.c.l.b16 %v1823
      %v2224 = vunpack.c.l.b16 %v1824
      %v2225 = vunpack.c.l.b16 %v1825
      %v2226 = vunpack.c.l.b16 %v1826
      %v2227 = vunpack.c.l.b16 %v1827
      %v2228 = vunpack.c.l.b16 %v1828
      %v2229 = vunpack.c.l.b16 %v1829
      %v2230 = vunpack.c.l.b16 %v1830
      %v2231 = vunpack.c.l.b16 %v1831
      %v2232 = vunpack.c.l.b16 %v1832
      %v2233 = vunpack.c.l.b16 %v1833
      %v2234 = vunpack.c.l.b16 %v1834
      %v2235 = vunpack.c.l.b16 %v1835
      %v2236 = vunpack.c.l.b16 %v1836
      %v2237 = vunpack.c.l.b16 %v1837
      %v2238 = vunpack.c.l.b16 %v1838
      %v2239 = vunpack.c.l.b16 %v1839
      %v2240 = vunpack.c.l.b16 %v1840
      %v2241 = vunpack.c.l.b16 %v1841
      %v2242 = vunpack.c.l.b16 %v1842
      %v2243 = vunpack.c.l.b16 %v1843
      %v2244 = vpack.c.b16 %v2213, %v2212
      %v2245 = vpack.c.b16 %v2215, %v2214
      %v2246 = vpack.c.b16 %v2217, %v2216
      %v2247 = vpack.c.b16 %v2219, %v2218
      %v2248 = vpack.c.b16 %v2221, %v2220
      %v2249 = vpack.c.b16 %v2223, %v2222
      %v2250 = vpack.c.b16 %v2225, %v2224
      %v2251 = vpack.c.b16 %v2227, %v2226
      %v2252 = vpack.c.b16 %v2229, %v2228
      %v2253 = vpack.c.b16 %v2231, %v2230
      %v2254 = vpack.c.b16 %v2233, %v2232
      %v2255 = vpack.c.b16 %v2235, %v2234
      %v2256 = vpack.c.b16 %v2237, %v2236
      %v2257 = vpack.c.b16 %v2239, %v2238
      %v2258 = vpack.c.b16 %v2241, %v2240
      %v2259 = vpack.c.b16 %v2243, %v2242
      %v2270 = vunpack.c.l.b16 %v1913
      %v2271 = vunpack.c.l.b16 %v1914
      %v2272 = vunpack.c.l.b16 %v1915
      %v2273 = vunpack.c.l.b16 %v1916
      %v2274 = vunpack.c.l.b16 %v1917
      %v2275 = vunpack.c.l.b16 %v1918
      %v2276 = vunpack.c.l.b16 %v1919
      %v2277 = vunpack.c.l.b16 %v1920
      %v2278 = vunpack.c.l.b16 %v1921
      %v2279 = vunpack.c.l.b16 %v1922
      %v2280 = vpack.c.b16 %v2271, %v2270
      %v2281 = vpack.c.b16 %v2273, %v2272
      %v2282 = vpack.c.b16 %v2275, %v2274
      %v2283 = vpack.c.b16 %v2277, %v2276
      %v2284 = vpack.c.b16 %v2279, %v2278
      %v2291 = vsel %vm707, %v2244, 0
      %v2294 = vsel %vm707, %v2245, 0
      %v2297 = vsel %vm707, %v2246, 0
      %v2300 = vsel %vm707, %v2247, 0
      %v2303 = vsel %vm707, %v2248, 0
      %v2306 = vsel %vm707, %v2249, 0
      %v2309 = vsel %vm707, %v2250, 0
      %v2312 = vsel %vm707, %v2251, 0
      %v2315 = vsel %vm707, %v2252, 0
      %v2318 = vsel %vm707, %v2253, 0
      %v2321 = vsel %vm707, %v2254, 0
      %v2324 = vsel %vm707, %v2255, 0
      %v2327 = vsel %vm707, %v2256, 0
      %v2330 = vsel %vm707, %v2257, 0
      %v2333 = vsel %vm707, %v2258, 0
      %v2336 = vsel %vm707, %v2259, 0
      %2338 = vmatpush.bf16.msra.mxu0 0
      %2339 = vmatpush.bf16.msra.mxu0 0
      %2340 = vmatpush.bf16.msra.mxu0 0
      %2341 = vmatpush.bf16.msra.mxu0 %v2284
      %2342 = vmatpush.bf16.msra.mxu0 %v2283
      %2343 = vmatpush.bf16.msra.mxu0 %v2282
      %2344 = vmatpush.bf16.msra.mxu0 %v2281
      %2345 = vmatpush.bf16.msra.mxu0 %v2280
      %2346 = vmatmul.bf16.gmra.mxu0 %v2291
      %v2347 = vpop.f32.mrf.mxu0
      %v2348 = vadd.f32 %v2101, %v2347
      %v2349 = vpop.f32.mrf.mxu0
      %v2350 = vadd.f32 %v2103, %v2349
      %2351 = vmatmul.bf16.gmra.mxu0 %v2294
      %v2352 = vpop.f32.mrf.mxu0
      %v2353 = vadd.f32 %v2106, %v2352
      %v2354 = vpop.f32.mrf.mxu0
      %v2355 = vadd.f32 %v2108, %v2354
      %2356 = vmatmul.bf16.gmra.mxu0 %v2297
      %v2357 = vpop.f32.mrf.mxu0
      %v2358 = vadd.f32 %v2111, %v2357
      %v2359 = vpop.f32.mrf.mxu0
      %v2360 = vadd.f32 %v2113, %v2359
      %2361 = vmatmul.bf16.gmra.mxu0 %v2300
      %v2362 = vpop.f32.mrf.mxu0
      %v2363 = vadd.f32 %v2116, %v2362
      %v2364 = vpop.f32.mrf.mxu0
      %v2365 = vadd.f32 %v2118, %v2364
      %2366 = vmatmul.bf16.gmra.mxu0 %v2303
      %v2367 = vpop.f32.mrf.mxu0
      %v2368 = vadd.f32 %v2121, %v2367
      %v2369 = vpop.f32.mrf.mxu0
      %v2370 = vadd.f32 %v2123, %v2369
      %2371 = vmatmul.bf16.gmra.mxu0 %v2306
      %v2372 = vpop.f32.mrf.mxu0
      %v2373 = vadd.f32 %v2126, %v2372
      %v2374 = vpop.f32.mrf.mxu0
      %v2375 = vadd.f32 %v2128, %v2374
      %2376 = vmatmul.bf16.gmra.mxu0 %v2309
      %v2377 = vpop.f32.mrf.mxu0
      %v2378 = vadd.f32 %v2131, %v2377
      %v2379 = vpop.f32.mrf.mxu0
      %v2380 = vadd.f32 %v2133, %v2379
      %2381 = vmatmul.bf16.gmra.mxu0 %v2312
      %v2382 = vpop.f32.mrf.mxu0
      %v2383 = vadd.f32 %v2136, %v2382
      %v2384 = vpop.f32.mrf.mxu0
      %v2385 = vadd.f32 %v2138, %v2384
      %2386 = vmatmul.bf16.gmra.mxu0 %v2315
      %v2387 = vpop.f32.mrf.mxu0
      %v2388 = vadd.f32 %v2141, %v2387
      %v2389 = vpop.f32.mrf.mxu0
      %v2390 = vadd.f32 %v2143, %v2389
      %2391 = vmatmul.bf16.gmra.mxu0 %v2318
      %v2392 = vpop.f32.mrf.mxu0
      %v2393 = vadd.f32 %v2146, %v2392
      %v2394 = vpop.f32.mrf.mxu0
      %v2395 = vadd.f32 %v2148, %v2394
      %2396 = vmatmul.bf16.gmra.mxu0 %v2321
      %v2397 = vpop.f32.mrf.mxu0
      %v2398 = vadd.f32 %v2151, %v2397
      %v2399 = vpop.f32.mrf.mxu0
      %v2400 = vadd.f32 %v2153, %v2399
      %2401 = vmatmul.bf16.gmra.mxu0 %v2324
      %v2402 = vpop.f32.mrf.mxu0
      %v2403 = vadd.f32 %v2156, %v2402
      %v2404 = vpop.f32.mrf.mxu0
      %v2405 = vadd.f32 %v2158, %v2404
      %2406 = vmatmul.bf16.gmra.mxu0 %v2327
      %v2407 = vpop.f32.mrf.mxu0
      %v2408 = vadd.f32 %v2161, %v2407
      %v2409 = vpop.f32.mrf.mxu0
      %v2410 = vadd.f32 %v2163, %v2409
      %2411 = vmatmul.bf16.gmra.mxu0 %v2330
      %v2412 = vpop.f32.mrf.mxu0
      %v2413 = vadd.f32 %v2166, %v2412
      %v2414 = vpop.f32.mrf.mxu0
      %v2415 = vadd.f32 %v2168, %v2414
      %2416 = vmatmul.bf16.gmra.mxu0 %v2333
      %v2417 = vpop.f32.mrf.mxu0
      %v2418 = vadd.f32 %v2171, %v2417
      %v2419 = vpop.f32.mrf.mxu0
      %v2420 = vadd.f32 %v2173, %v2419
      %2421 = vmatmul.bf16.gmra.mxu0 %v2336
      %v2422 = vpop.f32.mrf.mxu0
      %v2423 = vadd.f32 %v2176, %v2422
      %v2424 = vpop.f32.mrf.mxu0
      %v2425 = vadd.f32 %v2178, %v2424
      %2426 = vdwg.mxu0
      %v2427 = vunpack.c.l.bf16 %v1812
      %v2428 = vunpack.c.l.bf16 %v1813
      %v2429 = vunpack.c.l.bf16 %v1814
      %v2430 = vunpack.c.l.bf16 %v1815
      %v2431 = vunpack.c.l.bf16 %v1816
      %v2432 = vunpack.c.l.bf16 %v1817
      %v2433 = vunpack.c.l.bf16 %v1818
      %v2434 = vunpack.c.l.bf16 %v1819
      %v2435 = vunpack.c.l.bf16 %v1820
      %v2436 = vunpack.c.l.bf16 %v1821
      %v2437 = vunpack.c.l.bf16 %v1822
      %v2438 = vunpack.c.l.bf16 %v1823
      %v2439 = vunpack.c.l.bf16 %v1824
      %v2440 = vunpack.c.l.bf16 %v1825
      %v2441 = vunpack.c.l.bf16 %v1826
      %v2442 = vunpack.c.l.bf16 %v1827
      %v2443 = vunpack.c.l.bf16 %v1828
      %v2444 = vunpack.c.l.bf16 %v1829
      %v2445 = vunpack.c.l.bf16 %v1830
      %v2446 = vunpack.c.l.bf16 %v1831
      %v2447 = vunpack.c.l.bf16 %v1832
      %v2448 = vunpack.c.l.bf16 %v1833
      %v2449 = vunpack.c.l.bf16 %v1834
      %v2450 = vunpack.c.l.bf16 %v1835
      %v2451 = vunpack.c.l.bf16 %v1836
      %v2452 = vunpack.c.l.bf16 %v1837
      %v2453 = vunpack.c.l.bf16 %v1838
      %v2454 = vunpack.c.l.bf16 %v1839
      %v2455 = vunpack.c.l.bf16 %v1840
      %v2456 = vunpack.c.l.bf16 %v1841
      %v2457 = vunpack.c.l.bf16 %v1842
      %v2458 = vunpack.c.l.bf16 %v1843
      %v2459 = vunpack.c.l.bf16 %v1881
      %v2460 = vunpack.c.l.bf16 %v1882
      %v2461 = vunpack.c.l.bf16 %v1883
      %v2462 = vunpack.c.l.bf16 %v1884
      %v2463 = vunpack.c.l.bf16 %v1885
      %v2464 = vunpack.c.l.bf16 %v1886
      %v2465 = vunpack.c.l.bf16 %v1887
      %v2466 = vunpack.c.l.bf16 %v1888
      %v2467 = vunpack.c.l.bf16 %v1889
      %v2468 = vunpack.c.l.bf16 %v1890
      %v2469 = vunpack.c.l.bf16 %v1891
      %v2470 = vunpack.c.l.bf16 %v1892
      %v2471 = vunpack.c.l.bf16 %v1893
      %v2472 = vunpack.c.l.bf16 %v1894
      %v2473 = vunpack.c.l.bf16 %v1895
      %v2474 = vunpack.c.l.bf16 %v1896
      %v2475 = vunpack.c.l.bf16 %v1897
      %v2476 = vunpack.c.l.bf16 %v1898
      %v2477 = vunpack.c.l.bf16 %v1899
      %v2478 = vunpack.c.l.bf16 %v1900
      %v2479 = vunpack.c.l.bf16 %v1901
      %v2480 = vunpack.c.l.bf16 %v1902
      %v2481 = vunpack.c.l.bf16 %v1903
      %v2482 = vunpack.c.l.bf16 %v1904
      %v2483 = vunpack.c.l.bf16 %v1905
      %v2484 = vunpack.c.l.bf16 %v1906
      %v2485 = vunpack.c.l.bf16 %v1907
      %v2486 = vunpack.c.l.bf16 %v1908
      %v2487 = vunpack.c.l.bf16 %v1909
      %v2488 = vunpack.c.l.bf16 %v1910
      %v2489 = vunpack.c.l.bf16 %v1911
      %v2490 = vunpack.c.l.bf16 %v1912
      %v2491 = vmax.f32 %v2427, %v2459
      %v2492 = vmax.f32 %v2428, %v2460
      %v2493 = vmax.f32 %v2429, %v2461
      %v2494 = vmax.f32 %v2430, %v2462
      %v2495 = vmax.f32 %v2431, %v2463
      %v2496 = vmax.f32 %v2432, %v2464
      %v2497 = vmax.f32 %v2433, %v2465
      %v2498 = vmax.f32 %v2434, %v2466
      %v2499 = vmax.f32 %v2435, %v2467
      %v2500 = vmax.f32 %v2436, %v2468
      %v2501 = vmax.f32 %v2437, %v2469
      %v2502 = vmax.f32 %v2438, %v2470
      %v2503 = vmax.f32 %v2439, %v2471
      %v2504 = vmax.f32 %v2440, %v2472
      %v2505 = vmax.f32 %v2441, %v2473
      %v2506 = vmax.f32 %v2442, %v2474
      %v2507 = vmax.f32 %v2443, %v2475
      %v2508 = vmax.f32 %v2444, %v2476
      %v2509 = vmax.f32 %v2445, %v2477
      %v2510 = vmax.f32 %v2446, %v2478
      %v2511 = vmax.f32 %v2447, %v2479
      %v2512 = vmax.f32 %v2448, %v2480
      %v2513 = vmax.f32 %v2449, %v2481
      %v2514 = vmax.f32 %v2450, %v2482
      %v2515 = vmax.f32 %v2451, %v2483
      %v2516 = vmax.f32 %v2452, %v2484
      %v2517 = vmax.f32 %v2453, %v2485
      %v2518 = vmax.f32 %v2454, %v2486
      %v2519 = vmax.f32 %v2455, %v2487
      %v2520 = vmax.f32 %v2456, %v2488
      %v2521 = vmax.f32 %v2457, %v2489
      %v2522 = vmax.f32 %v2458, %v2490
      %v2523 = vpack.c.bf16 %v2492, %v2491
      %v2524 = vpack.c.bf16 %v2494, %v2493
      %v2525 = vpack.c.bf16 %v2496, %v2495
      %v2526 = vpack.c.bf16 %v2498, %v2497
      %v2527 = vpack.c.bf16 %v2500, %v2499
      %v2528 = vpack.c.bf16 %v2502, %v2501
      %v2529 = vpack.c.bf16 %v2504, %v2503
      %v2530 = vpack.c.bf16 %v2506, %v2505
      %v2531 = vpack.c.bf16 %v2508, %v2507
      %v2532 = vpack.c.bf16 %v2510, %v2509
      %v2533 = vpack.c.bf16 %v2512, %v2511
      %v2534 = vpack.c.bf16 %v2514, %v2513
      %v2535 = vpack.c.bf16 %v2516, %v2515
      %v2536 = vpack.c.bf16 %v2518, %v2517
      %v2537 = vpack.c.bf16 %v2520, %v2519
      %v2538 = vpack.c.bf16 %v2522, %v2521
      %v2539 = vunpack.c.l.bf16 %v2523
      %v2540 = vunpack.c.h.bf16 %v2523
      %v2541 = vunpack.c.l.bf16 %v2524
      %v2542 = vunpack.c.h.bf16 %v2524
      %v2543 = vunpack.c.l.bf16 %v2525
      %v2544 = vunpack.c.h.bf16 %v2525
      %v2545 = vunpack.c.l.bf16 %v2526
      %v2546 = vunpack.c.h.bf16 %v2526
      %v2547 = vunpack.c.l.bf16 %v2527
      %v2548 = vunpack.c.h.bf16 %v2527
      %v2549 = vunpack.c.l.bf16 %v2528
      %v2550 = vunpack.c.h.bf16 %v2528
      %v2551 = vunpack.c.l.bf16 %v2529
      %v2552 = vunpack.c.h.bf16 %v2529
      %v2553 = vunpack.c.l.bf16 %v2530
      %v2554 = vunpack.c.h.bf16 %v2530
      %v2555 = vunpack.c.l.bf16 %v2531
      %v2556 = vunpack.c.h.bf16 %v2531
      %v2557 = vunpack.c.l.bf16 %v2532
      %v2558 = vunpack.c.h.bf16 %v2532
      %v2559 = vunpack.c.l.bf16 %v2533
      %v2560 = vunpack.c.h.bf16 %v2533
      %v2561 = vunpack.c.l.bf16 %v2534
      %v2562 = vunpack.c.h.bf16 %v2534
      %v2563 = vunpack.c.l.bf16 %v2535
      %v2564 = vunpack.c.h.bf16 %v2535
      %v2565 = vunpack.c.l.bf16 %v2536
      %v2566 = vunpack.c.h.bf16 %v2536
      %v2567 = vunpack.c.l.bf16 %v2537
      %v2568 = vunpack.c.h.bf16 %v2537
      %v2569 = vunpack.c.l.bf16 %v2538
      %v2570 = vunpack.c.h.bf16 %v2538
      %v2571 = vsel %vm707, %v2539, -inf
      %2572 = vmax.xlane.f32.xlu0 %v2571
      %v2573 = vpop.xlane.xlu0 %2572
      %v2574 = vsel %vm707, %v2540, -inf
      %2575 = vmax.xlane.f32.xlu0 %v2574
      %v2576 = vpop.xlane.xlu0 %2575
      %v2577 = vsel %vm707, %v2541, -inf
      %2578 = vmax.xlane.f32.xlu0 %v2577
      %v2579 = vpop.xlane.xlu0 %2578
      %v2580 = vsel %vm707, %v2542, -inf
      %2581 = vmax.xlane.f32.xlu0 %v2580
      %v2582 = vpop.xlane.xlu0 %2581
      %v2583 = vsel %vm707, %v2543, -inf
      %2584 = vmax.xlane.f32.xlu0 %v2583
      %v2585 = vpop.xlane.xlu0 %2584
      %v2586 = vsel %vm707, %v2544, -inf
      %2587 = vmax.xlane.f32.xlu0 %v2586
      %v2588 = vpop.xlane.xlu0 %2587
      %v2589 = vsel %vm707, %v2545, -inf
      %2590 = vmax.xlane.f32.xlu0 %v2589
      %v2591 = vpop.xlane.xlu0 %2590
      %v2592 = vsel %vm707, %v2546, -inf
      %2593 = vmax.xlane.f32.xlu0 %v2592
      %v2594 = vpop.xlane.xlu0 %2593
      %v2595 = vsel %vm707, %v2547, -inf
      %2596 = vmax.xlane.f32.xlu0 %v2595
      %v2597 = vpop.xlane.xlu0 %2596
      %v2598 = vsel %vm707, %v2548, -inf
      %2599 = vmax.xlane.f32.xlu0 %v2598
      %v2600 = vpop.xlane.xlu0 %2599
      %v2601 = vsel %vm707, %v2549, -inf
      %2602 = vmax.xlane.f32.xlu0 %v2601
      %v2603 = vpop.xlane.xlu0 %2602
      %v2604 = vsel %vm707, %v2550, -inf
      %2605 = vmax.xlane.f32.xlu0 %v2604
      %v2606 = vpop.xlane.xlu0 %2605
      %v2607 = vsel %vm707, %v2551, -inf
      %2608 = vmax.xlane.f32.xlu0 %v2607
      %v2609 = vpop.xlane.xlu0 %2608
      %v2610 = vsel %vm707, %v2552, -inf
      %2611 = vmax.xlane.f32.xlu0 %v2610
      %v2612 = vpop.xlane.xlu0 %2611
      %v2613 = vsel %vm707, %v2553, -inf
      %2614 = vmax.xlane.f32.xlu0 %v2613
      %v2615 = vpop.xlane.xlu0 %2614
      %v2616 = vsel %vm707, %v2554, -inf
      %2617 = vmax.xlane.f32.xlu0 %v2616
      %v2618 = vpop.xlane.xlu0 %2617
      %v2619 = vsel %vm707, %v2555, -inf
      %2620 = vmax.xlane.f32.xlu0 %v2619
      %v2621 = vpop.xlane.xlu0 %2620
      %v2622 = vsel %vm707, %v2556, -inf
      %2623 = vmax.xlane.f32.xlu0 %v2622
      %v2624 = vpop.xlane.xlu0 %2623
      %v2625 = vsel %vm707, %v2557, -inf
      %2626 = vmax.xlane.f32.xlu0 %v2625
      %v2627 = vpop.xlane.xlu0 %2626
      %v2628 = vsel %vm707, %v2558, -inf
      %2629 = vmax.xlane.f32.xlu0 %v2628
      %v2630 = vpop.xlane.xlu0 %2629
      %v2631 = vsel %vm707, %v2559, -inf
      %2632 = vmax.xlane.f32.xlu0 %v2631
      %v2633 = vpop.xlane.xlu0 %2632
      %v2634 = vsel %vm707, %v2560, -inf
      %2635 = vmax.xlane.f32.xlu0 %v2634
      %v2636 = vpop.xlane.xlu0 %2635
      %v2637 = vsel %vm707, %v2561, -inf
      %2638 = vmax.xlane.f32.xlu0 %v2637
      %v2639 = vpop.xlane.xlu0 %2638
      %v2640 = vsel %vm707, %v2562, -inf
      %2641 = vmax.xlane.f32.xlu0 %v2640
      %v2642 = vpop.xlane.xlu0 %2641
      %v2643 = vsel %vm707, %v2563, -inf
      %2644 = vmax.xlane.f32.xlu0 %v2643
      %v2645 = vpop.xlane.xlu0 %2644
      %v2646 = vsel %vm707, %v2564, -inf
      %2647 = vmax.xlane.f32.xlu0 %v2646
      %v2648 = vpop.xlane.xlu0 %2647
      %v2649 = vsel %vm707, %v2565, -inf
      %2650 = vmax.xlane.f32.xlu0 %v2649
      %v2651 = vpop.xlane.xlu0 %2650
      %v2652 = vsel %vm707, %v2566, -inf
      %2653 = vmax.xlane.f32.xlu0 %v2652
      %v2654 = vpop.xlane.xlu0 %2653
      %v2655 = vsel %vm707, %v2567, -inf
      %2656 = vmax.xlane.f32.xlu0 %v2655
      %v2657 = vpop.xlane.xlu0 %2656
      %v2658 = vsel %vm707, %v2568, -inf
      %2659 = vmax.xlane.f32.xlu0 %v2658
      %v2660 = vpop.xlane.xlu0 %2659
      %v2661 = vsel %vm707, %v2569, -inf
      %2662 = vmax.xlane.f32.xlu0 %v2661
      %v2663 = vpop.xlane.xlu0 %2662
      %v2664 = vsel %vm707, %v2570, -inf
      %2665 = vmax.xlane.f32.xlu0 %v2664
      %v2666 = vpop.xlane.xlu0 %2665
      %v2667 = vshrl.u32 %v1750, 16
      %v2668 = vpack.i.b16 %v2667, %v2667
      %v2670 = vperm.slane %v2668, 0
      %v2671 = vunpack.c.l.bf16 %v2670
      %v2672 = vmul.f32 %v675, %v2671
      %v2673 = vmul.f32 %v676, %v2671
      %v2674 = vmul.f32 %v677, %v2671
      %v2675 = vmul.f32 %v678, %v2671
      %v2676 = vmul.f32 %v679, %v2671
      %v2677 = vmul.f32 %v680, %v2671
      %v2678 = vmul.f32 %v681, %v2671
      %v2679 = vmul.f32 %v682, %v2671
      %v2680 = vmul.f32 %v683, %v2671
      %v2681 = vmul.f32 %v684, %v2671
      %v2682 = vmul.f32 %v685, %v2671
      %v2683 = vmul.f32 %v686, %v2671
      %v2684 = vmul.f32 %v687, %v2671
      %v2685 = vmul.f32 %v688, %v2671
      %v2686 = vmul.f32 %v689, %v2671
      %v2687 = vmul.f32 %v690, %v2671
      %v2688 = vmul.f32 %v691, %v2671
      %v2689 = vmul.f32 %v692, %v2671
      %v2690 = vmul.f32 %v693, %v2671
      %v2691 = vmul.f32 %v694, %v2671
      %v2692 = vmul.f32 %v695, %v2671
      %v2693 = vmul.f32 %v696, %v2671
      %v2694 = vmul.f32 %v697, %v2671
      %v2695 = vmul.f32 %v698, %v2671
      %v2696 = vmul.f32 %v699, %v2671
      %v2697 = vmul.f32 %v700, %v2671
      %v2698 = vmul.f32 %v701, %v2671
      %v2699 = vmul.f32 %v702, %v2671
      %v2700 = vmul.f32 %v703, %v2671
      %v2701 = vmul.f32 %v704, %v2671
      %v2702 = vmul.f32 %v705, %v2671
      %v2703 = vmul.f32 %v706, %v2671
      %v2704 = vpack.c.bf16 %v2672, %v2672
      %v2705 = vpack.c.bf16 %v2673, %v2673
      %v2706 = vpack.c.bf16 %v2674, %v2674
      %v2707 = vpack.c.bf16 %v2675, %v2675
      %v2708 = vpack.c.bf16 %v2676, %v2676
      %v2709 = vpack.c.bf16 %v2677, %v2677
      %v2710 = vpack.c.bf16 %v2678, %v2678
      %v2711 = vpack.c.bf16 %v2679, %v2679
      %v2712 = vpack.c.bf16 %v2680, %v2680
      %v2713 = vpack.c.bf16 %v2681, %v2681
      %v2714 = vpack.c.bf16 %v2682, %v2682
      %v2715 = vpack.c.bf16 %v2683, %v2683
      %v2716 = vpack.c.bf16 %v2684, %v2684
      %v2717 = vpack.c.bf16 %v2685, %v2685
      %v2718 = vpack.c.bf16 %v2686, %v2686
      %v2719 = vpack.c.bf16 %v2687, %v2687
      %v2720 = vpack.c.bf16 %v2688, %v2688
      %v2721 = vpack.c.bf16 %v2689, %v2689
      %v2722 = vpack.c.bf16 %v2690, %v2690
      %v2723 = vpack.c.bf16 %v2691, %v2691
      %v2724 = vpack.c.bf16 %v2692, %v2692
      %v2725 = vpack.c.bf16 %v2693, %v2693
      %v2726 = vpack.c.bf16 %v2694, %v2694
      %v2727 = vpack.c.bf16 %v2695, %v2695
      %v2728 = vpack.c.bf16 %v2696, %v2696
      %v2729 = vpack.c.bf16 %v2697, %v2697
      %v2730 = vpack.c.bf16 %v2698, %v2698
      %v2731 = vpack.c.bf16 %v2699, %v2699
      %v2732 = vpack.c.bf16 %v2700, %v2700
      %v2733 = vpack.c.bf16 %v2701, %v2701
      %v2734 = vpack.c.bf16 %v2702, %v2702
      %v2735 = vpack.c.bf16 %v2703, %v2703
      %v2736 = vshrl.u32 %v1774, 16
      %v2737 = vpack.i.b16 %v2736, %v2736
      %v2739 = vperm.slane %v2737, 0
      %v2740 = vunpack.c.l.bf16 %v2739
      %v2741 = vmul.f32 %v1018, %v2740
      %v2742 = vmul.f32 %v1019, %v2740
      %v2743 = vmul.f32 %v1020, %v2740
      %v2744 = vmul.f32 %v1021, %v2740
      %v2745 = vmul.f32 %v1022, %v2740
      %v2746 = vmul.f32 %v1023, %v2740
      %v2747 = vmul.f32 %v1024, %v2740
      %v2748 = vmul.f32 %v1025, %v2740
      %v2749 = vmul.f32 %v1026, %v2740
      %v2750 = vmul.f32 %v1027, %v2740
      %v2751 = vmul.f32 %v1028, %v2740
      %v2752 = vmul.f32 %v1029, %v2740
      %v2753 = vmul.f32 %v1030, %v2740
      %v2754 = vmul.f32 %v1031, %v2740
      %v2755 = vmul.f32 %v1032, %v2740
      %v2756 = vmul.f32 %v1033, %v2740
      %v2757 = vmul.f32 %v1034, %v2740
      %v2758 = vmul.f32 %v1035, %v2740
      %v2759 = vmul.f32 %v1036, %v2740
      %v2760 = vmul.f32 %v1037, %v2740
      %v2761 = vmul.f32 %v1038, %v2740
      %v2762 = vmul.f32 %v1039, %v2740
      %v2763 = vmul.f32 %v1040, %v2740
      %v2764 = vmul.f32 %v1041, %v2740
      %v2765 = vmul.f32 %v1042, %v2740
      %v2766 = vmul.f32 %v1043, %v2740
      %v2767 = vmul.f32 %v1044, %v2740
      %v2768 = vmul.f32 %v1045, %v2740
      %v2769 = vmul.f32 %v1046, %v2740
      %v2770 = vmul.f32 %v1047, %v2740
      %v2771 = vmul.f32 %v1048, %v2740
      %v2772 = vmul.f32 %v1049, %v2740
      %v2773 = vpack.c.bf16 %v2741, %v2741
      %v2774 = vpack.c.bf16 %v2742, %v2742
      %v2775 = vpack.c.bf16 %v2743, %v2743
      %v2776 = vpack.c.bf16 %v2744, %v2744
      %v2777 = vpack.c.bf16 %v2745, %v2745
      %v2778 = vpack.c.bf16 %v2746, %v2746
      %v2779 = vpack.c.bf16 %v2747, %v2747
      %v2780 = vpack.c.bf16 %v2748, %v2748
      %v2781 = vpack.c.bf16 %v2749, %v2749
      %v2782 = vpack.c.bf16 %v2750, %v2750
      %v2783 = vpack.c.bf16 %v2751, %v2751
      %v2784 = vpack.c.bf16 %v2752, %v2752
      %v2785 = vpack.c.bf16 %v2753, %v2753
      %v2786 = vpack.c.bf16 %v2754, %v2754
      %v2787 = vpack.c.bf16 %v2755, %v2755
      %v2788 = vpack.c.bf16 %v2756, %v2756
      %v2789 = vpack.c.bf16 %v2757, %v2757
      %v2790 = vpack.c.bf16 %v2758, %v2758
      %v2791 = vpack.c.bf16 %v2759, %v2759
      %v2792 = vpack.c.bf16 %v2760, %v2760
      %v2793 = vpack.c.bf16 %v2761, %v2761
      %v2794 = vpack.c.bf16 %v2762, %v2762
      %v2795 = vpack.c.bf16 %v2763, %v2763
      %v2796 = vpack.c.bf16 %v2764, %v2764
      %v2797 = vpack.c.bf16 %v2765, %v2765
      %v2798 = vpack.c.bf16 %v2766, %v2766
      %v2799 = vpack.c.bf16 %v2767, %v2767
      %v2800 = vpack.c.bf16 %v2768, %v2768
      %v2801 = vpack.c.bf16 %v2769, %v2769
      %v2802 = vpack.c.bf16 %v2770, %v2770
      %v2803 = vpack.c.bf16 %v2771, %v2771
      %v2804 = vpack.c.bf16 %v2772, %v2772
      %v2837 = vunpack.c.l.b16 %v2773
      %v2838 = vunpack.c.l.b16 %v2774
      %v2839 = vunpack.c.l.b16 %v2775
      %v2840 = vunpack.c.l.b16 %v2776
      %v2841 = vunpack.c.l.b16 %v2777
      %v2842 = vunpack.c.l.b16 %v2778
      %v2843 = vunpack.c.l.b16 %v2779
      %v2844 = vunpack.c.l.b16 %v2780
      %v2845 = vunpack.c.l.b16 %v2781
      %v2846 = vunpack.c.l.b16 %v2782
      %v2847 = vunpack.c.l.b16 %v2783
      %v2848 = vunpack.c.l.b16 %v2784
      %v2849 = vunpack.c.l.b16 %v2785
      %v2850 = vunpack.c.l.b16 %v2786
      %v2851 = vunpack.c.l.b16 %v2787
      %v2852 = vunpack.c.l.b16 %v2788
      %v2853 = vunpack.c.l.b16 %v2789
      %v2854 = vunpack.c.l.b16 %v2790
      %v2855 = vunpack.c.l.b16 %v2791
      %v2856 = vunpack.c.l.b16 %v2792
      %v2857 = vunpack.c.l.b16 %v2793
      %v2858 = vunpack.c.l.b16 %v2794
      %v2859 = vunpack.c.l.b16 %v2795
      %v2860 = vunpack.c.l.b16 %v2796
      %v2861 = vunpack.c.l.b16 %v2797
      %v2862 = vunpack.c.l.b16 %v2798
      %v2863 = vunpack.c.l.b16 %v2799
      %v2864 = vunpack.c.l.b16 %v2800
      %v2865 = vunpack.c.l.b16 %v2801
      %v2866 = vunpack.c.l.b16 %v2802
      %v2867 = vunpack.c.l.b16 %v2803
      %v2868 = vunpack.c.l.b16 %v2804
      %v2869 = vpack.c.b16 %v2838, %v2837
      %v2870 = vpack.c.b16 %v2840, %v2839
      %v2871 = vpack.c.b16 %v2842, %v2841
      %v2872 = vpack.c.b16 %v2844, %v2843
      %v2873 = vpack.c.b16 %v2846, %v2845
      %v2874 = vpack.c.b16 %v2848, %v2847
      %v2875 = vpack.c.b16 %v2850, %v2849
      %v2876 = vpack.c.b16 %v2852, %v2851
      %v2877 = vpack.c.b16 %v2854, %v2853
      %v2878 = vpack.c.b16 %v2856, %v2855
      %v2879 = vpack.c.b16 %v2858, %v2857
      %v2880 = vpack.c.b16 %v2860, %v2859
      %v2881 = vpack.c.b16 %v2862, %v2861
      %v2882 = vpack.c.b16 %v2864, %v2863
      %v2883 = vpack.c.b16 %v2866, %v2865
      %v2884 = vpack.c.b16 %v2868, %v2867
      %v2886 = vsel %vm707, %v2869, 0
      %v2889 = vsel %vm707, %v2870, 0
      %v2892 = vsel %vm707, %v2871, 0
      %v2895 = vsel %vm707, %v2872, 0
      %v2898 = vsel %vm707, %v2873, 0
      %v2901 = vsel %vm707, %v2874, 0
      %v2904 = vsel %vm707, %v2875, 0
      %v2907 = vsel %vm707, %v2876, 0
      %v2910 = vsel %vm707, %v2877, 0
      %v2913 = vsel %vm707, %v2878, 0
      %v2916 = vsel %vm707, %v2879, 0
      %v2919 = vsel %vm707, %v2880, 0
      %v2922 = vsel %vm707, %v2881, 0
      %v2925 = vsel %vm707, %v2882, 0
      %v2928 = vsel %vm707, %v2883, 0
      %v2931 = vsel %vm707, %v2884, 0
      %2933 = vmatpush.bf16.msra.mxu0 0
      %2934 = vmatpush.bf16.msra.mxu0 0
      %2935 = vmatpush.bf16.msra.mxu0 0
      %2936 = vmatpush.bf16.msra.mxu0 %v2037
      %2937 = vmatpush.bf16.msra.mxu0 %v2036
      %2938 = vmatpush.bf16.msra.mxu0 %v2035
      %2939 = vmatpush.bf16.msra.mxu0 %v2034
      %2940 = vmatpush.bf16.msra.mxu0 %v2033
      %2941 = vmatmul.bf16.gmra.mxu0 %v2886
      %v2942 = vpop.f32.mrf.mxu0
      %v2943 = vadd.f32 0.0, %v2942
      %v2944 = vpop.f32.mrf.mxu0
      %v2945 = vadd.f32 0.0, %v2944
      %2946 = vmatmul.bf16.gmra.mxu0 %v2889
      %v2947 = vpop.f32.mrf.mxu0
      %v2948 = vadd.f32 0.0, %v2947
      %v2949 = vpop.f32.mrf.mxu0
      %v2950 = vadd.f32 0.0, %v2949
      %2951 = vmatmul.bf16.gmra.mxu0 %v2892
      %v2952 = vpop.f32.mrf.mxu0
      %v2953 = vadd.f32 0.0, %v2952
      %v2954 = vpop.f32.mrf.mxu0
      %v2955 = vadd.f32 0.0, %v2954
      %2956 = vmatmul.bf16.gmra.mxu0 %v2895
      %v2957 = vpop.f32.mrf.mxu0
      %v2958 = vadd.f32 0.0, %v2957
      %v2959 = vpop.f32.mrf.mxu0
      %v2960 = vadd.f32 0.0, %v2959
      %2961 = vmatmul.bf16.gmra.mxu0 %v2898
      %v2962 = vpop.f32.mrf.mxu0
      %v2963 = vadd.f32 0.0, %v2962
      %v2964 = vpop.f32.mrf.mxu0
      %v2965 = vadd.f32 0.0, %v2964
      %2966 = vmatmul.bf16.gmra.mxu0 %v2901
      %v2967 = vpop.f32.mrf.mxu0
      %v2968 = vadd.f32 0.0, %v2967
      %v2969 = vpop.f32.mrf.mxu0
      %v2970 = vadd.f32 0.0, %v2969
      %2971 = vmatmul.bf16.gmra.mxu0 %v2904
      %v2972 = vpop.f32.mrf.mxu0
      %v2973 = vadd.f32 0.0, %v2972
      %v2974 = vpop.f32.mrf.mxu0
      %v2975 = vadd.f32 0.0, %v2974
      %2976 = vmatmul.bf16.gmra.mxu0 %v2907
      %v2977 = vpop.f32.mrf.mxu0
      %v2978 = vadd.f32 0.0, %v2977
      %v2979 = vpop.f32.mrf.mxu0
      %v2980 = vadd.f32 0.0, %v2979
      %2981 = vmatmul.bf16.gmra.mxu0 %v2910
      %v2982 = vpop.f32.mrf.mxu0
      %v2983 = vadd.f32 0.0, %v2982
      %v2984 = vpop.f32.mrf.mxu0
      %v2985 = vadd.f32 0.0, %v2984
      %2986 = vmatmul.bf16.gmra.mxu0 %v2913
      %v2987 = vpop.f32.mrf.mxu0
      %v2988 = vadd.f32 0.0, %v2987
      %v2989 = vpop.f32.mrf.mxu0
      %v2990 = vadd.f32 0.0, %v2989
      %2991 = vmatmul.bf16.gmra.mxu0 %v2916
      %v2992 = vpop.f32.mrf.mxu0
      %v2993 = vadd.f32 0.0, %v2992
      %v2994 = vpop.f32.mrf.mxu0
      %v2995 = vadd.f32 0.0, %v2994
      %2996 = vmatmul.bf16.gmra.mxu0 %v2919
      %v2997 = vpop.f32.mrf.mxu0
      %v2998 = vadd.f32 0.0, %v2997
      %v2999 = vpop.f32.mrf.mxu0
      %v3000 = vadd.f32 0.0, %v2999
      %3001 = vmatmul.bf16.gmra.mxu0 %v2922
      %v3002 = vpop.f32.mrf.mxu0
      %v3003 = vadd.f32 0.0, %v3002
      %v3004 = vpop.f32.mrf.mxu0
      %v3005 = vadd.f32 0.0, %v3004
      %3006 = vmatmul.bf16.gmra.mxu0 %v2925
      %v3007 = vpop.f32.mrf.mxu0
      %v3008 = vadd.f32 0.0, %v3007
      %v3009 = vpop.f32.mrf.mxu0
      %v3010 = vadd.f32 0.0, %v3009
      %3011 = vmatmul.bf16.gmra.mxu0 %v2928
      %v3012 = vpop.f32.mrf.mxu0
      %v3013 = vadd.f32 0.0, %v3012
      %v3014 = vpop.f32.mrf.mxu0
      %v3015 = vadd.f32 0.0, %v3014
      %3016 = vmatmul.bf16.gmra.mxu0 %v2931
      %v3017 = vpop.f32.mrf.mxu0
      %v3018 = vadd.f32 0.0, %v3017
      %v3019 = vpop.f32.mrf.mxu0
      %v3020 = vadd.f32 0.0, %v3019
      %3021 = vdwg.mxu0
      %v3054 = vunpack.c.l.b16 %v2704
      %v3055 = vunpack.c.l.b16 %v2705
      %v3056 = vunpack.c.l.b16 %v2706
      %v3057 = vunpack.c.l.b16 %v2707
      %v3058 = vunpack.c.l.b16 %v2708
      %v3059 = vunpack.c.l.b16 %v2709
      %v3060 = vunpack.c.l.b16 %v2710
      %v3061 = vunpack.c.l.b16 %v2711
      %v3062 = vunpack.c.l.b16 %v2712
      %v3063 = vunpack.c.l.b16 %v2713
      %v3064 = vunpack.c.l.b16 %v2714
      %v3065 = vunpack.c.l.b16 %v2715
      %v3066 = vunpack.c.l.b16 %v2716
      %v3067 = vunpack.c.l.b16 %v2717
      %v3068 = vunpack.c.l.b16 %v2718
      %v3069 = vunpack.c.l.b16 %v2719
      %v3070 = vunpack.c.l.b16 %v2720
      %v3071 = vunpack.c.l.b16 %v2721
      %v3072 = vunpack.c.l.b16 %v2722
      %v3073 = vunpack.c.l.b16 %v2723
      %v3074 = vunpack.c.l.b16 %v2724
      %v3075 = vunpack.c.l.b16 %v2725
      %v3076 = vunpack.c.l.b16 %v2726
      %v3077 = vunpack.c.l.b16 %v2727
      %v3078 = vunpack.c.l.b16 %v2728
      %v3079 = vunpack.c.l.b16 %v2729
      %v3080 = vunpack.c.l.b16 %v2730
      %v3081 = vunpack.c.l.b16 %v2731
      %v3082 = vunpack.c.l.b16 %v2732
      %v3083 = vunpack.c.l.b16 %v2733
      %v3084 = vunpack.c.l.b16 %v2734
      %v3085 = vunpack.c.l.b16 %v2735
      %v3086 = vpack.c.b16 %v3055, %v3054
      %v3087 = vpack.c.b16 %v3057, %v3056
      %v3088 = vpack.c.b16 %v3059, %v3058
      %v3089 = vpack.c.b16 %v3061, %v3060
      %v3090 = vpack.c.b16 %v3063, %v3062
      %v3091 = vpack.c.b16 %v3065, %v3064
      %v3092 = vpack.c.b16 %v3067, %v3066
      %v3093 = vpack.c.b16 %v3069, %v3068
      %v3094 = vpack.c.b16 %v3071, %v3070
      %v3095 = vpack.c.b16 %v3073, %v3072
      %v3096 = vpack.c.b16 %v3075, %v3074
      %v3097 = vpack.c.b16 %v3077, %v3076
      %v3098 = vpack.c.b16 %v3079, %v3078
      %v3099 = vpack.c.b16 %v3081, %v3080
      %v3100 = vpack.c.b16 %v3083, %v3082
      %v3101 = vpack.c.b16 %v3085, %v3084
      %v3103 = vsel %vm707, %v3086, 0
      %v3106 = vsel %vm707, %v3087, 0
      %v3109 = vsel %vm707, %v3088, 0
      %v3112 = vsel %vm707, %v3089, 0
      %v3115 = vsel %vm707, %v3090, 0
      %v3118 = vsel %vm707, %v3091, 0
      %v3121 = vsel %vm707, %v3092, 0
      %v3124 = vsel %vm707, %v3093, 0
      %v3127 = vsel %vm707, %v3094, 0
      %v3130 = vsel %vm707, %v3095, 0
      %v3133 = vsel %vm707, %v3096, 0
      %v3136 = vsel %vm707, %v3097, 0
      %v3139 = vsel %vm707, %v3098, 0
      %v3142 = vsel %vm707, %v3099, 0
      %v3145 = vsel %vm707, %v3100, 0
      %v3148 = vsel %vm707, %v3101, 0
      %3150 = vmatpush.bf16.msra.mxu0 0
      %3151 = vmatpush.bf16.msra.mxu0 0
      %3152 = vmatpush.bf16.msra.mxu0 0
      %3153 = vmatpush.bf16.msra.mxu0 %v2284
      %3154 = vmatpush.bf16.msra.mxu0 %v2283
      %3155 = vmatpush.bf16.msra.mxu0 %v2282
      %3156 = vmatpush.bf16.msra.mxu0 %v2281
      %3157 = vmatpush.bf16.msra.mxu0 %v2280
      %3158 = vmatmul.bf16.gmra.mxu0 %v3103
      %v3159 = vpop.f32.mrf.mxu0
      %v3160 = vadd.f32 %v2943, %v3159
      %v3161 = vpop.f32.mrf.mxu0
      %v3162 = vadd.f32 %v2945, %v3161
      %3163 = vmatmul.bf16.gmra.mxu0 %v3106
      %v3164 = vpop.f32.mrf.mxu0
      %v3165 = vadd.f32 %v2948, %v3164
      %v3166 = vpop.f32.mrf.mxu0
      %v3167 = vadd.f32 %v2950, %v3166
      %3168 = vmatmul.bf16.gmra.mxu0 %v3109
      %v3169 = vpop.f32.mrf.mxu0
      %v3170 = vadd.f32 %v2953, %v3169
      %v3171 = vpop.f32.mrf.mxu0
      %v3172 = vadd.f32 %v2955, %v3171
      %3173 = vmatmul.bf16.gmra.mxu0 %v3112
      %v3174 = vpop.f32.mrf.mxu0
      %v3175 = vadd.f32 %v2958, %v3174
      %v3176 = vpop.f32.mrf.mxu0
      %v3177 = vadd.f32 %v2960, %v3176
      %3178 = vmatmul.bf16.gmra.mxu0 %v3115
      %v3179 = vpop.f32.mrf.mxu0
      %v3180 = vadd.f32 %v2963, %v3179
      %v3181 = vpop.f32.mrf.mxu0
      %v3182 = vadd.f32 %v2965, %v3181
      %3183 = vmatmul.bf16.gmra.mxu0 %v3118
      %v3184 = vpop.f32.mrf.mxu0
      %v3185 = vadd.f32 %v2968, %v3184
      %v3186 = vpop.f32.mrf.mxu0
      %v3187 = vadd.f32 %v2970, %v3186
      %3188 = vmatmul.bf16.gmra.mxu0 %v3121
      %v3189 = vpop.f32.mrf.mxu0
      %v3190 = vadd.f32 %v2973, %v3189
      %v3191 = vpop.f32.mrf.mxu0
      %v3192 = vadd.f32 %v2975, %v3191
      %3193 = vmatmul.bf16.gmra.mxu0 %v3124
      %v3194 = vpop.f32.mrf.mxu0
      %v3195 = vadd.f32 %v2978, %v3194
      %v3196 = vpop.f32.mrf.mxu0
      %v3197 = vadd.f32 %v2980, %v3196
      %3198 = vmatmul.bf16.gmra.mxu0 %v3127
      %v3199 = vpop.f32.mrf.mxu0
      %v3200 = vadd.f32 %v2983, %v3199
      %v3201 = vpop.f32.mrf.mxu0
      %v3202 = vadd.f32 %v2985, %v3201
      %3203 = vmatmul.bf16.gmra.mxu0 %v3130
      %v3204 = vpop.f32.mrf.mxu0
      %v3205 = vadd.f32 %v2988, %v3204
      %v3206 = vpop.f32.mrf.mxu0
      %v3207 = vadd.f32 %v2990, %v3206
      %3208 = vmatmul.bf16.gmra.mxu0 %v3133
      %v3209 = vpop.f32.mrf.mxu0
      %v3210 = vadd.f32 %v2993, %v3209
      %v3211 = vpop.f32.mrf.mxu0
      %v3212 = vadd.f32 %v2995, %v3211
      %3213 = vmatmul.bf16.gmra.mxu0 %v3136
      %v3214 = vpop.f32.mrf.mxu0
      %v3215 = vadd.f32 %v2998, %v3214
      %v3216 = vpop.f32.mrf.mxu0
      %v3217 = vadd.f32 %v3000, %v3216
      %3218 = vmatmul.bf16.gmra.mxu0 %v3139
      %v3219 = vpop.f32.mrf.mxu0
      %v3220 = vadd.f32 %v3003, %v3219
      %v3221 = vpop.f32.mrf.mxu0
      %v3222 = vadd.f32 %v3005, %v3221
      %3223 = vmatmul.bf16.gmra.mxu0 %v3142
      %v3224 = vpop.f32.mrf.mxu0
      %v3225 = vadd.f32 %v3008, %v3224
      %v3226 = vpop.f32.mrf.mxu0
      %v3227 = vadd.f32 %v3010, %v3226
      %3228 = vmatmul.bf16.gmra.mxu0 %v3145
      %v3229 = vpop.f32.mrf.mxu0
      %v3230 = vadd.f32 %v3013, %v3229
      %v3231 = vpop.f32.mrf.mxu0
      %v3232 = vadd.f32 %v3015, %v3231
      %3233 = vmatmul.bf16.gmra.mxu0 %v3148
      %v3234 = vpop.f32.mrf.mxu0
      %v3235 = vadd.f32 %v3018, %v3234
      %v3236 = vpop.f32.mrf.mxu0
      %v3237 = vadd.f32 %v3020, %v3236
      %3238 = vdwg.mxu0
      %v3239 = vunpack.c.l.bf16 %v2704
      %v3240 = vunpack.c.l.bf16 %v2705
      %v3241 = vunpack.c.l.bf16 %v2706
      %v3242 = vunpack.c.l.bf16 %v2707
      %v3243 = vunpack.c.l.bf16 %v2708
      %v3244 = vunpack.c.l.bf16 %v2709
      %v3245 = vunpack.c.l.bf16 %v2710
      %v3246 = vunpack.c.l.bf16 %v2711
      %v3247 = vunpack.c.l.bf16 %v2712
      %v3248 = vunpack.c.l.bf16 %v2713
      %v3249 = vunpack.c.l.bf16 %v2714
      %v3250 = vunpack.c.l.bf16 %v2715
      %v3251 = vunpack.c.l.bf16 %v2716
      %v3252 = vunpack.c.l.bf16 %v2717
      %v3253 = vunpack.c.l.bf16 %v2718
      %v3254 = vunpack.c.l.bf16 %v2719
      %v3255 = vunpack.c.l.bf16 %v2720
      %v3256 = vunpack.c.l.bf16 %v2721
      %v3257 = vunpack.c.l.bf16 %v2722
      %v3258 = vunpack.c.l.bf16 %v2723
      %v3259 = vunpack.c.l.bf16 %v2724
      %v3260 = vunpack.c.l.bf16 %v2725
      %v3261 = vunpack.c.l.bf16 %v2726
      %v3262 = vunpack.c.l.bf16 %v2727
      %v3263 = vunpack.c.l.bf16 %v2728
      %v3264 = vunpack.c.l.bf16 %v2729
      %v3265 = vunpack.c.l.bf16 %v2730
      %v3266 = vunpack.c.l.bf16 %v2731
      %v3267 = vunpack.c.l.bf16 %v2732
      %v3268 = vunpack.c.l.bf16 %v2733
      %v3269 = vunpack.c.l.bf16 %v2734
      %v3270 = vunpack.c.l.bf16 %v2735
      %v3271 = vunpack.c.l.bf16 %v2773
      %v3272 = vunpack.c.l.bf16 %v2774
      %v3273 = vunpack.c.l.bf16 %v2775
      %v3274 = vunpack.c.l.bf16 %v2776
      %v3275 = vunpack.c.l.bf16 %v2777
      %v3276 = vunpack.c.l.bf16 %v2778
      %v3277 = vunpack.c.l.bf16 %v2779
      %v3278 = vunpack.c.l.bf16 %v2780
      %v3279 = vunpack.c.l.bf16 %v2781
      %v3280 = vunpack.c.l.bf16 %v2782
      %v3281 = vunpack.c.l.bf16 %v2783
      %v3282 = vunpack.c.l.bf16 %v2784
      %v3283 = vunpack.c.l.bf16 %v2785
      %v3284 = vunpack.c.l.bf16 %v2786
      %v3285 = vunpack.c.l.bf16 %v2787
      %v3286 = vunpack.c.l.bf16 %v2788
      %v3287 = vunpack.c.l.bf16 %v2789
      %v3288 = vunpack.c.l.bf16 %v2790
      %v3289 = vunpack.c.l.bf16 %v2791
      %v3290 = vunpack.c.l.bf16 %v2792
      %v3291 = vunpack.c.l.bf16 %v2793
      %v3292 = vunpack.c.l.bf16 %v2794
      %v3293 = vunpack.c.l.bf16 %v2795
      %v3294 = vunpack.c.l.bf16 %v2796
      %v3295 = vunpack.c.l.bf16 %v2797
      %v3296 = vunpack.c.l.bf16 %v2798
      %v3297 = vunpack.c.l.bf16 %v2799
      %v3298 = vunpack.c.l.bf16 %v2800
      %v3299 = vunpack.c.l.bf16 %v2801
      %v3300 = vunpack.c.l.bf16 %v2802
      %v3301 = vunpack.c.l.bf16 %v2803
      %v3302 = vunpack.c.l.bf16 %v2804
      %v3303 = vmax.f32 %v3239, %v3271
      %v3304 = vmax.f32 %v3240, %v3272
      %v3305 = vmax.f32 %v3241, %v3273
      %v3306 = vmax.f32 %v3242, %v3274
      %v3307 = vmax.f32 %v3243, %v3275
      %v3308 = vmax.f32 %v3244, %v3276
      %v3309 = vmax.f32 %v3245, %v3277
      %v3310 = vmax.f32 %v3246, %v3278
      %v3311 = vmax.f32 %v3247, %v3279
      %v3312 = vmax.f32 %v3248, %v3280
      %v3313 = vmax.f32 %v3249, %v3281
      %v3314 = vmax.f32 %v3250, %v3282
      %v3315 = vmax.f32 %v3251, %v3283
      %v3316 = vmax.f32 %v3252, %v3284
      %v3317 = vmax.f32 %v3253, %v3285
      %v3318 = vmax.f32 %v3254, %v3286
      %v3319 = vmax.f32 %v3255, %v3287
      %v3320 = vmax.f32 %v3256, %v3288
      %v3321 = vmax.f32 %v3257, %v3289
      %v3322 = vmax.f32 %v3258, %v3290
      %v3323 = vmax.f32 %v3259, %v3291
      %v3324 = vmax.f32 %v3260, %v3292
      %v3325 = vmax.f32 %v3261, %v3293
      %v3326 = vmax.f32 %v3262, %v3294
      %v3327 = vmax.f32 %v3263, %v3295
      %v3328 = vmax.f32 %v3264, %v3296
      %v3329 = vmax.f32 %v3265, %v3297
      %v3330 = vmax.f32 %v3266, %v3298
      %v3331 = vmax.f32 %v3267, %v3299
      %v3332 = vmax.f32 %v3268, %v3300
      %v3333 = vmax.f32 %v3269, %v3301
      %v3334 = vmax.f32 %v3270, %v3302
      %v3335 = vpack.c.bf16 %v3304, %v3303
      %v3336 = vpack.c.bf16 %v3306, %v3305
      %v3337 = vpack.c.bf16 %v3308, %v3307
      %v3338 = vpack.c.bf16 %v3310, %v3309
      %v3339 = vpack.c.bf16 %v3312, %v3311
      %v3340 = vpack.c.bf16 %v3314, %v3313
      %v3341 = vpack.c.bf16 %v3316, %v3315
      %v3342 = vpack.c.bf16 %v3318, %v3317
      %v3343 = vpack.c.bf16 %v3320, %v3319
      %v3344 = vpack.c.bf16 %v3322, %v3321
      %v3345 = vpack.c.bf16 %v3324, %v3323
      %v3346 = vpack.c.bf16 %v3326, %v3325
      %v3347 = vpack.c.bf16 %v3328, %v3327
      %v3348 = vpack.c.bf16 %v3330, %v3329
      %v3349 = vpack.c.bf16 %v3332, %v3331
      %v3350 = vpack.c.bf16 %v3334, %v3333
      %v3351 = vunpack.c.l.bf16 %v3335
      %v3352 = vunpack.c.h.bf16 %v3335
      %v3353 = vunpack.c.l.bf16 %v3336
      %v3354 = vunpack.c.h.bf16 %v3336
      %v3355 = vunpack.c.l.bf16 %v3337
      %v3356 = vunpack.c.h.bf16 %v3337
      %v3357 = vunpack.c.l.bf16 %v3338
      %v3358 = vunpack.c.h.bf16 %v3338
      %v3359 = vunpack.c.l.bf16 %v3339
      %v3360 = vunpack.c.h.bf16 %v3339
      %v3361 = vunpack.c.l.bf16 %v3340
      %v3362 = vunpack.c.h.bf16 %v3340
      %v3363 = vunpack.c.l.bf16 %v3341
      %v3364 = vunpack.c.h.bf16 %v3341
      %v3365 = vunpack.c.l.bf16 %v3342
      %v3366 = vunpack.c.h.bf16 %v3342
      %v3367 = vunpack.c.l.bf16 %v3343
      %v3368 = vunpack.c.h.bf16 %v3343
      %v3369 = vunpack.c.l.bf16 %v3344
      %v3370 = vunpack.c.h.bf16 %v3344
      %v3371 = vunpack.c.l.bf16 %v3345
      %v3372 = vunpack.c.h.bf16 %v3345
      %v3373 = vunpack.c.l.bf16 %v3346
      %v3374 = vunpack.c.h.bf16 %v3346
      %v3375 = vunpack.c.l.bf16 %v3347
      %v3376 = vunpack.c.h.bf16 %v3347
      %v3377 = vunpack.c.l.bf16 %v3348
      %v3378 = vunpack.c.h.bf16 %v3348
      %v3379 = vunpack.c.l.bf16 %v3349
      %v3380 = vunpack.c.h.bf16 %v3349
      %v3381 = vunpack.c.l.bf16 %v3350
      %v3382 = vunpack.c.h.bf16 %v3350
      %v3383 = vsel %vm707, %v3351, -inf
      %3384 = vmax.xlane.f32.xlu0 %v3383
      %v3385 = vpop.xlane.xlu0 %3384
      %v3386 = vsel %vm707, %v3352, -inf
      %3387 = vmax.xlane.f32.xlu0 %v3386
      %v3388 = vpop.xlane.xlu0 %3387
      %v3389 = vsel %vm707, %v3353, -inf
      %3390 = vmax.xlane.f32.xlu0 %v3389
      %v3391 = vpop.xlane.xlu0 %3390
      %v3392 = vsel %vm707, %v3354, -inf
      %3393 = vmax.xlane.f32.xlu0 %v3392
      %v3394 = vpop.xlane.xlu0 %3393
      %v3395 = vsel %vm707, %v3355, -inf
      %3396 = vmax.xlane.f32.xlu0 %v3395
      %v3397 = vpop.xlane.xlu0 %3396
      %v3398 = vsel %vm707, %v3356, -inf
      %3399 = vmax.xlane.f32.xlu0 %v3398
      %v3400 = vpop.xlane.xlu0 %3399
      %v3401 = vsel %vm707, %v3357, -inf
      %3402 = vmax.xlane.f32.xlu0 %v3401
      %v3403 = vpop.xlane.xlu0 %3402
      %v3404 = vsel %vm707, %v3358, -inf
      %3405 = vmax.xlane.f32.xlu0 %v3404
      %v3406 = vpop.xlane.xlu0 %3405
      %v3407 = vsel %vm707, %v3359, -inf
      %3408 = vmax.xlane.f32.xlu0 %v3407
      %v3409 = vpop.xlane.xlu0 %3408
      %v3410 = vsel %vm707, %v3360, -inf
      %3411 = vmax.xlane.f32.xlu0 %v3410
      %v3412 = vpop.xlane.xlu0 %3411
      %v3413 = vsel %vm707, %v3361, -inf
      %3414 = vmax.xlane.f32.xlu0 %v3413
      %v3415 = vpop.xlane.xlu0 %3414
      %v3416 = vsel %vm707, %v3362, -inf
      %3417 = vmax.xlane.f32.xlu0 %v3416
      %v3418 = vpop.xlane.xlu0 %3417
      %v3419 = vsel %vm707, %v3363, -inf
      %3420 = vmax.xlane.f32.xlu0 %v3419
      %v3421 = vpop.xlane.xlu0 %3420
      %v3422 = vsel %vm707, %v3364, -inf
      %3423 = vmax.xlane.f32.xlu0 %v3422
      %v3424 = vpop.xlane.xlu0 %3423
      %v3425 = vsel %vm707, %v3365, -inf
      %3426 = vmax.xlane.f32.xlu0 %v3425
      %v3427 = vpop.xlane.xlu0 %3426
      %v3428 = vsel %vm707, %v3366, -inf
      %3429 = vmax.xlane.f32.xlu0 %v3428
      %v3430 = vpop.xlane.xlu0 %3429
      %v3431 = vsel %vm707, %v3367, -inf
      %3432 = vmax.xlane.f32.xlu0 %v3431
      %v3433 = vpop.xlane.xlu0 %3432
      %v3434 = vsel %vm707, %v3368, -inf
      %3435 = vmax.xlane.f32.xlu0 %v3434
      %v3436 = vpop.xlane.xlu0 %3435
      %v3437 = vsel %vm707, %v3369, -inf
      %3438 = vmax.xlane.f32.xlu0 %v3437
      %v3439 = vpop.xlane.xlu0 %3438
      %v3440 = vsel %vm707, %v3370, -inf
      %3441 = vmax.xlane.f32.xlu0 %v3440
      %v3442 = vpop.xlane.xlu0 %3441
      %v3443 = vsel %vm707, %v3371, -inf
      %3444 = vmax.xlane.f32.xlu0 %v3443
      %v3445 = vpop.xlane.xlu0 %3444
      %v3446 = vsel %vm707, %v3372, -inf
      %3447 = vmax.xlane.f32.xlu0 %v3446
      %v3448 = vpop.xlane.xlu0 %3447
      %v3449 = vsel %vm707, %v3373, -inf
      %3450 = vmax.xlane.f32.xlu0 %v3449
      %v3451 = vpop.xlane.xlu0 %3450
      %v3452 = vsel %vm707, %v3374, -inf
      %3453 = vmax.xlane.f32.xlu0 %v3452
      %v3454 = vpop.xlane.xlu0 %3453
      %v3455 = vsel %vm707, %v3375, -inf
      %3456 = vmax.xlane.f32.xlu0 %v3455
      %v3457 = vpop.xlane.xlu0 %3456
      %v3458 = vsel %vm707, %v3376, -inf
      %3459 = vmax.xlane.f32.xlu0 %v3458
      %v3460 = vpop.xlane.xlu0 %3459
      %v3461 = vsel %vm707, %v3377, -inf
      %3462 = vmax.xlane.f32.xlu0 %v3461
      %v3463 = vpop.xlane.xlu0 %3462
      %v3464 = vsel %vm707, %v3378, -inf
      %3465 = vmax.xlane.f32.xlu0 %v3464
      %v3466 = vpop.xlane.xlu0 %3465
      %v3467 = vsel %vm707, %v3379, -inf
      %3468 = vmax.xlane.f32.xlu0 %v3467
      %v3469 = vpop.xlane.xlu0 %3468
      %v3470 = vsel %vm707, %v3380, -inf
      %3471 = vmax.xlane.f32.xlu0 %v3470
      %v3472 = vpop.xlane.xlu0 %3471
      %v3473 = vsel %vm707, %v3381, -inf
      %3474 = vmax.xlane.f32.xlu0 %v3473
      %v3475 = vpop.xlane.xlu0 %3474
      %v3476 = vsel %vm707, %v3382, -inf
      %3477 = vmax.xlane.f32.xlu0 %v3476
      %v3478 = vpop.xlane.xlu0 %3477
      %v3479 = vperm.slane %v1776, 1
      %v3480 = vunpack.c.l.bf16 %v3479
      %v3481 = vmul.f32 %v675, %v3480
      %v3482 = vmul.f32 %v676, %v3480
      %v3483 = vmul.f32 %v677, %v3480
      %v3484 = vmul.f32 %v678, %v3480
      %v3485 = vmul.f32 %v679, %v3480
      %v3486 = vmul.f32 %v680, %v3480
      %v3487 = vmul.f32 %v681, %v3480
      %v3488 = vmul.f32 %v682, %v3480
      %v3489 = vmul.f32 %v683, %v3480
      %v3490 = vmul.f32 %v684, %v3480
      %v3491 = vmul.f32 %v685, %v3480
      %v3492 = vmul.f32 %v686, %v3480
      %v3493 = vmul.f32 %v687, %v3480
      %v3494 = vmul.f32 %v688, %v3480
      %v3495 = vmul.f32 %v689, %v3480
      %v3496 = vmul.f32 %v690, %v3480
      %v3497 = vmul.f32 %v691, %v3480
      %v3498 = vmul.f32 %v692, %v3480
      %v3499 = vmul.f32 %v693, %v3480
      %v3500 = vmul.f32 %v694, %v3480
      %v3501 = vmul.f32 %v695, %v3480
      %v3502 = vmul.f32 %v696, %v3480
      %v3503 = vmul.f32 %v697, %v3480
      %v3504 = vmul.f32 %v698, %v3480
      %v3505 = vmul.f32 %v699, %v3480
      %v3506 = vmul.f32 %v700, %v3480
      %v3507 = vmul.f32 %v701, %v3480
      %v3508 = vmul.f32 %v702, %v3480
      %v3509 = vmul.f32 %v703, %v3480
      %v3510 = vmul.f32 %v704, %v3480
      %v3511 = vmul.f32 %v705, %v3480
      %v3512 = vmul.f32 %v706, %v3480
      %v3513 = vpack.c.bf16 %v3481, %v3481
      %v3514 = vpack.c.bf16 %v3482, %v3482
      %v3515 = vpack.c.bf16 %v3483, %v3483
      %v3516 = vpack.c.bf16 %v3484, %v3484
      %v3517 = vpack.c.bf16 %v3485, %v3485
      %v3518 = vpack.c.bf16 %v3486, %v3486
      %v3519 = vpack.c.bf16 %v3487, %v3487
      %v3520 = vpack.c.bf16 %v3488, %v3488
      %v3521 = vpack.c.bf16 %v3489, %v3489
      %v3522 = vpack.c.bf16 %v3490, %v3490
      %v3523 = vpack.c.bf16 %v3491, %v3491
      %v3524 = vpack.c.bf16 %v3492, %v3492
      %v3525 = vpack.c.bf16 %v3493, %v3493
      %v3526 = vpack.c.bf16 %v3494, %v3494
      %v3527 = vpack.c.bf16 %v3495, %v3495
      %v3528 = vpack.c.bf16 %v3496, %v3496
      %v3529 = vpack.c.bf16 %v3497, %v3497
      %v3530 = vpack.c.bf16 %v3498, %v3498
      %v3531 = vpack.c.bf16 %v3499, %v3499
      %v3532 = vpack.c.bf16 %v3500, %v3500
      %v3533 = vpack.c.bf16 %v3501, %v3501
      %v3534 = vpack.c.bf16 %v3502, %v3502
      %v3535 = vpack.c.bf16 %v3503, %v3503
      %v3536 = vpack.c.bf16 %v3504, %v3504
      %v3537 = vpack.c.bf16 %v3505, %v3505
      %v3538 = vpack.c.bf16 %v3506, %v3506
      %v3539 = vpack.c.bf16 %v3507, %v3507
      %v3540 = vpack.c.bf16 %v3508, %v3508
      %v3541 = vpack.c.bf16 %v3509, %v3509
      %v3542 = vpack.c.bf16 %v3510, %v3510
      %v3543 = vpack.c.bf16 %v3511, %v3511
      %v3544 = vpack.c.bf16 %v3512, %v3512
      %v3545 = vperm.slane %v1845, 1
      %v3546 = vunpack.c.l.bf16 %v3545
      %v3547 = vmul.f32 %v1189, %v3546
      %v3548 = vmul.f32 %v1190, %v3546
      %v3549 = vmul.f32 %v1191, %v3546
      %v3550 = vmul.f32 %v1192, %v3546
      %v3551 = vmul.f32 %v1193, %v3546
      %v3552 = vmul.f32 %v1194, %v3546
      %v3553 = vmul.f32 %v1195, %v3546
      %v3554 = vmul.f32 %v1196, %v3546
      %v3555 = vmul.f32 %v1197, %v3546
      %v3556 = vmul.f32 %v1198, %v3546
      %v3557 = vmul.f32 %v1199, %v3546
      %v3558 = vmul.f32 %v1200, %v3546
      %v3559 = vmul.f32 %v1201, %v3546
      %v3560 = vmul.f32 %v1202, %v3546
      %v3561 = vmul.f32 %v1203, %v3546
      %v3562 = vmul.f32 %v1204, %v3546
      %v3563 = vmul.f32 %v1205, %v3546
      %v3564 = vmul.f32 %v1206, %v3546
      %v3565 = vmul.f32 %v1207, %v3546
      %v3566 = vmul.f32 %v1208, %v3546
      %v3567 = vmul.f32 %v1209, %v3546
      %v3568 = vmul.f32 %v1210, %v3546
      %v3569 = vmul.f32 %v1211, %v3546
      %v3570 = vmul.f32 %v1212, %v3546
      %v3571 = vmul.f32 %v1213, %v3546
      %v3572 = vmul.f32 %v1214, %v3546
      %v3573 = vmul.f32 %v1215, %v3546
      %v3574 = vmul.f32 %v1216, %v3546
      %v3575 = vmul.f32 %v1217, %v3546
      %v3576 = vmul.f32 %v1218, %v3546
      %v3577 = vmul.f32 %v1219, %v3546
      %v3578 = vmul.f32 %v1220, %v3546
      %v3579 = vpack.c.bf16 %v3547, %v3547
      %v3580 = vpack.c.bf16 %v3548, %v3548
      %v3581 = vpack.c.bf16 %v3549, %v3549
      %v3582 = vpack.c.bf16 %v3550, %v3550
      %v3583 = vpack.c.bf16 %v3551, %v3551
      %v3584 = vpack.c.bf16 %v3552, %v3552
      %v3585 = vpack.c.bf16 %v3553, %v3553
      %v3586 = vpack.c.bf16 %v3554, %v3554
      %v3587 = vpack.c.bf16 %v3555, %v3555
      %v3588 = vpack.c.bf16 %v3556, %v3556
      %v3589 = vpack.c.bf16 %v3557, %v3557
      %v3590 = vpack.c.bf16 %v3558, %v3558
      %v3591 = vpack.c.bf16 %v3559, %v3559
      %v3592 = vpack.c.bf16 %v3560, %v3560
      %v3593 = vpack.c.bf16 %v3561, %v3561
      %v3594 = vpack.c.bf16 %v3562, %v3562
      %v3595 = vpack.c.bf16 %v3563, %v3563
      %v3596 = vpack.c.bf16 %v3564, %v3564
      %v3597 = vpack.c.bf16 %v3565, %v3565
      %v3598 = vpack.c.bf16 %v3566, %v3566
      %v3599 = vpack.c.bf16 %v3567, %v3567
      %v3600 = vpack.c.bf16 %v3568, %v3568
      %v3601 = vpack.c.bf16 %v3569, %v3569
      %v3602 = vpack.c.bf16 %v3570, %v3570
      %v3603 = vpack.c.bf16 %v3571, %v3571
      %v3604 = vpack.c.bf16 %v3572, %v3572
      %v3605 = vpack.c.bf16 %v3573, %v3573
      %v3606 = vpack.c.bf16 %v3574, %v3574
      %v3607 = vpack.c.bf16 %v3575, %v3575
      %v3608 = vpack.c.bf16 %v3576, %v3576
      %v3609 = vpack.c.bf16 %v3577, %v3577
      %v3610 = vpack.c.bf16 %v3578, %v3578
      %v3643 = vunpack.c.l.b16 %v3579
      %v3644 = vunpack.c.l.b16 %v3580
      %v3645 = vunpack.c.l.b16 %v3581
      %v3646 = vunpack.c.l.b16 %v3582
      %v3647 = vunpack.c.l.b16 %v3583
      %v3648 = vunpack.c.l.b16 %v3584
      %v3649 = vunpack.c.l.b16 %v3585
      %v3650 = vunpack.c.l.b16 %v3586
      %v3651 = vunpack.c.l.b16 %v3587
      %v3652 = vunpack.c.l.b16 %v3588
      %v3653 = vunpack.c.l.b16 %v3589
      %v3654 = vunpack.c.l.b16 %v3590
      %v3655 = vunpack.c.l.b16 %v3591
      %v3656 = vunpack.c.l.b16 %v3592
      %v3657 = vunpack.c.l.b16 %v3593
      %v3658 = vunpack.c.l.b16 %v3594
      %v3659 = vunpack.c.l.b16 %v3595
      %v3660 = vunpack.c.l.b16 %v3596
      %v3661 = vunpack.c.l.b16 %v3597
      %v3662 = vunpack.c.l.b16 %v3598
      %v3663 = vunpack.c.l.b16 %v3599
      %v3664 = vunpack.c.l.b16 %v3600
      %v3665 = vunpack.c.l.b16 %v3601
      %v3666 = vunpack.c.l.b16 %v3602
      %v3667 = vunpack.c.l.b16 %v3603
      %v3668 = vunpack.c.l.b16 %v3604
      %v3669 = vunpack.c.l.b16 %v3605
      %v3670 = vunpack.c.l.b16 %v3606
      %v3671 = vunpack.c.l.b16 %v3607
      %v3672 = vunpack.c.l.b16 %v3608
      %v3673 = vunpack.c.l.b16 %v3609
      %v3674 = vunpack.c.l.b16 %v3610
      %v3675 = vpack.c.b16 %v3644, %v3643
      %v3676 = vpack.c.b16 %v3646, %v3645
      %v3677 = vpack.c.b16 %v3648, %v3647
      %v3678 = vpack.c.b16 %v3650, %v3649
      %v3679 = vpack.c.b16 %v3652, %v3651
      %v3680 = vpack.c.b16 %v3654, %v3653
      %v3681 = vpack.c.b16 %v3656, %v3655
      %v3682 = vpack.c.b16 %v3658, %v3657
      %v3683 = vpack.c.b16 %v3660, %v3659
      %v3684 = vpack.c.b16 %v3662, %v3661
      %v3685 = vpack.c.b16 %v3664, %v3663
      %v3686 = vpack.c.b16 %v3666, %v3665
      %v3687 = vpack.c.b16 %v3668, %v3667
      %v3688 = vpack.c.b16 %v3670, %v3669
      %v3689 = vpack.c.b16 %v3672, %v3671
      %v3690 = vpack.c.b16 %v3674, %v3673
      %v3692 = vsel %vm707, %v3675, 0
      %v3695 = vsel %vm707, %v3676, 0
      %v3698 = vsel %vm707, %v3677, 0
      %v3701 = vsel %vm707, %v3678, 0
      %v3704 = vsel %vm707, %v3679, 0
      %v3707 = vsel %vm707, %v3680, 0
      %v3710 = vsel %vm707, %v3681, 0
      %v3713 = vsel %vm707, %v3682, 0
      %v3716 = vsel %vm707, %v3683, 0
      %v3719 = vsel %vm707, %v3684, 0
      %v3722 = vsel %vm707, %v3685, 0
      %v3725 = vsel %vm707, %v3686, 0
      %v3728 = vsel %vm707, %v3687, 0
      %v3731 = vsel %vm707, %v3688, 0
      %v3734 = vsel %vm707, %v3689, 0
      %v3737 = vsel %vm707, %v3690, 0
      %3739 = vmatpush.bf16.msra.mxu0 0
      %3740 = vmatpush.bf16.msra.mxu0 0
      %3741 = vmatpush.bf16.msra.mxu0 0
      %3742 = vmatpush.bf16.msra.mxu0 %v2037
      %3743 = vmatpush.bf16.msra.mxu0 %v2036
      %3744 = vmatpush.bf16.msra.mxu0 %v2035
      %3745 = vmatpush.bf16.msra.mxu0 %v2034
      %3746 = vmatpush.bf16.msra.mxu0 %v2033
      %3747 = vmatmul.bf16.gmra.mxu0 %v3692
      %v3748 = vpop.f32.mrf.mxu0
      %v3749 = vadd.f32 0.0, %v3748
      %v3750 = vpop.f32.mrf.mxu0
      %v3751 = vadd.f32 0.0, %v3750
      %3752 = vmatmul.bf16.gmra.mxu0 %v3695
      %v3753 = vpop.f32.mrf.mxu0
      %v3754 = vadd.f32 0.0, %v3753
      %v3755 = vpop.f32.mrf.mxu0
      %v3756 = vadd.f32 0.0, %v3755
      %3757 = vmatmul.bf16.gmra.mxu0 %v3698
      %v3758 = vpop.f32.mrf.mxu0
      %v3759 = vadd.f32 0.0, %v3758
      %v3760 = vpop.f32.mrf.mxu0
      %v3761 = vadd.f32 0.0, %v3760
      %3762 = vmatmul.bf16.gmra.mxu0 %v3701
      %v3763 = vpop.f32.mrf.mxu0
      %v3764 = vadd.f32 0.0, %v3763
      %v3765 = vpop.f32.mrf.mxu0
      %v3766 = vadd.f32 0.0, %v3765
      %3767 = vmatmul.bf16.gmra.mxu0 %v3704
      %v3768 = vpop.f32.mrf.mxu0
      %v3769 = vadd.f32 0.0, %v3768
      %v3770 = vpop.f32.mrf.mxu0
      %v3771 = vadd.f32 0.0, %v3770
      %3772 = vmatmul.bf16.gmra.mxu0 %v3707
      %v3773 = vpop.f32.mrf.mxu0
      %v3774 = vadd.f32 0.0, %v3773
      %v3775 = vpop.f32.mrf.mxu0
      %v3776 = vadd.f32 0.0, %v3775
      %3777 = vmatmul.bf16.gmra.mxu0 %v3710
      %v3778 = vpop.f32.mrf.mxu0
      %v3779 = vadd.f32 0.0, %v3778
      %v3780 = vpop.f32.mrf.mxu0
      %v3781 = vadd.f32 0.0, %v3780
      %3782 = vmatmul.bf16.gmra.mxu0 %v3713
      %v3783 = vpop.f32.mrf.mxu0
      %v3784 = vadd.f32 0.0, %v3783
      %v3785 = vpop.f32.mrf.mxu0
      %v3786 = vadd.f32 0.0, %v3785
      %3787 = vmatmul.bf16.gmra.mxu0 %v3716
      %v3788 = vpop.f32.mrf.mxu0
      %v3789 = vadd.f32 0.0, %v3788
      %v3790 = vpop.f32.mrf.mxu0
      %v3791 = vadd.f32 0.0, %v3790
      %3792 = vmatmul.bf16.gmra.mxu0 %v3719
      %v3793 = vpop.f32.mrf.mxu0
      %v3794 = vadd.f32 0.0, %v3793
      %v3795 = vpop.f32.mrf.mxu0
      %v3796 = vadd.f32 0.0, %v3795
      %3797 = vmatmul.bf16.gmra.mxu0 %v3722
      %v3798 = vpop.f32.mrf.mxu0
      %v3799 = vadd.f32 0.0, %v3798
      %v3800 = vpop.f32.mrf.mxu0
      %v3801 = vadd.f32 0.0, %v3800
      %3802 = vmatmul.bf16.gmra.mxu0 %v3725
      %v3803 = vpop.f32.mrf.mxu0
      %v3804 = vadd.f32 0.0, %v3803
      %v3805 = vpop.f32.mrf.mxu0
      %v3806 = vadd.f32 0.0, %v3805
      %3807 = vmatmul.bf16.gmra.mxu0 %v3728
      %v3808 = vpop.f32.mrf.mxu0
      %v3809 = vadd.f32 0.0, %v3808
      %v3810 = vpop.f32.mrf.mxu0
      %v3811 = vadd.f32 0.0, %v3810
      %3812 = vmatmul.bf16.gmra.mxu0 %v3731
      %v3813 = vpop.f32.mrf.mxu0
      %v3814 = vadd.f32 0.0, %v3813
      %v3815 = vpop.f32.mrf.mxu0
      %v3816 = vadd.f32 0.0, %v3815
      %3817 = vmatmul.bf16.gmra.mxu0 %v3734
      %v3818 = vpop.f32.mrf.mxu0
      %v3819 = vadd.f32 0.0, %v3818
      %v3820 = vpop.f32.mrf.mxu0
      %v3821 = vadd.f32 0.0, %v3820
      %3822 = vmatmul.bf16.gmra.mxu0 %v3737
      %v3823 = vpop.f32.mrf.mxu0
      %v3824 = vadd.f32 0.0, %v3823
      %v3825 = vpop.f32.mrf.mxu0
      %v3826 = vadd.f32 0.0, %v3825
      %3827 = vdwg.mxu0
      %v3860 = vunpack.c.l.b16 %v3513
      %v3861 = vunpack.c.l.b16 %v3514
      %v3862 = vunpack.c.l.b16 %v3515
      %v3863 = vunpack.c.l.b16 %v3516
      %v3864 = vunpack.c.l.b16 %v3517
      %v3865 = vunpack.c.l.b16 %v3518
      %v3866 = vunpack.c.l.b16 %v3519
      %v3867 = vunpack.c.l.b16 %v3520
      %v3868 = vunpack.c.l.b16 %v3521
      %v3869 = vunpack.c.l.b16 %v3522
      %v3870 = vunpack.c.l.b16 %v3523
      %v3871 = vunpack.c.l.b16 %v3524
      %v3872 = vunpack.c.l.b16 %v3525
      %v3873 = vunpack.c.l.b16 %v3526
      %v3874 = vunpack.c.l.b16 %v3527
      %v3875 = vunpack.c.l.b16 %v3528
      %v3876 = vunpack.c.l.b16 %v3529
      %v3877 = vunpack.c.l.b16 %v3530
      %v3878 = vunpack.c.l.b16 %v3531
      %v3879 = vunpack.c.l.b16 %v3532
      %v3880 = vunpack.c.l.b16 %v3533
      %v3881 = vunpack.c.l.b16 %v3534
      %v3882 = vunpack.c.l.b16 %v3535
      %v3883 = vunpack.c.l.b16 %v3536
      %v3884 = vunpack.c.l.b16 %v3537
      %v3885 = vunpack.c.l.b16 %v3538
      %v3886 = vunpack.c.l.b16 %v3539
      %v3887 = vunpack.c.l.b16 %v3540
      %v3888 = vunpack.c.l.b16 %v3541
      %v3889 = vunpack.c.l.b16 %v3542
      %v3890 = vunpack.c.l.b16 %v3543
      %v3891 = vunpack.c.l.b16 %v3544
      %v3892 = vpack.c.b16 %v3861, %v3860
      %v3893 = vpack.c.b16 %v3863, %v3862
      %v3894 = vpack.c.b16 %v3865, %v3864
      %v3895 = vpack.c.b16 %v3867, %v3866
      %v3896 = vpack.c.b16 %v3869, %v3868
      %v3897 = vpack.c.b16 %v3871, %v3870
      %v3898 = vpack.c.b16 %v3873, %v3872
      %v3899 = vpack.c.b16 %v3875, %v3874
      %v3900 = vpack.c.b16 %v3877, %v3876
      %v3901 = vpack.c.b16 %v3879, %v3878
      %v3902 = vpack.c.b16 %v3881, %v3880
      %v3903 = vpack.c.b16 %v3883, %v3882
      %v3904 = vpack.c.b16 %v3885, %v3884
      %v3905 = vpack.c.b16 %v3887, %v3886
      %v3906 = vpack.c.b16 %v3889, %v3888
      %v3907 = vpack.c.b16 %v3891, %v3890
      %v3909 = vsel %vm707, %v3892, 0
      %v3912 = vsel %vm707, %v3893, 0
      %v3915 = vsel %vm707, %v3894, 0
      %v3918 = vsel %vm707, %v3895, 0
      %v3921 = vsel %vm707, %v3896, 0
      %v3924 = vsel %vm707, %v3897, 0
      %v3927 = vsel %vm707, %v3898, 0
      %v3930 = vsel %vm707, %v3899, 0
      %v3933 = vsel %vm707, %v3900, 0
      %v3936 = vsel %vm707, %v3901, 0
      %v3939 = vsel %vm707, %v3902, 0
      %v3942 = vsel %vm707, %v3903, 0
      %v3945 = vsel %vm707, %v3904, 0
      %v3948 = vsel %vm707, %v3905, 0
      %v3951 = vsel %vm707, %v3906, 0
      %v3954 = vsel %vm707, %v3907, 0
      %3956 = vmatpush.bf16.msra.mxu0 0
      %3957 = vmatpush.bf16.msra.mxu0 0
      %3958 = vmatpush.bf16.msra.mxu0 0
      %3959 = vmatpush.bf16.msra.mxu0 %v2284
      %3960 = vmatpush.bf16.msra.mxu0 %v2283
      %3961 = vmatpush.bf16.msra.mxu0 %v2282
      %3962 = vmatpush.bf16.msra.mxu0 %v2281
      %3963 = vmatpush.bf16.msra.mxu0 %v2280
      %3964 = vmatmul.bf16.gmra.mxu0 %v3909
      %v3965 = vpop.f32.mrf.mxu0
      %v3966 = vadd.f32 %v3749, %v3965
      %v3967 = vpop.f32.mrf.mxu0
      %v3968 = vadd.f32 %v3751, %v3967
      %3969 = vmatmul.bf16.gmra.mxu0 %v3912
      %v3970 = vpop.f32.mrf.mxu0
      %v3971 = vadd.f32 %v3754, %v3970
      %v3972 = vpop.f32.mrf.mxu0
      %v3973 = vadd.f32 %v3756, %v3972
      %3974 = vmatmul.bf16.gmra.mxu0 %v3915
      %v3975 = vpop.f32.mrf.mxu0
      %v3976 = vadd.f32 %v3759, %v3975
      %v3977 = vpop.f32.mrf.mxu0
      %v3978 = vadd.f32 %v3761, %v3977
      %3979 = vmatmul.bf16.gmra.mxu0 %v3918
      %v3980 = vpop.f32.mrf.mxu0
      %v3981 = vadd.f32 %v3764, %v3980
      %v3982 = vpop.f32.mrf.mxu0
      %v3983 = vadd.f32 %v3766, %v3982
      %3984 = vmatmul.bf16.gmra.mxu0 %v3921
      %v3985 = vpop.f32.mrf.mxu0
      %v3986 = vadd.f32 %v3769, %v3985
      %v3987 = vpop.f32.mrf.mxu0
      %v3988 = vadd.f32 %v3771, %v3987
      %3989 = vmatmul.bf16.gmra.mxu0 %v3924
      %v3990 = vpop.f32.mrf.mxu0
      %v3991 = vadd.f32 %v3774, %v3990
      %v3992 = vpop.f32.mrf.mxu0
      %v3993 = vadd.f32 %v3776, %v3992
      %3994 = vmatmul.bf16.gmra.mxu0 %v3927
      %v3995 = vpop.f32.mrf.mxu0
      %v3996 = vadd.f32 %v3779, %v3995
      %v3997 = vpop.f32.mrf.mxu0
      %v3998 = vadd.f32 %v3781, %v3997
      %3999 = vmatmul.bf16.gmra.mxu0 %v3930
      %v4000 = vpop.f32.mrf.mxu0
      %v4001 = vadd.f32 %v3784, %v4000
      %v4002 = vpop.f32.mrf.mxu0
      %v4003 = vadd.f32 %v3786, %v4002
      %4004 = vmatmul.bf16.gmra.mxu0 %v3933
      %v4005 = vpop.f32.mrf.mxu0
      %v4006 = vadd.f32 %v3789, %v4005
      %v4007 = vpop.f32.mrf.mxu0
      %v4008 = vadd.f32 %v3791, %v4007
      %4009 = vmatmul.bf16.gmra.mxu0 %v3936
      %v4010 = vpop.f32.mrf.mxu0
      %v4011 = vadd.f32 %v3794, %v4010
      %v4012 = vpop.f32.mrf.mxu0
      %v4013 = vadd.f32 %v3796, %v4012
      %4014 = vmatmul.bf16.gmra.mxu0 %v3939
      %v4015 = vpop.f32.mrf.mxu0
      %v4016 = vadd.f32 %v3799, %v4015
      %v4017 = vpop.f32.mrf.mxu0
      %v4018 = vadd.f32 %v3801, %v4017
      %4019 = vmatmul.bf16.gmra.mxu0 %v3942
      %v4020 = vpop.f32.mrf.mxu0
      %v4021 = vadd.f32 %v3804, %v4020
      %v4022 = vpop.f32.mrf.mxu0
      %v4023 = vadd.f32 %v3806, %v4022
      %4024 = vmatmul.bf16.gmra.mxu0 %v3945
      %v4025 = vpop.f32.mrf.mxu0
      %v4026 = vadd.f32 %v3809, %v4025
      %v4027 = vpop.f32.mrf.mxu0
      %v4028 = vadd.f32 %v3811, %v4027
      %4029 = vmatmul.bf16.gmra.mxu0 %v3948
      %v4030 = vpop.f32.mrf.mxu0
      %v4031 = vadd.f32 %v3814, %v4030
      %v4032 = vpop.f32.mrf.mxu0
      %v4033 = vadd.f32 %v3816, %v4032
      %4034 = vmatmul.bf16.gmra.mxu0 %v3951
      %v4035 = vpop.f32.mrf.mxu0
      %v4036 = vadd.f32 %v3819, %v4035
      %v4037 = vpop.f32.mrf.mxu0
      %v4038 = vadd.f32 %v3821, %v4037
      %4039 = vmatmul.bf16.gmra.mxu0 %v3954
      %v4040 = vpop.f32.mrf.mxu0
      %v4041 = vadd.f32 %v3824, %v4040
      %v4042 = vpop.f32.mrf.mxu0
      %v4043 = vadd.f32 %v3826, %v4042
      %4044 = vdwg.mxu0
      %v4045 = vunpack.c.l.bf16 %v3513
      %v4046 = vunpack.c.l.bf16 %v3514
      %v4047 = vunpack.c.l.bf16 %v3515
      %v4048 = vunpack.c.l.bf16 %v3516
      %v4049 = vunpack.c.l.bf16 %v3517
      %v4050 = vunpack.c.l.bf16 %v3518
      %v4051 = vunpack.c.l.bf16 %v3519
      %v4052 = vunpack.c.l.bf16 %v3520
      %v4053 = vunpack.c.l.bf16 %v3521
      %v4054 = vunpack.c.l.bf16 %v3522
      %v4055 = vunpack.c.l.bf16 %v3523
      %v4056 = vunpack.c.l.bf16 %v3524
      %v4057 = vunpack.c.l.bf16 %v3525
      %v4058 = vunpack.c.l.bf16 %v3526
      %v4059 = vunpack.c.l.bf16 %v3527
      %v4060 = vunpack.c.l.bf16 %v3528
      %v4061 = vunpack.c.l.bf16 %v3529
      %v4062 = vunpack.c.l.bf16 %v3530
      %v4063 = vunpack.c.l.bf16 %v3531
      %v4064 = vunpack.c.l.bf16 %v3532
      %v4065 = vunpack.c.l.bf16 %v3533
      %v4066 = vunpack.c.l.bf16 %v3534
      %v4067 = vunpack.c.l.bf16 %v3535
      %v4068 = vunpack.c.l.bf16 %v3536
      %v4069 = vunpack.c.l.bf16 %v3537
      %v4070 = vunpack.c.l.bf16 %v3538
      %v4071 = vunpack.c.l.bf16 %v3539
      %v4072 = vunpack.c.l.bf16 %v3540
      %v4073 = vunpack.c.l.bf16 %v3541
      %v4074 = vunpack.c.l.bf16 %v3542
      %v4075 = vunpack.c.l.bf16 %v3543
      %v4076 = vunpack.c.l.bf16 %v3544
      %v4077 = vunpack.c.l.bf16 %v3579
      %v4078 = vunpack.c.l.bf16 %v3580
      %v4079 = vunpack.c.l.bf16 %v3581
      %v4080 = vunpack.c.l.bf16 %v3582
      %v4081 = vunpack.c.l.bf16 %v3583
      %v4082 = vunpack.c.l.bf16 %v3584
      %v4083 = vunpack.c.l.bf16 %v3585
      %v4084 = vunpack.c.l.bf16 %v3586
      %v4085 = vunpack.c.l.bf16 %v3587
      %v4086 = vunpack.c.l.bf16 %v3588
      %v4087 = vunpack.c.l.bf16 %v3589
      %v4088 = vunpack.c.l.bf16 %v3590
      %v4089 = vunpack.c.l.bf16 %v3591
      %v4090 = vunpack.c.l.bf16 %v3592
      %v4091 = vunpack.c.l.bf16 %v3593
      %v4092 = vunpack.c.l.bf16 %v3594
      %v4093 = vunpack.c.l.bf16 %v3595
      %v4094 = vunpack.c.l.bf16 %v3596
      %v4095 = vunpack.c.l.bf16 %v3597
      %v4096 = vunpack.c.l.bf16 %v3598
      %v4097 = vunpack.c.l.bf16 %v3599
      %v4098 = vunpack.c.l.bf16 %v3600
      %v4099 = vunpack.c.l.bf16 %v3601
      %v4100 = vunpack.c.l.bf16 %v3602
      %v4101 = vunpack.c.l.bf16 %v3603
      %v4102 = vunpack.c.l.bf16 %v3604
      %v4103 = vunpack.c.l.bf16 %v3605
      %v4104 = vunpack.c.l.bf16 %v3606
      %v4105 = vunpack.c.l.bf16 %v3607
      %v4106 = vunpack.c.l.bf16 %v3608
      %v4107 = vunpack.c.l.bf16 %v3609
      %v4108 = vunpack.c.l.bf16 %v3610
      %v4109 = vmax.f32 %v4045, %v4077
      %v4110 = vmax.f32 %v4046, %v4078
      %v4111 = vmax.f32 %v4047, %v4079
      %v4112 = vmax.f32 %v4048, %v4080
      %v4113 = vmax.f32 %v4049, %v4081
      %v4114 = vmax.f32 %v4050, %v4082
      %v4115 = vmax.f32 %v4051, %v4083
      %v4116 = vmax.f32 %v4052, %v4084
      %v4117 = vmax.f32 %v4053, %v4085
      %v4118 = vmax.f32 %v4054, %v4086
      %v4119 = vmax.f32 %v4055, %v4087
      %v4120 = vmax.f32 %v4056, %v4088
      %v4121 = vmax.f32 %v4057, %v4089
      %v4122 = vmax.f32 %v4058, %v4090
      %v4123 = vmax.f32 %v4059, %v4091
      %v4124 = vmax.f32 %v4060, %v4092
      %v4125 = vmax.f32 %v4061, %v4093
      %v4126 = vmax.f32 %v4062, %v4094
      %v4127 = vmax.f32 %v4063, %v4095
      %v4128 = vmax.f32 %v4064, %v4096
      %v4129 = vmax.f32 %v4065, %v4097
      %v4130 = vmax.f32 %v4066, %v4098
      %v4131 = vmax.f32 %v4067, %v4099
      %v4132 = vmax.f32 %v4068, %v4100
      %v4133 = vmax.f32 %v4069, %v4101
      %v4134 = vmax.f32 %v4070, %v4102
      %v4135 = vmax.f32 %v4071, %v4103
      %v4136 = vmax.f32 %v4072, %v4104
      %v4137 = vmax.f32 %v4073, %v4105
      %v4138 = vmax.f32 %v4074, %v4106
      %v4139 = vmax.f32 %v4075, %v4107
      %v4140 = vmax.f32 %v4076, %v4108
      %v4141 = vpack.c.bf16 %v4110, %v4109
      %v4142 = vpack.c.bf16 %v4112, %v4111
      %v4143 = vpack.c.bf16 %v4114, %v4113
      %v4144 = vpack.c.bf16 %v4116, %v4115
      %v4145 = vpack.c.bf16 %v4118, %v4117
      %v4146 = vpack.c.bf16 %v4120, %v4119
      %v4147 = vpack.c.bf16 %v4122, %v4121
      %v4148 = vpack.c.bf16 %v4124, %v4123
      %v4149 = vpack.c.bf16 %v4126, %v4125
      %v4150 = vpack.c.bf16 %v4128, %v4127
      %v4151 = vpack.c.bf16 %v4130, %v4129
      %v4152 = vpack.c.bf16 %v4132, %v4131
      %v4153 = vpack.c.bf16 %v4134, %v4133
      %v4154 = vpack.c.bf16 %v4136, %v4135
      %v4155 = vpack.c.bf16 %v4138, %v4137
      %v4156 = vpack.c.bf16 %v4140, %v4139
      %v4157 = vunpack.c.l.bf16 %v4141
      %v4158 = vunpack.c.h.bf16 %v4141
      %v4159 = vunpack.c.l.bf16 %v4142
      %v4160 = vunpack.c.h.bf16 %v4142
      %v4161 = vunpack.c.l.bf16 %v4143
      %v4162 = vunpack.c.h.bf16 %v4143
      %v4163 = vunpack.c.l.bf16 %v4144
      %v4164 = vunpack.c.h.bf16 %v4144
      %v4165 = vunpack.c.l.bf16 %v4145
      %v4166 = vunpack.c.h.bf16 %v4145
      %v4167 = vunpack.c.l.bf16 %v4146
      %v4168 = vunpack.c.h.bf16 %v4146
      %v4169 = vunpack.c.l.bf16 %v4147
      %v4170 = vunpack.c.h.bf16 %v4147
      %v4171 = vunpack.c.l.bf16 %v4148
      %v4172 = vunpack.c.h.bf16 %v4148
      %v4173 = vunpack.c.l.bf16 %v4149
      %v4174 = vunpack.c.h.bf16 %v4149
      %v4175 = vunpack.c.l.bf16 %v4150
      %v4176 = vunpack.c.h.bf16 %v4150
      %v4177 = vunpack.c.l.bf16 %v4151
      %v4178 = vunpack.c.h.bf16 %v4151
      %v4179 = vunpack.c.l.bf16 %v4152
      %v4180 = vunpack.c.h.bf16 %v4152
      %v4181 = vunpack.c.l.bf16 %v4153
      %v4182 = vunpack.c.h.bf16 %v4153
      %v4183 = vunpack.c.l.bf16 %v4154
      %v4184 = vunpack.c.h.bf16 %v4154
      %v4185 = vunpack.c.l.bf16 %v4155
      %v4186 = vunpack.c.h.bf16 %v4155
      %v4187 = vunpack.c.l.bf16 %v4156
      %v4188 = vunpack.c.h.bf16 %v4156
      %v4189 = vsel %vm707, %v4157, -inf
      %4190 = vmax.xlane.f32.xlu0 %v4189
      %v4191 = vpop.xlane.xlu0 %4190
      %v4192 = vsel %vm707, %v4158, -inf
      %4193 = vmax.xlane.f32.xlu0 %v4192
      %v4194 = vpop.xlane.xlu0 %4193
      %v4195 = vsel %vm707, %v4159, -inf
      %4196 = vmax.xlane.f32.xlu0 %v4195
      %v4197 = vpop.xlane.xlu0 %4196
      %v4198 = vsel %vm707, %v4160, -inf
      %4199 = vmax.xlane.f32.xlu0 %v4198
      %v4200 = vpop.xlane.xlu0 %4199
      %v4201 = vsel %vm707, %v4161, -inf
      %4202 = vmax.xlane.f32.xlu0 %v4201
      %v4203 = vpop.xlane.xlu0 %4202
      %v4204 = vsel %vm707, %v4162, -inf
      %4205 = vmax.xlane.f32.xlu0 %v4204
      %v4206 = vpop.xlane.xlu0 %4205
      %v4207 = vsel %vm707, %v4163, -inf
      %4208 = vmax.xlane.f32.xlu0 %v4207
      %v4209 = vpop.xlane.xlu0 %4208
      %v4210 = vsel %vm707, %v4164, -inf
      %4211 = vmax.xlane.f32.xlu0 %v4210
      %v4212 = vpop.xlane.xlu0 %4211
      %v4213 = vsel %vm707, %v4165, -inf
      %4214 = vmax.xlane.f32.xlu0 %v4213
      %v4215 = vpop.xlane.xlu0 %4214
      %v4216 = vsel %vm707, %v4166, -inf
      %4217 = vmax.xlane.f32.xlu0 %v4216
      %v4218 = vpop.xlane.xlu0 %4217
      %v4219 = vsel %vm707, %v4167, -inf
      %4220 = vmax.xlane.f32.xlu0 %v4219
      %v4221 = vpop.xlane.xlu0 %4220
      %v4222 = vsel %vm707, %v4168, -inf
      %4223 = vmax.xlane.f32.xlu0 %v4222
      %v4224 = vpop.xlane.xlu0 %4223
      %v4225 = vsel %vm707, %v4169, -inf
      %4226 = vmax.xlane.f32.xlu0 %v4225
      %v4227 = vpop.xlane.xlu0 %4226
      %v4228 = vsel %vm707, %v4170, -inf
      %4229 = vmax.xlane.f32.xlu0 %v4228
      %v4230 = vpop.xlane.xlu0 %4229
      %v4231 = vsel %vm707, %v4171, -inf
      %4232 = vmax.xlane.f32.xlu0 %v4231
      %v4233 = vpop.xlane.xlu0 %4232
      %v4234 = vsel %vm707, %v4172, -inf
      %4235 = vmax.xlane.f32.xlu0 %v4234
      %v4236 = vpop.xlane.xlu0 %4235
      %v4237 = vsel %vm707, %v4173, -inf
      %4238 = vmax.xlane.f32.xlu0 %v4237
      %v4239 = vpop.xlane.xlu0 %4238
      %v4240 = vsel %vm707, %v4174, -inf
      %4241 = vmax.xlane.f32.xlu0 %v4240
      %v4242 = vpop.xlane.xlu0 %4241
      %v4243 = vsel %vm707, %v4175, -inf
      %4244 = vmax.xlane.f32.xlu0 %v4243
      %v4245 = vpop.xlane.xlu0 %4244
      %v4246 = vsel %vm707, %v4176, -inf
      %4247 = vmax.xlane.f32.xlu0 %v4246
      %v4248 = vpop.xlane.xlu0 %4247
      %v4249 = vsel %vm707, %v4177, -inf
      %4250 = vmax.xlane.f32.xlu0 %v4249
      %v4251 = vpop.xlane.xlu0 %4250
      %v4252 = vsel %vm707, %v4178, -inf
      %4253 = vmax.xlane.f32.xlu0 %v4252
      %v4254 = vpop.xlane.xlu0 %4253
      %v4255 = vsel %vm707, %v4179, -inf
      %4256 = vmax.xlane.f32.xlu0 %v4255
      %v4257 = vpop.xlane.xlu0 %4256
      %v4258 = vsel %vm707, %v4180, -inf
      %4259 = vmax.xlane.f32.xlu0 %v4258
      %v4260 = vpop.xlane.xlu0 %4259
      %v4261 = vsel %vm707, %v4181, -inf
      %4262 = vmax.xlane.f32.xlu0 %v4261
      %v4263 = vpop.xlane.xlu0 %4262
      %v4264 = vsel %vm707, %v4182, -inf
      %4265 = vmax.xlane.f32.xlu0 %v4264
      %v4266 = vpop.xlane.xlu0 %4265
      %v4267 = vsel %vm707, %v4183, -inf
      %4268 = vmax.xlane.f32.xlu0 %v4267
      %v4269 = vpop.xlane.xlu0 %4268
      %v4270 = vsel %vm707, %v4184, -inf
      %4271 = vmax.xlane.f32.xlu0 %v4270
      %v4272 = vpop.xlane.xlu0 %4271
      %v4273 = vsel %vm707, %v4185, -inf
      %4274 = vmax.xlane.f32.xlu0 %v4273
      %v4275 = vpop.xlane.xlu0 %4274
      %v4276 = vsel %vm707, %v4186, -inf
      %4277 = vmax.xlane.f32.xlu0 %v4276
      %v4278 = vpop.xlane.xlu0 %4277
      %v4279 = vsel %vm707, %v4187, -inf
      %4280 = vmax.xlane.f32.xlu0 %v4279
      %v4281 = vpop.xlane.xlu0 %4280
      %v4282 = vsel %vm707, %v4188, -inf
      %4283 = vmax.xlane.f32.xlu0 %v4282
      %v4284 = vpop.xlane.xlu0 %4283
      %v4285 = vperm.slane %v2668, 1
      %v4286 = vunpack.c.l.bf16 %v4285
      %v4287 = vmul.f32 %v675, %v4286
      %v4288 = vmul.f32 %v676, %v4286
      %v4289 = vmul.f32 %v677, %v4286
      %v4290 = vmul.f32 %v678, %v4286
      %v4291 = vmul.f32 %v679, %v4286
      %v4292 = vmul.f32 %v680, %v4286
      %v4293 = vmul.f32 %v681, %v4286
      %v4294 = vmul.f32 %v682, %v4286
      %v4295 = vmul.f32 %v683, %v4286
      %v4296 = vmul.f32 %v684, %v4286
      %v4297 = vmul.f32 %v685, %v4286
      %v4298 = vmul.f32 %v686, %v4286
      %v4299 = vmul.f32 %v687, %v4286
      %v4300 = vmul.f32 %v688, %v4286
      %v4301 = vmul.f32 %v689, %v4286
      %v4302 = vmul.f32 %v690, %v4286
      %v4303 = vmul.f32 %v691, %v4286
      %v4304 = vmul.f32 %v692, %v4286
      %v4305 = vmul.f32 %v693, %v4286
      %v4306 = vmul.f32 %v694, %v4286
      %v4307 = vmul.f32 %v695, %v4286
      %v4308 = vmul.f32 %v696, %v4286
      %v4309 = vmul.f32 %v697, %v4286
      %v4310 = vmul.f32 %v698, %v4286
      %v4311 = vmul.f32 %v699, %v4286
      %v4312 = vmul.f32 %v700, %v4286
      %v4313 = vmul.f32 %v701, %v4286
      %v4314 = vmul.f32 %v702, %v4286
      %v4315 = vmul.f32 %v703, %v4286
      %v4316 = vmul.f32 %v704, %v4286
      %v4317 = vmul.f32 %v705, %v4286
      %v4318 = vmul.f32 %v706, %v4286
      %v4319 = vpack.c.bf16 %v4287, %v4287
      %v4320 = vpack.c.bf16 %v4288, %v4288
      %v4321 = vpack.c.bf16 %v4289, %v4289
      %v4322 = vpack.c.bf16 %v4290, %v4290
      %v4323 = vpack.c.bf16 %v4291, %v4291
      %v4324 = vpack.c.bf16 %v4292, %v4292
      %v4325 = vpack.c.bf16 %v4293, %v4293
      %v4326 = vpack.c.bf16 %v4294, %v4294
      %v4327 = vpack.c.bf16 %v4295, %v4295
      %v4328 = vpack.c.bf16 %v4296, %v4296
      %v4329 = vpack.c.bf16 %v4297, %v4297
      %v4330 = vpack.c.bf16 %v4298, %v4298
      %v4331 = vpack.c.bf16 %v4299, %v4299
      %v4332 = vpack.c.bf16 %v4300, %v4300
      %v4333 = vpack.c.bf16 %v4301, %v4301
      %v4334 = vpack.c.bf16 %v4302, %v4302
      %v4335 = vpack.c.bf16 %v4303, %v4303
      %v4336 = vpack.c.bf16 %v4304, %v4304
      %v4337 = vpack.c.bf16 %v4305, %v4305
      %v4338 = vpack.c.bf16 %v4306, %v4306
      %v4339 = vpack.c.bf16 %v4307, %v4307
      %v4340 = vpack.c.bf16 %v4308, %v4308
      %v4341 = vpack.c.bf16 %v4309, %v4309
      %v4342 = vpack.c.bf16 %v4310, %v4310
      %v4343 = vpack.c.bf16 %v4311, %v4311
      %v4344 = vpack.c.bf16 %v4312, %v4312
      %v4345 = vpack.c.bf16 %v4313, %v4313
      %v4346 = vpack.c.bf16 %v4314, %v4314
      %v4347 = vpack.c.bf16 %v4315, %v4315
      %v4348 = vpack.c.bf16 %v4316, %v4316
      %v4349 = vpack.c.bf16 %v4317, %v4317
      %v4350 = vpack.c.bf16 %v4318, %v4318
      %v4351 = vperm.slane %v2737, 1
      %v4352 = vunpack.c.l.bf16 %v4351
      %v4353 = vmul.f32 %v1360, %v4352
      %v4354 = vmul.f32 %v1361, %v4352
      %v4355 = vmul.f32 %v1362, %v4352
      %v4356 = vmul.f32 %v1363, %v4352
      %v4357 = vmul.f32 %v1364, %v4352
      %v4358 = vmul.f32 %v1365, %v4352
      %v4359 = vmul.f32 %v1366, %v4352
      %v4360 = vmul.f32 %v1367, %v4352
      %v4361 = vmul.f32 %v1368, %v4352
      %v4362 = vmul.f32 %v1369, %v4352
      %v4363 = vmul.f32 %v1370, %v4352
      %v4364 = vmul.f32 %v1371, %v4352
      %v4365 = vmul.f32 %v1372, %v4352
      %v4366 = vmul.f32 %v1373, %v4352
      %v4367 = vmul.f32 %v1374, %v4352
      %v4368 = vmul.f32 %v1375, %v4352
      %v4369 = vmul.f32 %v1376, %v4352
      %v4370 = vmul.f32 %v1377, %v4352
      %v4371 = vmul.f32 %v1378, %v4352
      %v4372 = vmul.f32 %v1379, %v4352
      %v4373 = vmul.f32 %v1380, %v4352
      %v4374 = vmul.f32 %v1381, %v4352
      %v4375 = vmul.f32 %v1382, %v4352
      %v4376 = vmul.f32 %v1383, %v4352
      %v4377 = vmul.f32 %v1384, %v4352
      %v4378 = vmul.f32 %v1385, %v4352
      %v4379 = vmul.f32 %v1386, %v4352
      %v4380 = vmul.f32 %v1387, %v4352
      %v4381 = vmul.f32 %v1388, %v4352
      %v4382 = vmul.f32 %v1389, %v4352
      %v4383 = vmul.f32 %v1390, %v4352
      %v4384 = vmul.f32 %v1391, %v4352
      %v4385 = vpack.c.bf16 %v4353, %v4353
      %v4386 = vpack.c.bf16 %v4354, %v4354
      %v4387 = vpack.c.bf16 %v4355, %v4355
      %v4388 = vpack.c.bf16 %v4356, %v4356
      %v4389 = vpack.c.bf16 %v4357, %v4357
      %v4390 = vpack.c.bf16 %v4358, %v4358
      %v4391 = vpack.c.bf16 %v4359, %v4359
      %v4392 = vpack.c.bf16 %v4360, %v4360
      %v4393 = vpack.c.bf16 %v4361, %v4361
      %v4394 = vpack.c.bf16 %v4362, %v4362
      %v4395 = vpack.c.bf16 %v4363, %v4363
      %v4396 = vpack.c.bf16 %v4364, %v4364
      %v4397 = vpack.c.bf16 %v4365, %v4365
      %v4398 = vpack.c.bf16 %v4366, %v4366
      %v4399 = vpack.c.bf16 %v4367, %v4367
      %v4400 = vpack.c.bf16 %v4368, %v4368
      %v4401 = vpack.c.bf16 %v4369, %v4369
      %v4402 = vpack.c.bf16 %v4370, %v4370
      %v4403 = vpack.c.bf16 %v4371, %v4371
      %v4404 = vpack.c.bf16 %v4372, %v4372
      %v4405 = vpack.c.bf16 %v4373, %v4373
      %v4406 = vpack.c.bf16 %v4374, %v4374
      %v4407 = vpack.c.bf16 %v4375, %v4375
      %v4408 = vpack.c.bf16 %v4376, %v4376
      %v4409 = vpack.c.bf16 %v4377, %v4377
      %v4410 = vpack.c.bf16 %v4378, %v4378
      %v4411 = vpack.c.bf16 %v4379, %v4379
      %v4412 = vpack.c.bf16 %v4380, %v4380
      %v4413 = vpack.c.bf16 %v4381, %v4381
      %v4414 = vpack.c.bf16 %v4382, %v4382
      %v4415 = vpack.c.bf16 %v4383, %v4383
      %v4416 = vpack.c.bf16 %v4384, %v4384
      %v4449 = vunpack.c.l.b16 %v4385
      %v4450 = vunpack.c.l.b16 %v4386
      %v4451 = vunpack.c.l.b16 %v4387
      %v4452 = vunpack.c.l.b16 %v4388
      %v4453 = vunpack.c.l.b16 %v4389
      %v4454 = vunpack.c.l.b16 %v4390
      %v4455 = vunpack.c.l.b16 %v4391
      %v4456 = vunpack.c.l.b16 %v4392
      %v4457 = vunpack.c.l.b16 %v4393
      %v4458 = vunpack.c.l.b16 %v4394
      %v4459 = vunpack.c.l.b16 %v4395
      %v4460 = vunpack.c.l.b16 %v4396
      %v4461 = vunpack.c.l.b16 %v4397
      %v4462 = vunpack.c.l.b16 %v4398
      %v4463 = vunpack.c.l.b16 %v4399
      %v4464 = vunpack.c.l.b16 %v4400
      %v4465 = vunpack.c.l.b16 %v4401
      %v4466 = vunpack.c.l.b16 %v4402
      %v4467 = vunpack.c.l.b16 %v4403
      %v4468 = vunpack.c.l.b16 %v4404
      %v4469 = vunpack.c.l.b16 %v4405
      %v4470 = vunpack.c.l.b16 %v4406
      %v4471 = vunpack.c.l.b16 %v4407
      %v4472 = vunpack.c.l.b16 %v4408
      %v4473 = vunpack.c.l.b16 %v4409
      %v4474 = vunpack.c.l.b16 %v4410
      %v4475 = vunpack.c.l.b16 %v4411
      %v4476 = vunpack.c.l.b16 %v4412
      %v4477 = vunpack.c.l.b16 %v4413
      %v4478 = vunpack.c.l.b16 %v4414
      %v4479 = vunpack.c.l.b16 %v4415
      %v4480 = vunpack.c.l.b16 %v4416
      %v4481 = vpack.c.b16 %v4450, %v4449
      %v4482 = vpack.c.b16 %v4452, %v4451
      %v4483 = vpack.c.b16 %v4454, %v4453
      %v4484 = vpack.c.b16 %v4456, %v4455
      %v4485 = vpack.c.b16 %v4458, %v4457
      %v4486 = vpack.c.b16 %v4460, %v4459
      %v4487 = vpack.c.b16 %v4462, %v4461
      %v4488 = vpack.c.b16 %v4464, %v4463
      %v4489 = vpack.c.b16 %v4466, %v4465
      %v4490 = vpack.c.b16 %v4468, %v4467
      %v4491 = vpack.c.b16 %v4470, %v4469
      %v4492 = vpack.c.b16 %v4472, %v4471
      %v4493 = vpack.c.b16 %v4474, %v4473
      %v4494 = vpack.c.b16 %v4476, %v4475
      %v4495 = vpack.c.b16 %v4478, %v4477
      %v4496 = vpack.c.b16 %v4480, %v4479
      %v4498 = vsel %vm707, %v4481, 0
      %v4501 = vsel %vm707, %v4482, 0
      %v4504 = vsel %vm707, %v4483, 0
      %v4507 = vsel %vm707, %v4484, 0
      %v4510 = vsel %vm707, %v4485, 0
      %v4513 = vsel %vm707, %v4486, 0
      %v4516 = vsel %vm707, %v4487, 0
      %v4519 = vsel %vm707, %v4488, 0
      %v4522 = vsel %vm707, %v4489, 0
      %v4525 = vsel %vm707, %v4490, 0
      %v4528 = vsel %vm707, %v4491, 0
      %v4531 = vsel %vm707, %v4492, 0
      %v4534 = vsel %vm707, %v4493, 0
      %v4537 = vsel %vm707, %v4494, 0
      %v4540 = vsel %vm707, %v4495, 0
      %v4543 = vsel %vm707, %v4496, 0
      %4545 = vmatpush.bf16.msra.mxu0 0
      %4546 = vmatpush.bf16.msra.mxu0 0
      %4547 = vmatpush.bf16.msra.mxu0 0
      %4548 = vmatpush.bf16.msra.mxu0 %v2037
      %4549 = vmatpush.bf16.msra.mxu0 %v2036
      %4550 = vmatpush.bf16.msra.mxu0 %v2035
      %4551 = vmatpush.bf16.msra.mxu0 %v2034
      %4552 = vmatpush.bf16.msra.mxu0 %v2033
      %4553 = vmatmul.bf16.gmra.mxu0 %v4498
      %v4554 = vpop.f32.mrf.mxu0
      %v4555 = vadd.f32 0.0, %v4554
      %v4556 = vpop.f32.mrf.mxu0
      %v4557 = vadd.f32 0.0, %v4556
      %4558 = vmatmul.bf16.gmra.mxu0 %v4501
      %v4559 = vpop.f32.mrf.mxu0
      %v4560 = vadd.f32 0.0, %v4559
      %v4561 = vpop.f32.mrf.mxu0
      %v4562 = vadd.f32 0.0, %v4561
      %4563 = vmatmul.bf16.gmra.mxu0 %v4504
      %v4564 = vpop.f32.mrf.mxu0
      %v4565 = vadd.f32 0.0, %v4564
      %v4566 = vpop.f32.mrf.mxu0
      %v4567 = vadd.f32 0.0, %v4566
      %4568 = vmatmul.bf16.gmra.mxu0 %v4507
      %v4569 = vpop.f32.mrf.mxu0
      %v4570 = vadd.f32 0.0, %v4569
      %v4571 = vpop.f32.mrf.mxu0
      %v4572 = vadd.f32 0.0, %v4571
      %4573 = vmatmul.bf16.gmra.mxu0 %v4510
      %v4574 = vpop.f32.mrf.mxu0
      %v4575 = vadd.f32 0.0, %v4574
      %v4576 = vpop.f32.mrf.mxu0
      %v4577 = vadd.f32 0.0, %v4576
      %4578 = vmatmul.bf16.gmra.mxu0 %v4513
      %v4579 = vpop.f32.mrf.mxu0
      %v4580 = vadd.f32 0.0, %v4579
      %v4581 = vpop.f32.mrf.mxu0
      %v4582 = vadd.f32 0.0, %v4581
      %4583 = vmatmul.bf16.gmra.mxu0 %v4516
      %v4584 = vpop.f32.mrf.mxu0
      %v4585 = vadd.f32 0.0, %v4584
      %v4586 = vpop.f32.mrf.mxu0
      %v4587 = vadd.f32 0.0, %v4586
      %4588 = vmatmul.bf16.gmra.mxu0 %v4519
      %v4589 = vpop.f32.mrf.mxu0
      %v4590 = vadd.f32 0.0, %v4589
      %v4591 = vpop.f32.mrf.mxu0
      %v4592 = vadd.f32 0.0, %v4591
      %4593 = vmatmul.bf16.gmra.mxu0 %v4522
      %v4594 = vpop.f32.mrf.mxu0
      %v4595 = vadd.f32 0.0, %v4594
      %v4596 = vpop.f32.mrf.mxu0
      %v4597 = vadd.f32 0.0, %v4596
      %4598 = vmatmul.bf16.gmra.mxu0 %v4525
      %v4599 = vpop.f32.mrf.mxu0
      %v4600 = vadd.f32 0.0, %v4599
      %v4601 = vpop.f32.mrf.mxu0
      %v4602 = vadd.f32 0.0, %v4601
      %4603 = vmatmul.bf16.gmra.mxu0 %v4528
      %v4604 = vpop.f32.mrf.mxu0
      %v4605 = vadd.f32 0.0, %v4604
      %v4606 = vpop.f32.mrf.mxu0
      %v4607 = vadd.f32 0.0, %v4606
      %4608 = vmatmul.bf16.gmra.mxu0 %v4531
      %v4609 = vpop.f32.mrf.mxu0
      %v4610 = vadd.f32 0.0, %v4609
      %v4611 = vpop.f32.mrf.mxu0
      %v4612 = vadd.f32 0.0, %v4611
      %4613 = vmatmul.bf16.gmra.mxu0 %v4534
      %v4614 = vpop.f32.mrf.mxu0
      %v4615 = vadd.f32 0.0, %v4614
      %v4616 = vpop.f32.mrf.mxu0
      %v4617 = vadd.f32 0.0, %v4616
      %4618 = vmatmul.bf16.gmra.mxu0 %v4537
      %v4619 = vpop.f32.mrf.mxu0
      %v4620 = vadd.f32 0.0, %v4619
      %v4621 = vpop.f32.mrf.mxu0
      %v4622 = vadd.f32 0.0, %v4621
      %4623 = vmatmul.bf16.gmra.mxu0 %v4540
      %v4624 = vpop.f32.mrf.mxu0
      %v4625 = vadd.f32 0.0, %v4624
      %v4626 = vpop.f32.mrf.mxu0
      %v4627 = vadd.f32 0.0, %v4626
      %4628 = vmatmul.bf16.gmra.mxu0 %v4543
      %v4629 = vpop.f32.mrf.mxu0
      %v4630 = vadd.f32 0.0, %v4629
      %v4631 = vpop.f32.mrf.mxu0
      %v4632 = vadd.f32 0.0, %v4631
      %4633 = vdwg.mxu0
      %v4666 = vunpack.c.l.b16 %v4319
      %v4667 = vunpack.c.l.b16 %v4320
      %v4668 = vunpack.c.l.b16 %v4321
      %v4669 = vunpack.c.l.b16 %v4322
      %v4670 = vunpack.c.l.b16 %v4323
      %v4671 = vunpack.c.l.b16 %v4324
      %v4672 = vunpack.c.l.b16 %v4325
      %v4673 = vunpack.c.l.b16 %v4326
      %v4674 = vunpack.c.l.b16 %v4327
      %v4675 = vunpack.c.l.b16 %v4328
      %v4676 = vunpack.c.l.b16 %v4329
      %v4677 = vunpack.c.l.b16 %v4330
      %v4678 = vunpack.c.l.b16 %v4331
      %v4679 = vunpack.c.l.b16 %v4332
      %v4680 = vunpack.c.l.b16 %v4333
      %v4681 = vunpack.c.l.b16 %v4334
      %v4682 = vunpack.c.l.b16 %v4335
      %v4683 = vunpack.c.l.b16 %v4336
      %v4684 = vunpack.c.l.b16 %v4337
      %v4685 = vunpack.c.l.b16 %v4338
      %v4686 = vunpack.c.l.b16 %v4339
      %v4687 = vunpack.c.l.b16 %v4340
      %v4688 = vunpack.c.l.b16 %v4341
      %v4689 = vunpack.c.l.b16 %v4342
      %v4690 = vunpack.c.l.b16 %v4343
      %v4691 = vunpack.c.l.b16 %v4344
      %v4692 = vunpack.c.l.b16 %v4345
      %v4693 = vunpack.c.l.b16 %v4346
      %v4694 = vunpack.c.l.b16 %v4347
      %v4695 = vunpack.c.l.b16 %v4348
      %v4696 = vunpack.c.l.b16 %v4349
      %v4697 = vunpack.c.l.b16 %v4350
      %v4698 = vpack.c.b16 %v4667, %v4666
      %v4699 = vpack.c.b16 %v4669, %v4668
      %v4700 = vpack.c.b16 %v4671, %v4670
      %v4701 = vpack.c.b16 %v4673, %v4672
      %v4702 = vpack.c.b16 %v4675, %v4674
      %v4703 = vpack.c.b16 %v4677, %v4676
      %v4704 = vpack.c.b16 %v4679, %v4678
      %v4705 = vpack.c.b16 %v4681, %v4680
      %v4706 = vpack.c.b16 %v4683, %v4682
      %v4707 = vpack.c.b16 %v4685, %v4684
      %v4708 = vpack.c.b16 %v4687, %v4686
      %v4709 = vpack.c.b16 %v4689, %v4688
      %v4710 = vpack.c.b16 %v4691, %v4690
      %v4711 = vpack.c.b16 %v4693, %v4692
      %v4712 = vpack.c.b16 %v4695, %v4694
      %v4713 = vpack.c.b16 %v4697, %v4696
      %v4715 = vsel %vm707, %v4698, 0
      %v4718 = vsel %vm707, %v4699, 0
      %v4721 = vsel %vm707, %v4700, 0
      %v4724 = vsel %vm707, %v4701, 0
      %v4727 = vsel %vm707, %v4702, 0
      %v4730 = vsel %vm707, %v4703, 0
      %v4733 = vsel %vm707, %v4704, 0
      %v4736 = vsel %vm707, %v4705, 0
      %v4739 = vsel %vm707, %v4706, 0
      %v4742 = vsel %vm707, %v4707, 0
      %v4745 = vsel %vm707, %v4708, 0
      %v4748 = vsel %vm707, %v4709, 0
      %v4751 = vsel %vm707, %v4710, 0
      %v4754 = vsel %vm707, %v4711, 0
      %v4757 = vsel %vm707, %v4712, 0
      %v4760 = vsel %vm707, %v4713, 0
      %4762 = vmatpush.bf16.msra.mxu0 0
      %4763 = vmatpush.bf16.msra.mxu0 0
      %4764 = vmatpush.bf16.msra.mxu0 0
      %4765 = vmatpush.bf16.msra.mxu0 %v2284
      %4766 = vmatpush.bf16.msra.mxu0 %v2283
      %4767 = vmatpush.bf16.msra.mxu0 %v2282
      %4768 = vmatpush.bf16.msra.mxu0 %v2281
      %4769 = vmatpush.bf16.msra.mxu0 %v2280
      %4770 = vmatmul.bf16.gmra.mxu0 %v4715
      %v4771 = vpop.f32.mrf.mxu0
      %v4772 = vadd.f32 %v4555, %v4771
      %v4773 = vpop.f32.mrf.mxu0
      %v4774 = vadd.f32 %v4557, %v4773
      %4775 = vmatmul.bf16.gmra.mxu0 %v4718
      %v4776 = vpop.f32.mrf.mxu0
      %v4777 = vadd.f32 %v4560, %v4776
      %v4778 = vpop.f32.mrf.mxu0
      %v4779 = vadd.f32 %v4562, %v4778
      %4780 = vmatmul.bf16.gmra.mxu0 %v4721
      %v4781 = vpop.f32.mrf.mxu0
      %v4782 = vadd.f32 %v4565, %v4781
      %v4783 = vpop.f32.mrf.mxu0
      %v4784 = vadd.f32 %v4567, %v4783
      %4785 = vmatmul.bf16.gmra.mxu0 %v4724
      %v4786 = vpop.f32.mrf.mxu0
      %v4787 = vadd.f32 %v4570, %v4786
      %v4788 = vpop.f32.mrf.mxu0
      %v4789 = vadd.f32 %v4572, %v4788
      %4790 = vmatmul.bf16.gmra.mxu0 %v4727
      %v4791 = vpop.f32.mrf.mxu0
      %v4792 = vadd.f32 %v4575, %v4791
      %v4793 = vpop.f32.mrf.mxu0
      %v4794 = vadd.f32 %v4577, %v4793
      %4795 = vmatmul.bf16.gmra.mxu0 %v4730
      %v4796 = vpop.f32.mrf.mxu0
      %v4797 = vadd.f32 %v4580, %v4796
      %v4798 = vpop.f32.mrf.mxu0
      %v4799 = vadd.f32 %v4582, %v4798
      %4800 = vmatmul.bf16.gmra.mxu0 %v4733
      %v4801 = vpop.f32.mrf.mxu0
      %v4802 = vadd.f32 %v4585, %v4801
      %v4803 = vpop.f32.mrf.mxu0
      %v4804 = vadd.f32 %v4587, %v4803
      %4805 = vmatmul.bf16.gmra.mxu0 %v4736
      %v4806 = vpop.f32.mrf.mxu0
      %v4807 = vadd.f32 %v4590, %v4806
      %v4808 = vpop.f32.mrf.mxu0
      %v4809 = vadd.f32 %v4592, %v4808
      %4810 = vmatmul.bf16.gmra.mxu0 %v4739
      %v4811 = vpop.f32.mrf.mxu0
      %v4812 = vadd.f32 %v4595, %v4811
      %v4813 = vpop.f32.mrf.mxu0
      %v4814 = vadd.f32 %v4597, %v4813
      %4815 = vmatmul.bf16.gmra.mxu0 %v4742
      %v4816 = vpop.f32.mrf.mxu0
      %v4817 = vadd.f32 %v4600, %v4816
      %v4818 = vpop.f32.mrf.mxu0
      %v4819 = vadd.f32 %v4602, %v4818
      %4820 = vmatmul.bf16.gmra.mxu0 %v4745
      %v4821 = vpop.f32.mrf.mxu0
      %v4822 = vadd.f32 %v4605, %v4821
      %v4823 = vpop.f32.mrf.mxu0
      %v4824 = vadd.f32 %v4607, %v4823
      %4825 = vmatmul.bf16.gmra.mxu0 %v4748
      %v4826 = vpop.f32.mrf.mxu0
      %v4827 = vadd.f32 %v4610, %v4826
      %v4828 = vpop.f32.mrf.mxu0
      %v4829 = vadd.f32 %v4612, %v4828
      %4830 = vmatmul.bf16.gmra.mxu0 %v4751
      %v4831 = vpop.f32.mrf.mxu0
      %v4832 = vadd.f32 %v4615, %v4831
      %v4833 = vpop.f32.mrf.mxu0
      %v4834 = vadd.f32 %v4617, %v4833
      %4835 = vmatmul.bf16.gmra.mxu0 %v4754
      %v4836 = vpop.f32.mrf.mxu0
      %v4837 = vadd.f32 %v4620, %v4836
      %v4838 = vpop.f32.mrf.mxu0
      %v4839 = vadd.f32 %v4622, %v4838
      %4840 = vmatmul.bf16.gmra.mxu0 %v4757
      %v4841 = vpop.f32.mrf.mxu0
      %v4842 = vadd.f32 %v4625, %v4841
      %v4843 = vpop.f32.mrf.mxu0
      %v4844 = vadd.f32 %v4627, %v4843
      %4845 = vmatmul.bf16.gmra.mxu0 %v4760
      %v4846 = vpop.f32.mrf.mxu0
      %v4847 = vadd.f32 %v4630, %v4846
      %v4848 = vpop.f32.mrf.mxu0
      %v4849 = vadd.f32 %v4632, %v4848
      %4850 = vdwg.mxu0
      %v4851 = vunpack.c.l.bf16 %v4319
      %v4852 = vunpack.c.l.bf16 %v4320
      %v4853 = vunpack.c.l.bf16 %v4321
      %v4854 = vunpack.c.l.bf16 %v4322
      %v4855 = vunpack.c.l.bf16 %v4323
      %v4856 = vunpack.c.l.bf16 %v4324
      %v4857 = vunpack.c.l.bf16 %v4325
      %v4858 = vunpack.c.l.bf16 %v4326
      %v4859 = vunpack.c.l.bf16 %v4327
      %v4860 = vunpack.c.l.bf16 %v4328
      %v4861 = vunpack.c.l.bf16 %v4329
      %v4862 = vunpack.c.l.bf16 %v4330
      %v4863 = vunpack.c.l.bf16 %v4331
      %v4864 = vunpack.c.l.bf16 %v4332
      %v4865 = vunpack.c.l.bf16 %v4333
      %v4866 = vunpack.c.l.bf16 %v4334
      %v4867 = vunpack.c.l.bf16 %v4335
      %v4868 = vunpack.c.l.bf16 %v4336
      %v4869 = vunpack.c.l.bf16 %v4337
      %v4870 = vunpack.c.l.bf16 %v4338
      %v4871 = vunpack.c.l.bf16 %v4339
      %v4872 = vunpack.c.l.bf16 %v4340
      %v4873 = vunpack.c.l.bf16 %v4341
      %v4874 = vunpack.c.l.bf16 %v4342
      %v4875 = vunpack.c.l.bf16 %v4343
      %v4876 = vunpack.c.l.bf16 %v4344
      %v4877 = vunpack.c.l.bf16 %v4345
      %v4878 = vunpack.c.l.bf16 %v4346
      %v4879 = vunpack.c.l.bf16 %v4347
      %v4880 = vunpack.c.l.bf16 %v4348
      %v4881 = vunpack.c.l.bf16 %v4349
      %v4882 = vunpack.c.l.bf16 %v4350
      %v4883 = vunpack.c.l.bf16 %v4385
      %v4884 = vunpack.c.l.bf16 %v4386
      %v4885 = vunpack.c.l.bf16 %v4387
      %v4886 = vunpack.c.l.bf16 %v4388
      %v4887 = vunpack.c.l.bf16 %v4389
      %v4888 = vunpack.c.l.bf16 %v4390
      %v4889 = vunpack.c.l.bf16 %v4391
      %v4890 = vunpack.c.l.bf16 %v4392
      %v4891 = vunpack.c.l.bf16 %v4393
      %v4892 = vunpack.c.l.bf16 %v4394
      %v4893 = vunpack.c.l.bf16 %v4395
      %v4894 = vunpack.c.l.bf16 %v4396
      %v4895 = vunpack.c.l.bf16 %v4397
      %v4896 = vunpack.c.l.bf16 %v4398
      %v4897 = vunpack.c.l.bf16 %v4399
      %v4898 = vunpack.c.l.bf16 %v4400
      %v4899 = vunpack.c.l.bf16 %v4401
      %v4900 = vunpack.c.l.bf16 %v4402
      %v4901 = vunpack.c.l.bf16 %v4403
      %v4902 = vunpack.c.l.bf16 %v4404
      %v4903 = vunpack.c.l.bf16 %v4405
      %v4904 = vunpack.c.l.bf16 %v4406
      %v4905 = vunpack.c.l.bf16 %v4407
      %v4906 = vunpack.c.l.bf16 %v4408
      %v4907 = vunpack.c.l.bf16 %v4409
      %v4908 = vunpack.c.l.bf16 %v4410
      %v4909 = vunpack.c.l.bf16 %v4411
      %v4910 = vunpack.c.l.bf16 %v4412
      %v4911 = vunpack.c.l.bf16 %v4413
      %v4912 = vunpack.c.l.bf16 %v4414
      %v4913 = vunpack.c.l.bf16 %v4415
      %v4914 = vunpack.c.l.bf16 %v4416
      %v4915 = vmax.f32 %v4851, %v4883
      %v4916 = vmax.f32 %v4852, %v4884
      %v4917 = vmax.f32 %v4853, %v4885
      %v4918 = vmax.f32 %v4854, %v4886
      %v4919 = vmax.f32 %v4855, %v4887
      %v4920 = vmax.f32 %v4856, %v4888
      %v4921 = vmax.f32 %v4857, %v4889
      %v4922 = vmax.f32 %v4858, %v4890
      %v4923 = vmax.f32 %v4859, %v4891
      %v4924 = vmax.f32 %v4860, %v4892
      %v4925 = vmax.f32 %v4861, %v4893
      %v4926 = vmax.f32 %v4862, %v4894
      %v4927 = vmax.f32 %v4863, %v4895
      %v4928 = vmax.f32 %v4864, %v4896
      %v4929 = vmax.f32 %v4865, %v4897
      %v4930 = vmax.f32 %v4866, %v4898
      %v4931 = vmax.f32 %v4867, %v4899
      %v4932 = vmax.f32 %v4868, %v4900
      %v4933 = vmax.f32 %v4869, %v4901
      %v4934 = vmax.f32 %v4870, %v4902
      %v4935 = vmax.f32 %v4871, %v4903
      %v4936 = vmax.f32 %v4872, %v4904
      %v4937 = vmax.f32 %v4873, %v4905
      %v4938 = vmax.f32 %v4874, %v4906
      %v4939 = vmax.f32 %v4875, %v4907
      %v4940 = vmax.f32 %v4876, %v4908
      %v4941 = vmax.f32 %v4877, %v4909
      %v4942 = vmax.f32 %v4878, %v4910
      %v4943 = vmax.f32 %v4879, %v4911
      %v4944 = vmax.f32 %v4880, %v4912
      %v4945 = vmax.f32 %v4881, %v4913
      %v4946 = vmax.f32 %v4882, %v4914
      %v4947 = vpack.c.bf16 %v4916, %v4915
      %v4948 = vpack.c.bf16 %v4918, %v4917
      %v4949 = vpack.c.bf16 %v4920, %v4919
      %v4950 = vpack.c.bf16 %v4922, %v4921
      %v4951 = vpack.c.bf16 %v4924, %v4923
      %v4952 = vpack.c.bf16 %v4926, %v4925
      %v4953 = vpack.c.bf16 %v4928, %v4927
      %v4954 = vpack.c.bf16 %v4930, %v4929
      %v4955 = vpack.c.bf16 %v4932, %v4931
      %v4956 = vpack.c.bf16 %v4934, %v4933
      %v4957 = vpack.c.bf16 %v4936, %v4935
      %v4958 = vpack.c.bf16 %v4938, %v4937
      %v4959 = vpack.c.bf16 %v4940, %v4939
      %v4960 = vpack.c.bf16 %v4942, %v4941
      %v4961 = vpack.c.bf16 %v4944, %v4943
      %v4962 = vpack.c.bf16 %v4946, %v4945
      %v4963 = vunpack.c.l.bf16 %v4947
      %v4964 = vunpack.c.h.bf16 %v4947
      %v4965 = vunpack.c.l.bf16 %v4948
      %v4966 = vunpack.c.h.bf16 %v4948
      %v4967 = vunpack.c.l.bf16 %v4949
      %v4968 = vunpack.c.h.bf16 %v4949
      %v4969 = vunpack.c.l.bf16 %v4950
      %v4970 = vunpack.c.h.bf16 %v4950
      %v4971 = vunpack.c.l.bf16 %v4951
      %v4972 = vunpack.c.h.bf16 %v4951
      %v4973 = vunpack.c.l.bf16 %v4952
      %v4974 = vunpack.c.h.bf16 %v4952
      %v4975 = vunpack.c.l.bf16 %v4953
      %v4976 = vunpack.c.h.bf16 %v4953
      %v4977 = vunpack.c.l.bf16 %v4954
      %v4978 = vunpack.c.h.bf16 %v4954
      %v4979 = vunpack.c.l.bf16 %v4955
      %v4980 = vunpack.c.h.bf16 %v4955
      %v4981 = vunpack.c.l.bf16 %v4956
      %v4982 = vunpack.c.h.bf16 %v4956
      %v4983 = vunpack.c.l.bf16 %v4957
      %v4984 = vunpack.c.h.bf16 %v4957
      %v4985 = vunpack.c.l.bf16 %v4958
      %v4986 = vunpack.c.h.bf16 %v4958
      %v4987 = vunpack.c.l.bf16 %v4959
      %v4988 = vunpack.c.h.bf16 %v4959
      %v4989 = vunpack.c.l.bf16 %v4960
      %v4990 = vunpack.c.h.bf16 %v4960
      %v4991 = vunpack.c.l.bf16 %v4961
      %v4992 = vunpack.c.h.bf16 %v4961
      %v4993 = vunpack.c.l.bf16 %v4962
      %v4994 = vunpack.c.h.bf16 %v4962
      %v4995 = vsel %vm707, %v4963, -inf
      %4996 = vmax.xlane.f32.xlu0 %v4995
      %v4997 = vpop.xlane.xlu0 %4996
      %v4998 = vsel %vm707, %v4964, -inf
      %4999 = vmax.xlane.f32.xlu0 %v4998
      %v5000 = vpop.xlane.xlu0 %4999
      %v5001 = vsel %vm707, %v4965, -inf
      %5002 = vmax.xlane.f32.xlu0 %v5001
      %v5003 = vpop.xlane.xlu0 %5002
      %v5004 = vsel %vm707, %v4966, -inf
      %5005 = vmax.xlane.f32.xlu0 %v5004
      %v5006 = vpop.xlane.xlu0 %5005
      %v5007 = vsel %vm707, %v4967, -inf
      %5008 = vmax.xlane.f32.xlu0 %v5007
      %v5009 = vpop.xlane.xlu0 %5008
      %v5010 = vsel %vm707, %v4968, -inf
      %5011 = vmax.xlane.f32.xlu0 %v5010
      %v5012 = vpop.xlane.xlu0 %5011
      %v5013 = vsel %vm707, %v4969, -inf
      %5014 = vmax.xlane.f32.xlu0 %v5013
      %v5015 = vpop.xlane.xlu0 %5014
      %v5016 = vsel %vm707, %v4970, -inf
      %5017 = vmax.xlane.f32.xlu0 %v5016
      %v5018 = vpop.xlane.xlu0 %5017
      %v5019 = vsel %vm707, %v4971, -inf
      %5020 = vmax.xlane.f32.xlu0 %v5019
      %v5021 = vpop.xlane.xlu0 %5020
      %v5022 = vsel %vm707, %v4972, -inf
      %5023 = vmax.xlane.f32.xlu0 %v5022
      %v5024 = vpop.xlane.xlu0 %5023
      %v5025 = vsel %vm707, %v4973, -inf
      %5026 = vmax.xlane.f32.xlu0 %v5025
      %v5027 = vpop.xlane.xlu0 %5026
      %v5028 = vsel %vm707, %v4974, -inf
      %5029 = vmax.xlane.f32.xlu0 %v5028
      %v5030 = vpop.xlane.xlu0 %5029
      %v5031 = vsel %vm707, %v4975, -inf
      %5032 = vmax.xlane.f32.xlu0 %v5031
      %v5033 = vpop.xlane.xlu0 %5032
      %v5034 = vsel %vm707, %v4976, -inf
      %5035 = vmax.xlane.f32.xlu0 %v5034
      %v5036 = vpop.xlane.xlu0 %5035
      %v5037 = vsel %vm707, %v4977, -inf
      %5038 = vmax.xlane.f32.xlu0 %v5037
      %v5039 = vpop.xlane.xlu0 %5038
      %v5040 = vsel %vm707, %v4978, -inf
      %5041 = vmax.xlane.f32.xlu0 %v5040
      %v5042 = vpop.xlane.xlu0 %5041
      %v5043 = vsel %vm707, %v4979, -inf
      %5044 = vmax.xlane.f32.xlu0 %v5043
      %v5045 = vpop.xlane.xlu0 %5044
      %v5046 = vsel %vm707, %v4980, -inf
      %5047 = vmax.xlane.f32.xlu0 %v5046
      %v5048 = vpop.xlane.xlu0 %5047
      %v5049 = vsel %vm707, %v4981, -inf
      %5050 = vmax.xlane.f32.xlu0 %v5049
      %v5051 = vpop.xlane.xlu0 %5050
      %v5052 = vsel %vm707, %v4982, -inf
      %5053 = vmax.xlane.f32.xlu0 %v5052
      %v5054 = vpop.xlane.xlu0 %5053
      %v5055 = vsel %vm707, %v4983, -inf
      %5056 = vmax.xlane.f32.xlu0 %v5055
      %v5057 = vpop.xlane.xlu0 %5056
      %v5058 = vsel %vm707, %v4984, -inf
      %5059 = vmax.xlane.f32.xlu0 %v5058
      %v5060 = vpop.xlane.xlu0 %5059
      %v5061 = vsel %vm707, %v4985, -inf
      %5062 = vmax.xlane.f32.xlu0 %v5061
      %v5063 = vpop.xlane.xlu0 %5062
      %v5064 = vsel %vm707, %v4986, -inf
      %5065 = vmax.xlane.f32.xlu0 %v5064
      %v5066 = vpop.xlane.xlu0 %5065
      %v5067 = vsel %vm707, %v4987, -inf
      %5068 = vmax.xlane.f32.xlu0 %v5067
      %v5069 = vpop.xlane.xlu0 %5068
      %v5070 = vsel %vm707, %v4988, -inf
      %5071 = vmax.xlane.f32.xlu0 %v5070
      %v5072 = vpop.xlane.xlu0 %5071
      %v5073 = vsel %vm707, %v4989, -inf
      %5074 = vmax.xlane.f32.xlu0 %v5073
      %v5075 = vpop.xlane.xlu0 %5074
      %v5076 = vsel %vm707, %v4990, -inf
      %5077 = vmax.xlane.f32.xlu0 %v5076
      %v5078 = vpop.xlane.xlu0 %5077
      %v5079 = vsel %vm707, %v4991, -inf
      %5080 = vmax.xlane.f32.xlu0 %v5079
      %v5081 = vpop.xlane.xlu0 %5080
      %v5082 = vsel %vm707, %v4992, -inf
      %5083 = vmax.xlane.f32.xlu0 %v5082
      %v5084 = vpop.xlane.xlu0 %5083
      %v5085 = vsel %vm707, %v4993, -inf
      %5086 = vmax.xlane.f32.xlu0 %v5085
      %v5087 = vpop.xlane.xlu0 %5086
      %v5088 = vsel %vm707, %v4994, -inf
      %5089 = vmax.xlane.f32.xlu0 %v5088
      %v5090 = vpop.xlane.xlu0 %5089
      %5123 = vrot.lane.b32.xlu0 %v2348, 48
      %v5124 = vpop.permute.xlu0 %5123
      %5125 = vrot.lane.b32.xlu0 %v2350, 48
      %v5126 = vpop.permute.xlu0 %5125
      %5127 = vrot.lane.b32.xlu0 %v2353, 48
      %v5128 = vpop.permute.xlu0 %5127
      %5129 = vrot.lane.b32.xlu0 %v2355, 48
      %v5130 = vpop.permute.xlu0 %5129
      %5131 = vrot.lane.b32.xlu0 %v2358, 48
      %v5132 = vpop.permute.xlu0 %5131
      %5133 = vrot.lane.b32.xlu0 %v2360, 48
      %v5134 = vpop.permute.xlu0 %5133
      %5135 = vrot.lane.b32.xlu0 %v2363, 48
      %v5136 = vpop.permute.xlu0 %5135
      %5137 = vrot.lane.b32.xlu0 %v2365, 48
      %v5138 = vpop.permute.xlu0 %5137
      %5139 = vrot.lane.b32.xlu0 %v2368, 48
      %v5140 = vpop.permute.xlu0 %5139
      %5141 = vrot.lane.b32.xlu0 %v2370, 48
      %v5142 = vpop.permute.xlu0 %5141
      %5143 = vrot.lane.b32.xlu0 %v2373, 48
      %v5144 = vpop.permute.xlu0 %5143
      %5145 = vrot.lane.b32.xlu0 %v2375, 48
      %v5146 = vpop.permute.xlu0 %5145
      %5147 = vrot.lane.b32.xlu0 %v2378, 48
      %v5148 = vpop.permute.xlu0 %5147
      %5149 = vrot.lane.b32.xlu0 %v2380, 48
      %v5150 = vpop.permute.xlu0 %5149
      %5151 = vrot.lane.b32.xlu0 %v2383, 48
      %v5152 = vpop.permute.xlu0 %5151
      %5153 = vrot.lane.b32.xlu0 %v2385, 48
      %v5154 = vpop.permute.xlu0 %5153
      %5155 = vrot.lane.b32.xlu0 %v2388, 48
      %v5156 = vpop.permute.xlu0 %5155
      %5157 = vrot.lane.b32.xlu0 %v2390, 48
      %v5158 = vpop.permute.xlu0 %5157
      %5159 = vrot.lane.b32.xlu0 %v2393, 48
      %v5160 = vpop.permute.xlu0 %5159
      %5161 = vrot.lane.b32.xlu0 %v2395, 48
      %v5162 = vpop.permute.xlu0 %5161
      %5163 = vrot.lane.b32.xlu0 %v2398, 48
      %v5164 = vpop.permute.xlu0 %5163
      %5165 = vrot.lane.b32.xlu0 %v2400, 48
      %v5166 = vpop.permute.xlu0 %5165
      %5167 = vrot.lane.b32.xlu0 %v2403, 48
      %v5168 = vpop.permute.xlu0 %5167
      %5169 = vrot.lane.b32.xlu0 %v2405, 48
      %v5170 = vpop.permute.xlu0 %5169
      %5171 = vrot.lane.b32.xlu0 %v2408, 48
      %v5172 = vpop.permute.xlu0 %5171
      %5173 = vrot.lane.b32.xlu0 %v2410, 48
      %v5174 = vpop.permute.xlu0 %5173
      %5175 = vrot.lane.b32.xlu0 %v2413, 48
      %v5176 = vpop.permute.xlu0 %5175
      %5177 = vrot.lane.b32.xlu0 %v2415, 48
      %v5178 = vpop.permute.xlu0 %5177
      %5179 = vrot.lane.b32.xlu0 %v2418, 48
      %v5180 = vpop.permute.xlu0 %5179
      %5181 = vrot.lane.b32.xlu0 %v2420, 48
      %v5182 = vpop.permute.xlu0 %5181
      %5183 = vrot.lane.b32.xlu0 %v2423, 48
      %v5184 = vpop.permute.xlu0 %5183
      %5185 = vrot.lane.b32.xlu0 %v2425, 48
      %v5186 = vpop.permute.xlu0 %5185
      %5251 = vrot.lane.b32.xlu0 %v3160, 49
      %v5252 = vpop.permute.xlu0 %5251
      %5253 = vrot.lane.b32.xlu0 %v3162, 49
      %v5254 = vpop.permute.xlu0 %5253
      %5255 = vrot.lane.b32.xlu0 %v3165, 49
      %v5256 = vpop.permute.xlu0 %5255
      %5257 = vrot.lane.b32.xlu0 %v3167, 49
      %v5258 = vpop.permute.xlu0 %5257
      %5259 = vrot.lane.b32.xlu0 %v3170, 49
      %v5260 = vpop.permute.xlu0 %5259
      %5261 = vrot.lane.b32.xlu0 %v3172, 49
      %v5262 = vpop.permute.xlu0 %5261
      %5263 = vrot.lane.b32.xlu0 %v3175, 49
      %v5264 = vpop.permute.xlu0 %5263
      %5265 = vrot.lane.b32.xlu0 %v3177, 49
      %v5266 = vpop.permute.xlu0 %5265
      %5267 = vrot.lane.b32.xlu0 %v3180, 49
      %v5268 = vpop.permute.xlu0 %5267
      %5269 = vrot.lane.b32.xlu0 %v3182, 49
      %v5270 = vpop.permute.xlu0 %5269
      %5271 = vrot.lane.b32.xlu0 %v3185, 49
      %v5272 = vpop.permute.xlu0 %5271
      %5273 = vrot.lane.b32.xlu0 %v3187, 49
      %v5274 = vpop.permute.xlu0 %5273
      %5275 = vrot.lane.b32.xlu0 %v3190, 49
      %v5276 = vpop.permute.xlu0 %5275
      %5277 = vrot.lane.b32.xlu0 %v3192, 49
      %v5278 = vpop.permute.xlu0 %5277
      %5279 = vrot.lane.b32.xlu0 %v3195, 49
      %v5280 = vpop.permute.xlu0 %5279
      %5281 = vrot.lane.b32.xlu0 %v3197, 49
      %v5282 = vpop.permute.xlu0 %5281
      %5283 = vrot.lane.b32.xlu0 %v3200, 49
      %v5284 = vpop.permute.xlu0 %5283
      %5285 = vrot.lane.b32.xlu0 %v3202, 49
      %v5286 = vpop.permute.xlu0 %5285
      %5287 = vrot.lane.b32.xlu0 %v3205, 49
      %v5288 = vpop.permute.xlu0 %5287
      %5289 = vrot.lane.b32.xlu0 %v3207, 49
      %v5290 = vpop.permute.xlu0 %5289
      %5291 = vrot.lane.b32.xlu0 %v3210, 49
      %v5292 = vpop.permute.xlu0 %5291
      %5293 = vrot.lane.b32.xlu0 %v3212, 49
      %v5294 = vpop.permute.xlu0 %5293
      %5295 = vrot.lane.b32.xlu0 %v3215, 49
      %v5296 = vpop.permute.xlu0 %5295
      %5297 = vrot.lane.b32.xlu0 %v3217, 49
      %v5298 = vpop.permute.xlu0 %5297
      %5299 = vrot.lane.b32.xlu0 %v3220, 49
      %v5300 = vpop.permute.xlu0 %5299
      %5301 = vrot.lane.b32.xlu0 %v3222, 49
      %v5302 = vpop.permute.xlu0 %5301
      %5303 = vrot.lane.b32.xlu0 %v3225, 49
      %v5304 = vpop.permute.xlu0 %5303
      %5305 = vrot.lane.b32.xlu0 %v3227, 49
      %v5306 = vpop.permute.xlu0 %5305
      %5307 = vrot.lane.b32.xlu0 %v3230, 49
      %v5308 = vpop.permute.xlu0 %5307
      %5309 = vrot.lane.b32.xlu0 %v3232, 49
      %v5310 = vpop.permute.xlu0 %5309
      %5311 = vrot.lane.b32.xlu0 %v3235, 49
      %v5312 = vpop.permute.xlu0 %5311
      %5313 = vrot.lane.b32.xlu0 %v3237, 49
      %v5314 = vpop.permute.xlu0 %5313
      %5379 = vrot.lane.b32.xlu0 %v3966, 50
      %v5380 = vpop.permute.xlu0 %5379
      %5381 = vrot.lane.b32.xlu0 %v3968, 50
      %v5382 = vpop.permute.xlu0 %5381
      %5383 = vrot.lane.b32.xlu0 %v3971, 50
      %v5384 = vpop.permute.xlu0 %5383
      %5385 = vrot.lane.b32.xlu0 %v3973, 50
      %v5386 = vpop.permute.xlu0 %5385
      %5387 = vrot.lane.b32.xlu0 %v3976, 50
      %v5388 = vpop.permute.xlu0 %5387
      %5389 = vrot.lane.b32.xlu0 %v3978, 50
      %v5390 = vpop.permute.xlu0 %5389
      %5391 = vrot.lane.b32.xlu0 %v3981, 50
      %v5392 = vpop.permute.xlu0 %5391
      %5393 = vrot.lane.b32.xlu0 %v3983, 50
      %v5394 = vpop.permute.xlu0 %5393
      %5395 = vrot.lane.b32.xlu0 %v3986, 50
      %v5396 = vpop.permute.xlu0 %5395
      %5397 = vrot.lane.b32.xlu0 %v3988, 50
      %v5398 = vpop.permute.xlu0 %5397
      %5399 = vrot.lane.b32.xlu0 %v3991, 50
      %v5400 = vpop.permute.xlu0 %5399
      %5401 = vrot.lane.b32.xlu0 %v3993, 50
      %v5402 = vpop.permute.xlu0 %5401
      %5403 = vrot.lane.b32.xlu0 %v3996, 50
      %v5404 = vpop.permute.xlu0 %5403
      %5405 = vrot.lane.b32.xlu0 %v3998, 50
      %v5406 = vpop.permute.xlu0 %5405
      %5407 = vrot.lane.b32.xlu0 %v4001, 50
      %v5408 = vpop.permute.xlu0 %5407
      %5409 = vrot.lane.b32.xlu0 %v4003, 50
      %v5410 = vpop.permute.xlu0 %5409
      %5411 = vrot.lane.b32.xlu0 %v4006, 50
      %v5412 = vpop.permute.xlu0 %5411
      %5413 = vrot.lane.b32.xlu0 %v4008, 50
      %v5414 = vpop.permute.xlu0 %5413
      %5415 = vrot.lane.b32.xlu0 %v4011, 50
      %v5416 = vpop.permute.xlu0 %5415
      %5417 = vrot.lane.b32.xlu0 %v4013, 50
      %v5418 = vpop.permute.xlu0 %5417
      %5419 = vrot.lane.b32.xlu0 %v4016, 50
      %v5420 = vpop.permute.xlu0 %5419
      %5421 = vrot.lane.b32.xlu0 %v4018, 50
      %v5422 = vpop.permute.xlu0 %5421
      %5423 = vrot.lane.b32.xlu0 %v4021, 50
      %v5424 = vpop.permute.xlu0 %5423
      %5425 = vrot.lane.b32.xlu0 %v4023, 50
      %v5426 = vpop.permute.xlu0 %5425
      %5427 = vrot.lane.b32.xlu0 %v4026, 50
      %v5428 = vpop.permute.xlu0 %5427
      %5429 = vrot.lane.b32.xlu0 %v4028, 50
      %v5430 = vpop.permute.xlu0 %5429
      %5431 = vrot.lane.b32.xlu0 %v4031, 50
      %v5432 = vpop.permute.xlu0 %5431
      %5433 = vrot.lane.b32.xlu0 %v4033, 50
      %v5434 = vpop.permute.xlu0 %5433
      %5435 = vrot.lane.b32.xlu0 %v4036, 50
      %v5436 = vpop.permute.xlu0 %5435
      %5437 = vrot.lane.b32.xlu0 %v4038, 50
      %v5438 = vpop.permute.xlu0 %5437
      %5439 = vrot.lane.b32.xlu0 %v4041, 50
      %v5440 = vpop.permute.xlu0 %5439
      %5441 = vrot.lane.b32.xlu0 %v4043, 50
      %v5442 = vpop.permute.xlu0 %5441
      %5507 = vrot.lane.b32.xlu0 %v4772, 51
      %v5508 = vpop.permute.xlu0 %5507
      %5509 = vrot.lane.b32.xlu0 %v4774, 51
      %v5510 = vpop.permute.xlu0 %5509
      %5511 = vrot.lane.b32.xlu0 %v4777, 51
      %v5512 = vpop.permute.xlu0 %5511
      %5513 = vrot.lane.b32.xlu0 %v4779, 51
      %v5514 = vpop.permute.xlu0 %5513
      %5515 = vrot.lane.b32.xlu0 %v4782, 51
      %v5516 = vpop.permute.xlu0 %5515
      %5517 = vrot.lane.b32.xlu0 %v4784, 51
      %v5518 = vpop.permute.xlu0 %5517
      %5519 = vrot.lane.b32.xlu0 %v4787, 51
      %v5520 = vpop.permute.xlu0 %5519
      %5521 = vrot.lane.b32.xlu0 %v4789, 51
      %v5522 = vpop.permute.xlu0 %5521
      %5523 = vrot.lane.b32.xlu0 %v4792, 51
      %v5524 = vpop.permute.xlu0 %5523
      %5525 = vrot.lane.b32.xlu0 %v4794, 51
      %v5526 = vpop.permute.xlu0 %5525
      %5527 = vrot.lane.b32.xlu0 %v4797, 51
      %v5528 = vpop.permute.xlu0 %5527
      %5529 = vrot.lane.b32.xlu0 %v4799, 51
      %v5530 = vpop.permute.xlu0 %5529
      %5531 = vrot.lane.b32.xlu0 %v4802, 51
      %v5532 = vpop.permute.xlu0 %5531
      %5533 = vrot.lane.b32.xlu0 %v4804, 51
      %v5534 = vpop.permute.xlu0 %5533
      %5535 = vrot.lane.b32.xlu0 %v4807, 51
      %v5536 = vpop.permute.xlu0 %5535
      %5537 = vrot.lane.b32.xlu0 %v4809, 51
      %v5538 = vpop.permute.xlu0 %5537
      %5539 = vrot.lane.b32.xlu0 %v4812, 51
      %v5540 = vpop.permute.xlu0 %5539
      %5541 = vrot.lane.b32.xlu0 %v4814, 51
      %v5542 = vpop.permute.xlu0 %5541
      %5543 = vrot.lane.b32.xlu0 %v4817, 51
      %v5544 = vpop.permute.xlu0 %5543
      %5545 = vrot.lane.b32.xlu0 %v4819, 51
      %v5546 = vpop.permute.xlu0 %5545
      %5547 = vrot.lane.b32.xlu0 %v4822, 51
      %v5548 = vpop.permute.xlu0 %5547
      %5549 = vrot.lane.b32.xlu0 %v4824, 51
      %v5550 = vpop.permute.xlu0 %5549
      %5551 = vrot.lane.b32.xlu0 %v4827, 51
      %v5552 = vpop.permute.xlu0 %5551
      %5553 = vrot.lane.b32.xlu0 %v4829, 51
      %v5554 = vpop.permute.xlu0 %5553
      %5555 = vrot.lane.b32.xlu0 %v4832, 51
      %v5556 = vpop.permute.xlu0 %5555
      %5557 = vrot.lane.b32.xlu0 %v4834, 51
      %v5558 = vpop.permute.xlu0 %5557
      %5559 = vrot.lane.b32.xlu0 %v4837, 51
      %v5560 = vpop.permute.xlu0 %5559
      %5561 = vrot.lane.b32.xlu0 %v4839, 51
      %v5562 = vpop.permute.xlu0 %5561
      %5563 = vrot.lane.b32.xlu0 %v4842, 51
      %v5564 = vpop.permute.xlu0 %5563
      %5565 = vrot.lane.b32.xlu0 %v4844, 51
      %v5566 = vpop.permute.xlu0 %5565
      %5567 = vrot.lane.b32.xlu0 %v4847, 51
      %v5568 = vpop.permute.xlu0 %5567
      %5569 = vrot.lane.b32.xlu0 %v4849, 51
      %v5570 = vpop.permute.xlu0 %5569
      %vm5603 = vcmask 7168
      %v5604 = vsel %vm5603, %v5124, %v5252
      %v5605 = vsel %vm5603, %v5126, %v5254
      %v5606 = vsel %vm5603, %v5128, %v5256
      %v5607 = vsel %vm5603, %v5130, %v5258
      %v5608 = vsel %vm5603, %v5132, %v5260
      %v5609 = vsel %vm5603, %v5134, %v5262
      %v5610 = vsel %vm5603, %v5136, %v5264
      %v5611 = vsel %vm5603, %v5138, %v5266
      %v5612 = vsel %vm5603, %v5140, %v5268
      %v5613 = vsel %vm5603, %v5142, %v5270
      %v5614 = vsel %vm5603, %v5144, %v5272
      %v5615 = vsel %vm5603, %v5146, %v5274
      %v5616 = vsel %vm5603, %v5148, %v5276
      %v5617 = vsel %vm5603, %v5150, %v5278
      %v5618 = vsel %vm5603, %v5152, %v5280
      %v5619 = vsel %vm5603, %v5154, %v5282
      %v5620 = vsel %vm5603, %v5156, %v5284
      %v5621 = vsel %vm5603, %v5158, %v5286
      %v5622 = vsel %vm5603, %v5160, %v5288
      %v5623 = vsel %vm5603, %v5162, %v5290
      %v5624 = vsel %vm5603, %v5164, %v5292
      %v5625 = vsel %vm5603, %v5166, %v5294
      %v5626 = vsel %vm5603, %v5168, %v5296
      %v5627 = vsel %vm5603, %v5170, %v5298
      %v5628 = vsel %vm5603, %v5172, %v5300
      %v5629 = vsel %vm5603, %v5174, %v5302
      %v5630 = vsel %vm5603, %v5176, %v5304
      %v5631 = vsel %vm5603, %v5178, %v5306
      %v5632 = vsel %vm5603, %v5180, %v5308
      %v5633 = vsel %vm5603, %v5182, %v5310
      %v5634 = vsel %vm5603, %v5184, %v5312
      %v5635 = vsel %vm5603, %v5186, %v5314
      %vm5636 = vcmask 15360
      %v5637 = vsel %vm5636, %v5604, %v5380
      %v5638 = vsel %vm5636, %v5605, %v5382
      %v5639 = vsel %vm5636, %v5606, %v5384
      %v5640 = vsel %vm5636, %v5607, %v5386
      %v5641 = vsel %vm5636, %v5608, %v5388
      %v5642 = vsel %vm5636, %v5609, %v5390
      %v5643 = vsel %vm5636, %v5610, %v5392
      %v5644 = vsel %vm5636, %v5611, %v5394
      %v5645 = vsel %vm5636, %v5612, %v5396
      %v5646 = vsel %vm5636, %v5613, %v5398
      %v5647 = vsel %vm5636, %v5614, %v5400
      %v5648 = vsel %vm5636, %v5615, %v5402
      %v5649 = vsel %vm5636, %v5616, %v5404
      %v5650 = vsel %vm5636, %v5617, %v5406
      %v5651 = vsel %vm5636, %v5618, %v5408
      %v5652 = vsel %vm5636, %v5619, %v5410
      %v5653 = vsel %vm5636, %v5620, %v5412
      %v5654 = vsel %vm5636, %v5621, %v5414
      %v5655 = vsel %vm5636, %v5622, %v5416
      %v5656 = vsel %vm5636, %v5623, %v5418
      %v5657 = vsel %vm5636, %v5624, %v5420
      %v5658 = vsel %vm5636, %v5625, %v5422
      %v5659 = vsel %vm5636, %v5626, %v5424
      %v5660 = vsel %vm5636, %v5627, %v5426
      %v5661 = vsel %vm5636, %v5628, %v5428
      %v5662 = vsel %vm5636, %v5629, %v5430
      %v5663 = vsel %vm5636, %v5630, %v5432
      %v5664 = vsel %vm5636, %v5631, %v5434
      %v5665 = vsel %vm5636, %v5632, %v5436
      %v5666 = vsel %vm5636, %v5633, %v5438
      %v5667 = vsel %vm5636, %v5634, %v5440
      %v5668 = vsel %vm5636, %v5635, %v5442
      %vm5669 = vcmask 23552
      %v5670 = vsel %vm5669, %v5637, %v5508
      %v5671 = vsel %vm5669, %v5638, %v5510
      %v5672 = vsel %vm5669, %v5639, %v5512
      %v5673 = vsel %vm5669, %v5640, %v5514
      %v5674 = vsel %vm5669, %v5641, %v5516
      %v5675 = vsel %vm5669, %v5642, %v5518
      %v5676 = vsel %vm5669, %v5643, %v5520
      %v5677 = vsel %vm5669, %v5644, %v5522
      %v5678 = vsel %vm5669, %v5645, %v5524
      %v5679 = vsel %vm5669, %v5646, %v5526
      %v5680 = vsel %vm5669, %v5647, %v5528
      %v5681 = vsel %vm5669, %v5648, %v5530
      %v5682 = vsel %vm5669, %v5649, %v5532
      %v5683 = vsel %vm5669, %v5650, %v5534
      %v5684 = vsel %vm5669, %v5651, %v5536
      %v5685 = vsel %vm5669, %v5652, %v5538
      %v5686 = vsel %vm5669, %v5653, %v5540
      %v5687 = vsel %vm5669, %v5654, %v5542
      %v5688 = vsel %vm5669, %v5655, %v5544
      %v5689 = vsel %vm5669, %v5656, %v5546
      %v5690 = vsel %vm5669, %v5657, %v5548
      %v5691 = vsel %vm5669, %v5658, %v5550
      %v5692 = vsel %vm5669, %v5659, %v5552
      %v5693 = vsel %vm5669, %v5660, %v5554
      %v5694 = vsel %vm5669, %v5661, %v5556
      %v5695 = vsel %vm5669, %v5662, %v5558
      %v5696 = vsel %vm5669, %v5663, %v5560
      %v5697 = vsel %vm5669, %v5664, %v5562
      %v5698 = vsel %vm5669, %v5665, %v5564
      %v5699 = vsel %vm5669, %v5666, %v5566
      %v5700 = vsel %vm5669, %v5667, %v5568
      %v5701 = vsel %vm5669, %v5668, %v5570
      %v5702 = vpack.c.bf16 %v5671, %v5670
      %v5703 = vpack.c.bf16 %v5673, %v5672
      %v5704 = vpack.c.bf16 %v5675, %v5674
      %v5705 = vpack.c.bf16 %v5677, %v5676
      %v5706 = vpack.c.bf16 %v5679, %v5678
      %v5707 = vpack.c.bf16 %v5681, %v5680
      %v5708 = vpack.c.bf16 %v5683, %v5682
      %v5709 = vpack.c.bf16 %v5685, %v5684
      %v5710 = vpack.c.bf16 %v5687, %v5686
      %v5711 = vpack.c.bf16 %v5689, %v5688
      %v5712 = vpack.c.bf16 %v5691, %v5690
      %v5713 = vpack.c.bf16 %v5693, %v5692
      %v5714 = vpack.c.bf16 %v5695, %v5694
      %v5715 = vpack.c.bf16 %v5697, %v5696
      %v5716 = vpack.c.bf16 %v5699, %v5698
      %v5717 = vpack.c.bf16 %v5701, %v5700
      %v5718 = vsel %vm5603, %v2573, %v3385
      %v5719 = vsel %vm5603, %v2576, %v3388
      %v5720 = vsel %vm5603, %v2579, %v3391
      %v5721 = vsel %vm5603, %v2582, %v3394
      %v5722 = vsel %vm5603, %v2585, %v3397
      %v5723 = vsel %vm5603, %v2588, %v3400
      %v5724 = vsel %vm5603, %v2591, %v3403
      %v5725 = vsel %vm5603, %v2594, %v3406
      %v5726 = vsel %vm5603, %v2597, %v3409
      %v5727 = vsel %vm5603, %v2600, %v3412
      %v5728 = vsel %vm5603, %v2603, %v3415
      %v5729 = vsel %vm5603, %v2606, %v3418
      %v5730 = vsel %vm5603, %v2609, %v3421
      %v5731 = vsel %vm5603, %v2612, %v3424
      %v5732 = vsel %vm5603, %v2615, %v3427
      %v5733 = vsel %vm5603, %v2618, %v3430
      %v5734 = vsel %vm5603, %v2621, %v3433
      %v5735 = vsel %vm5603, %v2624, %v3436
      %v5736 = vsel %vm5603, %v2627, %v3439
      %v5737 = vsel %vm5603, %v2630, %v3442
      %v5738 = vsel %vm5603, %v2633, %v3445
      %v5739 = vsel %vm5603, %v2636, %v3448
      %v5740 = vsel %vm5603, %v2639, %v3451
      %v5741 = vsel %vm5603, %v2642, %v3454
      %v5742 = vsel %vm5603, %v2645, %v3457
      %v5743 = vsel %vm5603, %v2648, %v3460
      %v5744 = vsel %vm5603, %v2651, %v3463
      %v5745 = vsel %vm5603, %v2654, %v3466
      %v5746 = vsel %vm5603, %v2657, %v3469
      %v5747 = vsel %vm5603, %v2660, %v3472
      %v5748 = vsel %vm5603, %v2663, %v3475
      %v5749 = vsel %vm5603, %v2666, %v3478
      %v5750 = vsel %vm5636, %v5718, %v4191
      %v5751 = vsel %vm5636, %v5719, %v4194
      %v5752 = vsel %vm5636, %v5720, %v4197
      %v5753 = vsel %vm5636, %v5721, %v4200
      %v5754 = vsel %vm5636, %v5722, %v4203
      %v5755 = vsel %vm5636, %v5723, %v4206
      %v5756 = vsel %vm5636, %v5724, %v4209
      %v5757 = vsel %vm5636, %v5725, %v4212
      %v5758 = vsel %vm5636, %v5726, %v4215
      %v5759 = vsel %vm5636, %v5727, %v4218
      %v5760 = vsel %vm5636, %v5728, %v4221
      %v5761 = vsel %vm5636, %v5729, %v4224
      %v5762 = vsel %vm5636, %v5730, %v4227
      %v5763 = vsel %vm5636, %v5731, %v4230
      %v5764 = vsel %vm5636, %v5732, %v4233
      %v5765 = vsel %vm5636, %v5733, %v4236
      %v5766 = vsel %vm5636, %v5734, %v4239
      %v5767 = vsel %vm5636, %v5735, %v4242
      %v5768 = vsel %vm5636, %v5736, %v4245
      %v5769 = vsel %vm5636, %v5737, %v4248
      %v5770 = vsel %vm5636, %v5738, %v4251
      %v5771 = vsel %vm5636, %v5739, %v4254
      %v5772 = vsel %vm5636, %v5740, %v4257
      %v5773 = vsel %vm5636, %v5741, %v4260
      %v5774 = vsel %vm5636, %v5742, %v4263
      %v5775 = vsel %vm5636, %v5743, %v4266
      %v5776 = vsel %vm5636, %v5744, %v4269
      %v5777 = vsel %vm5636, %v5745, %v4272
      %v5778 = vsel %vm5636, %v5746, %v4275
      %v5779 = vsel %vm5636, %v5747, %v4278
      %v5780 = vsel %vm5636, %v5748, %v4281
      %v5781 = vsel %vm5636, %v5749, %v4284
      %v5782 = vsel %vm5669, %v5750, %v4997
      %v5783 = vsel %vm5669, %v5751, %v5000
      %v5784 = vsel %vm5669, %v5752, %v5003
      %v5785 = vsel %vm5669, %v5753, %v5006
      %v5786 = vsel %vm5669, %v5754, %v5009
      %v5787 = vsel %vm5669, %v5755, %v5012
      %v5788 = vsel %vm5669, %v5756, %v5015
      %v5789 = vsel %vm5669, %v5757, %v5018
      %v5790 = vsel %vm5669, %v5758, %v5021
      %v5791 = vsel %vm5669, %v5759, %v5024
      %v5792 = vsel %vm5669, %v5760, %v5027
      %v5793 = vsel %vm5669, %v5761, %v5030
      %v5794 = vsel %vm5669, %v5762, %v5033
      %v5795 = vsel %vm5669, %v5763, %v5036
      %v5796 = vsel %vm5669, %v5764, %v5039
      %v5797 = vsel %vm5669, %v5765, %v5042
      %v5798 = vsel %vm5669, %v5766, %v5045
      %v5799 = vsel %vm5669, %v5767, %v5048
      %v5800 = vsel %vm5669, %v5768, %v5051
      %v5801 = vsel %vm5669, %v5769, %v5054
      %v5802 = vsel %vm5669, %v5770, %v5057
      %v5803 = vsel %vm5669, %v5771, %v5060
      %v5804 = vsel %vm5669, %v5772, %v5063
      %v5805 = vsel %vm5669, %v5773, %v5066
      %v5806 = vsel %vm5669, %v5774, %v5069
      %v5807 = vsel %vm5669, %v5775, %v5072
      %v5808 = vsel %vm5669, %v5776, %v5075
      %v5809 = vsel %vm5669, %v5777, %v5078
      %v5810 = vsel %vm5669, %v5778, %v5081
      %v5811 = vsel %vm5669, %v5779, %v5084
      %v5812 = vsel %vm5669, %v5780, %v5087
      %v5813 = vsel %vm5669, %v5781, %v5090
      %v5814 = vpack.c.bf16 %v5783, %v5782
      %v5815 = vpack.c.bf16 %v5785, %v5784
      %v5816 = vpack.c.bf16 %v5787, %v5786
      %v5817 = vpack.c.bf16 %v5789, %v5788
      %v5818 = vpack.c.bf16 %v5791, %v5790
      %v5819 = vpack.c.bf16 %v5793, %v5792
      %v5820 = vpack.c.bf16 %v5795, %v5794
      %v5821 = vpack.c.bf16 %v5797, %v5796
      %v5822 = vpack.c.bf16 %v5799, %v5798
      %v5823 = vpack.c.bf16 %v5801, %v5800
      %v5824 = vpack.c.bf16 %v5803, %v5802
      %v5825 = vpack.c.bf16 %v5805, %v5804
      %v5826 = vpack.c.bf16 %v5807, %v5806
      %v5827 = vpack.c.bf16 %v5809, %v5808
      %v5828 = vpack.c.bf16 %v5811, %v5810
      %v5829 = vpack.c.bf16 %v5813, %v5812
      %v5830 = vld [vmem:[%s1] sm:$0xff]
      %v5831 = vld [vmem:[%s1 + $0x8] sm:$0xff]
      %v5832 = vld [vmem:[%s1 + $0x10] sm:$0xff]
      %v5833 = vld [vmem:[%s1 + $0x18] sm:$0xff]
      %v5834 = vld [vmem:[%s1 + $0x20] sm:$0xff]
      %v5835 = vld [vmem:[%s1 + $0x28] sm:$0xff]
      %v5836 = vld [vmem:[%s1 + $0x30] sm:$0xff]
      %v5837 = vld [vmem:[%s1 + $0x38] sm:$0xff]
      %v5838 = vld [vmem:[%s1 + $0x40] sm:$0xff]
      %v5839 = vld [vmem:[%s1 + $0x48] sm:$0xff]
      %v5840 = vld [vmem:[%s1 + $0x50] sm:$0xff]
      %v5841 = vld [vmem:[%s1 + $0x58] sm:$0xff]
      %v5842 = vld [vmem:[%s1 + $0x60] sm:$0xff]
      %v5843 = vld [vmem:[%s1 + $0x68] sm:$0xff]
      %v5844 = vld [vmem:[%s1 + $0x70] sm:$0xff]
      %v5845 = vld [vmem:[%s1 + $0x78] sm:$0xff]
      %v5846 = vld [vmem:[%s1 + $0x80] sm:$0xff]
      %v5847 = vld [vmem:[%s1 + $0x88] sm:$0xff]
      %v5848 = vld [vmem:[%s1 + $0x90] sm:$0xff]
      %v5849 = vld [vmem:[%s1 + $0x98] sm:$0xff]
      %v5850 = vld [vmem:[%s1 + $0xa0] sm:$0xff]
      %v5851 = vld [vmem:[%s1 + $0xa8] sm:$0xff]
      %v5852 = vld [vmem:[%s1 + $0xb0] sm:$0xff]
      %v5853 = vld [vmem:[%s1 + $0xb8] sm:$0xff]
      %v5854 = vld [vmem:[%s1 + $0xc0] sm:$0xff]
      %v5855 = vld [vmem:[%s1 + $0xc8] sm:$0xff]
      %v5856 = vld [vmem:[%s1 + $0xd0] sm:$0xff]
      %v5857 = vld [vmem:[%s1 + $0xd8] sm:$0xff]
      %v5858 = vld [vmem:[%s1 + $0xe0] sm:$0xff]
      %v5859 = vld [vmem:[%s1 + $0xe8] sm:$0xff]
      %v5860 = vld [vmem:[%s1 + $0xf0] sm:$0xff]
      %v5861 = vld [vmem:[%s1 + $0xf8] sm:$0xff]
      %v5862 = vld [vmem:[%s2] sm:$0xff]
      %v5863 = vld [vmem:[%s2 + $0x8] sm:$0xff]
      %v5864 = vld [vmem:[%s2 + $0x10] sm:$0xff]
      %v5865 = vld [vmem:[%s2 + $0x18] sm:$0xff]
      %v5866 = vld [vmem:[%s2 + $0x20] sm:$0xff]
      %v5867 = vld [vmem:[%s2 + $0x28] sm:$0xff]
      %v5868 = vld [vmem:[%s2 + $0x30] sm:$0xff]
      %v5869 = vld [vmem:[%s2 + $0x38] sm:$0xff]
      %v5870 = vld [vmem:[%s2 + $0x40] sm:$0xff]
      %v5871 = vld [vmem:[%s2 + $0x48] sm:$0xff]
      %v5872 = vld [vmem:[%s2 + $0x50] sm:$0xff]
      %v5873 = vld [vmem:[%s2 + $0x58] sm:$0xff]
      %v5874 = vld [vmem:[%s2 + $0x60] sm:$0xff]
      %v5875 = vld [vmem:[%s2 + $0x68] sm:$0xff]
      %v5876 = vld [vmem:[%s2 + $0x70] sm:$0xff]
      %v5877 = vld [vmem:[%s2 + $0x78] sm:$0xff]
      %v5878 = vld [vmem:[%s2 + $0x80] sm:$0xff]
      %v5879 = vld [vmem:[%s2 + $0x88] sm:$0xff]
      %v5880 = vld [vmem:[%s2 + $0x90] sm:$0xff]
      %v5881 = vld [vmem:[%s2 + $0x98] sm:$0xff]
      %v5882 = vld [vmem:[%s2 + $0xa0] sm:$0xff]
      %v5883 = vld [vmem:[%s2 + $0xa8] sm:$0xff]
      %v5884 = vld [vmem:[%s2 + $0xb0] sm:$0xff]
      %v5885 = vld [vmem:[%s2 + $0xb8] sm:$0xff]
      %v5886 = vld [vmem:[%s2 + $0xc0] sm:$0xff]
      %v5887 = vld [vmem:[%s2 + $0xc8] sm:$0xff]
      %v5888 = vld [vmem:[%s2 + $0xd0] sm:$0xff]
      %v5889 = vld [vmem:[%s2 + $0xd8] sm:$0xff]
      %v5890 = vld [vmem:[%s2 + $0xe0] sm:$0xff]
      %v5891 = vld [vmem:[%s2 + $0xe8] sm:$0xff]
      %v5892 = vld [vmem:[%s2 + $0xf0] sm:$0xff]
      %v5893 = vld [vmem:[%s2 + $0xf8] sm:$0xff]
      %v5926 = vunpack.c.l.b16 %v5862
      %v5927 = vunpack.c.h.b16 %v5862
      %v5928 = vunpack.c.l.b16 %v5863
      %v5929 = vunpack.c.h.b16 %v5863
      %v5930 = vunpack.c.l.b16 %v5864
      %v5931 = vunpack.c.h.b16 %v5864
      %v5932 = vunpack.c.l.b16 %v5865
      %v5933 = vunpack.c.h.b16 %v5865
      %v5934 = vunpack.c.l.b16 %v5866
      %v5935 = vunpack.c.h.b16 %v5866
      %v5936 = vunpack.c.l.b16 %v5867
      %v5937 = vunpack.c.h.b16 %v5867
      %v5938 = vunpack.c.l.b16 %v5868
      %v5939 = vunpack.c.h.b16 %v5868
      %v5940 = vunpack.c.l.b16 %v5869
      %v5941 = vunpack.c.h.b16 %v5869
      %v5942 = vunpack.c.l.b16 %v5870
      %v5943 = vunpack.c.h.b16 %v5870
      %v5944 = vunpack.c.l.b16 %v5871
      %v5945 = vunpack.c.h.b16 %v5871
      %v5946 = vunpack.c.l.b16 %v5872
      %v5947 = vunpack.c.h.b16 %v5872
      %v5948 = vunpack.c.l.b16 %v5873
      %v5949 = vunpack.c.h.b16 %v5873
      %v5950 = vunpack.c.l.b16 %v5874
      %v5951 = vunpack.c.h.b16 %v5874
      %v5952 = vunpack.c.l.b16 %v5875
      %v5953 = vunpack.c.h.b16 %v5875
      %v5954 = vunpack.c.l.b16 %v5876
      %v5955 = vunpack.c.h.b16 %v5876
      %v5956 = vunpack.c.l.b16 %v5877
      %v5957 = vunpack.c.h.b16 %v5877
      %v5958 = vunpack.c.l.b16 %v5878
      %v5959 = vunpack.c.h.b16 %v5878
      %v5960 = vunpack.c.l.b16 %v5879
      %v5961 = vunpack.c.h.b16 %v5879
      %v5962 = vunpack.c.l.b16 %v5880
      %v5963 = vunpack.c.h.b16 %v5880
      %v5964 = vunpack.c.l.b16 %v5881
      %v5965 = vunpack.c.h.b16 %v5881
      %v5966 = vunpack.c.l.b16 %v5882
      %v5967 = vunpack.c.h.b16 %v5882
      %v5968 = vunpack.c.l.b16 %v5883
      %v5969 = vunpack.c.h.b16 %v5883
      %v5970 = vunpack.c.l.b16 %v5884
      %v5971 = vunpack.c.h.b16 %v5884
      %v5972 = vunpack.c.l.b16 %v5885
      %v5973 = vunpack.c.h.b16 %v5885
      %v5974 = vunpack.c.l.b16 %v5886
      %v5975 = vunpack.c.h.b16 %v5886
      %v5976 = vunpack.c.l.b16 %v5887
      %v5977 = vunpack.c.h.b16 %v5887
      %v5978 = vunpack.c.l.b16 %v5888
      %v5979 = vunpack.c.h.b16 %v5888
      %v5980 = vunpack.c.l.b16 %v5889
      %v5981 = vunpack.c.h.b16 %v5889
      %v5982 = vunpack.c.l.b16 %v5890
      %v5983 = vunpack.c.h.b16 %v5890
      %v5984 = vunpack.c.l.b16 %v5891
      %v5985 = vunpack.c.h.b16 %v5891
      %v5986 = vunpack.c.l.b16 %v5892
      %v5987 = vunpack.c.h.b16 %v5892
      %v5988 = vunpack.c.l.b16 %v5893
      %v5989 = vunpack.c.h.b16 %v5893
      %v5990 = vpack.c.b16 %v5928, %v5926
      %v5991 = vpack.c.b16 %v5929, %v5927
      %v5992 = vpack.c.b16 %v5932, %v5930
      %v5993 = vpack.c.b16 %v5933, %v5931
      %v5994 = vpack.c.b16 %v5936, %v5934
      %v5995 = vpack.c.b16 %v5937, %v5935
      %v5996 = vpack.c.b16 %v5940, %v5938
      %v5997 = vpack.c.b16 %v5941, %v5939
      %v5998 = vpack.c.b16 %v5944, %v5942
      %v5999 = vpack.c.b16 %v5945, %v5943
      %v6000 = vpack.c.b16 %v5948, %v5946
      %v6001 = vpack.c.b16 %v5949, %v5947
      %v6002 = vpack.c.b16 %v5952, %v5950
      %v6003 = vpack.c.b16 %v5953, %v5951
      %v6004 = vpack.c.b16 %v5956, %v5954
      %v6005 = vpack.c.b16 %v5957, %v5955
      %v6006 = vpack.c.b16 %v5960, %v5958
      %v6007 = vpack.c.b16 %v5961, %v5959
      %v6008 = vpack.c.b16 %v5964, %v5962
      %v6009 = vpack.c.b16 %v5965, %v5963
      %v6010 = vpack.c.b16 %v5968, %v5966
      %v6011 = vpack.c.b16 %v5969, %v5967
      %v6012 = vpack.c.b16 %v5972, %v5970
      %v6013 = vpack.c.b16 %v5973, %v5971
      %v6014 = vpack.c.b16 %v5976, %v5974
      %v6015 = vpack.c.b16 %v5977, %v5975
      %v6016 = vpack.c.b16 %v5980, %v5978
      %v6017 = vpack.c.b16 %v5981, %v5979
      %v6018 = vpack.c.b16 %v5984, %v5982
      %v6019 = vpack.c.b16 %v5985, %v5983
      %v6020 = vpack.c.b16 %v5988, %v5986
      %v6021 = vpack.c.b16 %v5989, %v5987
      %6054 = vmatpush.bf16.msra.mxu0 %v5821
      %6055 = vmatpush.bf16.msra.mxu0 %v5820
      %6056 = vmatpush.bf16.msra.mxu0 %v5819
      %6057 = vmatpush.bf16.msra.mxu0 %v5818
      %6058 = vmatpush.bf16.msra.mxu0 %v5817
      %6059 = vmatpush.bf16.msra.mxu0 %v5816
      %6060 = vmatpush.bf16.msra.mxu0 %v5815
      %6061 = vmatpush.bf16.msra.mxu0 %v5814
      %6062 = vmatmul.bf16.gmra.mxu0 %v5990
      %v6063 = vpop.f32.mrf.mxu0
      %v6064 = vadd.f32 0.0, %v6063
      %v6065 = vpop.f32.mrf.mxu0
      %v6066 = vadd.f32 0.0, %v6065
      %6067 = vmatmul.bf16.gmra.mxu0 %v5992
      %v6068 = vpop.f32.mrf.mxu0
      %v6069 = vadd.f32 0.0, %v6068
      %v6070 = vpop.f32.mrf.mxu0
      %v6071 = vadd.f32 0.0, %v6070
      %6072 = vmatmul.bf16.gmra.mxu0 %v5994
      %v6073 = vpop.f32.mrf.mxu0
      %v6074 = vadd.f32 0.0, %v6073
      %v6075 = vpop.f32.mrf.mxu0
      %v6076 = vadd.f32 0.0, %v6075
      %6077 = vmatmul.bf16.gmra.mxu0 %v5996
      %v6078 = vpop.f32.mrf.mxu0
      %v6079 = vadd.f32 0.0, %v6078
      %v6080 = vpop.f32.mrf.mxu0
      %v6081 = vadd.f32 0.0, %v6080
      %6082 = vmatmul.bf16.gmra.mxu0 %v5998
      %v6083 = vpop.f32.mrf.mxu0
      %v6084 = vadd.f32 0.0, %v6083
      %v6085 = vpop.f32.mrf.mxu0
      %v6086 = vadd.f32 0.0, %v6085
      %6087 = vmatmul.bf16.gmra.mxu0 %v6000
      %v6088 = vpop.f32.mrf.mxu0
      %v6089 = vadd.f32 0.0, %v6088
      %v6090 = vpop.f32.mrf.mxu0
      %v6091 = vadd.f32 0.0, %v6090
      %6092 = vmatmul.bf16.gmra.mxu0 %v6002
      %v6093 = vpop.f32.mrf.mxu0
      %v6094 = vadd.f32 0.0, %v6093
      %v6095 = vpop.f32.mrf.mxu0
      %v6096 = vadd.f32 0.0, %v6095
      %6097 = vmatmul.bf16.gmra.mxu0 %v6004
      %v6098 = vpop.f32.mrf.mxu0
      %v6099 = vadd.f32 0.0, %v6098
      %v6100 = vpop.f32.mrf.mxu0
      %v6101 = vadd.f32 0.0, %v6100
      %6102 = vmatmul.bf16.gmra.mxu0 %v6006
      %v6103 = vpop.f32.mrf.mxu0
      %v6104 = vadd.f32 0.0, %v6103
      %v6105 = vpop.f32.mrf.mxu0
      %v6106 = vadd.f32 0.0, %v6105
      %6107 = vmatmul.bf16.gmra.mxu0 %v6008
      %v6108 = vpop.f32.mrf.mxu0
      %v6109 = vadd.f32 0.0, %v6108
      %v6110 = vpop.f32.mrf.mxu0
      %v6111 = vadd.f32 0.0, %v6110
      %6112 = vmatmul.bf16.gmra.mxu0 %v6010
      %v6113 = vpop.f32.mrf.mxu0
      %v6114 = vadd.f32 0.0, %v6113
      %v6115 = vpop.f32.mrf.mxu0
      %v6116 = vadd.f32 0.0, %v6115
      %6117 = vmatmul.bf16.gmra.mxu0 %v6012
      %v6118 = vpop.f32.mrf.mxu0
      %v6119 = vadd.f32 0.0, %v6118
      %v6120 = vpop.f32.mrf.mxu0
      %v6121 = vadd.f32 0.0, %v6120
      %6122 = vmatmul.bf16.gmra.mxu0 %v6014
      %v6123 = vpop.f32.mrf.mxu0
      %v6124 = vadd.f32 0.0, %v6123
      %v6125 = vpop.f32.mrf.mxu0
      %v6126 = vadd.f32 0.0, %v6125
      %6127 = vmatmul.bf16.gmra.mxu0 %v6016
      %v6128 = vpop.f32.mrf.mxu0
      %v6129 = vadd.f32 0.0, %v6128
      %v6130 = vpop.f32.mrf.mxu0
      %v6131 = vadd.f32 0.0, %v6130
      %6132 = vmatmul.bf16.gmra.mxu0 %v6018
      %v6133 = vpop.f32.mrf.mxu0
      %v6134 = vadd.f32 0.0, %v6133
      %v6135 = vpop.f32.mrf.mxu0
      %v6136 = vadd.f32 0.0, %v6135
      %6137 = vmatmul.bf16.gmra.mxu0 %v6020
      %v6138 = vpop.f32.mrf.mxu0
      %v6139 = vadd.f32 0.0, %v6138
      %v6140 = vpop.f32.mrf.mxu0
      %v6141 = vadd.f32 0.0, %v6140
      %6142 = vdwg.mxu0
      %6143 = vmatpush.bf16.msra.mxu0 %v5829
      %6144 = vmatpush.bf16.msra.mxu0 %v5828
      %6145 = vmatpush.bf16.msra.mxu0 %v5827
      %6146 = vmatpush.bf16.msra.mxu0 %v5826
      %6147 = vmatpush.bf16.msra.mxu0 %v5825
      %6148 = vmatpush.bf16.msra.mxu0 %v5824
      %6149 = vmatpush.bf16.msra.mxu0 %v5823
      %6150 = vmatpush.bf16.msra.mxu0 %v5822
      %6151 = vmatmul.bf16.gmra.mxu0 %v5991
      %v6152 = vpop.f32.mrf.mxu0
      %v6153 = vadd.f32 %v6064, %v6152
      %v6154 = vpop.f32.mrf.mxu0
      %v6155 = vadd.f32 %v6066, %v6154
      %6156 = vmatmul.bf16.gmra.mxu0 %v5993
      %v6157 = vpop.f32.mrf.mxu0
      %v6158 = vadd.f32 %v6069, %v6157
      %v6159 = vpop.f32.mrf.mxu0
      %v6160 = vadd.f32 %v6071, %v6159
      %6161 = vmatmul.bf16.gmra.mxu0 %v5995
      %v6162 = vpop.f32.mrf.mxu0
      %v6163 = vadd.f32 %v6074, %v6162
      %v6164 = vpop.f32.mrf.mxu0
      %v6165 = vadd.f32 %v6076, %v6164
      %6166 = vmatmul.bf16.gmra.mxu0 %v5997
      %v6167 = vpop.f32.mrf.mxu0
      %v6168 = vadd.f32 %v6079, %v6167
      %v6169 = vpop.f32.mrf.mxu0
      %v6170 = vadd.f32 %v6081, %v6169
      %6171 = vmatmul.bf16.gmra.mxu0 %v5999
      %v6172 = vpop.f32.mrf.mxu0
      %v6173 = vadd.f32 %v6084, %v6172
      %v6174 = vpop.f32.mrf.mxu0
      %v6175 = vadd.f32 %v6086, %v6174
      %6176 = vmatmul.bf16.gmra.mxu0 %v6001
      %v6177 = vpop.f32.mrf.mxu0
      %v6178 = vadd.f32 %v6089, %v6177
      %v6179 = vpop.f32.mrf.mxu0
      %v6180 = vadd.f32 %v6091, %v6179
      %6181 = vmatmul.bf16.gmra.mxu0 %v6003
      %v6182 = vpop.f32.mrf.mxu0
      %v6183 = vadd.f32 %v6094, %v6182
      %v6184 = vpop.f32.mrf.mxu0
      %v6185 = vadd.f32 %v6096, %v6184
      %6186 = vmatmul.bf16.gmra.mxu0 %v6005
      %v6187 = vpop.f32.mrf.mxu0
      %v6188 = vadd.f32 %v6099, %v6187
      %v6189 = vpop.f32.mrf.mxu0
      %v6190 = vadd.f32 %v6101, %v6189
      %6191 = vmatmul.bf16.gmra.mxu0 %v6007
      %v6192 = vpop.f32.mrf.mxu0
      %v6193 = vadd.f32 %v6104, %v6192
      %v6194 = vpop.f32.mrf.mxu0
      %v6195 = vadd.f32 %v6106, %v6194
      %6196 = vmatmul.bf16.gmra.mxu0 %v6009
      %v6197 = vpop.f32.mrf.mxu0
      %v6198 = vadd.f32 %v6109, %v6197
      %v6199 = vpop.f32.mrf.mxu0
      %v6200 = vadd.f32 %v6111, %v6199
      %6201 = vmatmul.bf16.gmra.mxu0 %v6011
      %v6202 = vpop.f32.mrf.mxu0
      %v6203 = vadd.f32 %v6114, %v6202
      %v6204 = vpop.f32.mrf.mxu0
      %v6205 = vadd.f32 %v6116, %v6204
      %6206 = vmatmul.bf16.gmra.mxu0 %v6013
      %v6207 = vpop.f32.mrf.mxu0
      %v6208 = vadd.f32 %v6119, %v6207
      %v6209 = vpop.f32.mrf.mxu0
      %v6210 = vadd.f32 %v6121, %v6209
      %6211 = vmatmul.bf16.gmra.mxu0 %v6015
      %v6212 = vpop.f32.mrf.mxu0
      %v6213 = vadd.f32 %v6124, %v6212
      %v6214 = vpop.f32.mrf.mxu0
      %v6215 = vadd.f32 %v6126, %v6214
      %6216 = vmatmul.bf16.gmra.mxu0 %v6017
      %v6217 = vpop.f32.mrf.mxu0
      %v6218 = vadd.f32 %v6129, %v6217
      %v6219 = vpop.f32.mrf.mxu0
      %v6220 = vadd.f32 %v6131, %v6219
      %6221 = vmatmul.bf16.gmra.mxu0 %v6019
      %v6222 = vpop.f32.mrf.mxu0
      %v6223 = vadd.f32 %v6134, %v6222
      %v6224 = vpop.f32.mrf.mxu0
      %v6225 = vadd.f32 %v6136, %v6224
      %6226 = vmatmul.bf16.gmra.mxu0 %v6021
      %v6227 = vpop.f32.mrf.mxu0
      %v6228 = vadd.f32 %v6139, %v6227
      %v6229 = vpop.f32.mrf.mxu0
      %v6230 = vadd.f32 %v6141, %v6229
      %6231 = vdwg.mxu0
      %v6264 = vunpack.c.l.b16 %v5830
      %v6265 = vunpack.c.h.b16 %v5830
      %v6266 = vunpack.c.l.b16 %v5831
      %v6267 = vunpack.c.h.b16 %v5831
      %v6268 = vunpack.c.l.b16 %v5832
      %v6269 = vunpack.c.h.b16 %v5832
      %v6270 = vunpack.c.l.b16 %v5833
      %v6271 = vunpack.c.h.b16 %v5833
      %v6272 = vunpack.c.l.b16 %v5834
      %v6273 = vunpack.c.h.b16 %v5834
      %v6274 = vunpack.c.l.b16 %v5835
      %v6275 = vunpack.c.h.b16 %v5835
      %v6276 = vunpack.c.l.b16 %v5836
      %v6277 = vunpack.c.h.b16 %v5836
      %v6278 = vunpack.c.l.b16 %v5837
      %v6279 = vunpack.c.h.b16 %v5837
      %v6280 = vunpack.c.l.b16 %v5838
      %v6281 = vunpack.c.h.b16 %v5838
      %v6282 = vunpack.c.l.b16 %v5839
      %v6283 = vunpack.c.h.b16 %v5839
      %v6284 = vunpack.c.l.b16 %v5840
      %v6285 = vunpack.c.h.b16 %v5840
      %v6286 = vunpack.c.l.b16 %v5841
      %v6287 = vunpack.c.h.b16 %v5841
      %v6288 = vunpack.c.l.b16 %v5842
      %v6289 = vunpack.c.h.b16 %v5842
      %v6290 = vunpack.c.l.b16 %v5843
      %v6291 = vunpack.c.h.b16 %v5843
      %v6292 = vunpack.c.l.b16 %v5844
      %v6293 = vunpack.c.h.b16 %v5844
      %v6294 = vunpack.c.l.b16 %v5845
      %v6295 = vunpack.c.h.b16 %v5845
      %v6296 = vunpack.c.l.b16 %v5846
      %v6297 = vunpack.c.h.b16 %v5846
      %v6298 = vunpack.c.l.b16 %v5847
      %v6299 = vunpack.c.h.b16 %v5847
      %v6300 = vunpack.c.l.b16 %v5848
      %v6301 = vunpack.c.h.b16 %v5848
      %v6302 = vunpack.c.l.b16 %v5849
      %v6303 = vunpack.c.h.b16 %v5849
      %v6304 = vunpack.c.l.b16 %v5850
      %v6305 = vunpack.c.h.b16 %v5850
      %v6306 = vunpack.c.l.b16 %v5851
      %v6307 = vunpack.c.h.b16 %v5851
      %v6308 = vunpack.c.l.b16 %v5852
      %v6309 = vunpack.c.h.b16 %v5852
      %v6310 = vunpack.c.l.b16 %v5853
      %v6311 = vunpack.c.h.b16 %v5853
      %v6312 = vunpack.c.l.b16 %v5854
      %v6313 = vunpack.c.h.b16 %v5854
      %v6314 = vunpack.c.l.b16 %v5855
      %v6315 = vunpack.c.h.b16 %v5855
      %v6316 = vunpack.c.l.b16 %v5856
      %v6317 = vunpack.c.h.b16 %v5856
      %v6318 = vunpack.c.l.b16 %v5857
      %v6319 = vunpack.c.h.b16 %v5857
      %v6320 = vunpack.c.l.b16 %v5858
      %v6321 = vunpack.c.h.b16 %v5858
      %v6322 = vunpack.c.l.b16 %v5859
      %v6323 = vunpack.c.h.b16 %v5859
      %v6324 = vunpack.c.l.b16 %v5860
      %v6325 = vunpack.c.h.b16 %v5860
      %v6326 = vunpack.c.l.b16 %v5861
      %v6327 = vunpack.c.h.b16 %v5861
      %v6328 = vpack.c.b16 %v6266, %v6264
      %v6329 = vpack.c.b16 %v6267, %v6265
      %v6330 = vpack.c.b16 %v6270, %v6268
      %v6331 = vpack.c.b16 %v6271, %v6269
      %v6332 = vpack.c.b16 %v6274, %v6272
      %v6333 = vpack.c.b16 %v6275, %v6273
      %v6334 = vpack.c.b16 %v6278, %v6276
      %v6335 = vpack.c.b16 %v6279, %v6277
      %v6336 = vpack.c.b16 %v6282, %v6280
      %v6337 = vpack.c.b16 %v6283, %v6281
      %v6338 = vpack.c.b16 %v6286, %v6284
      %v6339 = vpack.c.b16 %v6287, %v6285
      %v6340 = vpack.c.b16 %v6290, %v6288
      %v6341 = vpack.c.b16 %v6291, %v6289
      %v6342 = vpack.c.b16 %v6294, %v6292
      %v6343 = vpack.c.b16 %v6295, %v6293
      %v6344 = vpack.c.b16 %v6298, %v6296
      %v6345 = vpack.c.b16 %v6299, %v6297
      %v6346 = vpack.c.b16 %v6302, %v6300
      %v6347 = vpack.c.b16 %v6303, %v6301
      %v6348 = vpack.c.b16 %v6306, %v6304
      %v6349 = vpack.c.b16 %v6307, %v6305
      %v6350 = vpack.c.b16 %v6310, %v6308
      %v6351 = vpack.c.b16 %v6311, %v6309
      %v6352 = vpack.c.b16 %v6314, %v6312
      %v6353 = vpack.c.b16 %v6315, %v6313
      %v6354 = vpack.c.b16 %v6318, %v6316
      %v6355 = vpack.c.b16 %v6319, %v6317
      %v6356 = vpack.c.b16 %v6322, %v6320
      %v6357 = vpack.c.b16 %v6323, %v6321
      %v6358 = vpack.c.b16 %v6326, %v6324
      %v6359 = vpack.c.b16 %v6327, %v6325
      %6392 = vmatpush.bf16.msra.mxu0 %v5709
      %6393 = vmatpush.bf16.msra.mxu0 %v5708
      %6394 = vmatpush.bf16.msra.mxu0 %v5707
      %6395 = vmatpush.bf16.msra.mxu0 %v5706
      %6396 = vmatpush.bf16.msra.mxu0 %v5705
      %6397 = vmatpush.bf16.msra.mxu0 %v5704
      %6398 = vmatpush.bf16.msra.mxu0 %v5703
      %6399 = vmatpush.bf16.msra.mxu0 %v5702
      %6400 = vmatmul.bf16.gmra.mxu0 %v6328
      %v6401 = vpop.f32.mrf.mxu0
      %v6402 = vadd.f32 %v6153, %v6401
      %v6403 = vpop.f32.mrf.mxu0
      %v6404 = vadd.f32 %v6155, %v6403
      %6405 = vmatmul.bf16.gmra.mxu0 %v6330
      %v6406 = vpop.f32.mrf.mxu0
      %v6407 = vadd.f32 %v6158, %v6406
      %v6408 = vpop.f32.mrf.mxu0
      %v6409 = vadd.f32 %v6160, %v6408
      %6410 = vmatmul.bf16.gmra.mxu0 %v6332
      %v6411 = vpop.f32.mrf.mxu0
      %v6412 = vadd.f32 %v6163, %v6411
      %v6413 = vpop.f32.mrf.mxu0
      %v6414 = vadd.f32 %v6165, %v6413
      %6415 = vmatmul.bf16.gmra.mxu0 %v6334
      %v6416 = vpop.f32.mrf.mxu0
      %v6417 = vadd.f32 %v6168, %v6416
      %v6418 = vpop.f32.mrf.mxu0
      %v6419 = vadd.f32 %v6170, %v6418
      %6420 = vmatmul.bf16.gmra.mxu0 %v6336
      %v6421 = vpop.f32.mrf.mxu0
      %v6422 = vadd.f32 %v6173, %v6421
      %v6423 = vpop.f32.mrf.mxu0
      %v6424 = vadd.f32 %v6175, %v6423
      %6425 = vmatmul.bf16.gmra.mxu0 %v6338
      %v6426 = vpop.f32.mrf.mxu0
      %v6427 = vadd.f32 %v6178, %v6426
      %v6428 = vpop.f32.mrf.mxu0
      %v6429 = vadd.f32 %v6180, %v6428
      %6430 = vmatmul.bf16.gmra.mxu0 %v6340
      %v6431 = vpop.f32.mrf.mxu0
      %v6432 = vadd.f32 %v6183, %v6431
      %v6433 = vpop.f32.mrf.mxu0
      %v6434 = vadd.f32 %v6185, %v6433
      %6435 = vmatmul.bf16.gmra.mxu0 %v6342
      %v6436 = vpop.f32.mrf.mxu0
      %v6437 = vadd.f32 %v6188, %v6436
      %v6438 = vpop.f32.mrf.mxu0
      %v6439 = vadd.f32 %v6190, %v6438
      %6440 = vmatmul.bf16.gmra.mxu0 %v6344
      %v6441 = vpop.f32.mrf.mxu0
      %v6442 = vadd.f32 %v6193, %v6441
      %v6443 = vpop.f32.mrf.mxu0
      %v6444 = vadd.f32 %v6195, %v6443
      %6445 = vmatmul.bf16.gmra.mxu0 %v6346
      %v6446 = vpop.f32.mrf.mxu0
      %v6447 = vadd.f32 %v6198, %v6446
      %v6448 = vpop.f32.mrf.mxu0
      %v6449 = vadd.f32 %v6200, %v6448
      %6450 = vmatmul.bf16.gmra.mxu0 %v6348
      %v6451 = vpop.f32.mrf.mxu0
      %v6452 = vadd.f32 %v6203, %v6451
      %v6453 = vpop.f32.mrf.mxu0
      %v6454 = vadd.f32 %v6205, %v6453
      %6455 = vmatmul.bf16.gmra.mxu0 %v6350
      %v6456 = vpop.f32.mrf.mxu0
      %v6457 = vadd.f32 %v6208, %v6456
      %v6458 = vpop.f32.mrf.mxu0
      %v6459 = vadd.f32 %v6210, %v6458
      %6460 = vmatmul.bf16.gmra.mxu0 %v6352
      %v6461 = vpop.f32.mrf.mxu0
      %v6462 = vadd.f32 %v6213, %v6461
      %v6463 = vpop.f32.mrf.mxu0
      %v6464 = vadd.f32 %v6215, %v6463
      %6465 = vmatmul.bf16.gmra.mxu0 %v6354
      %v6466 = vpop.f32.mrf.mxu0
      %v6467 = vadd.f32 %v6218, %v6466
      %v6468 = vpop.f32.mrf.mxu0
      %v6469 = vadd.f32 %v6220, %v6468
      %6470 = vmatmul.bf16.gmra.mxu0 %v6356
      %v6471 = vpop.f32.mrf.mxu0
      %v6472 = vadd.f32 %v6223, %v6471
      %v6473 = vpop.f32.mrf.mxu0
      %v6474 = vadd.f32 %v6225, %v6473
      %6475 = vmatmul.bf16.gmra.mxu0 %v6358
      %v6476 = vpop.f32.mrf.mxu0
      %v6477 = vadd.f32 %v6228, %v6476
      %v6478 = vpop.f32.mrf.mxu0
      %v6479 = vadd.f32 %v6230, %v6478
      %6480 = vdwg.mxu0
      %6481 = vmatpush.bf16.msra.mxu0 %v5717
      %6482 = vmatpush.bf16.msra.mxu0 %v5716
      %6483 = vmatpush.bf16.msra.mxu0 %v5715
      %6484 = vmatpush.bf16.msra.mxu0 %v5714
      %6485 = vmatpush.bf16.msra.mxu0 %v5713
      %6486 = vmatpush.bf16.msra.mxu0 %v5712
      %6487 = vmatpush.bf16.msra.mxu0 %v5711
      %6488 = vmatpush.bf16.msra.mxu0 %v5710
      %6489 = vmatmul.bf16.gmra.mxu0 %v6329
      %v6490 = vpop.f32.mrf.mxu0
      %v6491 = vadd.f32 %v6402, %v6490
      %v6492 = vpop.f32.mrf.mxu0
      %v6493 = vadd.f32 %v6404, %v6492
      %6494 = vmatmul.bf16.gmra.mxu0 %v6331
      %v6495 = vpop.f32.mrf.mxu0
      %v6496 = vadd.f32 %v6407, %v6495
      %v6497 = vpop.f32.mrf.mxu0
      %v6498 = vadd.f32 %v6409, %v6497
      %6499 = vmatmul.bf16.gmra.mxu0 %v6333
      %v6500 = vpop.f32.mrf.mxu0
      %v6501 = vadd.f32 %v6412, %v6500
      %v6502 = vpop.f32.mrf.mxu0
      %v6503 = vadd.f32 %v6414, %v6502
      %6504 = vmatmul.bf16.gmra.mxu0 %v6335
      %v6505 = vpop.f32.mrf.mxu0
      %v6506 = vadd.f32 %v6417, %v6505
      %v6507 = vpop.f32.mrf.mxu0
      %v6508 = vadd.f32 %v6419, %v6507
      %6509 = vmatmul.bf16.gmra.mxu0 %v6337
      %v6510 = vpop.f32.mrf.mxu0
      %v6511 = vadd.f32 %v6422, %v6510
      %v6512 = vpop.f32.mrf.mxu0
      %v6513 = vadd.f32 %v6424, %v6512
      %6514 = vmatmul.bf16.gmra.mxu0 %v6339
      %v6515 = vpop.f32.mrf.mxu0
      %v6516 = vadd.f32 %v6427, %v6515
      %v6517 = vpop.f32.mrf.mxu0
      %v6518 = vadd.f32 %v6429, %v6517
      %6519 = vmatmul.bf16.gmra.mxu0 %v6341
      %v6520 = vpop.f32.mrf.mxu0
      %v6521 = vadd.f32 %v6432, %v6520
      %v6522 = vpop.f32.mrf.mxu0
      %v6523 = vadd.f32 %v6434, %v6522
      %6524 = vmatmul.bf16.gmra.mxu0 %v6343
      %v6525 = vpop.f32.mrf.mxu0
      %v6526 = vadd.f32 %v6437, %v6525
      %v6527 = vpop.f32.mrf.mxu0
      %v6528 = vadd.f32 %v6439, %v6527
      %6529 = vmatmul.bf16.gmra.mxu0 %v6345
      %v6530 = vpop.f32.mrf.mxu0
      %v6531 = vadd.f32 %v6442, %v6530
      %v6532 = vpop.f32.mrf.mxu0
      %v6533 = vadd.f32 %v6444, %v6532
      %6534 = vmatmul.bf16.gmra.mxu0 %v6347
      %v6535 = vpop.f32.mrf.mxu0
      %v6536 = vadd.f32 %v6447, %v6535
      %v6537 = vpop.f32.mrf.mxu0
      %v6538 = vadd.f32 %v6449, %v6537
      %6539 = vmatmul.bf16.gmra.mxu0 %v6349
      %v6540 = vpop.f32.mrf.mxu0
      %v6541 = vadd.f32 %v6452, %v6540
      %v6542 = vpop.f32.mrf.mxu0
      %v6543 = vadd.f32 %v6454, %v6542
      %6544 = vmatmul.bf16.gmra.mxu0 %v6351
      %v6545 = vpop.f32.mrf.mxu0
      %v6546 = vadd.f32 %v6457, %v6545
      %v6547 = vpop.f32.mrf.mxu0
      %v6548 = vadd.f32 %v6459, %v6547
      %6549 = vmatmul.bf16.gmra.mxu0 %v6353
      %v6550 = vpop.f32.mrf.mxu0
      %v6551 = vadd.f32 %v6462, %v6550
      %v6552 = vpop.f32.mrf.mxu0
      %v6553 = vadd.f32 %v6464, %v6552
      %6554 = vmatmul.bf16.gmra.mxu0 %v6355
      %v6555 = vpop.f32.mrf.mxu0
      %v6556 = vadd.f32 %v6467, %v6555
      %v6557 = vpop.f32.mrf.mxu0
      %v6558 = vadd.f32 %v6469, %v6557
      %6559 = vmatmul.bf16.gmra.mxu0 %v6357
      %v6560 = vpop.f32.mrf.mxu0
      %v6561 = vadd.f32 %v6472, %v6560
      %v6562 = vpop.f32.mrf.mxu0
      %v6563 = vadd.f32 %v6474, %v6562
      %6564 = vmatmul.bf16.gmra.mxu0 %v6359
      %v6565 = vpop.f32.mrf.mxu0
      %v6566 = vadd.f32 %v6477, %v6565
      %v6567 = vpop.f32.mrf.mxu0
      %v6568 = vadd.f32 %v6479, %v6567
      %6569 = vdwg.mxu0
      %v6570 = vxor.u32 %v6491, 2147483648
      %v6571 = vxor.u32 %v6493, 2147483648
      %v6572 = vxor.u32 %v6496, 2147483648
      %v6573 = vxor.u32 %v6498, 2147483648
      %v6574 = vxor.u32 %v6501, 2147483648
      %v6575 = vxor.u32 %v6503, 2147483648
      %v6576 = vxor.u32 %v6506, 2147483648
      %v6577 = vxor.u32 %v6508, 2147483648
      %v6578 = vxor.u32 %v6511, 2147483648
      %v6579 = vxor.u32 %v6513, 2147483648
      %v6580 = vxor.u32 %v6516, 2147483648
      %v6581 = vxor.u32 %v6518, 2147483648
      %v6582 = vxor.u32 %v6521, 2147483648
      %v6583 = vxor.u32 %v6523, 2147483648
      %v6584 = vxor.u32 %v6526, 2147483648
      %v6585 = vxor.u32 %v6528, 2147483648
      %v6586 = vxor.u32 %v6531, 2147483648
      %v6587 = vxor.u32 %v6533, 2147483648
      %v6588 = vxor.u32 %v6536, 2147483648
      %v6589 = vxor.u32 %v6538, 2147483648
      %v6590 = vxor.u32 %v6541, 2147483648
      %v6591 = vxor.u32 %v6543, 2147483648
      %v6592 = vxor.u32 %v6546, 2147483648
      %v6593 = vxor.u32 %v6548, 2147483648
      %v6594 = vxor.u32 %v6551, 2147483648
      %v6595 = vxor.u32 %v6553, 2147483648
      %v6596 = vxor.u32 %v6556, 2147483648
      %v6597 = vxor.u32 %v6558, 2147483648
      %v6598 = vxor.u32 %v6561, 2147483648
      %v6599 = vxor.u32 %v6563, 2147483648
      %v6600 = vxor.u32 %v6566, 2147483648
      %v6601 = vxor.u32 %v6568, 2147483648
      %v6602 = vmul.f32 %v6570, 1.442695
      %v6603 = vpow.pop %v6602
      %v6604 = vmul.f32 %v6571, 1.442695
      %v6605 = vpow.pop %v6604
      %v6606 = vmul.f32 %v6572, 1.442695
      %v6607 = vpow.pop %v6606
      %v6608 = vmul.f32 %v6573, 1.442695
      %v6609 = vpow.pop %v6608
      %v6610 = vmul.f32 %v6574, 1.442695
      %v6611 = vpow.pop %v6610
      %v6612 = vmul.f32 %v6575, 1.442695
      %v6613 = vpow.pop %v6612
      %v6614 = vmul.f32 %v6576, 1.442695
      %v6615 = vpow.pop %v6614
      %v6616 = vmul.f32 %v6577, 1.442695
      %v6617 = vpow.pop %v6616
      %v6618 = vmul.f32 %v6578, 1.442695
      %v6619 = vpow.pop %v6618
      %v6620 = vmul.f32 %v6579, 1.442695
      %v6621 = vpow.pop %v6620
      %v6622 = vmul.f32 %v6580, 1.442695
      %v6623 = vpow.pop %v6622
      %v6624 = vmul.f32 %v6581, 1.442695
      %v6625 = vpow.pop %v6624
      %v6626 = vmul.f32 %v6582, 1.442695
      %v6627 = vpow.pop %v6626
      %v6628 = vmul.f32 %v6583, 1.442695
      %v6629 = vpow.pop %v6628
      %v6630 = vmul.f32 %v6584, 1.442695
      %v6631 = vpow.pop %v6630
      %v6632 = vmul.f32 %v6585, 1.442695
      %v6633 = vpow.pop %v6632
      %v6634 = vmul.f32 %v6586, 1.442695
      %v6635 = vpow.pop %v6634
      %v6636 = vmul.f32 %v6587, 1.442695
      %v6637 = vpow.pop %v6636
      %v6638 = vmul.f32 %v6588, 1.442695
      %v6639 = vpow.pop %v6638
      %v6640 = vmul.f32 %v6589, 1.442695
      %v6641 = vpow.pop %v6640
      %v6642 = vmul.f32 %v6590, 1.442695
      %v6643 = vpow.pop %v6642
      %v6644 = vmul.f32 %v6591, 1.442695
      %v6645 = vpow.pop %v6644
      %v6646 = vmul.f32 %v6592, 1.442695
      %v6647 = vpow.pop %v6646
      %v6648 = vmul.f32 %v6593, 1.442695
      %v6649 = vpow.pop %v6648
      %v6650 = vmul.f32 %v6594, 1.442695
      %v6651 = vpow.pop %v6650
      %v6652 = vmul.f32 %v6595, 1.442695
      %v6653 = vpow.pop %v6652
      %v6654 = vmul.f32 %v6596, 1.442695
      %v6655 = vpow.pop %v6654
      %v6656 = vmul.f32 %v6597, 1.442695
      %v6657 = vpow.pop %v6656
      %v6658 = vmul.f32 %v6598, 1.442695
      %v6659 = vpow.pop %v6658
      %v6660 = vmul.f32 %v6599, 1.442695
      %v6661 = vpow.pop %v6660
      %v6662 = vmul.f32 %v6600, 1.442695
      %v6663 = vpow.pop %v6662
      %v6664 = vmul.f32 %v6601, 1.442695
      %v6665 = vpow.pop %v6664
      %v6666 = vadd.f32 %v6603, 1.0
      %v6667 = vadd.f32 %v6605, 1.0
      %v6668 = vadd.f32 %v6607, 1.0
      %v6669 = vadd.f32 %v6609, 1.0
      %v6670 = vadd.f32 %v6611, 1.0
      %v6671 = vadd.f32 %v6613, 1.0
      %v6672 = vadd.f32 %v6615, 1.0
      %v6673 = vadd.f32 %v6617, 1.0
      %v6674 = vadd.f32 %v6619, 1.0
      %v6675 = vadd.f32 %v6621, 1.0
      %v6676 = vadd.f32 %v6623, 1.0
      %v6677 = vadd.f32 %v6625, 1.0
      %v6678 = vadd.f32 %v6627, 1.0
      %v6679 = vadd.f32 %v6629, 1.0
      %v6680 = vadd.f32 %v6631, 1.0
      %v6681 = vadd.f32 %v6633, 1.0
      %v6682 = vadd.f32 %v6635, 1.0
      %v6683 = vadd.f32 %v6637, 1.0
      %v6684 = vadd.f32 %v6639, 1.0
      %v6685 = vadd.f32 %v6641, 1.0
      %v6686 = vadd.f32 %v6643, 1.0
      %v6687 = vadd.f32 %v6645, 1.0
      %v6688 = vadd.f32 %v6647, 1.0
      %v6689 = vadd.f32 %v6649, 1.0
      %v6690 = vadd.f32 %v6651, 1.0
      %v6691 = vadd.f32 %v6653, 1.0
      %v6692 = vadd.f32 %v6655, 1.0
      %v6693 = vadd.f32 %v6657, 1.0
      %v6694 = vadd.f32 %v6659, 1.0
      %v6695 = vadd.f32 %v6661, 1.0
      %v6696 = vadd.f32 %v6663, 1.0
      %v6697 = vadd.f32 %v6665, 1.0
      %v6698 = vrcp.pop %v6666
      %v6699 = vmul.f32 %v6666, %v6698
      %v6700 = vsub.f32 1.0, %v6699
      %v6701 = vmul.f32 %v6698, %v6700
      %v6702 = vadd.f32 %v6698, %v6701
      %vm6703 = vweird.f32 %v6666
      %vm6704 = vweird.f32 %v6698
      %vm6705 = vmor %vm6703, %vm6704
      %v6706 = vsel %vm6705, %v6698, %v6702
      %v6707 = vand.u32 2147483647, %v6666
      %vm6708 = vcmp.eq.f32.partialorder %v6707, 8.507059e+37
      %v6709 = vand.u32 %v6666, 2147483648
      %v6710 = vor.u32 1.1754944e-38, %v6709
      %v6711 = vsel %vm6708, %v6710, %v6706
      %v6712 = vmul.f32 1.0, %v6711
      %v6713 = vrcp.pop %v6667
      %v6714 = vmul.f32 %v6667, %v6713
      %v6715 = vsub.f32 1.0, %v6714
      %v6716 = vmul.f32 %v6713, %v6715
      %v6717 = vadd.f32 %v6713, %v6716
      %vm6718 = vweird.f32 %v6667
      %vm6719 = vweird.f32 %v6713
      %vm6720 = vmor %vm6718, %vm6719
      %v6721 = vsel %vm6720, %v6713, %v6717
      %v6722 = vand.u32 2147483647, %v6667
      %vm6723 = vcmp.eq.f32.partialorder %v6722, 8.507059e+37
      %v6724 = vand.u32 %v6667, 2147483648
      %v6725 = vor.u32 1.1754944e-38, %v6724
      %v6726 = vsel %vm6723, %v6725, %v6721
      %v6727 = vmul.f32 1.0, %v6726
      %v6728 = vrcp.pop %v6668
      %v6729 = vmul.f32 %v6668, %v6728
      %v6730 = vsub.f32 1.0, %v6729
      %v6731 = vmul.f32 %v6728, %v6730
      %v6732 = vadd.f32 %v6728, %v6731
      %vm6733 = vweird.f32 %v6668
      %vm6734 = vweird.f32 %v6728
      %vm6735 = vmor %vm6733, %vm6734
      %v6736 = vsel %vm6735, %v6728, %v6732
      %v6737 = vand.u32 2147483647, %v6668
      %vm6738 = vcmp.eq.f32.partialorder %v6737, 8.507059e+37
      %v6739 = vand.u32 %v6668, 2147483648
      %v6740 = vor.u32 1.1754944e-38, %v6739
      %v6741 = vsel %vm6738, %v6740, %v6736
      %v6742 = vmul.f32 1.0, %v6741
      %v6743 = vrcp.pop %v6669
      %v6744 = vmul.f32 %v6669, %v6743
      %v6745 = vsub.f32 1.0, %v6744
      %v6746 = vmul.f32 %v6743, %v6745
      %v6747 = vadd.f32 %v6743, %v6746
      %vm6748 = vweird.f32 %v6669
      %vm6749 = vweird.f32 %v6743
      %vm6750 = vmor %vm6748, %vm6749
      %v6751 = vsel %vm6750, %v6743, %v6747
      %v6752 = vand.u32 2147483647, %v6669
      %vm6753 = vcmp.eq.f32.partialorder %v6752, 8.507059e+37
      %v6754 = vand.u32 %v6669, 2147483648
      %v6755 = vor.u32 1.1754944e-38, %v6754
      %v6756 = vsel %vm6753, %v6755, %v6751
      %v6757 = vmul.f32 1.0, %v6756
      %v6758 = vrcp.pop %v6670
      %v6759 = vmul.f32 %v6670, %v6758
      %v6760 = vsub.f32 1.0, %v6759
      %v6761 = vmul.f32 %v6758, %v6760
      %v6762 = vadd.f32 %v6758, %v6761
      %vm6763 = vweird.f32 %v6670
      %vm6764 = vweird.f32 %v6758
      %vm6765 = vmor %vm6763, %vm6764
      %v6766 = vsel %vm6765, %v6758, %v6762
      %v6767 = vand.u32 2147483647, %v6670
      %vm6768 = vcmp.eq.f32.partialorder %v6767, 8.507059e+37
      %v6769 = vand.u32 %v6670, 2147483648
      %v6770 = vor.u32 1.1754944e-38, %v6769
      %v6771 = vsel %vm6768, %v6770, %v6766
      %v6772 = vmul.f32 1.0, %v6771
      %v6773 = vrcp.pop %v6671
      %v6774 = vmul.f32 %v6671, %v6773
      %v6775 = vsub.f32 1.0, %v6774
      %v6776 = vmul.f32 %v6773, %v6775
      %v6777 = vadd.f32 %v6773, %v6776
      %vm6778 = vweird.f32 %v6671
      %vm6779 = vweird.f32 %v6773
      %vm6780 = vmor %vm6778, %vm6779
      %v6781 = vsel %vm6780, %v6773, %v6777
      %v6782 = vand.u32 2147483647, %v6671
      %vm6783 = vcmp.eq.f32.partialorder %v6782, 8.507059e+37
      %v6784 = vand.u32 %v6671, 2147483648
      %v6785 = vor.u32 1.1754944e-38, %v6784
      %v6786 = vsel %vm6783, %v6785, %v6781
      %v6787 = vmul.f32 1.0, %v6786
      %v6788 = vrcp.pop %v6672
      %v6789 = vmul.f32 %v6672, %v6788
      %v6790 = vsub.f32 1.0, %v6789
      %v6791 = vmul.f32 %v6788, %v6790
      %v6792 = vadd.f32 %v6788, %v6791
      %vm6793 = vweird.f32 %v6672
      %vm6794 = vweird.f32 %v6788
      %vm6795 = vmor %vm6793, %vm6794
      %v6796 = vsel %vm6795, %v6788, %v6792
      %v6797 = vand.u32 2147483647, %v6672
      %vm6798 = vcmp.eq.f32.partialorder %v6797, 8.507059e+37
      %v6799 = vand.u32 %v6672, 2147483648
      %v6800 = vor.u32 1.1754944e-38, %v6799
      %v6801 = vsel %vm6798, %v6800, %v6796
      %v6802 = vmul.f32 1.0, %v6801
      %v6803 = vrcp.pop %v6673
      %v6804 = vmul.f32 %v6673, %v6803
      %v6805 = vsub.f32 1.0, %v6804
      %v6806 = vmul.f32 %v6803, %v6805
      %v6807 = vadd.f32 %v6803, %v6806
      %vm6808 = vweird.f32 %v6673
      %vm6809 = vweird.f32 %v6803
      %vm6810 = vmor %vm6808, %vm6809
      %v6811 = vsel %vm6810, %v6803, %v6807
      %v6812 = vand.u32 2147483647, %v6673
      %vm6813 = vcmp.eq.f32.partialorder %v6812, 8.507059e+37
      %v6814 = vand.u32 %v6673, 2147483648
      %v6815 = vor.u32 1.1754944e-38, %v6814
      %v6816 = vsel %vm6813, %v6815, %v6811
      %v6817 = vmul.f32 1.0, %v6816
      %v6818 = vrcp.pop %v6674
      %v6819 = vmul.f32 %v6674, %v6818
      %v6820 = vsub.f32 1.0, %v6819
      %v6821 = vmul.f32 %v6818, %v6820
      %v6822 = vadd.f32 %v6818, %v6821
      %vm6823 = vweird.f32 %v6674
      %vm6824 = vweird.f32 %v6818
      %vm6825 = vmor %vm6823, %vm6824
      %v6826 = vsel %vm6825, %v6818, %v6822
      %v6827 = vand.u32 2147483647, %v6674
      %vm6828 = vcmp.eq.f32.partialorder %v6827, 8.507059e+37
      %v6829 = vand.u32 %v6674, 2147483648
      %v6830 = vor.u32 1.1754944e-38, %v6829
      %v6831 = vsel %vm6828, %v6830, %v6826
      %v6832 = vmul.f32 1.0, %v6831
      %v6833 = vrcp.pop %v6675
      %v6834 = vmul.f32 %v6675, %v6833
      %v6835 = vsub.f32 1.0, %v6834
      %v6836 = vmul.f32 %v6833, %v6835
      %v6837 = vadd.f32 %v6833, %v6836
      %vm6838 = vweird.f32 %v6675
      %vm6839 = vweird.f32 %v6833
      %vm6840 = vmor %vm6838, %vm6839
      %v6841 = vsel %vm6840, %v6833, %v6837
      %v6842 = vand.u32 2147483647, %v6675
      %vm6843 = vcmp.eq.f32.partialorder %v6842, 8.507059e+37
      %v6844 = vand.u32 %v6675, 2147483648
      %v6845 = vor.u32 1.1754944e-38, %v6844
      %v6846 = vsel %vm6843, %v6845, %v6841
      %v6847 = vmul.f32 1.0, %v6846
      %v6848 = vrcp.pop %v6676
      %v6849 = vmul.f32 %v6676, %v6848
      %v6850 = vsub.f32 1.0, %v6849
      %v6851 = vmul.f32 %v6848, %v6850
      %v6852 = vadd.f32 %v6848, %v6851
      %vm6853 = vweird.f32 %v6676
      %vm6854 = vweird.f32 %v6848
      %vm6855 = vmor %vm6853, %vm6854
      %v6856 = vsel %vm6855, %v6848, %v6852
      %v6857 = vand.u32 2147483647, %v6676
      %vm6858 = vcmp.eq.f32.partialorder %v6857, 8.507059e+37
      %v6859 = vand.u32 %v6676, 2147483648
      %v6860 = vor.u32 1.1754944e-38, %v6859
      %v6861 = vsel %vm6858, %v6860, %v6856
      %v6862 = vmul.f32 1.0, %v6861
      %v6863 = vrcp.pop %v6677
      %v6864 = vmul.f32 %v6677, %v6863
      %v6865 = vsub.f32 1.0, %v6864
      %v6866 = vmul.f32 %v6863, %v6865
      %v6867 = vadd.f32 %v6863, %v6866
      %vm6868 = vweird.f32 %v6677
      %vm6869 = vweird.f32 %v6863
      %vm6870 = vmor %vm6868, %vm6869
      %v6871 = vsel %vm6870, %v6863, %v6867
      %v6872 = vand.u32 2147483647, %v6677
      %vm6873 = vcmp.eq.f32.partialorder %v6872, 8.507059e+37
      %v6874 = vand.u32 %v6677, 2147483648
      %v6875 = vor.u32 1.1754944e-38, %v6874
      %v6876 = vsel %vm6873, %v6875, %v6871
      %v6877 = vmul.f32 1.0, %v6876
      %v6878 = vrcp.pop %v6678
      %v6879 = vmul.f32 %v6678, %v6878
      %v6880 = vsub.f32 1.0, %v6879
      %v6881 = vmul.f32 %v6878, %v6880
      %v6882 = vadd.f32 %v6878, %v6881
      %vm6883 = vweird.f32 %v6678
      %vm6884 = vweird.f32 %v6878
      %vm6885 = vmor %vm6883, %vm6884
      %v6886 = vsel %vm6885, %v6878, %v6882
      %v6887 = vand.u32 2147483647, %v6678
      %vm6888 = vcmp.eq.f32.partialorder %v6887, 8.507059e+37
      %v6889 = vand.u32 %v6678, 2147483648
      %v6890 = vor.u32 1.1754944e-38, %v6889
      %v6891 = vsel %vm6888, %v6890, %v6886
      %v6892 = vmul.f32 1.0, %v6891
      %v6893 = vrcp.pop %v6679
      %v6894 = vmul.f32 %v6679, %v6893
      %v6895 = vsub.f32 1.0, %v6894
      %v6896 = vmul.f32 %v6893, %v6895
      %v6897 = vadd.f32 %v6893, %v6896
      %vm6898 = vweird.f32 %v6679
      %vm6899 = vweird.f32 %v6893
      %vm6900 = vmor %vm6898, %vm6899
      %v6901 = vsel %vm6900, %v6893, %v6897
      %v6902 = vand.u32 2147483647, %v6679
      %vm6903 = vcmp.eq.f32.partialorder %v6902, 8.507059e+37
      %v6904 = vand.u32 %v6679, 2147483648
      %v6905 = vor.u32 1.1754944e-38, %v6904
      %v6906 = vsel %vm6903, %v6905, %v6901
      %v6907 = vmul.f32 1.0, %v6906
      %v6908 = vrcp.pop %v6680
      %v6909 = vmul.f32 %v6680, %v6908
      %v6910 = vsub.f32 1.0, %v6909
      %v6911 = vmul.f32 %v6908, %v6910
      %v6912 = vadd.f32 %v6908, %v6911
      %vm6913 = vweird.f32 %v6680
      %vm6914 = vweird.f32 %v6908
      %vm6915 = vmor %vm6913, %vm6914
      %v6916 = vsel %vm6915, %v6908, %v6912
      %v6917 = vand.u32 2147483647, %v6680
      %vm6918 = vcmp.eq.f32.partialorder %v6917, 8.507059e+37
      %v6919 = vand.u32 %v6680, 2147483648
      %v6920 = vor.u32 1.1754944e-38, %v6919
      %v6921 = vsel %vm6918, %v6920, %v6916
      %v6922 = vmul.f32 1.0, %v6921
      %v6923 = vrcp.pop %v6681
      %v6924 = vmul.f32 %v6681, %v6923
      %v6925 = vsub.f32 1.0, %v6924
      %v6926 = vmul.f32 %v6923, %v6925
      %v6927 = vadd.f32 %v6923, %v6926
      %vm6928 = vweird.f32 %v6681
      %vm6929 = vweird.f32 %v6923
      %vm6930 = vmor %vm6928, %vm6929
      %v6931 = vsel %vm6930, %v6923, %v6927
      %v6932 = vand.u32 2147483647, %v6681
      %vm6933 = vcmp.eq.f32.partialorder %v6932, 8.507059e+37
      %v6934 = vand.u32 %v6681, 2147483648
      %v6935 = vor.u32 1.1754944e-38, %v6934
      %v6936 = vsel %vm6933, %v6935, %v6931
      %v6937 = vmul.f32 1.0, %v6936
      %v6938 = vrcp.pop %v6682
      %v6939 = vmul.f32 %v6682, %v6938
      %v6940 = vsub.f32 1.0, %v6939
      %v6941 = vmul.f32 %v6938, %v6940
      %v6942 = vadd.f32 %v6938, %v6941
      %vm6943 = vweird.f32 %v6682
      %vm6944 = vweird.f32 %v6938
      %vm6945 = vmor %vm6943, %vm6944
      %v6946 = vsel %vm6945, %v6938, %v6942
      %v6947 = vand.u32 2147483647, %v6682
      %vm6948 = vcmp.eq.f32.partialorder %v6947, 8.507059e+37
      %v6949 = vand.u32 %v6682, 2147483648
      %v6950 = vor.u32 1.1754944e-38, %v6949
      %v6951 = vsel %vm6948, %v6950, %v6946
      %v6952 = vmul.f32 1.0, %v6951
      %v6953 = vrcp.pop %v6683
      %v6954 = vmul.f32 %v6683, %v6953
      %v6955 = vsub.f32 1.0, %v6954
      %v6956 = vmul.f32 %v6953, %v6955
      %v6957 = vadd.f32 %v6953, %v6956
      %vm6958 = vweird.f32 %v6683
      %vm6959 = vweird.f32 %v6953
      %vm6960 = vmor %vm6958, %vm6959
      %v6961 = vsel %vm6960, %v6953, %v6957
      %v6962 = vand.u32 2147483647, %v6683
      %vm6963 = vcmp.eq.f32.partialorder %v6962, 8.507059e+37
      %v6964 = vand.u32 %v6683, 2147483648
      %v6965 = vor.u32 1.1754944e-38, %v6964
      %v6966 = vsel %vm6963, %v6965, %v6961
      %v6967 = vmul.f32 1.0, %v6966
      %v6968 = vrcp.pop %v6684
      %v6969 = vmul.f32 %v6684, %v6968
      %v6970 = vsub.f32 1.0, %v6969
      %v6971 = vmul.f32 %v6968, %v6970
      %v6972 = vadd.f32 %v6968, %v6971
      %vm6973 = vweird.f32 %v6684
      %vm6974 = vweird.f32 %v6968
      %vm6975 = vmor %vm6973, %vm6974
      %v6976 = vsel %vm6975, %v6968, %v6972
      %v6977 = vand.u32 2147483647, %v6684
      %vm6978 = vcmp.eq.f32.partialorder %v6977, 8.507059e+37
      %v6979 = vand.u32 %v6684, 2147483648
      %v6980 = vor.u32 1.1754944e-38, %v6979
      %v6981 = vsel %vm6978, %v6980, %v6976
      %v6982 = vmul.f32 1.0, %v6981
      %v6983 = vrcp.pop %v6685
      %v6984 = vmul.f32 %v6685, %v6983
      %v6985 = vsub.f32 1.0, %v6984
      %v6986 = vmul.f32 %v6983, %v6985
      %v6987 = vadd.f32 %v6983, %v6986
      %vm6988 = vweird.f32 %v6685
      %vm6989 = vweird.f32 %v6983
      %vm6990 = vmor %vm6988, %vm6989
      %v6991 = vsel %vm6990, %v6983, %v6987
      %v6992 = vand.u32 2147483647, %v6685
      %vm6993 = vcmp.eq.f32.partialorder %v6992, 8.507059e+37
      %v6994 = vand.u32 %v6685, 2147483648
      %v6995 = vor.u32 1.1754944e-38, %v6994
      %v6996 = vsel %vm6993, %v6995, %v6991
      %v6997 = vmul.f32 1.0, %v6996
      %v6998 = vrcp.pop %v6686
      %v6999 = vmul.f32 %v6686, %v6998
      %v7000 = vsub.f32 1.0, %v6999
      %v7001 = vmul.f32 %v6998, %v7000
      %v7002 = vadd.f32 %v6998, %v7001
      %vm7003 = vweird.f32 %v6686
      %vm7004 = vweird.f32 %v6998
      %vm7005 = vmor %vm7003, %vm7004
      %v7006 = vsel %vm7005, %v6998, %v7002
      %v7007 = vand.u32 2147483647, %v6686
      %vm7008 = vcmp.eq.f32.partialorder %v7007, 8.507059e+37
      %v7009 = vand.u32 %v6686, 2147483648
      %v7010 = vor.u32 1.1754944e-38, %v7009
      %v7011 = vsel %vm7008, %v7010, %v7006
      %v7012 = vmul.f32 1.0, %v7011
      %v7013 = vrcp.pop %v6687
      %v7014 = vmul.f32 %v6687, %v7013
      %v7015 = vsub.f32 1.0, %v7014
      %v7016 = vmul.f32 %v7013, %v7015
      %v7017 = vadd.f32 %v7013, %v7016
      %vm7018 = vweird.f32 %v6687
      %vm7019 = vweird.f32 %v7013
      %vm7020 = vmor %vm7018, %vm7019
      %v7021 = vsel %vm7020, %v7013, %v7017
      %v7022 = vand.u32 2147483647, %v6687
      %vm7023 = vcmp.eq.f32.partialorder %v7022, 8.507059e+37
      %v7024 = vand.u32 %v6687, 2147483648
      %v7025 = vor.u32 1.1754944e-38, %v7024
      %v7026 = vsel %vm7023, %v7025, %v7021
      %v7027 = vmul.f32 1.0, %v7026
      %v7028 = vrcp.pop %v6688
      %v7029 = vmul.f32 %v6688, %v7028
      %v7030 = vsub.f32 1.0, %v7029
      %v7031 = vmul.f32 %v7028, %v7030
      %v7032 = vadd.f32 %v7028, %v7031
      %vm7033 = vweird.f32 %v6688
      %vm7034 = vweird.f32 %v7028
      %vm7035 = vmor %vm7033, %vm7034
      %v7036 = vsel %vm7035, %v7028, %v7032
      %v7037 = vand.u32 2147483647, %v6688
      %vm7038 = vcmp.eq.f32.partialorder %v7037, 8.507059e+37
      %v7039 = vand.u32 %v6688, 2147483648
      %v7040 = vor.u32 1.1754944e-38, %v7039
      %v7041 = vsel %vm7038, %v7040, %v7036
      %v7042 = vmul.f32 1.0, %v7041
      %v7043 = vrcp.pop %v6689
      %v7044 = vmul.f32 %v6689, %v7043
      %v7045 = vsub.f32 1.0, %v7044
      %v7046 = vmul.f32 %v7043, %v7045
      %v7047 = vadd.f32 %v7043, %v7046
      %vm7048 = vweird.f32 %v6689
      %vm7049 = vweird.f32 %v7043
      %vm7050 = vmor %vm7048, %vm7049
      %v7051 = vsel %vm7050, %v7043, %v7047
      %v7052 = vand.u32 2147483647, %v6689
      %vm7053 = vcmp.eq.f32.partialorder %v7052, 8.507059e+37
      %v7054 = vand.u32 %v6689, 2147483648
      %v7055 = vor.u32 1.1754944e-38, %v7054
      %v7056 = vsel %vm7053, %v7055, %v7051
      %v7057 = vmul.f32 1.0, %v7056
      %v7058 = vrcp.pop %v6690
      %v7059 = vmul.f32 %v6690, %v7058
      %v7060 = vsub.f32 1.0, %v7059
      %v7061 = vmul.f32 %v7058, %v7060
      %v7062 = vadd.f32 %v7058, %v7061
      %vm7063 = vweird.f32 %v6690
      %vm7064 = vweird.f32 %v7058
      %vm7065 = vmor %vm7063, %vm7064
      %v7066 = vsel %vm7065, %v7058, %v7062
      %v7067 = vand.u32 2147483647, %v6690
      %vm7068 = vcmp.eq.f32.partialorder %v7067, 8.507059e+37
      %v7069 = vand.u32 %v6690, 2147483648
      %v7070 = vor.u32 1.1754944e-38, %v7069
      %v7071 = vsel %vm7068, %v7070, %v7066
      %v7072 = vmul.f32 1.0, %v7071
      %v7073 = vrcp.pop %v6691
      %v7074 = vmul.f32 %v6691, %v7073
      %v7075 = vsub.f32 1.0, %v7074
      %v7076 = vmul.f32 %v7073, %v7075
      %v7077 = vadd.f32 %v7073, %v7076
      %vm7078 = vweird.f32 %v6691
      %vm7079 = vweird.f32 %v7073
      %vm7080 = vmor %vm7078, %vm7079
      %v7081 = vsel %vm7080, %v7073, %v7077
      %v7082 = vand.u32 2147483647, %v6691
      %vm7083 = vcmp.eq.f32.partialorder %v7082, 8.507059e+37
      %v7084 = vand.u32 %v6691, 2147483648
      %v7085 = vor.u32 1.1754944e-38, %v7084
      %v7086 = vsel %vm7083, %v7085, %v7081
      %v7087 = vmul.f32 1.0, %v7086
      %v7088 = vrcp.pop %v6692
      %v7089 = vmul.f32 %v6692, %v7088
      %v7090 = vsub.f32 1.0, %v7089
      %v7091 = vmul.f32 %v7088, %v7090
      %v7092 = vadd.f32 %v7088, %v7091
      %vm7093 = vweird.f32 %v6692
      %vm7094 = vweird.f32 %v7088
      %vm7095 = vmor %vm7093, %vm7094
      %v7096 = vsel %vm7095, %v7088, %v7092
      %v7097 = vand.u32 2147483647, %v6692
      %vm7098 = vcmp.eq.f32.partialorder %v7097, 8.507059e+37
      %v7099 = vand.u32 %v6692, 2147483648
      %v7100 = vor.u32 1.1754944e-38, %v7099
      %v7101 = vsel %vm7098, %v7100, %v7096
      %v7102 = vmul.f32 1.0, %v7101
      %v7103 = vrcp.pop %v6693
      %v7104 = vmul.f32 %v6693, %v7103
      %v7105 = vsub.f32 1.0, %v7104
      %v7106 = vmul.f32 %v7103, %v7105
      %v7107 = vadd.f32 %v7103, %v7106
      %vm7108 = vweird.f32 %v6693
      %vm7109 = vweird.f32 %v7103
      %vm7110 = vmor %vm7108, %vm7109
      %v7111 = vsel %vm7110, %v7103, %v7107
      %v7112 = vand.u32 2147483647, %v6693
      %vm7113 = vcmp.eq.f32.partialorder %v7112, 8.507059e+37
      %v7114 = vand.u32 %v6693, 2147483648
      %v7115 = vor.u32 1.1754944e-38, %v7114
      %v7116 = vsel %vm7113, %v7115, %v7111
      %v7117 = vmul.f32 1.0, %v7116
      %v7118 = vrcp.pop %v6694
      %v7119 = vmul.f32 %v6694, %v7118
      %v7120 = vsub.f32 1.0, %v7119
      %v7121 = vmul.f32 %v7118, %v7120
      %v7122 = vadd.f32 %v7118, %v7121
      %vm7123 = vweird.f32 %v6694
      %vm7124 = vweird.f32 %v7118
      %vm7125 = vmor %vm7123, %vm7124
      %v7126 = vsel %vm7125, %v7118, %v7122
      %v7127 = vand.u32 2147483647, %v6694
      %vm7128 = vcmp.eq.f32.partialorder %v7127, 8.507059e+37
      %v7129 = vand.u32 %v6694, 2147483648
      %v7130 = vor.u32 1.1754944e-38, %v7129
      %v7131 = vsel %vm7128, %v7130, %v7126
      %v7132 = vmul.f32 1.0, %v7131
      %v7133 = vrcp.pop %v6695
      %v7134 = vmul.f32 %v6695, %v7133
      %v7135 = vsub.f32 1.0, %v7134
      %v7136 = vmul.f32 %v7133, %v7135
      %v7137 = vadd.f32 %v7133, %v7136
      %vm7138 = vweird.f32 %v6695
      %vm7139 = vweird.f32 %v7133
      %vm7140 = vmor %vm7138, %vm7139
      %v7141 = vsel %vm7140, %v7133, %v7137
      %v7142 = vand.u32 2147483647, %v6695
      %vm7143 = vcmp.eq.f32.partialorder %v7142, 8.507059e+37
      %v7144 = vand.u32 %v6695, 2147483648
      %v7145 = vor.u32 1.1754944e-38, %v7144
      %v7146 = vsel %vm7143, %v7145, %v7141
      %v7147 = vmul.f32 1.0, %v7146
      %v7148 = vrcp.pop %v6696
      %v7149 = vmul.f32 %v6696, %v7148
      %v7150 = vsub.f32 1.0, %v7149
      %v7151 = vmul.f32 %v7148, %v7150
      %v7152 = vadd.f32 %v7148, %v7151
      %vm7153 = vweird.f32 %v6696
      %vm7154 = vweird.f32 %v7148
      %vm7155 = vmor %vm7153, %vm7154
      %v7156 = vsel %vm7155, %v7148, %v7152
      %v7157 = vand.u32 2147483647, %v6696
      %vm7158 = vcmp.eq.f32.partialorder %v7157, 8.507059e+37
      %v7159 = vand.u32 %v6696, 2147483648
      %v7160 = vor.u32 1.1754944e-38, %v7159
      %v7161 = vsel %vm7158, %v7160, %v7156
      %v7162 = vmul.f32 1.0, %v7161
      %v7163 = vrcp.pop %v6697
      %v7164 = vmul.f32 %v6697, %v7163
      %v7165 = vsub.f32 1.0, %v7164
      %v7166 = vmul.f32 %v7163, %v7165
      %v7167 = vadd.f32 %v7163, %v7166
      %vm7168 = vweird.f32 %v6697
      %vm7169 = vweird.f32 %v7163
      %vm7170 = vmor %vm7168, %vm7169
      %v7171 = vsel %vm7170, %v7163, %v7167
      %v7172 = vand.u32 2147483647, %v6697
      %vm7173 = vcmp.eq.f32.partialorder %v7172, 8.507059e+37
      %v7174 = vand.u32 %v6697, 2147483648
      %v7175 = vor.u32 1.1754944e-38, %v7174
      %v7176 = vsel %vm7173, %v7175, %v7171
      %v7177 = vmul.f32 1.0, %v7176
      %v7178 = vld [vmem:[%s9] sm:$0x1]
      %7180 = vset.pattern.permute.xlu0 0
      %7181 = vperm.xlu0 %7180, %v6712
      %v7182 = vpop.permute.xlu0 %7181
      %7185 = vset.pattern.permute.xlu0 0
      %7186 = vperm.xlu0 %7185, %v6727
      %v7187 = vpop.permute.xlu0 %7186
      %7190 = vset.pattern.permute.xlu0 0
      %7191 = vperm.xlu0 %7190, %v6742
      %v7192 = vpop.permute.xlu0 %7191
      %7195 = vset.pattern.permute.xlu0 0
      %7196 = vperm.xlu0 %7195, %v6757
      %v7197 = vpop.permute.xlu0 %7196
      %7200 = vset.pattern.permute.xlu0 0
      %7201 = vperm.xlu0 %7200, %v6772
      %v7202 = vpop.permute.xlu0 %7201
      %7205 = vset.pattern.permute.xlu0 0
      %7206 = vperm.xlu0 %7205, %v6787
      %v7207 = vpop.permute.xlu0 %7206
      %7210 = vset.pattern.permute.xlu0 0
      %7211 = vperm.xlu0 %7210, %v6802
      %v7212 = vpop.permute.xlu0 %7211
      %7215 = vset.pattern.permute.xlu0 0
      %7216 = vperm.xlu0 %7215, %v6817
      %v7217 = vpop.permute.xlu0 %7216
      %7220 = vset.pattern.permute.xlu0 0
      %7221 = vperm.xlu0 %7220, %v6832
      %v7222 = vpop.permute.xlu0 %7221
      %7225 = vset.pattern.permute.xlu0 0
      %7226 = vperm.xlu0 %7225, %v6847
      %v7227 = vpop.permute.xlu0 %7226
      %7230 = vset.pattern.permute.xlu0 0
      %7231 = vperm.xlu0 %7230, %v6862
      %v7232 = vpop.permute.xlu0 %7231
      %7235 = vset.pattern.permute.xlu0 0
      %7236 = vperm.xlu0 %7235, %v6877
      %v7237 = vpop.permute.xlu0 %7236
      %7240 = vset.pattern.permute.xlu0 0
      %7241 = vperm.xlu0 %7240, %v6892
      %v7242 = vpop.permute.xlu0 %7241
      %7245 = vset.pattern.permute.xlu0 0
      %7246 = vperm.xlu0 %7245, %v6907
      %v7247 = vpop.permute.xlu0 %7246
      %7250 = vset.pattern.permute.xlu0 0
      %7251 = vperm.xlu0 %7250, %v6922
      %v7252 = vpop.permute.xlu0 %7251
      %7255 = vset.pattern.permute.xlu0 0
      %7256 = vperm.xlu0 %7255, %v6937
      %v7257 = vpop.permute.xlu0 %7256
      %7260 = vset.pattern.permute.xlu0 0
      %7261 = vperm.xlu0 %7260, %v6952
      %v7262 = vpop.permute.xlu0 %7261
      %7265 = vset.pattern.permute.xlu0 0
      %7266 = vperm.xlu0 %7265, %v6967
      %v7267 = vpop.permute.xlu0 %7266
      %7270 = vset.pattern.permute.xlu0 0
      %7271 = vperm.xlu0 %7270, %v6982
      %v7272 = vpop.permute.xlu0 %7271
      %7275 = vset.pattern.permute.xlu0 0
      %7276 = vperm.xlu0 %7275, %v6997
      %v7277 = vpop.permute.xlu0 %7276
      %7280 = vset.pattern.permute.xlu0 0
      %7281 = vperm.xlu0 %7280, %v7012
      %v7282 = vpop.permute.xlu0 %7281
      %7285 = vset.pattern.permute.xlu0 0
      %7286 = vperm.xlu0 %7285, %v7027
      %v7287 = vpop.permute.xlu0 %7286
      %7290 = vset.pattern.permute.xlu0 0
      %7291 = vperm.xlu0 %7290, %v7042
      %v7292 = vpop.permute.xlu0 %7291
      %7295 = vset.pattern.permute.xlu0 0
      %7296 = vperm.xlu0 %7295, %v7057
      %v7297 = vpop.permute.xlu0 %7296
      %7300 = vset.pattern.permute.xlu0 0
      %7301 = vperm.xlu0 %7300, %v7072
      %v7302 = vpop.permute.xlu0 %7301
      %7305 = vset.pattern.permute.xlu0 0
      %7306 = vperm.xlu0 %7305, %v7087
      %v7307 = vpop.permute.xlu0 %7306
      %7310 = vset.pattern.permute.xlu0 0
      %7311 = vperm.xlu0 %7310, %v7102
      %v7312 = vpop.permute.xlu0 %7311
      %7315 = vset.pattern.permute.xlu0 0
      %7316 = vperm.xlu0 %7315, %v7117
      %v7317 = vpop.permute.xlu0 %7316
      %7320 = vset.pattern.permute.xlu0 0
      %7321 = vperm.xlu0 %7320, %v7132
      %v7322 = vpop.permute.xlu0 %7321
      %7325 = vset.pattern.permute.xlu0 0
      %7326 = vperm.xlu0 %7325, %v7147
      %v7327 = vpop.permute.xlu0 %7326
      %7330 = vset.pattern.permute.xlu0 0
      %7331 = vperm.xlu0 %7330, %v7162
      %v7332 = vpop.permute.xlu0 %7331
      %7335 = vset.pattern.permute.xlu0 0
      %7336 = vperm.xlu0 %7335, %v7177
      %v7337 = vpop.permute.xlu0 %7336
      %v7339 = vmul.f32 %v7182, %v2348
      %v7340 = vmul.f32 %v7187, %v2350
      %v7341 = vmul.f32 %v7192, %v2353
      %v7342 = vmul.f32 %v7197, %v2355
      %v7343 = vmul.f32 %v7202, %v2358
      %v7344 = vmul.f32 %v7207, %v2360
      %v7345 = vmul.f32 %v7212, %v2363
      %v7346 = vmul.f32 %v7217, %v2365
      %v7347 = vmul.f32 %v7222, %v2368
      %v7348 = vmul.f32 %v7227, %v2370
      %v7349 = vmul.f32 %v7232, %v2373
      %v7350 = vmul.f32 %v7237, %v2375
      %v7351 = vmul.f32 %v7242, %v2378
      %v7352 = vmul.f32 %v7247, %v2380
      %v7353 = vmul.f32 %v7252, %v2383
      %v7354 = vmul.f32 %v7257, %v2385
      %v7355 = vmul.f32 %v7262, %v2388
      %v7356 = vmul.f32 %v7267, %v2390
      %v7357 = vmul.f32 %v7272, %v2393
      %v7358 = vmul.f32 %v7277, %v2395
      %v7359 = vmul.f32 %v7282, %v2398
      %v7360 = vmul.f32 %v7287, %v2400
      %v7361 = vmul.f32 %v7292, %v2403
      %v7362 = vmul.f32 %v7297, %v2405
      %v7363 = vmul.f32 %v7302, %v2408
      %v7364 = vmul.f32 %v7307, %v2410
      %v7365 = vmul.f32 %v7312, %v2413
      %v7366 = vmul.f32 %v7317, %v2415
      %v7367 = vmul.f32 %v7322, %v2418
      %v7368 = vmul.f32 %v7327, %v2420
      %v7369 = vmul.f32 %v7332, %v2423
      %v7370 = vmul.f32 %v7337, %v2425
      %v7372 = vperm.slane %v7178, 0
      %v7374 = vadd.f32 %v7339, %v7372
      %v7375 = vadd.f32 %v7340, %v7372
      %v7376 = vadd.f32 %v7341, %v7372
      %v7377 = vadd.f32 %v7342, %v7372
      %v7378 = vadd.f32 %v7343, %v7372
      %v7379 = vadd.f32 %v7344, %v7372
      %v7380 = vadd.f32 %v7345, %v7372
      %v7381 = vadd.f32 %v7346, %v7372
      %v7382 = vadd.f32 %v7347, %v7372
      %v7383 = vadd.f32 %v7348, %v7372
      %v7384 = vadd.f32 %v7349, %v7372
      %v7385 = vadd.f32 %v7350, %v7372
      %v7386 = vadd.f32 %v7351, %v7372
      %v7387 = vadd.f32 %v7352, %v7372
      %v7388 = vadd.f32 %v7353, %v7372
      %v7389 = vadd.f32 %v7354, %v7372
      %v7390 = vadd.f32 %v7355, %v7372
      %v7391 = vadd.f32 %v7356, %v7372
      %v7392 = vadd.f32 %v7357, %v7372
      %v7393 = vadd.f32 %v7358, %v7372
      %v7394 = vadd.f32 %v7359, %v7372
      %v7395 = vadd.f32 %v7360, %v7372
      %v7396 = vadd.f32 %v7361, %v7372
      %v7397 = vadd.f32 %v7362, %v7372
      %v7398 = vadd.f32 %v7363, %v7372
      %v7399 = vadd.f32 %v7364, %v7372
      %v7400 = vadd.f32 %v7365, %v7372
      %v7401 = vadd.f32 %v7366, %v7372
      %v7402 = vadd.f32 %v7367, %v7372
      %v7403 = vadd.f32 %v7368, %v7372
      %v7404 = vadd.f32 %v7369, %v7372
      %v7405 = vadd.f32 %v7370, %v7372
      %v7406 = vpack.c.bf16 %v7374, %v7374
      %v7407 = vpack.c.bf16 %v7375, %v7375
      %v7408 = vpack.c.bf16 %v7376, %v7376
      %v7409 = vpack.c.bf16 %v7377, %v7377
      %v7410 = vpack.c.bf16 %v7378, %v7378
      %v7411 = vpack.c.bf16 %v7379, %v7379
      %v7412 = vpack.c.bf16 %v7380, %v7380
      %v7413 = vpack.c.bf16 %v7381, %v7381
      %v7414 = vpack.c.bf16 %v7382, %v7382
      %v7415 = vpack.c.bf16 %v7383, %v7383
      %v7416 = vpack.c.bf16 %v7384, %v7384
      %v7417 = vpack.c.bf16 %v7385, %v7385
      %v7418 = vpack.c.bf16 %v7386, %v7386
      %v7419 = vpack.c.bf16 %v7387, %v7387
      %v7420 = vpack.c.bf16 %v7388, %v7388
      %v7421 = vpack.c.bf16 %v7389, %v7389
      %v7422 = vpack.c.bf16 %v7390, %v7390
      %v7423 = vpack.c.bf16 %v7391, %v7391
      %v7424 = vpack.c.bf16 %v7392, %v7392
      %v7425 = vpack.c.bf16 %v7393, %v7393
      %v7426 = vpack.c.bf16 %v7394, %v7394
      %v7427 = vpack.c.bf16 %v7395, %v7395
      %v7428 = vpack.c.bf16 %v7396, %v7396
      %v7429 = vpack.c.bf16 %v7397, %v7397
      %v7430 = vpack.c.bf16 %v7398, %v7398
      %v7431 = vpack.c.bf16 %v7399, %v7399
      %v7432 = vpack.c.bf16 %v7400, %v7400
      %v7433 = vpack.c.bf16 %v7401, %v7401
      %v7434 = vpack.c.bf16 %v7402, %v7402
      %v7435 = vpack.c.bf16 %v7403, %v7403
      %v7436 = vpack.c.bf16 %v7404, %v7404
      %v7437 = vpack.c.bf16 %v7405, %v7405
      %vm7438 = vcmask 650240
      %7439 = vst.msk [vmem:[#allocation2] sm:$0xf] %vm7438, %v7406
      %7440 = vst.msk [vmem:[#allocation2 + $0x14] sm:$0xf] %vm7438, %v7407
      %7441 = vst.msk [vmem:[#allocation2 + $0x28] sm:$0xf] %vm7438, %v7408
      %7442 = vst.msk [vmem:[#allocation2 + $0x3c] sm:$0xf] %vm7438, %v7409
      %7443 = vst.msk [vmem:[#allocation2 + $0x50] sm:$0xf] %vm7438, %v7410
      %7444 = vst.msk [vmem:[#allocation2 + $0x64] sm:$0xf] %vm7438, %v7411
      %7445 = vst.msk [vmem:[#allocation2 + $0x78] sm:$0xf] %vm7438, %v7412
      %7446 = vst.msk [vmem:[#allocation2 + $0x8c] sm:$0xf] %vm7438, %v7413
      %7447 = vst.msk [vmem:[#allocation2 + $0xa0] sm:$0xf] %vm7438, %v7414
      %7448 = vst.msk [vmem:[#allocation2 + $0xb4] sm:$0xf] %vm7438, %v7415
      %7449 = vst.msk [vmem:[#allocation2 + $0xc8] sm:$0xf] %vm7438, %v7416
      %7450 = vst.msk [vmem:[#allocation2 + $0xdc] sm:$0xf] %vm7438, %v7417
      %7451 = vst.msk [vmem:[#allocation2 + $0xf0] sm:$0xf] %vm7438, %v7418
      %7452 = vst.msk [vmem:[#allocation2 + $0x104] sm:$0xf] %vm7438, %v7419
      %7453 = vst.msk [vmem:[#allocation2 + $0x118] sm:$0xf] %vm7438, %v7420
      %7454 = vst.msk [vmem:[#allocation2 + $0x12c] sm:$0xf] %vm7438, %v7421
      %7455 = vst.msk [vmem:[#allocation2 + $0x140] sm:$0xf] %vm7438, %v7422
      %7456 = vst.msk [vmem:[#allocation2 + $0x154] sm:$0xf] %vm7438, %v7423
      %7457 = vst.msk [vmem:[#allocation2 + $0x168] sm:$0xf] %vm7438, %v7424
      %7458 = vst.msk [vmem:[#allocation2 + $0x17c] sm:$0xf] %vm7438, %v7425
      %7459 = vst.msk [vmem:[#allocation2 + $0x190] sm:$0xf] %vm7438, %v7426
      %7460 = vst.msk [vmem:[#allocation2 + $0x1a4] sm:$0xf] %vm7438, %v7427
      %7461 = vst.msk [vmem:[#allocation2 + $0x1b8] sm:$0xf] %vm7438, %v7428
      %7462 = vst.msk [vmem:[#allocation2 + $0x1cc] sm:$0xf] %vm7438, %v7429
      %7463 = vst.msk [vmem:[#allocation2 + $0x1e0] sm:$0xf] %vm7438, %v7430
      %7464 = vst.msk [vmem:[#allocation2 + $0x1f4] sm:$0xf] %vm7438, %v7431
      %7465 = vst.msk [vmem:[#allocation2 + $0x208] sm:$0xf] %vm7438, %v7432
      %7466 = vst.msk [vmem:[#allocation2 + $0x21c] sm:$0xf] %vm7438, %v7433
      %7467 = vst.msk [vmem:[#allocation2 + $0x230] sm:$0xf] %vm7438, %v7434
      %7468 = vst.msk [vmem:[#allocation2 + $0x244] sm:$0xf] %vm7438, %v7435
      %7469 = vst.msk [vmem:[#allocation2 + $0x258] sm:$0xf] %vm7438, %v7436
      %7470 = vst.msk [vmem:[#allocation2 + $0x26c] sm:$0xf] %vm7438, %v7437
      %7471 = vset.pattern.permute.xlu0 1
      %7472 = vperm.xlu0 %7471, %v6712
      %v7473 = vpop.permute.xlu0 %7472
      %7475 = vset.pattern.permute.xlu0 1
      %7476 = vperm.xlu0 %7475, %v6727
      %v7477 = vpop.permute.xlu0 %7476
      %7479 = vset.pattern.permute.xlu0 1
      %7480 = vperm.xlu0 %7479, %v6742
      %v7481 = vpop.permute.xlu0 %7480
      %7483 = vset.pattern.permute.xlu0 1
      %7484 = vperm.xlu0 %7483, %v6757
      %v7485 = vpop.permute.xlu0 %7484
      %7487 = vset.pattern.permute.xlu0 1
      %7488 = vperm.xlu0 %7487, %v6772
      %v7489 = vpop.permute.xlu0 %7488
      %7491 = vset.pattern.permute.xlu0 1
      %7492 = vperm.xlu0 %7491, %v6787
      %v7493 = vpop.permute.xlu0 %7492
      %7495 = vset.pattern.permute.xlu0 1
      %7496 = vperm.xlu0 %7495, %v6802
      %v7497 = vpop.permute.xlu0 %7496
      %7499 = vset.pattern.permute.xlu0 1
      %7500 = vperm.xlu0 %7499, %v6817
      %v7501 = vpop.permute.xlu0 %7500
      %7503 = vset.pattern.permute.xlu0 1
      %7504 = vperm.xlu0 %7503, %v6832
      %v7505 = vpop.permute.xlu0 %7504
      %7507 = vset.pattern.permute.xlu0 1
      %7508 = vperm.xlu0 %7507, %v6847
      %v7509 = vpop.permute.xlu0 %7508
      %7511 = vset.pattern.permute.xlu0 1
      %7512 = vperm.xlu0 %7511, %v6862
      %v7513 = vpop.permute.xlu0 %7512
      %7515 = vset.pattern.permute.xlu0 1
      %7516 = vperm.xlu0 %7515, %v6877
      %v7517 = vpop.permute.xlu0 %7516
      %7519 = vset.pattern.permute.xlu0 1
      %7520 = vperm.xlu0 %7519, %v6892
      %v7521 = vpop.permute.xlu0 %7520
      %7523 = vset.pattern.permute.xlu0 1
      %7524 = vperm.xlu0 %7523, %v6907
      %v7525 = vpop.permute.xlu0 %7524
      %7527 = vset.pattern.permute.xlu0 1
      %7528 = vperm.xlu0 %7527, %v6922
      %v7529 = vpop.permute.xlu0 %7528
      %7531 = vset.pattern.permute.xlu0 1
      %7532 = vperm.xlu0 %7531, %v6937
      %v7533 = vpop.permute.xlu0 %7532
      %7535 = vset.pattern.permute.xlu0 1
      %7536 = vperm.xlu0 %7535, %v6952
      %v7537 = vpop.permute.xlu0 %7536
      %7539 = vset.pattern.permute.xlu0 1
      %7540 = vperm.xlu0 %7539, %v6967
      %v7541 = vpop.permute.xlu0 %7540
      %7543 = vset.pattern.permute.xlu0 1
      %7544 = vperm.xlu0 %7543, %v6982
      %v7545 = vpop.permute.xlu0 %7544
      %7547 = vset.pattern.permute.xlu0 1
      %7548 = vperm.xlu0 %7547, %v6997
      %v7549 = vpop.permute.xlu0 %7548
      %7551 = vset.pattern.permute.xlu0 1
      %7552 = vperm.xlu0 %7551, %v7012
      %v7553 = vpop.permute.xlu0 %7552
      %7555 = vset.pattern.permute.xlu0 1
      %7556 = vperm.xlu0 %7555, %v7027
      %v7557 = vpop.permute.xlu0 %7556
      %7559 = vset.pattern.permute.xlu0 1
      %7560 = vperm.xlu0 %7559, %v7042
      %v7561 = vpop.permute.xlu0 %7560
      %7563 = vset.pattern.permute.xlu0 1
      %7564 = vperm.xlu0 %7563, %v7057
      %v7565 = vpop.permute.xlu0 %7564
      %7567 = vset.pattern.permute.xlu0 1
      %7568 = vperm.xlu0 %7567, %v7072
      %v7569 = vpop.permute.xlu0 %7568
      %7571 = vset.pattern.permute.xlu0 1
      %7572 = vperm.xlu0 %7571, %v7087
      %v7573 = vpop.permute.xlu0 %7572
      %7575 = vset.pattern.permute.xlu0 1
      %7576 = vperm.xlu0 %7575, %v7102
      %v7577 = vpop.permute.xlu0 %7576
      %7579 = vset.pattern.permute.xlu0 1
      %7580 = vperm.xlu0 %7579, %v7117
      %v7581 = vpop.permute.xlu0 %7580
      %7583 = vset.pattern.permute.xlu0 1
      %7584 = vperm.xlu0 %7583, %v7132
      %v7585 = vpop.permute.xlu0 %7584
      %7587 = vset.pattern.permute.xlu0 1
      %7588 = vperm.xlu0 %7587, %v7147
      %v7589 = vpop.permute.xlu0 %7588
      %7591 = vset.pattern.permute.xlu0 1
      %7592 = vperm.xlu0 %7591, %v7162
      %v7593 = vpop.permute.xlu0 %7592
      %7595 = vset.pattern.permute.xlu0 1
      %7596 = vperm.xlu0 %7595, %v7177
      %v7597 = vpop.permute.xlu0 %7596
      %v7599 = vmul.f32 %v7473, %v3160
      %v7600 = vmul.f32 %v7477, %v3162
      %v7601 = vmul.f32 %v7481, %v3165
      %v7602 = vmul.f32 %v7485, %v3167
      %v7603 = vmul.f32 %v7489, %v3170
      %v7604 = vmul.f32 %v7493, %v3172
      %v7605 = vmul.f32 %v7497, %v3175
      %v7606 = vmul.f32 %v7501, %v3177
      %v7607 = vmul.f32 %v7505, %v3180
      %v7608 = vmul.f32 %v7509, %v3182
      %v7609 = vmul.f32 %v7513, %v3185
      %v7610 = vmul.f32 %v7517, %v3187
      %v7611 = vmul.f32 %v7521, %v3190
      %v7612 = vmul.f32 %v7525, %v3192
      %v7613 = vmul.f32 %v7529, %v3195
      %v7614 = vmul.f32 %v7533, %v3197
      %v7615 = vmul.f32 %v7537, %v3200
      %v7616 = vmul.f32 %v7541, %v3202
      %v7617 = vmul.f32 %v7545, %v3205
      %v7618 = vmul.f32 %v7549, %v3207
      %v7619 = vmul.f32 %v7553, %v3210
      %v7620 = vmul.f32 %v7557, %v3212
      %v7621 = vmul.f32 %v7561, %v3215
      %v7622 = vmul.f32 %v7565, %v3217
      %v7623 = vmul.f32 %v7569, %v3220
      %v7624 = vmul.f32 %v7573, %v3222
      %v7625 = vmul.f32 %v7577, %v3225
      %v7626 = vmul.f32 %v7581, %v3227
      %v7627 = vmul.f32 %v7585, %v3230
      %v7628 = vmul.f32 %v7589, %v3232
      %v7629 = vmul.f32 %v7593, %v3235
      %v7630 = vmul.f32 %v7597, %v3237
      %v7631 = vadd.f32 %v7599, %v7372
      %v7632 = vadd.f32 %v7600, %v7372
      %v7633 = vadd.f32 %v7601, %v7372
      %v7634 = vadd.f32 %v7602, %v7372
      %v7635 = vadd.f32 %v7603, %v7372
      %v7636 = vadd.f32 %v7604, %v7372
      %v7637 = vadd.f32 %v7605, %v7372
      %v7638 = vadd.f32 %v7606, %v7372
      %v7639 = vadd.f32 %v7607, %v7372
      %v7640 = vadd.f32 %v7608, %v7372
      %v7641 = vadd.f32 %v7609, %v7372
      %v7642 = vadd.f32 %v7610, %v7372
      %v7643 = vadd.f32 %v7611, %v7372
      %v7644 = vadd.f32 %v7612, %v7372
      %v7645 = vadd.f32 %v7613, %v7372
      %v7646 = vadd.f32 %v7614, %v7372
      %v7647 = vadd.f32 %v7615, %v7372
      %v7648 = vadd.f32 %v7616, %v7372
      %v7649 = vadd.f32 %v7617, %v7372
      %v7650 = vadd.f32 %v7618, %v7372
      %v7651 = vadd.f32 %v7619, %v7372
      %v7652 = vadd.f32 %v7620, %v7372
      %v7653 = vadd.f32 %v7621, %v7372
      %v7654 = vadd.f32 %v7622, %v7372
      %v7655 = vadd.f32 %v7623, %v7372
      %v7656 = vadd.f32 %v7624, %v7372
      %v7657 = vadd.f32 %v7625, %v7372
      %v7658 = vadd.f32 %v7626, %v7372
      %v7659 = vadd.f32 %v7627, %v7372
      %v7660 = vadd.f32 %v7628, %v7372
      %v7661 = vadd.f32 %v7629, %v7372
      %v7662 = vadd.f32 %v7630, %v7372
      %v7663 = vpack.c.bf16 %v7631, %v7631
      %v7664 = vpack.c.bf16 %v7632, %v7632
      %v7665 = vpack.c.bf16 %v7633, %v7633
      %v7666 = vpack.c.bf16 %v7634, %v7634
      %v7667 = vpack.c.bf16 %v7635, %v7635
      %v7668 = vpack.c.bf16 %v7636, %v7636
      %v7669 = vpack.c.bf16 %v7637, %v7637
      %v7670 = vpack.c.bf16 %v7638, %v7638
      %v7671 = vpack.c.bf16 %v7639, %v7639
      %v7672 = vpack.c.bf16 %v7640, %v7640
      %v7673 = vpack.c.bf16 %v7641, %v7641
      %v7674 = vpack.c.bf16 %v7642, %v7642
      %v7675 = vpack.c.bf16 %v7643, %v7643
      %v7676 = vpack.c.bf16 %v7644, %v7644
      %v7677 = vpack.c.bf16 %v7645, %v7645
      %v7678 = vpack.c.bf16 %v7646, %v7646
      %v7679 = vpack.c.bf16 %v7647, %v7647
      %v7680 = vpack.c.bf16 %v7648, %v7648
      %v7681 = vpack.c.bf16 %v7649, %v7649
      %v7682 = vpack.c.bf16 %v7650, %v7650
      %v7683 = vpack.c.bf16 %v7651, %v7651
      %v7684 = vpack.c.bf16 %v7652, %v7652
      %v7685 = vpack.c.bf16 %v7653, %v7653
      %v7686 = vpack.c.bf16 %v7654, %v7654
      %v7687 = vpack.c.bf16 %v7655, %v7655
      %v7688 = vpack.c.bf16 %v7656, %v7656
      %v7689 = vpack.c.bf16 %v7657, %v7657
      %v7690 = vpack.c.bf16 %v7658, %v7658
      %v7691 = vpack.c.bf16 %v7659, %v7659
      %v7692 = vpack.c.bf16 %v7660, %v7660
      %v7693 = vpack.c.bf16 %v7661, %v7661
      %v7694 = vpack.c.bf16 %v7662, %v7662
      %7695 = vst.msk [vmem:[#allocation2 + $0x4] sm:$0xf] %vm7438, %v7663
      %7696 = vst.msk [vmem:[#allocation2 + $0x18] sm:$0xf] %vm7438, %v7664
      %7697 = vst.msk [vmem:[#allocation2 + $0x2c] sm:$0xf] %vm7438, %v7665
      %7698 = vst.msk [vmem:[#allocation2 + $0x40] sm:$0xf] %vm7438, %v7666
      %7699 = vst.msk [vmem:[#allocation2 + $0x54] sm:$0xf] %vm7438, %v7667
      %7700 = vst.msk [vmem:[#allocation2 + $0x68] sm:$0xf] %vm7438, %v7668
      %7701 = vst.msk [vmem:[#allocation2 + $0x7c] sm:$0xf] %vm7438, %v7669
      %7702 = vst.msk [vmem:[#allocation2 + $0x90] sm:$0xf] %vm7438, %v7670
      %7703 = vst.msk [vmem:[#allocation2 + $0xa4] sm:$0xf] %vm7438, %v7671
      %7704 = vst.msk [vmem:[#allocation2 + $0xb8] sm:$0xf] %vm7438, %v7672
      %7705 = vst.msk [vmem:[#allocation2 + $0xcc] sm:$0xf] %vm7438, %v7673
      %7706 = vst.msk [vmem:[#allocation2 + $0xe0] sm:$0xf] %vm7438, %v7674
      %7707 = vst.msk [vmem:[#allocation2 + $0xf4] sm:$0xf] %vm7438, %v7675
      %7708 = vst.msk [vmem:[#allocation2 + $0x108] sm:$0xf] %vm7438, %v7676
      %7709 = vst.msk [vmem:[#allocation2 + $0x11c] sm:$0xf] %vm7438, %v7677
      %7710 = vst.msk [vmem:[#allocation2 + $0x130] sm:$0xf] %vm7438, %v7678
      %7711 = vst.msk [vmem:[#allocation2 + $0x144] sm:$0xf] %vm7438, %v7679
      %7712 = vst.msk [vmem:[#allocation2 + $0x158] sm:$0xf] %vm7438, %v7680
      %7713 = vst.msk [vmem:[#allocation2 + $0x16c] sm:$0xf] %vm7438, %v7681
      %7714 = vst.msk [vmem:[#allocation2 + $0x180] sm:$0xf] %vm7438, %v7682
      %7715 = vst.msk [vmem:[#allocation2 + $0x194] sm:$0xf] %vm7438, %v7683
      %7716 = vst.msk [vmem:[#allocation2 + $0x1a8] sm:$0xf] %vm7438, %v7684
      %7717 = vst.msk [vmem:[#allocation2 + $0x1bc] sm:$0xf] %vm7438, %v7685
      %7718 = vst.msk [vmem:[#allocation2 + $0x1d0] sm:$0xf] %vm7438, %v7686
      %7719 = vst.msk [vmem:[#allocation2 + $0x1e4] sm:$0xf] %vm7438, %v7687
      %7720 = vst.msk [vmem:[#allocation2 + $0x1f8] sm:$0xf] %vm7438, %v7688
      %7721 = vst.msk [vmem:[#allocation2 + $0x20c] sm:$0xf] %vm7438, %v7689
      %7722 = vst.msk [vmem:[#allocation2 + $0x220] sm:$0xf] %vm7438, %v7690
      %7723 = vst.msk [vmem:[#allocation2 + $0x234] sm:$0xf] %vm7438, %v7691
      %7724 = vst.msk [vmem:[#allocation2 + $0x248] sm:$0xf] %vm7438, %v7692
      %7725 = vst.msk [vmem:[#allocation2 + $0x25c] sm:$0xf] %vm7438, %v7693
      %7726 = vst.msk [vmem:[#allocation2 + $0x270] sm:$0xf] %vm7438, %v7694
      %7727 = vset.pattern.permute.xlu0 2
      %7728 = vperm.xlu0 %7727, %v6712
      %v7729 = vpop.permute.xlu0 %7728
      %7731 = vset.pattern.permute.xlu0 2
      %7732 = vperm.xlu0 %7731, %v6727
      %v7733 = vpop.permute.xlu0 %7732
      %7735 = vset.pattern.permute.xlu0 2
      %7736 = vperm.xlu0 %7735, %v6742
      %v7737 = vpop.permute.xlu0 %7736
      %7739 = vset.pattern.permute.xlu0 2
      %7740 = vperm.xlu0 %7739, %v6757
      %v7741 = vpop.permute.xlu0 %7740
      %7743 = vset.pattern.permute.xlu0 2
      %7744 = vperm.xlu0 %7743, %v6772
      %v7745 = vpop.permute.xlu0 %7744
      %7747 = vset.pattern.permute.xlu0 2
      %7748 = vperm.xlu0 %7747, %v6787
      %v7749 = vpop.permute.xlu0 %7748
      %7751 = vset.pattern.permute.xlu0 2
      %7752 = vperm.xlu0 %7751, %v6802
      %v7753 = vpop.permute.xlu0 %7752
      %7755 = vset.pattern.permute.xlu0 2
      %7756 = vperm.xlu0 %7755, %v6817
      %v7757 = vpop.permute.xlu0 %7756
      %7759 = vset.pattern.permute.xlu0 2
      %7760 = vperm.xlu0 %7759, %v6832
      %v7761 = vpop.permute.xlu0 %7760
      %7763 = vset.pattern.permute.xlu0 2
      %7764 = vperm.xlu0 %7763, %v6847
      %v7765 = vpop.permute.xlu0 %7764
      %7767 = vset.pattern.permute.xlu0 2
      %7768 = vperm.xlu0 %7767, %v6862
      %v7769 = vpop.permute.xlu0 %7768
      %7771 = vset.pattern.permute.xlu0 2
      %7772 = vperm.xlu0 %7771, %v6877
      %v7773 = vpop.permute.xlu0 %7772
      %7775 = vset.pattern.permute.xlu0 2
      %7776 = vperm.xlu0 %7775, %v6892
      %v7777 = vpop.permute.xlu0 %7776
      %7779 = vset.pattern.permute.xlu0 2
      %7780 = vperm.xlu0 %7779, %v6907
      %v7781 = vpop.permute.xlu0 %7780
      %7783 = vset.pattern.permute.xlu0 2
      %7784 = vperm.xlu0 %7783, %v6922
      %v7785 = vpop.permute.xlu0 %7784
      %7787 = vset.pattern.permute.xlu0 2
      %7788 = vperm.xlu0 %7787, %v6937
      %v7789 = vpop.permute.xlu0 %7788
      %7791 = vset.pattern.permute.xlu0 2
      %7792 = vperm.xlu0 %7791, %v6952
      %v7793 = vpop.permute.xlu0 %7792
      %7795 = vset.pattern.permute.xlu0 2
      %7796 = vperm.xlu0 %7795, %v6967
      %v7797 = vpop.permute.xlu0 %7796
      %7799 = vset.pattern.permute.xlu0 2
      %7800 = vperm.xlu0 %7799, %v6982
      %v7801 = vpop.permute.xlu0 %7800
      %7803 = vset.pattern.permute.xlu0 2
      %7804 = vperm.xlu0 %7803, %v6997
      %v7805 = vpop.permute.xlu0 %7804
      %7807 = vset.pattern.permute.xlu0 2
      %7808 = vperm.xlu0 %7807, %v7012
      %v7809 = vpop.permute.xlu0 %7808
      %7811 = vset.pattern.permute.xlu0 2
      %7812 = vperm.xlu0 %7811, %v7027
      %v7813 = vpop.permute.xlu0 %7812
      %7815 = vset.pattern.permute.xlu0 2
      %7816 = vperm.xlu0 %7815, %v7042
      %v7817 = vpop.permute.xlu0 %7816
      %7819 = vset.pattern.permute.xlu0 2
      %7820 = vperm.xlu0 %7819, %v7057
      %v7821 = vpop.permute.xlu0 %7820
      %7823 = vset.pattern.permute.xlu0 2
      %7824 = vperm.xlu0 %7823, %v7072
      %v7825 = vpop.permute.xlu0 %7824
      %7827 = vset.pattern.permute.xlu0 2
      %7828 = vperm.xlu0 %7827, %v7087
      %v7829 = vpop.permute.xlu0 %7828
      %7831 = vset.pattern.permute.xlu0 2
      %7832 = vperm.xlu0 %7831, %v7102
      %v7833 = vpop.permute.xlu0 %7832
      %7835 = vset.pattern.permute.xlu0 2
      %7836 = vperm.xlu0 %7835, %v7117
      %v7837 = vpop.permute.xlu0 %7836
      %7839 = vset.pattern.permute.xlu0 2
      %7840 = vperm.xlu0 %7839, %v7132
      %v7841 = vpop.permute.xlu0 %7840
      %7843 = vset.pattern.permute.xlu0 2
      %7844 = vperm.xlu0 %7843, %v7147
      %v7845 = vpop.permute.xlu0 %7844
      %7847 = vset.pattern.permute.xlu0 2
      %7848 = vperm.xlu0 %7847, %v7162
      %v7849 = vpop.permute.xlu0 %7848
      %7851 = vset.pattern.permute.xlu0 2
      %7852 = vperm.xlu0 %7851, %v7177
      %v7853 = vpop.permute.xlu0 %7852
      %v7855 = vmul.f32 %v7729, %v3966
      %v7856 = vmul.f32 %v7733, %v3968
      %v7857 = vmul.f32 %v7737, %v3971
      %v7858 = vmul.f32 %v7741, %v3973
      %v7859 = vmul.f32 %v7745, %v3976
      %v7860 = vmul.f32 %v7749, %v3978
      %v7861 = vmul.f32 %v7753, %v3981
      %v7862 = vmul.f32 %v7757, %v3983
      %v7863 = vmul.f32 %v7761, %v3986
      %v7864 = vmul.f32 %v7765, %v3988
      %v7865 = vmul.f32 %v7769, %v3991
      %v7866 = vmul.f32 %v7773, %v3993
      %v7867 = vmul.f32 %v7777, %v3996
      %v7868 = vmul.f32 %v7781, %v3998
      %v7869 = vmul.f32 %v7785, %v4001
      %v7870 = vmul.f32 %v7789, %v4003
      %v7871 = vmul.f32 %v7793, %v4006
      %v7872 = vmul.f32 %v7797, %v4008
      %v7873 = vmul.f32 %v7801, %v4011
      %v7874 = vmul.f32 %v7805, %v4013
      %v7875 = vmul.f32 %v7809, %v4016
      %v7876 = vmul.f32 %v7813, %v4018
      %v7877 = vmul.f32 %v7817, %v4021
      %v7878 = vmul.f32 %v7821, %v4023
      %v7879 = vmul.f32 %v7825, %v4026
      %v7880 = vmul.f32 %v7829, %v4028
      %v7881 = vmul.f32 %v7833, %v4031
      %v7882 = vmul.f32 %v7837, %v4033
      %v7883 = vmul.f32 %v7841, %v4036
      %v7884 = vmul.f32 %v7845, %v4038
      %v7885 = vmul.f32 %v7849, %v4041
      %v7886 = vmul.f32 %v7853, %v4043
      %v7887 = vadd.f32 %v7855, %v7372
      %v7888 = vadd.f32 %v7856, %v7372
      %v7889 = vadd.f32 %v7857, %v7372
      %v7890 = vadd.f32 %v7858, %v7372
      %v7891 = vadd.f32 %v7859, %v7372
      %v7892 = vadd.f32 %v7860, %v7372
      %v7893 = vadd.f32 %v7861, %v7372
      %v7894 = vadd.f32 %v7862, %v7372
      %v7895 = vadd.f32 %v7863, %v7372
      %v7896 = vadd.f32 %v7864, %v7372
      %v7897 = vadd.f32 %v7865, %v7372
      %v7898 = vadd.f32 %v7866, %v7372
      %v7899 = vadd.f32 %v7867, %v7372
      %v7900 = vadd.f32 %v7868, %v7372
      %v7901 = vadd.f32 %v7869, %v7372
      %v7902 = vadd.f32 %v7870, %v7372
      %v7903 = vadd.f32 %v7871, %v7372
      %v7904 = vadd.f32 %v7872, %v7372
      %v7905 = vadd.f32 %v7873, %v7372
      %v7906 = vadd.f32 %v7874, %v7372
      %v7907 = vadd.f32 %v7875, %v7372
      %v7908 = vadd.f32 %v7876, %v7372
      %v7909 = vadd.f32 %v7877, %v7372
      %v7910 = vadd.f32 %v7878, %v7372
      %v7911 = vadd.f32 %v7879, %v7372
      %v7912 = vadd.f32 %v7880, %v7372
      %v7913 = vadd.f32 %v7881, %v7372
      %v7914 = vadd.f32 %v7882, %v7372
      %v7915 = vadd.f32 %v7883, %v7372
      %v7916 = vadd.f32 %v7884, %v7372
      %v7917 = vadd.f32 %v7885, %v7372
      %v7918 = vadd.f32 %v7886, %v7372
      %v7919 = vpack.c.bf16 %v7887, %v7887
      %v7920 = vpack.c.bf16 %v7888, %v7888
      %v7921 = vpack.c.bf16 %v7889, %v7889
      %v7922 = vpack.c.bf16 %v7890, %v7890
      %v7923 = vpack.c.bf16 %v7891, %v7891
      %v7924 = vpack.c.bf16 %v7892, %v7892
      %v7925 = vpack.c.bf16 %v7893, %v7893
      %v7926 = vpack.c.bf16 %v7894, %v7894
      %v7927 = vpack.c.bf16 %v7895, %v7895
      %v7928 = vpack.c.bf16 %v7896, %v7896
      %v7929 = vpack.c.bf16 %v7897, %v7897
      %v7930 = vpack.c.bf16 %v7898, %v7898
      %v7931 = vpack.c.bf16 %v7899, %v7899
      %v7932 = vpack.c.bf16 %v7900, %v7900
      %v7933 = vpack.c.bf16 %v7901, %v7901
      %v7934 = vpack.c.bf16 %v7902, %v7902
      %v7935 = vpack.c.bf16 %v7903, %v7903
      %v7936 = vpack.c.bf16 %v7904, %v7904
      %v7937 = vpack.c.bf16 %v7905, %v7905
      %v7938 = vpack.c.bf16 %v7906, %v7906
      %v7939 = vpack.c.bf16 %v7907, %v7907
      %v7940 = vpack.c.bf16 %v7908, %v7908
      %v7941 = vpack.c.bf16 %v7909, %v7909
      %v7942 = vpack.c.bf16 %v7910, %v7910
      %v7943 = vpack.c.bf16 %v7911, %v7911
      %v7944 = vpack.c.bf16 %v7912, %v7912
      %v7945 = vpack.c.bf16 %v7913, %v7913
      %v7946 = vpack.c.bf16 %v7914, %v7914
      %v7947 = vpack.c.bf16 %v7915, %v7915
      %v7948 = vpack.c.bf16 %v7916, %v7916
      %v7949 = vpack.c.bf16 %v7917, %v7917
      %v7950 = vpack.c.bf16 %v7918, %v7918
      %7951 = vst.msk [vmem:[#allocation2 + $0x8] sm:$0xf] %vm7438, %v7919
      %7952 = vst.msk [vmem:[#allocation2 + $0x1c] sm:$0xf] %vm7438, %v7920
      %7953 = vst.msk [vmem:[#allocation2 + $0x30] sm:$0xf] %vm7438, %v7921
      %7954 = vst.msk [vmem:[#allocation2 + $0x44] sm:$0xf] %vm7438, %v7922
      %7955 = vst.msk [vmem:[#allocation2 + $0x58] sm:$0xf] %vm7438, %v7923
      %7956 = vst.msk [vmem:[#allocation2 + $0x6c] sm:$0xf] %vm7438, %v7924
      %7957 = vst.msk [vmem:[#allocation2 + $0x80] sm:$0xf] %vm7438, %v7925
      %7958 = vst.msk [vmem:[#allocation2 + $0x94] sm:$0xf] %vm7438, %v7926
      %7959 = vst.msk [vmem:[#allocation2 + $0xa8] sm:$0xf] %vm7438, %v7927
      %7960 = vst.msk [vmem:[#allocation2 + $0xbc] sm:$0xf] %vm7438, %v7928
      %7961 = vst.msk [vmem:[#allocation2 + $0xd0] sm:$0xf] %vm7438, %v7929
      %7962 = vst.msk [vmem:[#allocation2 + $0xe4] sm:$0xf] %vm7438, %v7930
      %7963 = vst.msk [vmem:[#allocation2 + $0xf8] sm:$0xf] %vm7438, %v7931
      %7964 = vst.msk [vmem:[#allocation2 + $0x10c] sm:$0xf] %vm7438, %v7932
      %7965 = vst.msk [vmem:[#allocation2 + $0x120] sm:$0xf] %vm7438, %v7933
      %7966 = vst.msk [vmem:[#allocation2 + $0x134] sm:$0xf] %vm7438, %v7934
      %7967 = vst.msk [vmem:[#allocation2 + $0x148] sm:$0xf] %vm7438, %v7935
      %7968 = vst.msk [vmem:[#allocation2 + $0x15c] sm:$0xf] %vm7438, %v7936
      %7969 = vst.msk [vmem:[#allocation2 + $0x170] sm:$0xf] %vm7438, %v7937
      %7970 = vst.msk [vmem:[#allocation2 + $0x184] sm:$0xf] %vm7438, %v7938
      %7971 = vst.msk [vmem:[#allocation2 + $0x198] sm:$0xf] %vm7438, %v7939
      %7972 = vst.msk [vmem:[#allocation2 + $0x1ac] sm:$0xf] %vm7438, %v7940
      %7973 = vst.msk [vmem:[#allocation2 + $0x1c0] sm:$0xf] %vm7438, %v7941
      %7974 = vst.msk [vmem:[#allocation2 + $0x1d4] sm:$0xf] %vm7438, %v7942
      %7975 = vst.msk [vmem:[#allocation2 + $0x1e8] sm:$0xf] %vm7438, %v7943
      %7976 = vst.msk [vmem:[#allocation2 + $0x1fc] sm:$0xf] %vm7438, %v7944
      %7977 = vst.msk [vmem:[#allocation2 + $0x210] sm:$0xf] %vm7438, %v7945
      %7978 = vst.msk [vmem:[#allocation2 + $0x224] sm:$0xf] %vm7438, %v7946
      %7979 = vst.msk [vmem:[#allocation2 + $0x238] sm:$0xf] %vm7438, %v7947
      %7980 = vst.msk [vmem:[#allocation2 + $0x24c] sm:$0xf] %vm7438, %v7948
      %7981 = vst.msk [vmem:[#allocation2 + $0x260] sm:$0xf] %vm7438, %v7949
      %7982 = vst.msk [vmem:[#allocation2 + $0x274] sm:$0xf] %vm7438, %v7950
      %7983 = vset.pattern.permute.xlu0 3
      %7984 = vperm.xlu0 %7983, %v6712
      %v7985 = vpop.permute.xlu0 %7984
      %7987 = vset.pattern.permute.xlu0 3
      %7988 = vperm.xlu0 %7987, %v6727
      %v7989 = vpop.permute.xlu0 %7988
      %7991 = vset.pattern.permute.xlu0 3
      %7992 = vperm.xlu0 %7991, %v6742
      %v7993 = vpop.permute.xlu0 %7992
      %7995 = vset.pattern.permute.xlu0 3
      %7996 = vperm.xlu0 %7995, %v6757
      %v7997 = vpop.permute.xlu0 %7996
      %7999 = vset.pattern.permute.xlu0 3
      %8000 = vperm.xlu0 %7999, %v6772
      %v8001 = vpop.permute.xlu0 %8000
      %8003 = vset.pattern.permute.xlu0 3
      %8004 = vperm.xlu0 %8003, %v6787
      %v8005 = vpop.permute.xlu0 %8004
      %8007 = vset.pattern.permute.xlu0 3
      %8008 = vperm.xlu0 %8007, %v6802
      %v8009 = vpop.permute.xlu0 %8008
      %8011 = vset.pattern.permute.xlu0 3
      %8012 = vperm.xlu0 %8011, %v6817
      %v8013 = vpop.permute.xlu0 %8012
      %8015 = vset.pattern.permute.xlu0 3
      %8016 = vperm.xlu0 %8015, %v6832
      %v8017 = vpop.permute.xlu0 %8016
      %8019 = vset.pattern.permute.xlu0 3
      %8020 = vperm.xlu0 %8019, %v6847
      %v8021 = vpop.permute.xlu0 %8020
      %8023 = vset.pattern.permute.xlu0 3
      %8024 = vperm.xlu0 %8023, %v6862
      %v8025 = vpop.permute.xlu0 %8024
      %8027 = vset.pattern.permute.xlu0 3
      %8028 = vperm.xlu0 %8027, %v6877
      %v8029 = vpop.permute.xlu0 %8028
      %8031 = vset.pattern.permute.xlu0 3
      %8032 = vperm.xlu0 %8031, %v6892
      %v8033 = vpop.permute.xlu0 %8032
      %8035 = vset.pattern.permute.xlu0 3
      %8036 = vperm.xlu0 %8035, %v6907
      %v8037 = vpop.permute.xlu0 %8036
      %8039 = vset.pattern.permute.xlu0 3
      %8040 = vperm.xlu0 %8039, %v6922
      %v8041 = vpop.permute.xlu0 %8040
      %8043 = vset.pattern.permute.xlu0 3
      %8044 = vperm.xlu0 %8043, %v6937
      %v8045 = vpop.permute.xlu0 %8044
      %8047 = vset.pattern.permute.xlu0 3
      %8048 = vperm.xlu0 %8047, %v6952
      %v8049 = vpop.permute.xlu0 %8048
      %8051 = vset.pattern.permute.xlu0 3
      %8052 = vperm.xlu0 %8051, %v6967
      %v8053 = vpop.permute.xlu0 %8052
      %8055 = vset.pattern.permute.xlu0 3
      %8056 = vperm.xlu0 %8055, %v6982
      %v8057 = vpop.permute.xlu0 %8056
      %8059 = vset.pattern.permute.xlu0 3
      %8060 = vperm.xlu0 %8059, %v6997
      %v8061 = vpop.permute.xlu0 %8060
      %8063 = vset.pattern.permute.xlu0 3
      %8064 = vperm.xlu0 %8063, %v7012
      %v8065 = vpop.permute.xlu0 %8064
      %8067 = vset.pattern.permute.xlu0 3
      %8068 = vperm.xlu0 %8067, %v7027
      %v8069 = vpop.permute.xlu0 %8068
      %8071 = vset.pattern.permute.xlu0 3
      %8072 = vperm.xlu0 %8071, %v7042
      %v8073 = vpop.permute.xlu0 %8072
      %8075 = vset.pattern.permute.xlu0 3
      %8076 = vperm.xlu0 %8075, %v7057
      %v8077 = vpop.permute.xlu0 %8076
      %8079 = vset.pattern.permute.xlu0 3
      %8080 = vperm.xlu0 %8079, %v7072
      %v8081 = vpop.permute.xlu0 %8080
      %8083 = vset.pattern.permute.xlu0 3
      %8084 = vperm.xlu0 %8083, %v7087
      %v8085 = vpop.permute.xlu0 %8084
      %8087 = vset.pattern.permute.xlu0 3
      %8088 = vperm.xlu0 %8087, %v7102
      %v8089 = vpop.permute.xlu0 %8088
      %8091 = vset.pattern.permute.xlu0 3
      %8092 = vperm.xlu0 %8091, %v7117
      %v8093 = vpop.permute.xlu0 %8092
      %8095 = vset.pattern.permute.xlu0 3
      %8096 = vperm.xlu0 %8095, %v7132
      %v8097 = vpop.permute.xlu0 %8096
      %8099 = vset.pattern.permute.xlu0 3
      %8100 = vperm.xlu0 %8099, %v7147
      %v8101 = vpop.permute.xlu0 %8100
      %8103 = vset.pattern.permute.xlu0 3
      %8104 = vperm.xlu0 %8103, %v7162
      %v8105 = vpop.permute.xlu0 %8104
      %8107 = vset.pattern.permute.xlu0 3
      %8108 = vperm.xlu0 %8107, %v7177
      %v8109 = vpop.permute.xlu0 %8108
      %v8111 = vmul.f32 %v7985, %v4772
      %v8112 = vmul.f32 %v7989, %v4774
      %v8113 = vmul.f32 %v7993, %v4777
      %v8114 = vmul.f32 %v7997, %v4779
      %v8115 = vmul.f32 %v8001, %v4782
      %v8116 = vmul.f32 %v8005, %v4784
      %v8117 = vmul.f32 %v8009, %v4787
      %v8118 = vmul.f32 %v8013, %v4789
      %v8119 = vmul.f32 %v8017, %v4792
      %v8120 = vmul.f32 %v8021, %v4794
      %v8121 = vmul.f32 %v8025, %v4797
      %v8122 = vmul.f32 %v8029, %v4799
      %v8123 = vmul.f32 %v8033, %v4802
      %v8124 = vmul.f32 %v8037, %v4804
      %v8125 = vmul.f32 %v8041, %v4807
      %v8126 = vmul.f32 %v8045, %v4809
      %v8127 = vmul.f32 %v8049, %v4812
      %v8128 = vmul.f32 %v8053, %v4814
      %v8129 = vmul.f32 %v8057, %v4817
      %v8130 = vmul.f32 %v8061, %v4819
      %v8131 = vmul.f32 %v8065, %v4822
      %v8132 = vmul.f32 %v8069, %v4824
      %v8133 = vmul.f32 %v8073, %v4827
      %v8134 = vmul.f32 %v8077, %v4829
      %v8135 = vmul.f32 %v8081, %v4832
      %v8136 = vmul.f32 %v8085, %v4834
      %v8137 = vmul.f32 %v8089, %v4837
      %v8138 = vmul.f32 %v8093, %v4839
      %v8139 = vmul.f32 %v8097, %v4842
      %v8140 = vmul.f32 %v8101, %v4844
      %v8141 = vmul.f32 %v8105, %v4847
      %v8142 = vmul.f32 %v8109, %v4849
      %v8143 = vadd.f32 %v8111, %v7372
      %v8144 = vadd.f32 %v8112, %v7372
      %v8145 = vadd.f32 %v8113, %v7372
      %v8146 = vadd.f32 %v8114, %v7372
      %v8147 = vadd.f32 %v8115, %v7372
      %v8148 = vadd.f32 %v8116, %v7372
      %v8149 = vadd.f32 %v8117, %v7372
      %v8150 = vadd.f32 %v8118, %v7372
      %v8151 = vadd.f32 %v8119, %v7372
      %v8152 = vadd.f32 %v8120, %v7372
      %v8153 = vadd.f32 %v8121, %v7372
      %v8154 = vadd.f32 %v8122, %v7372
      %v8155 = vadd.f32 %v8123, %v7372
      %v8156 = vadd.f32 %v8124, %v7372
      %v8157 = vadd.f32 %v8125, %v7372
      %v8158 = vadd.f32 %v8126, %v7372
      %v8159 = vadd.f32 %v8127, %v7372
      %v8160 = vadd.f32 %v8128, %v7372
      %v8161 = vadd.f32 %v8129, %v7372
      %v8162 = vadd.f32 %v8130, %v7372
      %v8163 = vadd.f32 %v8131, %v7372
      %v8164 = vadd.f32 %v8132, %v7372
      %v8165 = vadd.f32 %v8133, %v7372
      %v8166 = vadd.f32 %v8134, %v7372
      %v8167 = vadd.f32 %v8135, %v7372
      %v8168 = vadd.f32 %v8136, %v7372
      %v8169 = vadd.f32 %v8137, %v7372
      %v8170 = vadd.f32 %v8138, %v7372
      %v8171 = vadd.f32 %v8139, %v7372
      %v8172 = vadd.f32 %v8140, %v7372
      %v8173 = vadd.f32 %v8141, %v7372
      %v8174 = vadd.f32 %v8142, %v7372
      %v8175 = vpack.c.bf16 %v8143, %v8143
      %v8176 = vpack.c.bf16 %v8144, %v8144
      %v8177 = vpack.c.bf16 %v8145, %v8145
      %v8178 = vpack.c.bf16 %v8146, %v8146
      %v8179 = vpack.c.bf16 %v8147, %v8147
      %v8180 = vpack.c.bf16 %v8148, %v8148
      %v8181 = vpack.c.bf16 %v8149, %v8149
      %v8182 = vpack.c.bf16 %v8150, %v8150
      %v8183 = vpack.c.bf16 %v8151, %v8151
      %v8184 = vpack.c.bf16 %v8152, %v8152
      %v8185 = vpack.c.bf16 %v8153, %v8153
      %v8186 = vpack.c.bf16 %v8154, %v8154
      %v8187 = vpack.c.bf16 %v8155, %v8155
      %v8188 = vpack.c.bf16 %v8156, %v8156
      %v8189 = vpack.c.bf16 %v8157, %v8157
      %v8190 = vpack.c.bf16 %v8158, %v8158
      %v8191 = vpack.c.bf16 %v8159, %v8159
      %v8192 = vpack.c.bf16 %v8160, %v8160
      %v8193 = vpack.c.bf16 %v8161, %v8161
      %v8194 = vpack.c.bf16 %v8162, %v8162
      %v8195 = vpack.c.bf16 %v8163, %v8163
      %v8196 = vpack.c.bf16 %v8164, %v8164
      %v8197 = vpack.c.bf16 %v8165, %v8165
      %v8198 = vpack.c.bf16 %v8166, %v8166
      %v8199 = vpack.c.bf16 %v8167, %v8167
      %v8200 = vpack.c.bf16 %v8168, %v8168
      %v8201 = vpack.c.bf16 %v8169, %v8169
      %v8202 = vpack.c.bf16 %v8170, %v8170
      %v8203 = vpack.c.bf16 %v8171, %v8171
      %v8204 = vpack.c.bf16 %v8172, %v8172
      %v8205 = vpack.c.bf16 %v8173, %v8173
      %v8206 = vpack.c.bf16 %v8174, %v8174
      %8207 = vst.msk [vmem:[#allocation2 + $0xc] sm:$0xf] %vm7438, %v8175
      %8208 = vst.msk [vmem:[#allocation2 + $0x20] sm:$0xf] %vm7438, %v8176
      %8209 = vst.msk [vmem:[#allocation2 + $0x34] sm:$0xf] %vm7438, %v8177
      %8210 = vst.msk [vmem:[#allocation2 + $0x48] sm:$0xf] %vm7438, %v8178
      %8211 = vst.msk [vmem:[#allocation2 + $0x5c] sm:$0xf] %vm7438, %v8179
      %8212 = vst.msk [vmem:[#allocation2 + $0x70] sm:$0xf] %vm7438, %v8180
      %8213 = vst.msk [vmem:[#allocation2 + $0x84] sm:$0xf] %vm7438, %v8181
      %8214 = vst.msk [vmem:[#allocation2 + $0x98] sm:$0xf] %vm7438, %v8182
      %8215 = vst.msk [vmem:[#allocation2 + $0xac] sm:$0xf] %vm7438, %v8183
      %8216 = vst.msk [vmem:[#allocation2 + $0xc0] sm:$0xf] %vm7438, %v8184
      %8217 = vst.msk [vmem:[#allocation2 + $0xd4] sm:$0xf] %vm7438, %v8185
      %8218 = vst.msk [vmem:[#allocation2 + $0xe8] sm:$0xf] %vm7438, %v8186
      %8219 = vst.msk [vmem:[#allocation2 + $0xfc] sm:$0xf] %vm7438, %v8187
      %8220 = vst.msk [vmem:[#allocation2 + $0x110] sm:$0xf] %vm7438, %v8188
      %8221 = vst.msk [vmem:[#allocation2 + $0x124] sm:$0xf] %vm7438, %v8189
      %8222 = vst.msk [vmem:[#allocation2 + $0x138] sm:$0xf] %vm7438, %v8190
      %8223 = vst.msk [vmem:[#allocation2 + $0x14c] sm:$0xf] %vm7438, %v8191
      %8224 = vst.msk [vmem:[#allocation2 + $0x160] sm:$0xf] %vm7438, %v8192
      %8225 = vst.msk [vmem:[#allocation2 + $0x174] sm:$0xf] %vm7438, %v8193
      %8226 = vst.msk [vmem:[#allocation2 + $0x188] sm:$0xf] %vm7438, %v8194
      %8227 = vst.msk [vmem:[#allocation2 + $0x19c] sm:$0xf] %vm7438, %v8195
      %8228 = vst.msk [vmem:[#allocation2 + $0x1b0] sm:$0xf] %vm7438, %v8196
      %8229 = vst.msk [vmem:[#allocation2 + $0x1c4] sm:$0xf] %vm7438, %v8197
      %8230 = vst.msk [vmem:[#allocation2 + $0x1d8] sm:$0xf] %vm7438, %v8198
      %8231 = vst.msk [vmem:[#allocation2 + $0x1ec] sm:$0xf] %vm7438, %v8199
      %8232 = vst.msk [vmem:[#allocation2 + $0x200] sm:$0xf] %vm7438, %v8200
      %8233 = vst.msk [vmem:[#allocation2 + $0x214] sm:$0xf] %vm7438, %v8201
      %8234 = vst.msk [vmem:[#allocation2 + $0x228] sm:$0xf] %vm7438, %v8202
      %8235 = vst.msk [vmem:[#allocation2 + $0x23c] sm:$0xf] %vm7438, %v8203
      %8236 = vst.msk [vmem:[#allocation2 + $0x250] sm:$0xf] %vm7438, %v8204
      %8237 = vst.msk [vmem:[#allocation2 + $0x264] sm:$0xf] %vm7438, %v8205
      %8238 = vst.msk [vmem:[#allocation2 + $0x278] sm:$0xf] %vm7438, %v8206
      %8239 = vst.msk [vmem:[#allocation2 + $0x10] sm:$0xf] %vm7438, %v416
      %8240 = vst.msk [vmem:[#allocation2 + $0x24] sm:$0xf] %vm7438, %v417
      %8241 = vst.msk [vmem:[#allocation2 + $0x38] sm:$0xf] %vm7438, %v418
      %8242 = vst.msk [vmem:[#allocation2 + $0x4c] sm:$0xf] %vm7438, %v419
      %8243 = vst.msk [vmem:[#allocation2 + $0x60] sm:$0xf] %vm7438, %v420
      %8244 = vst.msk [vmem:[#allocation2 + $0x74] sm:$0xf] %vm7438, %v421
      %8245 = vst.msk [vmem:[#allocation2 + $0x88] sm:$0xf] %vm7438, %v422
      %8246 = vst.msk [vmem:[#allocation2 + $0x9c] sm:$0xf] %vm7438, %v423
      %8247 = vst.msk [vmem:[#allocation2 + $0xb0] sm:$0xf] %vm7438, %v424
      %8248 = vst.msk [vmem:[#allocation2 + $0xc4] sm:$0xf] %vm7438, %v425
      %8249 = vst.msk [vmem:[#allocation2 + $0xd8] sm:$0xf] %vm7438, %v426
      %8250 = vst.msk [vmem:[#allocation2 + $0xec] sm:$0xf] %vm7438, %v427
      %8251 = vst.msk [vmem:[#allocation2 + $0x100] sm:$0xf] %vm7438, %v428
      %8252 = vst.msk [vmem:[#allocation2 + $0x114] sm:$0xf] %vm7438, %v429
      %8253 = vst.msk [vmem:[#allocation2 + $0x128] sm:$0xf] %vm7438, %v430
      %8254 = vst.msk [vmem:[#allocation2 + $0x13c] sm:$0xf] %vm7438, %v431
      %8255 = vst.msk [vmem:[#allocation2 + $0x150] sm:$0xf] %vm7438, %v432
      %8256 = vst.msk [vmem:[#allocation2 + $0x164] sm:$0xf] %vm7438, %v433
      %8257 = vst.msk [vmem:[#allocation2 + $0x178] sm:$0xf] %vm7438, %v434
      %8258 = vst.msk [vmem:[#allocation2 + $0x18c] sm:$0xf] %vm7438, %v435
      %8259 = vst.msk [vmem:[#allocation2 + $0x1a0] sm:$0xf] %vm7438, %v436
      %8260 = vst.msk [vmem:[#allocation2 + $0x1b4] sm:$0xf] %vm7438, %v437
      %8261 = vst.msk [vmem:[#allocation2 + $0x1c8] sm:$0xf] %vm7438, %v438
      %8262 = vst.msk [vmem:[#allocation2 + $0x1dc] sm:$0xf] %vm7438, %v439
      %8263 = vst.msk [vmem:[#allocation2 + $0x1f0] sm:$0xf] %vm7438, %v440
      %8264 = vst.msk [vmem:[#allocation2 + $0x204] sm:$0xf] %vm7438, %v441
      %8265 = vst.msk [vmem:[#allocation2 + $0x218] sm:$0xf] %vm7438, %v442
      %8266 = vst.msk [vmem:[#allocation2 + $0x22c] sm:$0xf] %vm7438, %v443
      %8267 = vst.msk [vmem:[#allocation2 + $0x240] sm:$0xf] %vm7438, %v444
      %8268 = vst.msk [vmem:[#allocation2 + $0x254] sm:$0xf] %vm7438, %v445
      %8269 = vst.msk [vmem:[#allocation2 + $0x268] sm:$0xf] %vm7438, %v446
      %8270 = vst.msk [vmem:[#allocation2 + $0x27c] sm:$0xf] %vm7438, %v447
      %v8271 = vld [vmem:[#allocation2] sm:$0xff]
      %v8272 = vld [vmem:[#allocation2 + $0x8] sm:$0xff]
      %v8273 = vld [vmem:[#allocation2 + $0x10] sm:$0xf]
      %v8274 = vld [vmem:[#allocation2 + $0x14] sm:$0xff]
      %v8275 = vld [vmem:[#allocation2 + $0x1c] sm:$0xff]
      %v8276 = vld [vmem:[#allocation2 + $0x24] sm:$0xf]
      %v8277 = vld [vmem:[#allocation2 + $0x28] sm:$0xff]
      %v8278 = vld [vmem:[#allocation2 + $0x30] sm:$0xff]
      %v8279 = vld [vmem:[#allocation2 + $0x38] sm:$0xf]
      %v8280 = vld [vmem:[#allocation2 + $0x3c] sm:$0xff]
      %v8281 = vld [vmem:[#allocation2 + $0x44] sm:$0xff]
      %v8282 = vld [vmem:[#allocation2 + $0x4c] sm:$0xf]
      %v8283 = vld [vmem:[#allocation2 + $0x50] sm:$0xff]
      %v8284 = vld [vmem:[#allocation2 + $0x58] sm:$0xff]
      %v8285 = vld [vmem:[#allocation2 + $0x60] sm:$0xf]
      %v8286 = vld [vmem:[#allocation2 + $0x64] sm:$0xff]
      %v8287 = vld [vmem:[#allocation2 + $0x6c] sm:$0xff]
      %v8288 = vld [vmem:[#allocation2 + $0x74] sm:$0xf]
      %v8289 = vld [vmem:[#allocation2 + $0x78] sm:$0xff]
      %v8290 = vld [vmem:[#allocation2 + $0x80] sm:$0xff]
      %v8291 = vld [vmem:[#allocation2 + $0x88] sm:$0xf]
      %v8292 = vld [vmem:[#allocation2 + $0x8c] sm:$0xff]
      %v8293 = vld [vmem:[#allocation2 + $0x94] sm:$0xff]
      %v8294 = vld [vmem:[#allocation2 + $0x9c] sm:$0xf]
      %v8295 = vld [vmem:[#allocation2 + $0xa0] sm:$0xff]
      %v8296 = vld [vmem:[#allocation2 + $0xa8] sm:$0xff]
      %v8297 = vld [vmem:[#allocation2 + $0xb0] sm:$0xf]
      %v8298 = vld [vmem:[#allocation2 + $0xb4] sm:$0xff]
      %v8299 = vld [vmem:[#allocation2 + $0xbc] sm:$0xff]
      %v8300 = vld [vmem:[#allocation2 + $0xc4] sm:$0xf]
      %v8301 = vld [vmem:[#allocation2 + $0xc8] sm:$0xff]
      %v8302 = vld [vmem:[#allocation2 + $0xd0] sm:$0xff]
      %v8303 = vld [vmem:[#allocation2 + $0xd8] sm:$0xf]
      %v8304 = vld [vmem:[#allocation2 + $0xdc] sm:$0xff]
      %v8305 = vld [vmem:[#allocation2 + $0xe4] sm:$0xff]
      %v8306 = vld [vmem:[#allocation2 + $0xec] sm:$0xf]
      %v8307 = vld [vmem:[#allocation2 + $0xf0] sm:$0xff]
      %v8308 = vld [vmem:[#allocation2 + $0xf8] sm:$0xff]
      %v8309 = vld [vmem:[#allocation2 + $0x100] sm:$0xf]
      %v8310 = vld [vmem:[#allocation2 + $0x104] sm:$0xff]
      %v8311 = vld [vmem:[#allocation2 + $0x10c] sm:$0xff]
      %v8312 = vld [vmem:[#allocation2 + $0x114] sm:$0xf]
      %v8313 = vld [vmem:[#allocation2 + $0x118] sm:$0xff]
      %v8314 = vld [vmem:[#allocation2 + $0x120] sm:$0xff]
      %v8315 = vld [vmem:[#allocation2 + $0x128] sm:$0xf]
      %v8316 = vld [vmem:[#allocation2 + $0x12c] sm:$0xff]
      %v8317 = vld [vmem:[#allocation2 + $0x134] sm:$0xff]
      %v8318 = vld [vmem:[#allocation2 + $0x13c] sm:$0xf]
      %v8319 = vld [vmem:[#allocation2 + $0x140] sm:$0xff]
      %v8320 = vld [vmem:[#allocation2 + $0x148] sm:$0xff]
      %v8321 = vld [vmem:[#allocation2 + $0x150] sm:$0xf]
      %v8322 = vld [vmem:[#allocation2 + $0x154] sm:$0xff]
      %v8323 = vld [vmem:[#allocation2 + $0x15c] sm:$0xff]
      %v8324 = vld [vmem:[#allocation2 + $0x164] sm:$0xf]
      %v8325 = vld [vmem:[#allocation2 + $0x168] sm:$0xff]
      %v8326 = vld [vmem:[#allocation2 + $0x170] sm:$0xff]
      %v8327 = vld [vmem:[#allocation2 + $0x178] sm:$0xf]
      %v8328 = vld [vmem:[#allocation2 + $0x17c] sm:$0xff]
      %v8329 = vld [vmem:[#allocation2 + $0x184] sm:$0xff]
      %v8330 = vld [vmem:[#allocation2 + $0x18c] sm:$0xf]
      %v8331 = vld [vmem:[#allocation2 + $0x190] sm:$0xff]
      %v8332 = vld [vmem:[#allocation2 + $0x198] sm:$0xff]
      %v8333 = vld [vmem:[#allocation2 + $0x1a0] sm:$0xf]
      %v8334 = vld [vmem:[#allocation2 + $0x1a4] sm:$0xff]
      %v8335 = vld [vmem:[#allocation2 + $0x1ac] sm:$0xff]
      %v8336 = vld [vmem:[#allocation2 + $0x1b4] sm:$0xf]
      %v8337 = vld [vmem:[#allocation2 + $0x1b8] sm:$0xff]
      %v8338 = vld [vmem:[#allocation2 + $0x1c0] sm:$0xff]
      %v8339 = vld [vmem:[#allocation2 + $0x1c8] sm:$0xf]
      %v8340 = vld [vmem:[#allocation2 + $0x1cc] sm:$0xff]
      %v8341 = vld [vmem:[#allocation2 + $0x1d4] sm:$0xff]
      %v8342 = vld [vmem:[#allocation2 + $0x1dc] sm:$0xf]
      %v8343 = vld [vmem:[#allocation2 + $0x1e0] sm:$0xff]
      %v8344 = vld [vmem:[#allocation2 + $0x1e8] sm:$0xff]
      %v8345 = vld [vmem:[#allocation2 + $0x1f0] sm:$0xf]
      %v8346 = vld [vmem:[#allocation2 + $0x1f4] sm:$0xff]
      %v8347 = vld [vmem:[#allocation2 + $0x1fc] sm:$0xff]
      %v8348 = vld [vmem:[#allocation2 + $0x204] sm:$0xf]
      %v8349 = vld [vmem:[#allocation2 + $0x208] sm:$0xff]
      %v8350 = vld [vmem:[#allocation2 + $0x210] sm:$0xff]
      %v8351 = vld [vmem:[#allocation2 + $0x218] sm:$0xf]
      %v8352 = vld [vmem:[#allocation2 + $0x21c] sm:$0xff]
      %v8353 = vld [vmem:[#allocation2 + $0x224] sm:$0xff]
      %v8354 = vld [vmem:[#allocation2 + $0x22c] sm:$0xf]
      %v8355 = vld [vmem:[#allocation2 + $0x230] sm:$0xff]
      %v8356 = vld [vmem:[#allocation2 + $0x238] sm:$0xff]
      %v8357 = vld [vmem:[#allocation2 + $0x240] sm:$0xf]
      %v8358 = vld [vmem:[#allocation2 + $0x244] sm:$0xff]
      %v8359 = vld [vmem:[#allocation2 + $0x24c] sm:$0xff]
      %v8360 = vld [vmem:[#allocation2 + $0x254] sm:$0xf]
      %v8361 = vld [vmem:[#allocation2 + $0x258] sm:$0xff]
      %v8362 = vld [vmem:[#allocation2 + $0x260] sm:$0xff]
      %v8363 = vld [vmem:[#allocation2 + $0x268] sm:$0xf]
      %v8364 = vld [vmem:[#allocation2 + $0x26c] sm:$0xff]
      %v8365 = vld [vmem:[#allocation2 + $0x274] sm:$0xff]
      %v8366 = vld [vmem:[#allocation2 + $0x27c] sm:$0xf]
      %v8367 = vld [vmem:[%s10] sm:$0xff]
      %v8368 = vld [vmem:[%s10 + $0x8] sm:$0xff]
      %v8369 = vld [vmem:[%s10 + $0x10] sm:$0xff]
      %v8370 = vld [vmem:[%s10 + $0x18] sm:$0xff]
      %v8371 = vld [vmem:[%s10 + $0x20] sm:$0xff]
      %v8372 = vld [vmem:[%s10 + $0x28] sm:$0xff]
      %v8373 = vld [vmem:[%s10 + $0x30] sm:$0xff]
      %v8374 = vld [vmem:[%s10 + $0x38] sm:$0xff]
      %v8375 = vld [vmem:[%s10 + $0x40] sm:$0xff]
      %v8376 = vld [vmem:[%s10 + $0x48] sm:$0xff]
      %v8377 = vld [vmem:[%s10 + $0x50] sm:$0xff]
      %v8378 = vld [vmem:[%s10 + $0x58] sm:$0xff]
      %v8379 = vld [vmem:[%s10 + $0x60] sm:$0xff]
      %v8380 = vld [vmem:[%s10 + $0x68] sm:$0xff]
      %v8381 = vld [vmem:[%s10 + $0x70] sm:$0xff]
      %v8382 = vld [vmem:[%s10 + $0x78] sm:$0xff]
      %v8383 = vld [vmem:[%s10 + $0x80] sm:$0xff]
      %v8384 = vld [vmem:[%s10 + $0x88] sm:$0xff]
      %v8385 = vld [vmem:[%s10 + $0x90] sm:$0xff]
      %v8386 = vld [vmem:[%s10 + $0x98] sm:$0xff]
      %v8387 = vld [vmem:[%s10 + $0xa0] sm:$0xff]
      %v8388 = vld [vmem:[%s10 + $0xa8] sm:$0xff]
      %v8389 = vld [vmem:[%s10 + $0xb0] sm:$0xff]
      %v8390 = vld [vmem:[%s10 + $0xb8] sm:$0xff]
      %v8391 = vld [vmem:[%s10 + $0xc0] sm:$0xff]
      %v8392 = vld [vmem:[%s10 + $0xc8] sm:$0xff]
      %v8393 = vld [vmem:[%s10 + $0xd0] sm:$0xff]
      %v8394 = vld [vmem:[%s10 + $0xd8] sm:$0xff]
      %v8395 = vld [vmem:[%s10 + $0xe0] sm:$0xff]
      %v8396 = vld [vmem:[%s10 + $0xe8] sm:$0xff]
      %v8397 = vld [vmem:[%s10 + $0xf0] sm:$0xff]
      %v8398 = vld [vmem:[%s10 + $0xf8] sm:$0xff]
      %v8399 = vld [vmem:[%s10 + $0x100] sm:$0xff]
      %v8400 = vld [vmem:[%s10 + $0x108] sm:$0xff]
      %v8401 = vld [vmem:[%s10 + $0x110] sm:$0xff]
      %v8402 = vld [vmem:[%s10 + $0x118] sm:$0xff]
      %v8403 = vld [vmem:[%s10 + $0x120] sm:$0xff]
      %v8404 = vld [vmem:[%s10 + $0x128] sm:$0xff]
      %v8405 = vld [vmem:[%s10 + $0x130] sm:$0xff]
      %v8406 = vld [vmem:[%s10 + $0x138] sm:$0xff]
      %v8407 = vld [vmem:[%s10 + $0x140] sm:$0xff]
      %v8408 = vld [vmem:[%s10 + $0x148] sm:$0xff]
      %v8409 = vld [vmem:[%s10 + $0x150] sm:$0xff]
      %v8410 = vld [vmem:[%s10 + $0x158] sm:$0xff]
      %v8411 = vld [vmem:[%s10 + $0x160] sm:$0xff]
      %v8412 = vld [vmem:[%s10 + $0x168] sm:$0xff]
      %v8413 = vld [vmem:[%s10 + $0x170] sm:$0xff]
      %v8414 = vld [vmem:[%s10 + $0x178] sm:$0xff]
      %v8415 = vld [vmem:[%s10 + $0x180] sm:$0xff]
      %v8416 = vld [vmem:[%s10 + $0x188] sm:$0xff]
      %v8417 = vld [vmem:[%s10 + $0x190] sm:$0xff]
      %v8418 = vld [vmem:[%s10 + $0x198] sm:$0xff]
      %v8419 = vld [vmem:[%s10 + $0x1a0] sm:$0xff]
      %v8420 = vld [vmem:[%s10 + $0x1a8] sm:$0xff]
      %v8421 = vld [vmem:[%s10 + $0x1b0] sm:$0xff]
      %v8422 = vld [vmem:[%s10 + $0x1b8] sm:$0xff]
      %v8423 = vld [vmem:[%s10 + $0x1c0] sm:$0xff]
      %v8424 = vld [vmem:[%s10 + $0x1c8] sm:$0xff]
      %v8425 = vld [vmem:[%s10 + $0x1d0] sm:$0xff]
      %v8426 = vld [vmem:[%s10 + $0x1d8] sm:$0xff]
      %v8427 = vld [vmem:[%s10 + $0x1e0] sm:$0xff]
      %v8428 = vld [vmem:[%s10 + $0x1e8] sm:$0xff]
      %v8429 = vld [vmem:[%s10 + $0x1f0] sm:$0xff]
      %v8430 = vld [vmem:[%s10 + $0x1f8] sm:$0xff]
      %v8431 = vld [vmem:[%s10 + $0x200] sm:$0xff]
      %v8432 = vld [vmem:[%s10 + $0x208] sm:$0xff]
      %v8433 = vld [vmem:[%s10 + $0x210] sm:$0xff]
      %v8434 = vld [vmem:[%s10 + $0x218] sm:$0xff]
      %v8435 = vld [vmem:[%s10 + $0x220] sm:$0xff]
      %v8436 = vld [vmem:[%s10 + $0x228] sm:$0xff]
      %v8437 = vld [vmem:[%s10 + $0x230] sm:$0xff]
      %v8438 = vld [vmem:[%s10 + $0x238] sm:$0xff]
      %v8439 = vld [vmem:[%s10 + $0x240] sm:$0xff]
      %v8440 = vld [vmem:[%s10 + $0x248] sm:$0xff]
      %v8441 = vld [vmem:[%s10 + $0x250] sm:$0xff]
      %v8442 = vld [vmem:[%s10 + $0x258] sm:$0xff]
      %v8443 = vld [vmem:[%s10 + $0x260] sm:$0xff]
      %v8444 = vld [vmem:[%s10 + $0x268] sm:$0xff]
      %v8445 = vld [vmem:[%s10 + $0x270] sm:$0xff]
      %v8446 = vld [vmem:[%s10 + $0x278] sm:$0xff]
      %v8447 = vld [vmem:[%s10 + $0x280] sm:$0xff]
      %v8448 = vld [vmem:[%s10 + $0x288] sm:$0xff]
      %v8449 = vld [vmem:[%s10 + $0x290] sm:$0xff]
      %v8450 = vld [vmem:[%s10 + $0x298] sm:$0xff]
      %v8451 = vld [vmem:[%s10 + $0x2a0] sm:$0xff]
      %v8452 = vld [vmem:[%s10 + $0x2a8] sm:$0xff]
      %v8453 = vld [vmem:[%s10 + $0x2b0] sm:$0xff]
      %v8454 = vld [vmem:[%s10 + $0x2b8] sm:$0xff]
      %v8455 = vld [vmem:[%s10 + $0x2c0] sm:$0xff]
      %v8456 = vld [vmem:[%s10 + $0x2c8] sm:$0xff]
      %v8457 = vld [vmem:[%s10 + $0x2d0] sm:$0xff]
      %v8458 = vld [vmem:[%s10 + $0x2d8] sm:$0xff]
      %v8459 = vld [vmem:[%s10 + $0x2e0] sm:$0xff]
      %v8460 = vld [vmem:[%s10 + $0x2e8] sm:$0xff]
      %v8461 = vld [vmem:[%s10 + $0x2f0] sm:$0xff]
      %v8462 = vld [vmem:[%s10 + $0x2f8] sm:$0xff]
      %v8463 = vld [vmem:[%s10 + $0x300] sm:$0xff]
      %v8464 = vld [vmem:[%s10 + $0x308] sm:$0xff]
      %v8465 = vld [vmem:[%s10 + $0x310] sm:$0xff]
      %v8466 = vld [vmem:[%s10 + $0x318] sm:$0xff]
      %v8467 = vld [vmem:[%s10 + $0x320] sm:$0xff]
      %v8468 = vld [vmem:[%s10 + $0x328] sm:$0xff]
      %v8469 = vld [vmem:[%s10 + $0x330] sm:$0xff]
      %v8470 = vld [vmem:[%s10 + $0x338] sm:$0xff]
      %v8471 = vld [vmem:[%s10 + $0x340] sm:$0xff]
      %v8472 = vld [vmem:[%s10 + $0x348] sm:$0xff]
      %v8473 = vld [vmem:[%s10 + $0x350] sm:$0xff]
      %v8474 = vld [vmem:[%s10 + $0x358] sm:$0xff]
      %v8475 = vld [vmem:[%s10 + $0x360] sm:$0xff]
      %v8476 = vld [vmem:[%s10 + $0x368] sm:$0xff]
      %v8477 = vld [vmem:[%s10 + $0x370] sm:$0xff]
      %v8478 = vld [vmem:[%s10 + $0x378] sm:$0xff]
      %v8479 = vld [vmem:[%s10 + $0x380] sm:$0xff]
      %v8480 = vld [vmem:[%s10 + $0x388] sm:$0xff]
      %v8481 = vld [vmem:[%s10 + $0x390] sm:$0xff]
      %v8482 = vld [vmem:[%s10 + $0x398] sm:$0xff]
      %v8483 = vld [vmem:[%s10 + $0x3a0] sm:$0xff]
      %v8484 = vld [vmem:[%s10 + $0x3a8] sm:$0xff]
      %v8485 = vld [vmem:[%s10 + $0x3b0] sm:$0xff]
      %v8486 = vld [vmem:[%s10 + $0x3b8] sm:$0xff]
      %v8487 = vld [vmem:[%s10 + $0x3c0] sm:$0xff]
      %v8488 = vld [vmem:[%s10 + $0x3c8] sm:$0xff]
      %v8489 = vld [vmem:[%s10 + $0x3d0] sm:$0xff]
      %v8490 = vld [vmem:[%s10 + $0x3d8] sm:$0xff]
      %v8491 = vld [vmem:[%s10 + $0x3e0] sm:$0xff]
      %v8492 = vld [vmem:[%s10 + $0x3e8] sm:$0xff]
      %v8493 = vld [vmem:[%s10 + $0x3f0] sm:$0xff]
      %v8494 = vld [vmem:[%s10 + $0x3f8] sm:$0xff]
      %v8495 = vld [vmem:[%s10 + $0x400] sm:$0xff]
      %v8496 = vld [vmem:[%s10 + $0x408] sm:$0xff]
      %v8497 = vld [vmem:[%s10 + $0x410] sm:$0xff]
      %v8498 = vld [vmem:[%s10 + $0x418] sm:$0xff]
      %v8499 = vld [vmem:[%s10 + $0x420] sm:$0xff]
      %v8500 = vld [vmem:[%s10 + $0x428] sm:$0xff]
      %v8501 = vld [vmem:[%s10 + $0x430] sm:$0xff]
      %v8502 = vld [vmem:[%s10 + $0x438] sm:$0xff]
      %v8503 = vld [vmem:[%s10 + $0x440] sm:$0xff]
      %v8504 = vld [vmem:[%s10 + $0x448] sm:$0xff]
      %v8505 = vld [vmem:[%s10 + $0x450] sm:$0xff]
      %v8506 = vld [vmem:[%s10 + $0x458] sm:$0xff]
      %v8507 = vld [vmem:[%s10 + $0x460] sm:$0xff]
      %v8508 = vld [vmem:[%s10 + $0x468] sm:$0xff]
      %v8509 = vld [vmem:[%s10 + $0x470] sm:$0xff]
      %v8510 = vld [vmem:[%s10 + $0x478] sm:$0xff]
      %v8511 = vld [vmem:[%s10 + $0x480] sm:$0xff]
      %v8512 = vld [vmem:[%s10 + $0x488] sm:$0xff]
      %v8513 = vld [vmem:[%s10 + $0x490] sm:$0xff]
      %v8514 = vld [vmem:[%s10 + $0x498] sm:$0xff]
      %v8515 = vld [vmem:[%s10 + $0x4a0] sm:$0xff]
      %v8516 = vld [vmem:[%s10 + $0x4a8] sm:$0xff]
      %v8517 = vld [vmem:[%s10 + $0x4b0] sm:$0xff]
      %v8518 = vld [vmem:[%s10 + $0x4b8] sm:$0xff]
      %v8519 = vld [vmem:[%s10 + $0x4c0] sm:$0xff]
      %v8520 = vld [vmem:[%s10 + $0x4c8] sm:$0xff]
      %v8521 = vld [vmem:[%s10 + $0x4d0] sm:$0xff]
      %v8522 = vld [vmem:[%s10 + $0x4d8] sm:$0xff]
      %v8523 = vld [vmem:[%s10 + $0x4e0] sm:$0xff]
      %v8524 = vld [vmem:[%s10 + $0x4e8] sm:$0xff]
      %v8525 = vld [vmem:[%s10 + $0x4f0] sm:$0xff]
      %v8526 = vld [vmem:[%s10 + $0x4f8] sm:$0xff]
      %v8527 = vld [vmem:[%s11] sm:$0xf]
      %v8529 = vperm.slane %v8527, 0
      %v8530 = vperm.slane %v8527, 1
      %v8531 = vperm.slane %v8527, 2
      %v8532 = vperm.slane %v8527, 3
      %v8633 = vunpack.c.l.b16 %v8271
      %v8634 = vunpack.c.h.b16 %v8271
      %v8635 = vunpack.c.l.b16 %v8272
      %v8636 = vunpack.c.h.b16 %v8272
      %v8637 = vunpack.c.l.b16 %v8273
      %v8638 = vunpack.c.l.b16 %v8274
      %v8639 = vunpack.c.h.b16 %v8274
      %v8640 = vunpack.c.l.b16 %v8275
      %v8641 = vunpack.c.h.b16 %v8275
      %v8642 = vunpack.c.l.b16 %v8276
      %v8643 = vunpack.c.l.b16 %v8277
      %v8644 = vunpack.c.h.b16 %v8277
      %v8645 = vunpack.c.l.b16 %v8278
      %v8646 = vunpack.c.h.b16 %v8278
      %v8647 = vunpack.c.l.b16 %v8279
      %v8648 = vunpack.c.l.b16 %v8280
      %v8649 = vunpack.c.h.b16 %v8280
      %v8650 = vunpack.c.l.b16 %v8281
      %v8651 = vunpack.c.h.b16 %v8281
      %v8652 = vunpack.c.l.b16 %v8282
      %v8653 = vunpack.c.l.b16 %v8283
      %v8654 = vunpack.c.h.b16 %v8283
      %v8655 = vunpack.c.l.b16 %v8284
      %v8656 = vunpack.c.h.b16 %v8284
      %v8657 = vunpack.c.l.b16 %v8285
      %v8658 = vunpack.c.l.b16 %v8286
      %v8659 = vunpack.c.h.b16 %v8286
      %v8660 = vunpack.c.l.b16 %v8287
      %v8661 = vunpack.c.h.b16 %v8287
      %v8662 = vunpack.c.l.b16 %v8288
      %v8663 = vunpack.c.l.b16 %v8289
      %v8664 = vunpack.c.h.b16 %v8289
      %v8665 = vunpack.c.l.b16 %v8290
      %v8666 = vunpack.c.h.b16 %v8290
      %v8667 = vunpack.c.l.b16 %v8291
      %v8668 = vunpack.c.l.b16 %v8292
      %v8669 = vunpack.c.h.b16 %v8292
      %v8670 = vunpack.c.l.b16 %v8293
      %v8671 = vunpack.c.h.b16 %v8293
      %v8672 = vunpack.c.l.b16 %v8294
      %v8673 = vunpack.c.l.b16 %v8295
      %v8674 = vunpack.c.h.b16 %v8295
      %v8675 = vunpack.c.l.b16 %v8296
      %v8676 = vunpack.c.h.b16 %v8296
      %v8677 = vunpack.c.l.b16 %v8297
      %v8678 = vunpack.c.l.b16 %v8298
      %v8679 = vunpack.c.h.b16 %v8298
      %v8680 = vunpack.c.l.b16 %v8299
      %v8681 = vunpack.c.h.b16 %v8299
      %v8682 = vunpack.c.l.b16 %v8300
      %v8683 = vunpack.c.l.b16 %v8301
      %v8684 = vunpack.c.h.b16 %v8301
      %v8685 = vunpack.c.l.b16 %v8302
      %v8686 = vunpack.c.h.b16 %v8302
      %v8687 = vunpack.c.l.b16 %v8303
      %v8688 = vunpack.c.l.b16 %v8304
      %v8689 = vunpack.c.h.b16 %v8304
      %v8690 = vunpack.c.l.b16 %v8305
      %v8691 = vunpack.c.h.b16 %v8305
      %v8692 = vunpack.c.l.b16 %v8306
      %v8693 = vunpack.c.l.b16 %v8307
      %v8694 = vunpack.c.h.b16 %v8307
      %v8695 = vunpack.c.l.b16 %v8308
      %v8696 = vunpack.c.h.b16 %v8308
      %v8697 = vunpack.c.l.b16 %v8309
      %v8698 = vunpack.c.l.b16 %v8310
      %v8699 = vunpack.c.h.b16 %v8310
      %v8700 = vunpack.c.l.b16 %v8311
      %v8701 = vunpack.c.h.b16 %v8311
      %v8702 = vunpack.c.l.b16 %v8312
      %v8703 = vunpack.c.l.b16 %v8313
      %v8704 = vunpack.c.h.b16 %v8313
      %v8705 = vunpack.c.l.b16 %v8314
      %v8706 = vunpack.c.h.b16 %v8314
      %v8707 = vunpack.c.l.b16 %v8315
      %v8708 = vunpack.c.l.b16 %v8316
      %v8709 = vunpack.c.h.b16 %v8316
      %v8710 = vunpack.c.l.b16 %v8317
      %v8711 = vunpack.c.h.b16 %v8317
      %v8712 = vunpack.c.l.b16 %v8318
      %v8713 = vunpack.c.l.b16 %v8319
      %v8714 = vunpack.c.h.b16 %v8319
      %v8715 = vunpack.c.l.b16 %v8320
      %v8716 = vunpack.c.h.b16 %v8320
      %v8717 = vunpack.c.l.b16 %v8321
      %v8718 = vunpack.c.l.b16 %v8322
      %v8719 = vunpack.c.h.b16 %v8322
      %v8720 = vunpack.c.l.b16 %v8323
      %v8721 = vunpack.c.h.b16 %v8323
      %v8722 = vunpack.c.l.b16 %v8324
      %v8723 = vunpack.c.l.b16 %v8325
      %v8724 = vunpack.c.h.b16 %v8325
      %v8725 = vunpack.c.l.b16 %v8326
      %v8726 = vunpack.c.h.b16 %v8326
      %v8727 = vunpack.c.l.b16 %v8327
      %v8728 = vunpack.c.l.b16 %v8328
      %v8729 = vunpack.c.h.b16 %v8328
      %v8730 = vunpack.c.l.b16 %v8329
      %v8731 = vunpack.c.h.b16 %v8329
      %v8732 = vunpack.c.l.b16 %v8330
      %v8733 = vunpack.c.l.b16 %v8331
      %v8734 = vunpack.c.h.b16 %v8331
      %v8735 = vunpack.c.l.b16 %v8332
      %v8736 = vunpack.c.h.b16 %v8332
      %v8737 = vunpack.c.l.b16 %v8333
      %v8738 = vunpack.c.l.b16 %v8334
      %v8739 = vunpack.c.h.b16 %v8334
      %v8740 = vunpack.c.l.b16 %v8335
      %v8741 = vunpack.c.h.b16 %v8335
      %v8742 = vunpack.c.l.b16 %v8336
      %v8743 = vunpack.c.l.b16 %v8337
      %v8744 = vunpack.c.h.b16 %v8337
      %v8745 = vunpack.c.l.b16 %v8338
      %v8746 = vunpack.c.h.b16 %v8338
      %v8747 = vunpack.c.l.b16 %v8339
      %v8748 = vunpack.c.l.b16 %v8340
      %v8749 = vunpack.c.h.b16 %v8340
      %v8750 = vunpack.c.l.b16 %v8341
      %v8751 = vunpack.c.h.b16 %v8341
      %v8752 = vunpack.c.l.b16 %v8342
      %v8753 = vunpack.c.l.b16 %v8343
      %v8754 = vunpack.c.h.b16 %v8343
      %v8755 = vunpack.c.l.b16 %v8344
      %v8756 = vunpack.c.h.b16 %v8344
      %v8757 = vunpack.c.l.b16 %v8345
      %v8758 = vunpack.c.l.b16 %v8346
      %v8759 = vunpack.c.h.b16 %v8346
      %v8760 = vunpack.c.l.b16 %v8347
      %v8761 = vunpack.c.h.b16 %v8347
      %v8762 = vunpack.c.l.b16 %v8348
      %v8763 = vunpack.c.l.b16 %v8349
      %v8764 = vunpack.c.h.b16 %v8349
      %v8765 = vunpack.c.l.b16 %v8350
      %v8766 = vunpack.c.h.b16 %v8350
      %v8767 = vunpack.c.l.b16 %v8351
      %v8768 = vunpack.c.l.b16 %v8352
      %v8769 = vunpack.c.h.b16 %v8352
      %v8770 = vunpack.c.l.b16 %v8353
      %v8771 = vunpack.c.h.b16 %v8353
      %v8772 = vunpack.c.l.b16 %v8354
      %v8773 = vunpack.c.l.b16 %v8355
      %v8774 = vunpack.c.h.b16 %v8355
      %v8775 = vunpack.c.l.b16 %v8356
      %v8776 = vunpack.c.h.b16 %v8356
      %v8777 = vunpack.c.l.b16 %v8357
      %v8778 = vunpack.c.l.b16 %v8358
      %v8779 = vunpack.c.h.b16 %v8358
      %v8780 = vunpack.c.l.b16 %v8359
      %v8781 = vunpack.c.h.b16 %v8359
      %v8782 = vunpack.c.l.b16 %v8360
      %v8783 = vunpack.c.l.b16 %v8361
      %v8784 = vunpack.c.h.b16 %v8361
      %v8785 = vunpack.c.l.b16 %v8362
      %v8786 = vunpack.c.h.b16 %v8362
      %v8787 = vunpack.c.l.b16 %v8363
      %v8788 = vunpack.c.l.b16 %v8364
      %v8789 = vunpack.c.h.b16 %v8364
      %v8790 = vunpack.c.l.b16 %v8365
      %v8791 = vunpack.c.h.b16 %v8365
      %v8792 = vunpack.c.l.b16 %v8366
      %v8793 = vpack.c.b16 %v8638, %v8633
      %v8794 = vpack.c.b16 %v8639, %v8634
      %v8795 = vpack.c.b16 %v8640, %v8635
      %v8796 = vpack.c.b16 %v8641, %v8636
      %v8797 = vpack.c.b16 %v8642, %v8637
      %v8798 = vpack.c.b16 %v8648, %v8643
      %v8799 = vpack.c.b16 %v8649, %v8644
      %v8800 = vpack.c.b16 %v8650, %v8645
      %v8801 = vpack.c.b16 %v8651, %v8646
      %v8802 = vpack.c.b16 %v8652, %v8647
      %v8803 = vpack.c.b16 %v8658, %v8653
      %v8804 = vpack.c.b16 %v8659, %v8654
      %v8805 = vpack.c.b16 %v8660, %v8655
      %v8806 = vpack.c.b16 %v8661, %v8656
      %v8807 = vpack.c.b16 %v8662, %v8657
      %v8808 = vpack.c.b16 %v8668, %v8663
      %v8809 = vpack.c.b16 %v8669, %v8664
      %v8810 = vpack.c.b16 %v8670, %v8665
      %v8811 = vpack.c.b16 %v8671, %v8666
      %v8812 = vpack.c.b16 %v8672, %v8667
      %v8813 = vpack.c.b16 %v8678, %v8673
      %v8814 = vpack.c.b16 %v8679, %v8674
      %v8815 = vpack.c.b16 %v8680, %v8675
      %v8816 = vpack.c.b16 %v8681, %v8676
      %v8817 = vpack.c.b16 %v8682, %v8677
      %v8818 = vpack.c.b16 %v8688, %v8683
      %v8819 = vpack.c.b16 %v8689, %v8684
      %v8820 = vpack.c.b16 %v8690, %v8685
      %v8821 = vpack.c.b16 %v8691, %v8686
      %v8822 = vpack.c.b16 %v8692, %v8687
      %v8823 = vpack.c.b16 %v8698, %v8693
      %v8824 = vpack.c.b16 %v8699, %v8694
      %v8825 = vpack.c.b16 %v8700, %v8695
      %v8826 = vpack.c.b16 %v8701, %v8696
      %v8827 = vpack.c.b16 %v8702, %v8697
      %v8828 = vpack.c.b16 %v8708, %v8703
      %v8829 = vpack.c.b16 %v8709, %v8704
      %v8830 = vpack.c.b16 %v8710, %v8705
      %v8831 = vpack.c.b16 %v8711, %v8706
      %v8832 = vpack.c.b16 %v8712, %v8707
      %v8833 = vpack.c.b16 %v8718, %v8713
      %v8834 = vpack.c.b16 %v8719, %v8714
      %v8835 = vpack.c.b16 %v8720, %v8715
      %v8836 = vpack.c.b16 %v8721, %v8716
      %v8837 = vpack.c.b16 %v8722, %v8717
      %v8838 = vpack.c.b16 %v8728, %v8723
      %v8839 = vpack.c.b16 %v8729, %v8724
      %v8840 = vpack.c.b16 %v8730, %v8725
      %v8841 = vpack.c.b16 %v8731, %v8726
      %v8842 = vpack.c.b16 %v8732, %v8727
      %v8843 = vpack.c.b16 %v8738, %v8733
      %v8844 = vpack.c.b16 %v8739, %v8734
      %v8845 = vpack.c.b16 %v8740, %v8735
      %v8846 = vpack.c.b16 %v8741, %v8736
      %v8847 = vpack.c.b16 %v8742, %v8737
      %v8848 = vpack.c.b16 %v8748, %v8743
      %v8849 = vpack.c.b16 %v8749, %v8744
      %v8850 = vpack.c.b16 %v8750, %v8745
      %v8851 = vpack.c.b16 %v8751, %v8746
      %v8852 = vpack.c.b16 %v8752, %v8747
      %v8853 = vpack.c.b16 %v8758, %v8753
      %v8854 = vpack.c.b16 %v8759, %v8754
      %v8855 = vpack.c.b16 %v8760, %v8755
      %v8856 = vpack.c.b16 %v8761, %v8756
      %v8857 = vpack.c.b16 %v8762, %v8757
      %v8858 = vpack.c.b16 %v8768, %v8763
      %v8859 = vpack.c.b16 %v8769, %v8764
      %v8860 = vpack.c.b16 %v8770, %v8765
      %v8861 = vpack.c.b16 %v8771, %v8766
      %v8862 = vpack.c.b16 %v8772, %v8767
      %v8863 = vpack.c.b16 %v8778, %v8773
      %v8864 = vpack.c.b16 %v8779, %v8774
      %v8865 = vpack.c.b16 %v8780, %v8775
      %v8866 = vpack.c.b16 %v8781, %v8776
      %v8867 = vpack.c.b16 %v8782, %v8777
      %v8868 = vpack.c.b16 %v8788, %v8783
      %v8869 = vpack.c.b16 %v8789, %v8784
      %v8870 = vpack.c.b16 %v8790, %v8785
      %v8871 = vpack.c.b16 %v8791, %v8786
      %v8872 = vpack.c.b16 %v8792, %v8787
      %v9113 = vunpack.c.l.b16 %v8367
      %v9114 = vunpack.c.h.b16 %v8367
      %v9115 = vunpack.c.l.b16 %v8368
      %v9116 = vunpack.c.h.b16 %v8368
      %v9117 = vunpack.c.l.b16 %v8369
      %v9118 = vunpack.c.h.b16 %v8369
      %v9119 = vunpack.c.l.b16 %v8370
      %v9120 = vunpack.c.h.b16 %v8370
      %v9121 = vunpack.c.l.b16 %v8371
      %v9122 = vunpack.c.h.b16 %v8371
      %v9123 = vunpack.c.l.b16 %v8372
      %v9124 = vunpack.c.h.b16 %v8372
      %v9125 = vunpack.c.l.b16 %v8373
      %v9126 = vunpack.c.h.b16 %v8373
      %v9127 = vunpack.c.l.b16 %v8374
      %v9128 = vunpack.c.h.b16 %v8374
      %v9129 = vunpack.c.l.b16 %v8375
      %v9130 = vunpack.c.h.b16 %v8375
      %v9131 = vunpack.c.l.b16 %v8376
      %v9132 = vunpack.c.h.b16 %v8376
      %v9133 = vunpack.c.l.b16 %v8377
      %v9134 = vunpack.c.h.b16 %v8377
      %v9135 = vunpack.c.l.b16 %v8378
      %v9136 = vunpack.c.h.b16 %v8378
      %v9137 = vunpack.c.l.b16 %v8379
      %v9138 = vunpack.c.h.b16 %v8379
      %v9139 = vunpack.c.l.b16 %v8380
      %v9140 = vunpack.c.h.b16 %v8380
      %v9141 = vunpack.c.l.b16 %v8381
      %v9142 = vunpack.c.h.b16 %v8381
      %v9143 = vunpack.c.l.b16 %v8382
      %v9144 = vunpack.c.h.b16 %v8382
      %v9145 = vunpack.c.l.b16 %v8383
      %v9146 = vunpack.c.h.b16 %v8383
      %v9147 = vunpack.c.l.b16 %v8384
      %v9148 = vunpack.c.h.b16 %v8384
      %v9149 = vunpack.c.l.b16 %v8385
      %v9150 = vunpack.c.h.b16 %v8385
      %v9151 = vunpack.c.l.b16 %v8386
      %v9152 = vunpack.c.h.b16 %v8386
      %v9153 = vunpack.c.l.b16 %v8387
      %v9154 = vunpack.c.h.b16 %v8387
      %v9155 = vunpack.c.l.b16 %v8388
      %v9156 = vunpack.c.h.b16 %v8388
      %v9157 = vunpack.c.l.b16 %v8389
      %v9158 = vunpack.c.h.b16 %v8389
      %v9159 = vunpack.c.l.b16 %v8390
      %v9160 = vunpack.c.h.b16 %v8390
      %v9161 = vunpack.c.l.b16 %v8391
      %v9162 = vunpack.c.h.b16 %v8391
      %v9163 = vunpack.c.l.b16 %v8392
      %v9164 = vunpack.c.h.b16 %v8392
      %v9165 = vunpack.c.l.b16 %v8393
      %v9166 = vunpack.c.h.b16 %v8393
      %v9167 = vunpack.c.l.b16 %v8394
      %v9168 = vunpack.c.h.b16 %v8394
      %v9169 = vunpack.c.l.b16 %v8395
      %v9170 = vunpack.c.h.b16 %v8395
      %v9171 = vunpack.c.l.b16 %v8396
      %v9172 = vunpack.c.h.b16 %v8396
      %v9173 = vunpack.c.l.b16 %v8397
      %v9174 = vunpack.c.h.b16 %v8397
      %v9175 = vunpack.c.l.b16 %v8398
      %v9176 = vunpack.c.h.b16 %v8398
      %v9177 = vunpack.c.l.b16 %v8399
      %v9178 = vunpack.c.h.b16 %v8399
      %v9179 = vunpack.c.l.b16 %v8400
      %v9180 = vunpack.c.h.b16 %v8400
      %v9181 = vunpack.c.l.b16 %v8401
      %v9182 = vunpack.c.h.b16 %v8401
      %v9183 = vunpack.c.l.b16 %v8402
      %v9184 = vunpack.c.h.b16 %v8402
      %v9185 = vunpack.c.l.b16 %v8403
      %v9186 = vunpack.c.h.b16 %v8403
      %v9187 = vunpack.c.l.b16 %v8404
      %v9188 = vunpack.c.h.b16 %v8404
      %v9189 = vunpack.c.l.b16 %v8405
      %v9190 = vunpack.c.h.b16 %v8405
      %v9191 = vunpack.c.l.b16 %v8406
      %v9192 = vunpack.c.h.b16 %v8406
      %v9193 = vunpack.c.l.b16 %v8407
      %v9194 = vunpack.c.h.b16 %v8407
      %v9195 = vunpack.c.l.b16 %v8408
      %v9196 = vunpack.c.h.b16 %v8408
      %v9197 = vunpack.c.l.b16 %v8409
      %v9198 = vunpack.c.h.b16 %v8409
      %v9199 = vunpack.c.l.b16 %v8410
      %v9200 = vunpack.c.h.b16 %v8410
      %v9201 = vunpack.c.l.b16 %v8411
      %v9202 = vunpack.c.h.b16 %v8411
      %v9203 = vunpack.c.l.b16 %v8412
      %v9204 = vunpack.c.h.b16 %v8412
      %v9205 = vunpack.c.l.b16 %v8413
      %v9206 = vunpack.c.h.b16 %v8413
      %v9207 = vunpack.c.l.b16 %v8414
      %v9208 = vunpack.c.h.b16 %v8414
      %v9209 = vunpack.c.l.b16 %v8415
      %v9210 = vunpack.c.h.b16 %v8415
      %v9211 = vunpack.c.l.b16 %v8416
      %v9212 = vunpack.c.h.b16 %v8416
      %v9213 = vunpack.c.l.b16 %v8417
      %v9214 = vunpack.c.h.b16 %v8417
      %v9215 = vunpack.c.l.b16 %v8418
      %v9216 = vunpack.c.h.b16 %v8418
      %v9217 = vunpack.c.l.b16 %v8419
      %v9218 = vunpack.c.h.b16 %v8419
      %v9219 = vunpack.c.l.b16 %v8420
      %v9220 = vunpack.c.h.b16 %v8420
      %v9221 = vunpack.c.l.b16 %v8421
      %v9222 = vunpack.c.h.b16 %v8421
      %v9223 = vunpack.c.l.b16 %v8422
      %v9224 = vunpack.c.h.b16 %v8422
      %v9225 = vunpack.c.l.b16 %v8423
      %v9226 = vunpack.c.h.b16 %v8423
      %v9227 = vunpack.c.l.b16 %v8424
      %v9228 = vunpack.c.h.b16 %v8424
      %v9229 = vunpack.c.l.b16 %v8425
      %v9230 = vunpack.c.h.b16 %v8425
      %v9231 = vunpack.c.l.b16 %v8426
      %v9232 = vunpack.c.h.b16 %v8426
      %v9233 = vunpack.c.l.b16 %v8427
      %v9234 = vunpack.c.h.b16 %v8427
      %v9235 = vunpack.c.l.b16 %v8428
      %v9236 = vunpack.c.h.b16 %v8428
      %v9237 = vunpack.c.l.b16 %v8429
      %v9238 = vunpack.c.h.b16 %v8429
      %v9239 = vunpack.c.l.b16 %v8430
      %v9240 = vunpack.c.h.b16 %v8430
      %v9241 = vunpack.c.l.b16 %v8431
      %v9242 = vunpack.c.h.b16 %v8431
      %v9243 = vunpack.c.l.b16 %v8432
      %v9244 = vunpack.c.h.b16 %v8432
      %v9245 = vunpack.c.l.b16 %v8433
      %v9246 = vunpack.c.h.b16 %v8433
      %v9247 = vunpack.c.l.b16 %v8434
      %v9248 = vunpack.c.h.b16 %v8434
      %v9249 = vunpack.c.l.b16 %v8435
      %v9250 = vunpack.c.h.b16 %v8435
      %v9251 = vunpack.c.l.b16 %v8436
      %v9252 = vunpack.c.h.b16 %v8436
      %v9253 = vunpack.c.l.b16 %v8437
      %v9254 = vunpack.c.h.b16 %v8437
      %v9255 = vunpack.c.l.b16 %v8438
      %v9256 = vunpack.c.h.b16 %v8438
      %v9257 = vunpack.c.l.b16 %v8439
      %v9258 = vunpack.c.h.b16 %v8439
      %v9259 = vunpack.c.l.b16 %v8440
      %v9260 = vunpack.c.h.b16 %v8440
      %v9261 = vunpack.c.l.b16 %v8441
      %v9262 = vunpack.c.h.b16 %v8441
      %v9263 = vunpack.c.l.b16 %v8442
      %v9264 = vunpack.c.h.b16 %v8442
      %v9265 = vunpack.c.l.b16 %v8443
      %v9266 = vunpack.c.h.b16 %v8443
      %v9267 = vunpack.c.l.b16 %v8444
      %v9268 = vunpack.c.h.b16 %v8444
      %v9269 = vunpack.c.l.b16 %v8445
      %v9270 = vunpack.c.h.b16 %v8445
      %v9271 = vunpack.c.l.b16 %v8446
      %v9272 = vunpack.c.h.b16 %v8446
      %v9273 = vunpack.c.l.b16 %v8447
      %v9274 = vunpack.c.h.b16 %v8447
      %v9275 = vunpack.c.l.b16 %v8448
      %v9276 = vunpack.c.h.b16 %v8448
      %v9277 = vunpack.c.l.b16 %v8449
      %v9278 = vunpack.c.h.b16 %v8449
      %v9279 = vunpack.c.l.b16 %v8450
      %v9280 = vunpack.c.h.b16 %v8450
      %v9281 = vunpack.c.l.b16 %v8451
      %v9282 = vunpack.c.h.b16 %v8451
      %v9283 = vunpack.c.l.b16 %v8452
      %v9284 = vunpack.c.h.b16 %v8452
      %v9285 = vunpack.c.l.b16 %v8453
      %v9286 = vunpack.c.h.b16 %v8453
      %v9287 = vunpack.c.l.b16 %v8454
      %v9288 = vunpack.c.h.b16 %v8454
      %v9289 = vunpack.c.l.b16 %v8455
      %v9290 = vunpack.c.h.b16 %v8455
      %v9291 = vunpack.c.l.b16 %v8456
      %v9292 = vunpack.c.h.b16 %v8456
      %v9293 = vunpack.c.l.b16 %v8457
      %v9294 = vunpack.c.h.b16 %v8457
      %v9295 = vunpack.c.l.b16 %v8458
      %v9296 = vunpack.c.h.b16 %v8458
      %v9297 = vunpack.c.l.b16 %v8459
      %v9298 = vunpack.c.h.b16 %v8459
      %v9299 = vunpack.c.l.b16 %v8460
      %v9300 = vunpack.c.h.b16 %v8460
      %v9301 = vunpack.c.l.b16 %v8461
      %v9302 = vunpack.c.h.b16 %v8461
      %v9303 = vunpack.c.l.b16 %v8462
      %v9304 = vunpack.c.h.b16 %v8462
      %v9305 = vunpack.c.l.b16 %v8463
      %v9306 = vunpack.c.h.b16 %v8463
      %v9307 = vunpack.c.l.b16 %v8464
      %v9308 = vunpack.c.h.b16 %v8464
      %v9309 = vunpack.c.l.b16 %v8465
      %v9310 = vunpack.c.h.b16 %v8465
      %v9311 = vunpack.c.l.b16 %v8466
      %v9312 = vunpack.c.h.b16 %v8466
      %v9313 = vunpack.c.l.b16 %v8467
      %v9314 = vunpack.c.h.b16 %v8467
      %v9315 = vunpack.c.l.b16 %v8468
      %v9316 = vunpack.c.h.b16 %v8468
      %v9317 = vunpack.c.l.b16 %v8469
      %v9318 = vunpack.c.h.b16 %v8469
      %v9319 = vunpack.c.l.b16 %v8470
      %v9320 = vunpack.c.h.b16 %v8470
      %v9321 = vunpack.c.l.b16 %v8471
      %v9322 = vunpack.c.h.b16 %v8471
      %v9323 = vunpack.c.l.b16 %v8472
      %v9324 = vunpack.c.h.b16 %v8472
      %v9325 = vunpack.c.l.b16 %v8473
      %v9326 = vunpack.c.h.b16 %v8473
      %v9327 = vunpack.c.l.b16 %v8474
      %v9328 = vunpack.c.h.b16 %v8474
      %v9329 = vunpack.c.l.b16 %v8475
      %v9330 = vunpack.c.h.b16 %v8475
      %v9331 = vunpack.c.l.b16 %v8476
      %v9332 = vunpack.c.h.b16 %v8476
      %v9333 = vunpack.c.l.b16 %v8477
      %v9334 = vunpack.c.h.b16 %v8477
      %v9335 = vunpack.c.l.b16 %v8478
      %v9336 = vunpack.c.h.b16 %v8478
      %v9337 = vunpack.c.l.b16 %v8479
      %v9338 = vunpack.c.h.b16 %v8479
      %v9339 = vunpack.c.l.b16 %v8480
      %v9340 = vunpack.c.h.b16 %v8480
      %v9341 = vunpack.c.l.b16 %v8481
      %v9342 = vunpack.c.h.b16 %v8481
      %v9343 = vunpack.c.l.b16 %v8482
      %v9344 = vunpack.c.h.b16 %v8482
      %v9345 = vunpack.c.l.b16 %v8483
      %v9346 = vunpack.c.h.b16 %v8483
      %v9347 = vunpack.c.l.b16 %v8484
      %v9348 = vunpack.c.h.b16 %v8484
      %v9349 = vunpack.c.l.b16 %v8485
      %v9350 = vunpack.c.h.b16 %v8485
      %v9351 = vunpack.c.l.b16 %v8486
      %v9352 = vunpack.c.h.b16 %v8486
      %v9353 = vunpack.c.l.b16 %v8487
      %v9354 = vunpack.c.h.b16 %v8487
      %v9355 = vunpack.c.l.b16 %v8488
      %v9356 = vunpack.c.h.b16 %v8488
      %v9357 = vunpack.c.l.b16 %v8489
      %v9358 = vunpack.c.h.b16 %v8489
      %v9359 = vunpack.c.l.b16 %v8490
      %v9360 = vunpack.c.h.b16 %v8490
      %v9361 = vunpack.c.l.b16 %v8491
      %v9362 = vunpack.c.h.b16 %v8491
      %v9363 = vunpack.c.l.b16 %v8492
      %v9364 = vunpack.c.h.b16 %v8492
      %v9365 = vunpack.c.l.b16 %v8493
      %v9366 = vunpack.c.h.b16 %v8493
      %v9367 = vunpack.c.l.b16 %v8494
      %v9368 = vunpack.c.h.b16 %v8494
      %v9369 = vunpack.c.l.b16 %v8495
      %v9370 = vunpack.c.h.b16 %v8495
      %v9371 = vunpack.c.l.b16 %v8496
      %v9372 = vunpack.c.h.b16 %v8496
      %v9373 = vunpack.c.l.b16 %v8497
      %v9374 = vunpack.c.h.b16 %v8497
      %v9375 = vunpack.c.l.b16 %v8498
      %v9376 = vunpack.c.h.b16 %v8498
      %v9377 = vunpack.c.l.b16 %v8499
      %v9378 = vunpack.c.h.b16 %v8499
      %v9379 = vunpack.c.l.b16 %v8500
      %v9380 = vunpack.c.h.b16 %v8500
      %v9381 = vunpack.c.l.b16 %v8501
      %v9382 = vunpack.c.h.b16 %v8501
      %v9383 = vunpack.c.l.b16 %v8502
      %v9384 = vunpack.c.h.b16 %v8502
      %v9385 = vunpack.c.l.b16 %v8503
      %v9386 = vunpack.c.h.b16 %v8503
      %v9387 = vunpack.c.l.b16 %v8504
      %v9388 = vunpack.c.h.b16 %v8504
      %v9389 = vunpack.c.l.b16 %v8505
      %v9390 = vunpack.c.h.b16 %v8505
      %v9391 = vunpack.c.l.b16 %v8506
      %v9392 = vunpack.c.h.b16 %v8506
      %v9393 = vunpack.c.l.b16 %v8507
      %v9394 = vunpack.c.h.b16 %v8507
      %v9395 = vunpack.c.l.b16 %v8508
      %v9396 = vunpack.c.h.b16 %v8508
      %v9397 = vunpack.c.l.b16 %v8509
      %v9398 = vunpack.c.h.b16 %v8509
      %v9399 = vunpack.c.l.b16 %v8510
      %v9400 = vunpack.c.h.b16 %v8510
      %v9401 = vunpack.c.l.b16 %v8511
      %v9402 = vunpack.c.h.b16 %v8511
      %v9403 = vunpack.c.l.b16 %v8512
      %v9404 = vunpack.c.h.b16 %v8512
      %v9405 = vunpack.c.l.b16 %v8513
      %v9406 = vunpack.c.h.b16 %v8513
      %v9407 = vunpack.c.l.b16 %v8514
      %v9408 = vunpack.c.h.b16 %v8514
      %v9409 = vunpack.c.l.b16 %v8515
      %v9410 = vunpack.c.h.b16 %v8515
      %v9411 = vunpack.c.l.b16 %v8516
      %v9412 = vunpack.c.h.b16 %v8516
      %v9413 = vunpack.c.l.b16 %v8517
      %v9414 = vunpack.c.h.b16 %v8517
      %v9415 = vunpack.c.l.b16 %v8518
      %v9416 = vunpack.c.h.b16 %v8518
      %v9417 = vunpack.c.l.b16 %v8519
      %v9418 = vunpack.c.h.b16 %v8519
      %v9419 = vunpack.c.l.b16 %v8520
      %v9420 = vunpack.c.h.b16 %v8520
      %v9421 = vunpack.c.l.b16 %v8521
      %v9422 = vunpack.c.h.b16 %v8521
      %v9423 = vunpack.c.l.b16 %v8522
      %v9424 = vunpack.c.h.b16 %v8522
      %v9425 = vunpack.c.l.b16 %v8523
      %v9426 = vunpack.c.h.b16 %v8523
      %v9427 = vunpack.c.l.b16 %v8524
      %v9428 = vunpack.c.h.b16 %v8524
      %v9429 = vunpack.c.l.b16 %v8525
      %v9430 = vunpack.c.h.b16 %v8525
      %v9431 = vunpack.c.l.b16 %v8526
      %v9432 = vunpack.c.h.b16 %v8526
      %v9433 = vpack.c.b16 %v9117, %v9113
      %v9434 = vpack.c.b16 %v9118, %v9114
      %v9435 = vpack.c.b16 %v9119, %v9115
      %v9436 = vpack.c.b16 %v9120, %v9116
      %v9437 = vpack.c.b16 %v9125, %v9121
      %v9438 = vpack.c.b16 %v9126, %v9122
      %v9439 = vpack.c.b16 %v9127, %v9123
      %v9440 = vpack.c.b16 %v9128, %v9124
      %v9441 = vpack.c.b16 %v9133, %v9129
      %v9442 = vpack.c.b16 %v9134, %v9130
      %v9443 = vpack.c.b16 %v9135, %v9131
      %v9444 = vpack.c.b16 %v9136, %v9132
      %v9445 = vpack.c.b16 %v9141, %v9137
      %v9446 = vpack.c.b16 %v9142, %v9138
      %v9447 = vpack.c.b16 %v9143, %v9139
      %v9448 = vpack.c.b16 %v9144, %v9140
      %v9449 = vpack.c.b16 %v9149, %v9145
      %v9450 = vpack.c.b16 %v9150, %v9146
      %v9451 = vpack.c.b16 %v9151, %v9147
      %v9452 = vpack.c.b16 %v9152, %v9148
      %v9453 = vpack.c.b16 %v9157, %v9153
      %v9454 = vpack.c.b16 %v9158, %v9154
      %v9455 = vpack.c.b16 %v9159, %v9155
      %v9456 = vpack.c.b16 %v9160, %v9156
      %v9457 = vpack.c.b16 %v9165, %v9161
      %v9458 = vpack.c.b16 %v9166, %v9162
      %v9459 = vpack.c.b16 %v9167, %v9163
      %v9460 = vpack.c.b16 %v9168, %v9164
      %v9461 = vpack.c.b16 %v9173, %v9169
      %v9462 = vpack.c.b16 %v9174, %v9170
      %v9463 = vpack.c.b16 %v9175, %v9171
      %v9464 = vpack.c.b16 %v9176, %v9172
      %v9465 = vpack.c.b16 %v9181, %v9177
      %v9466 = vpack.c.b16 %v9182, %v9178
      %v9467 = vpack.c.b16 %v9183, %v9179
      %v9468 = vpack.c.b16 %v9184, %v9180
      %v9469 = vpack.c.b16 %v9189, %v9185
      %v9470 = vpack.c.b16 %v9190, %v9186
      %v9471 = vpack.c.b16 %v9191, %v9187
      %v9472 = vpack.c.b16 %v9192, %v9188
      %v9473 = vpack.c.b16 %v9197, %v9193
      %v9474 = vpack.c.b16 %v9198, %v9194
      %v9475 = vpack.c.b16 %v9199, %v9195
      %v9476 = vpack.c.b16 %v9200, %v9196
      %v9477 = vpack.c.b16 %v9205, %v9201
      %v9478 = vpack.c.b16 %v9206, %v9202
      %v9479 = vpack.c.b16 %v9207, %v9203
      %v9480 = vpack.c.b16 %v9208, %v9204
      %v9481 = vpack.c.b16 %v9213, %v9209
      %v9482 = vpack.c.b16 %v9214, %v9210
      %v9483 = vpack.c.b16 %v9215, %v9211
      %v9484 = vpack.c.b16 %v9216, %v9212
      %v9485 = vpack.c.b16 %v9221, %v9217
      %v9486 = vpack.c.b16 %v9222, %v9218
      %v9487 = vpack.c.b16 %v9223, %v9219
      %v9488 = vpack.c.b16 %v9224, %v9220
      %v9489 = vpack.c.b16 %v9229, %v9225
      %v9490 = vpack.c.b16 %v9230, %v9226
      %v9491 = vpack.c.b16 %v9231, %v9227
      %v9492 = vpack.c.b16 %v9232, %v9228
      %v9493 = vpack.c.b16 %v9237, %v9233
      %v9494 = vpack.c.b16 %v9238, %v9234
      %v9495 = vpack.c.b16 %v9239, %v9235
      %v9496 = vpack.c.b16 %v9240, %v9236
      %v9497 = vpack.c.b16 %v9245, %v9241
      %v9498 = vpack.c.b16 %v9246, %v9242
      %v9499 = vpack.c.b16 %v9247, %v9243
      %v9500 = vpack.c.b16 %v9248, %v9244
      %v9501 = vpack.c.b16 %v9253, %v9249
      %v9502 = vpack.c.b16 %v9254, %v9250
      %v9503 = vpack.c.b16 %v9255, %v9251
      %v9504 = vpack.c.b16 %v9256, %v9252
      %v9505 = vpack.c.b16 %v9261, %v9257
      %v9506 = vpack.c.b16 %v9262, %v9258
      %v9507 = vpack.c.b16 %v9263, %v9259
      %v9508 = vpack.c.b16 %v9264, %v9260
      %v9509 = vpack.c.b16 %v9269, %v9265
      %v9510 = vpack.c.b16 %v9270, %v9266
      %v9511 = vpack.c.b16 %v9271, %v9267
      %v9512 = vpack.c.b16 %v9272, %v9268
      %v9513 = vpack.c.b16 %v9277, %v9273
      %v9514 = vpack.c.b16 %v9278, %v9274
      %v9515 = vpack.c.b16 %v9279, %v9275
      %v9516 = vpack.c.b16 %v9280, %v9276
      %v9517 = vpack.c.b16 %v9285, %v9281
      %v9518 = vpack.c.b16 %v9286, %v9282
      %v9519 = vpack.c.b16 %v9287, %v9283
      %v9520 = vpack.c.b16 %v9288, %v9284
      %v9521 = vpack.c.b16 %v9293, %v9289
      %v9522 = vpack.c.b16 %v9294, %v9290
      %v9523 = vpack.c.b16 %v9295, %v9291
      %v9524 = vpack.c.b16 %v9296, %v9292
      %v9525 = vpack.c.b16 %v9301, %v9297
      %v9526 = vpack.c.b16 %v9302, %v9298
      %v9527 = vpack.c.b16 %v9303, %v9299
      %v9528 = vpack.c.b16 %v9304, %v9300
      %v9529 = vpack.c.b16 %v9309, %v9305
      %v9530 = vpack.c.b16 %v9310, %v9306
      %v9531 = vpack.c.b16 %v9311, %v9307
      %v9532 = vpack.c.b16 %v9312, %v9308
      %v9533 = vpack.c.b16 %v9317, %v9313
      %v9534 = vpack.c.b16 %v9318, %v9314
      %v9535 = vpack.c.b16 %v9319, %v9315
      %v9536 = vpack.c.b16 %v9320, %v9316
      %v9537 = vpack.c.b16 %v9325, %v9321
      %v9538 = vpack.c.b16 %v9326, %v9322
      %v9539 = vpack.c.b16 %v9327, %v9323
      %v9540 = vpack.c.b16 %v9328, %v9324
      %v9541 = vpack.c.b16 %v9333, %v9329
      %v9542 = vpack.c.b16 %v9334, %v9330
      %v9543 = vpack.c.b16 %v9335, %v9331
      %v9544 = vpack.c.b16 %v9336, %v9332
      %v9545 = vpack.c.b16 %v9341, %v9337
      %v9546 = vpack.c.b16 %v9342, %v9338
      %v9547 = vpack.c.b16 %v9343, %v9339
      %v9548 = vpack.c.b16 %v9344, %v9340
      %v9549 = vpack.c.b16 %v9349, %v9345
      %v9550 = vpack.c.b16 %v9350, %v9346
      %v9551 = vpack.c.b16 %v9351, %v9347
      %v9552 = vpack.c.b16 %v9352, %v9348
      %v9553 = vpack.c.b16 %v9357, %v9353
      %v9554 = vpack.c.b16 %v9358, %v9354
      %v9555 = vpack.c.b16 %v9359, %v9355
      %v9556 = vpack.c.b16 %v9360, %v9356
      %v9557 = vpack.c.b16 %v9365, %v9361
      %v9558 = vpack.c.b16 %v9366, %v9362
      %v9559 = vpack.c.b16 %v9367, %v9363
      %v9560 = vpack.c.b16 %v9368, %v9364
      %v9561 = vpack.c.b16 %v9373, %v9369
      %v9562 = vpack.c.b16 %v9374, %v9370
      %v9563 = vpack.c.b16 %v9375, %v9371
      %v9564 = vpack.c.b16 %v9376, %v9372
      %v9565 = vpack.c.b16 %v9381, %v9377
      %v9566 = vpack.c.b16 %v9382, %v9378
      %v9567 = vpack.c.b16 %v9383, %v9379
      %v9568 = vpack.c.b16 %v9384, %v9380
      %v9569 = vpack.c.b16 %v9389, %v9385
      %v9570 = vpack.c.b16 %v9390, %v9386
      %v9571 = vpack.c.b16 %v9391, %v9387
      %v9572 = vpack.c.b16 %v9392, %v9388
      %v9573 = vpack.c.b16 %v9397, %v9393
      %v9574 = vpack.c.b16 %v9398, %v9394
      %v9575 = vpack.c.b16 %v9399, %v9395
      %v9576 = vpack.c.b16 %v9400, %v9396
      %v9577 = vpack.c.b16 %v9405, %v9401
      %v9578 = vpack.c.b16 %v9406, %v9402
      %v9579 = vpack.c.b16 %v9407, %v9403
      %v9580 = vpack.c.b16 %v9408, %v9404
      %v9581 = vpack.c.b16 %v9413, %v9409
      %v9582 = vpack.c.b16 %v9414, %v9410
      %v9583 = vpack.c.b16 %v9415, %v9411
      %v9584 = vpack.c.b16 %v9416, %v9412
      %v9585 = vpack.c.b16 %v9421, %v9417
      %v9586 = vpack.c.b16 %v9422, %v9418
      %v9587 = vpack.c.b16 %v9423, %v9419
      %v9588 = vpack.c.b16 %v9424, %v9420
      %v9589 = vpack.c.b16 %v9429, %v9425
      %v9590 = vpack.c.b16 %v9430, %v9426
      %v9591 = vpack.c.b16 %v9431, %v9427
      %v9592 = vpack.c.b16 %v9432, %v9428
      %9753 = vmatpush.bf16.msra.mxu0 %v9461
      %9754 = vmatpush.bf16.msra.mxu0 %v9457
      %9755 = vmatpush.bf16.msra.mxu0 %v9453
      %9756 = vmatpush.bf16.msra.mxu0 %v9449
      %9757 = vmatpush.bf16.msra.mxu0 %v9445
      %9758 = vmatpush.bf16.msra.mxu0 %v9441
      %9759 = vmatpush.bf16.msra.mxu0 %v9437
      %9760 = vmatpush.bf16.msra.mxu0 %v9433
      %9761 = vmatmul.bf16.gmra.mxu0 %v8793
      %v9762 = vpop.f32.mrf.mxu0
      %v9763 = vadd.f32 %v8529, %v9762
      %v9764 = vpop.f32.mrf.mxu0
      %v9765 = vadd.f32 %v8529, %v9764
      %9766 = vmatmul.bf16.gmra.mxu0 %v8798
      %v9767 = vpop.f32.mrf.mxu0
      %v9768 = vadd.f32 %v8529, %v9767
      %v9769 = vpop.f32.mrf.mxu0
      %v9770 = vadd.f32 %v8529, %v9769
      %9771 = vmatmul.bf16.gmra.mxu0 %v8803
      %v9772 = vpop.f32.mrf.mxu0
      %v9773 = vadd.f32 %v8529, %v9772
      %v9774 = vpop.f32.mrf.mxu0
      %v9775 = vadd.f32 %v8529, %v9774
      %9776 = vmatmul.bf16.gmra.mxu0 %v8808
      %v9777 = vpop.f32.mrf.mxu0
      %v9778 = vadd.f32 %v8529, %v9777
      %v9779 = vpop.f32.mrf.mxu0
      %v9780 = vadd.f32 %v8529, %v9779
      %9781 = vmatmul.bf16.gmra.mxu0 %v8813
      %v9782 = vpop.f32.mrf.mxu0
      %v9783 = vadd.f32 %v8529, %v9782
      %v9784 = vpop.f32.mrf.mxu0
      %v9785 = vadd.f32 %v8529, %v9784
      %9786 = vmatmul.bf16.gmra.mxu0 %v8818
      %v9787 = vpop.f32.mrf.mxu0
      %v9788 = vadd.f32 %v8529, %v9787
      %v9789 = vpop.f32.mrf.mxu0
      %v9790 = vadd.f32 %v8529, %v9789
      %9791 = vmatmul.bf16.gmra.mxu0 %v8823
      %v9792 = vpop.f32.mrf.mxu0
      %v9793 = vadd.f32 %v8529, %v9792
      %v9794 = vpop.f32.mrf.mxu0
      %v9795 = vadd.f32 %v8529, %v9794
      %9796 = vmatmul.bf16.gmra.mxu0 %v8828
      %v9797 = vpop.f32.mrf.mxu0
      %v9798 = vadd.f32 %v8529, %v9797
      %v9799 = vpop.f32.mrf.mxu0
      %v9800 = vadd.f32 %v8529, %v9799
      %9801 = vmatmul.bf16.gmra.mxu0 %v8833
      %v9802 = vpop.f32.mrf.mxu0
      %v9803 = vadd.f32 %v8529, %v9802
      %v9804 = vpop.f32.mrf.mxu0
      %v9805 = vadd.f32 %v8529, %v9804
      %9806 = vmatmul.bf16.gmra.mxu0 %v8838
      %v9807 = vpop.f32.mrf.mxu0
      %v9808 = vadd.f32 %v8529, %v9807
      %v9809 = vpop.f32.mrf.mxu0
      %v9810 = vadd.f32 %v8529, %v9809
      %9811 = vmatmul.bf16.gmra.mxu0 %v8843
      %v9812 = vpop.f32.mrf.mxu0
      %v9813 = vadd.f32 %v8529, %v9812
      %v9814 = vpop.f32.mrf.mxu0
      %v9815 = vadd.f32 %v8529, %v9814
      %9816 = vmatmul.bf16.gmra.mxu0 %v8848
      %v9817 = vpop.f32.mrf.mxu0
      %v9818 = vadd.f32 %v8529, %v9817
      %v9819 = vpop.f32.mrf.mxu0
      %v9820 = vadd.f32 %v8529, %v9819
      %9821 = vmatmul.bf16.gmra.mxu0 %v8853
      %v9822 = vpop.f32.mrf.mxu0
      %v9823 = vadd.f32 %v8529, %v9822
      %v9824 = vpop.f32.mrf.mxu0
      %v9825 = vadd.f32 %v8529, %v9824
      %9826 = vmatmul.bf16.gmra.mxu0 %v8858
      %v9827 = vpop.f32.mrf.mxu0
      %v9828 = vadd.f32 %v8529, %v9827
      %v9829 = vpop.f32.mrf.mxu0
      %v9830 = vadd.f32 %v8529, %v9829
      %9831 = vmatmul.bf16.gmra.mxu0 %v8863
      %v9832 = vpop.f32.mrf.mxu0
      %v9833 = vadd.f32 %v8529, %v9832
      %v9834 = vpop.f32.mrf.mxu0
      %v9835 = vadd.f32 %v8529, %v9834
      %9836 = vmatmul.bf16.gmra.mxu0 %v8868
      %v9837 = vpop.f32.mrf.mxu0
      %v9838 = vadd.f32 %v8529, %v9837
      %v9839 = vpop.f32.mrf.mxu0
      %v9840 = vadd.f32 %v8529, %v9839
      %9841 = vdwg.mxu0
      %9842 = vmatpush.bf16.msra.mxu0 %v9493
      %9843 = vmatpush.bf16.msra.mxu0 %v9489
      %9844 = vmatpush.bf16.msra.mxu0 %v9485
      %9845 = vmatpush.bf16.msra.mxu0 %v9481
      %9846 = vmatpush.bf16.msra.mxu0 %v9477
      %9847 = vmatpush.bf16.msra.mxu0 %v9473
      %9848 = vmatpush.bf16.msra.mxu0 %v9469
      %9849 = vmatpush.bf16.msra.mxu0 %v9465
      %9850 = vmatmul.bf16.gmra.mxu0 %v8794
      %v9851 = vpop.f32.mrf.mxu0
      %v9852 = vadd.f32 %v9763, %v9851
      %v9853 = vpop.f32.mrf.mxu0
      %v9854 = vadd.f32 %v9765, %v9853
      %9855 = vmatmul.bf16.gmra.mxu0 %v8799
      %v9856 = vpop.f32.mrf.mxu0
      %v9857 = vadd.f32 %v9768, %v9856
      %v9858 = vpop.f32.mrf.mxu0
      %v9859 = vadd.f32 %v9770, %v9858
      %9860 = vmatmul.bf16.gmra.mxu0 %v8804
      %v9861 = vpop.f32.mrf.mxu0
      %v9862 = vadd.f32 %v9773, %v9861
      %v9863 = vpop.f32.mrf.mxu0
      %v9864 = vadd.f32 %v9775, %v9863
      %9865 = vmatmul.bf16.gmra.mxu0 %v8809
      %v9866 = vpop.f32.mrf.mxu0
      %v9867 = vadd.f32 %v9778, %v9866
      %v9868 = vpop.f32.mrf.mxu0
      %v9869 = vadd.f32 %v9780, %v9868
      %9870 = vmatmul.bf16.gmra.mxu0 %v8814
      %v9871 = vpop.f32.mrf.mxu0
      %v9872 = vadd.f32 %v9783, %v9871
      %v9873 = vpop.f32.mrf.mxu0
      %v9874 = vadd.f32 %v9785, %v9873
      %9875 = vmatmul.bf16.gmra.mxu0 %v8819
      %v9876 = vpop.f32.mrf.mxu0
      %v9877 = vadd.f32 %v9788, %v9876
      %v9878 = vpop.f32.mrf.mxu0
      %v9879 = vadd.f32 %v9790, %v9878
      %9880 = vmatmul.bf16.gmra.mxu0 %v8824
      %v9881 = vpop.f32.mrf.mxu0
      %v9882 = vadd.f32 %v9793, %v9881
      %v9883 = vpop.f32.mrf.mxu0
      %v9884 = vadd.f32 %v9795, %v9883
      %9885 = vmatmul.bf16.gmra.mxu0 %v8829
      %v9886 = vpop.f32.mrf.mxu0
      %v9887 = vadd.f32 %v9798, %v9886
      %v9888 = vpop.f32.mrf.mxu0
      %v9889 = vadd.f32 %v9800, %v9888
      %9890 = vmatmul.bf16.gmra.mxu0 %v8834
      %v9891 = vpop.f32.mrf.mxu0
      %v9892 = vadd.f32 %v9803, %v9891
      %v9893 = vpop.f32.mrf.mxu0
      %v9894 = vadd.f32 %v9805, %v9893
      %9895 = vmatmul.bf16.gmra.mxu0 %v8839
      %v9896 = vpop.f32.mrf.mxu0
      %v9897 = vadd.f32 %v9808, %v9896
      %v9898 = vpop.f32.mrf.mxu0
      %v9899 = vadd.f32 %v9810, %v9898
      %9900 = vmatmul.bf16.gmra.mxu0 %v8844
      %v9901 = vpop.f32.mrf.mxu0
      %v9902 = vadd.f32 %v9813, %v9901
      %v9903 = vpop.f32.mrf.mxu0
      %v9904 = vadd.f32 %v9815, %v9903
      %9905 = vmatmul.bf16.gmra.mxu0 %v8849
      %v9906 = vpop.f32.mrf.mxu0
      %v9907 = vadd.f32 %v9818, %v9906
      %v9908 = vpop.f32.mrf.mxu0
      %v9909 = vadd.f32 %v9820, %v9908
      %9910 = vmatmul.bf16.gmra.mxu0 %v8854
      %v9911 = vpop.f32.mrf.mxu0
      %v9912 = vadd.f32 %v9823, %v9911
      %v9913 = vpop.f32.mrf.mxu0
      %v9914 = vadd.f32 %v9825, %v9913
      %9915 = vmatmul.bf16.gmra.mxu0 %v8859
      %v9916 = vpop.f32.mrf.mxu0
      %v9917 = vadd.f32 %v9828, %v9916
      %v9918 = vpop.f32.mrf.mxu0
      %v9919 = vadd.f32 %v9830, %v9918
      %9920 = vmatmul.bf16.gmra.mxu0 %v8864
      %v9921 = vpop.f32.mrf.mxu0
      %v9922 = vadd.f32 %v9833, %v9921
      %v9923 = vpop.f32.mrf.mxu0
      %v9924 = vadd.f32 %v9835, %v9923
      %9925 = vmatmul.bf16.gmra.mxu0 %v8869
      %v9926 = vpop.f32.mrf.mxu0
      %v9927 = vadd.f32 %v9838, %v9926
      %v9928 = vpop.f32.mrf.mxu0
      %v9929 = vadd.f32 %v9840, %v9928
      %9930 = vdwg.mxu0
      %9931 = vmatpush.bf16.msra.mxu0 %v9525
      %9932 = vmatpush.bf16.msra.mxu0 %v9521
      %9933 = vmatpush.bf16.msra.mxu0 %v9517
      %9934 = vmatpush.bf16.msra.mxu0 %v9513
      %9935 = vmatpush.bf16.msra.mxu0 %v9509
      %9936 = vmatpush.bf16.msra.mxu0 %v9505
      %9937 = vmatpush.bf16.msra.mxu0 %v9501
      %9938 = vmatpush.bf16.msra.mxu0 %v9497
      %9939 = vmatmul.bf16.gmra.mxu0 %v8795
      %v9940 = vpop.f32.mrf.mxu0
      %v9941 = vadd.f32 %v9852, %v9940
      %v9942 = vpop.f32.mrf.mxu0
      %v9943 = vadd.f32 %v9854, %v9942
      %9944 = vmatmul.bf16.gmra.mxu0 %v8800
      %v9945 = vpop.f32.mrf.mxu0
      %v9946 = vadd.f32 %v9857, %v9945
      %v9947 = vpop.f32.mrf.mxu0
      %v9948 = vadd.f32 %v9859, %v9947
      %9949 = vmatmul.bf16.gmra.mxu0 %v8805
      %v9950 = vpop.f32.mrf.mxu0
      %v9951 = vadd.f32 %v9862, %v9950
      %v9952 = vpop.f32.mrf.mxu0
      %v9953 = vadd.f32 %v9864, %v9952
      %9954 = vmatmul.bf16.gmra.mxu0 %v8810
      %v9955 = vpop.f32.mrf.mxu0
      %v9956 = vadd.f32 %v9867, %v9955
      %v9957 = vpop.f32.mrf.mxu0
      %v9958 = vadd.f32 %v9869, %v9957
      %9959 = vmatmul.bf16.gmra.mxu0 %v8815
      %v9960 = vpop.f32.mrf.mxu0
      %v9961 = vadd.f32 %v9872, %v9960
      %v9962 = vpop.f32.mrf.mxu0
      %v9963 = vadd.f32 %v9874, %v9962
      %9964 = vmatmul.bf16.gmra.mxu0 %v8820
      %v9965 = vpop.f32.mrf.mxu0
      %v9966 = vadd.f32 %v9877, %v9965
      %v9967 = vpop.f32.mrf.mxu0
      %v9968 = vadd.f32 %v9879, %v9967
      %9969 = vmatmul.bf16.gmra.mxu0 %v8825
      %v9970 = vpop.f32.mrf.mxu0
      %v9971 = vadd.f32 %v9882, %v9970
      %v9972 = vpop.f32.mrf.mxu0
      %v9973 = vadd.f32 %v9884, %v9972
      %9974 = vmatmul.bf16.gmra.mxu0 %v8830
      %v9975 = vpop.f32.mrf.mxu0
      %v9976 = vadd.f32 %v9887, %v9975
      %v9977 = vpop.f32.mrf.mxu0
      %v9978 = vadd.f32 %v9889, %v9977
      %9979 = vmatmul.bf16.gmra.mxu0 %v8835
      %v9980 = vpop.f32.mrf.mxu0
      %v9981 = vadd.f32 %v9892, %v9980
      %v9982 = vpop.f32.mrf.mxu0
      %v9983 = vadd.f32 %v9894, %v9982
      %9984 = vmatmul.bf16.gmra.mxu0 %v8840
      %v9985 = vpop.f32.mrf.mxu0
      %v9986 = vadd.f32 %v9897, %v9985
      %v9987 = vpop.f32.mrf.mxu0
      %v9988 = vadd.f32 %v9899, %v9987
      %9989 = vmatmul.bf16.gmra.mxu0 %v8845
      %v9990 = vpop.f32.mrf.mxu0
      %v9991 = vadd.f32 %v9902, %v9990
      %v9992 = vpop.f32.mrf.mxu0
      %v9993 = vadd.f32 %v9904, %v9992
      %9994 = vmatmul.bf16.gmra.mxu0 %v8850
      %v9995 = vpop.f32.mrf.mxu0
      %v9996 = vadd.f32 %v9907, %v9995
      %v9997 = vpop.f32.mrf.mxu0
      %v9998 = vadd.f32 %v9909, %v9997
      %9999 = vmatmul.bf16.gmra.mxu0 %v8855
      %v10000 = vpop.f32.mrf.mxu0
      %v10001 = vadd.f32 %v9912, %v10000
      %v10002 = vpop.f32.mrf.mxu0
      %v10003 = vadd.f32 %v9914, %v10002
      %10004 = vmatmul.bf16.gmra.mxu0 %v8860
      %v10005 = vpop.f32.mrf.mxu0
      %v10006 = vadd.f32 %v9917, %v10005
      %v10007 = vpop.f32.mrf.mxu0
      %v10008 = vadd.f32 %v9919, %v10007
      %10009 = vmatmul.bf16.gmra.mxu0 %v8865
      %v10010 = vpop.f32.mrf.mxu0
      %v10011 = vadd.f32 %v9922, %v10010
      %v10012 = vpop.f32.mrf.mxu0
      %v10013 = vadd.f32 %v9924, %v10012
      %10014 = vmatmul.bf16.gmra.mxu0 %v8870
      %v10015 = vpop.f32.mrf.mxu0
      %v10016 = vadd.f32 %v9927, %v10015
      %v10017 = vpop.f32.mrf.mxu0
      %v10018 = vadd.f32 %v9929, %v10017
      %10019 = vdwg.mxu0
      %10020 = vmatpush.bf16.msra.mxu0 %v9557
      %10021 = vmatpush.bf16.msra.mxu0 %v9553
      %10022 = vmatpush.bf16.msra.mxu0 %v9549
      %10023 = vmatpush.bf16.msra.mxu0 %v9545
      %10024 = vmatpush.bf16.msra.mxu0 %v9541
      %10025 = vmatpush.bf16.msra.mxu0 %v9537
      %10026 = vmatpush.bf16.msra.mxu0 %v9533
      %10027 = vmatpush.bf16.msra.mxu0 %v9529
      %10028 = vmatmul.bf16.gmra.mxu0 %v8796
      %v10029 = vpop.f32.mrf.mxu0
      %v10030 = vadd.f32 %v9941, %v10029
      %v10031 = vpop.f32.mrf.mxu0
      %v10032 = vadd.f32 %v9943, %v10031
      %10033 = vmatmul.bf16.gmra.mxu0 %v8801
      %v10034 = vpop.f32.mrf.mxu0
      %v10035 = vadd.f32 %v9946, %v10034
      %v10036 = vpop.f32.mrf.mxu0
      %v10037 = vadd.f32 %v9948, %v10036
      %10038 = vmatmul.bf16.gmra.mxu0 %v8806
      %v10039 = vpop.f32.mrf.mxu0
      %v10040 = vadd.f32 %v9951, %v10039
      %v10041 = vpop.f32.mrf.mxu0
      %v10042 = vadd.f32 %v9953, %v10041
      %10043 = vmatmul.bf16.gmra.mxu0 %v8811
      %v10044 = vpop.f32.mrf.mxu0
      %v10045 = vadd.f32 %v9956, %v10044
      %v10046 = vpop.f32.mrf.mxu0
      %v10047 = vadd.f32 %v9958, %v10046
      %10048 = vmatmul.bf16.gmra.mxu0 %v8816
      %v10049 = vpop.f32.mrf.mxu0
      %v10050 = vadd.f32 %v9961, %v10049
      %v10051 = vpop.f32.mrf.mxu0
      %v10052 = vadd.f32 %v9963, %v10051
      %10053 = vmatmul.bf16.gmra.mxu0 %v8821
      %v10054 = vpop.f32.mrf.mxu0
      %v10055 = vadd.f32 %v9966, %v10054
      %v10056 = vpop.f32.mrf.mxu0
      %v10057 = vadd.f32 %v9968, %v10056
      %10058 = vmatmul.bf16.gmra.mxu0 %v8826
      %v10059 = vpop.f32.mrf.mxu0
      %v10060 = vadd.f32 %v9971, %v10059
      %v10061 = vpop.f32.mrf.mxu0
      %v10062 = vadd.f32 %v9973, %v10061
      %10063 = vmatmul.bf16.gmra.mxu0 %v8831
      %v10064 = vpop.f32.mrf.mxu0
      %v10065 = vadd.f32 %v9976, %v10064
      %v10066 = vpop.f32.mrf.mxu0
      %v10067 = vadd.f32 %v9978, %v10066
      %10068 = vmatmul.bf16.gmra.mxu0 %v8836
      %v10069 = vpop.f32.mrf.mxu0
      %v10070 = vadd.f32 %v9981, %v10069
      %v10071 = vpop.f32.mrf.mxu0
      %v10072 = vadd.f32 %v9983, %v10071
      %10073 = vmatmul.bf16.gmra.mxu0 %v8841
      %v10074 = vpop.f32.mrf.mxu0
      %v10075 = vadd.f32 %v9986, %v10074
      %v10076 = vpop.f32.mrf.mxu0
      %v10077 = vadd.f32 %v9988, %v10076
      %10078 = vmatmul.bf16.gmra.mxu0 %v8846
      %v10079 = vpop.f32.mrf.mxu0
      %v10080 = vadd.f32 %v9991, %v10079
      %v10081 = vpop.f32.mrf.mxu0
      %v10082 = vadd.f32 %v9993, %v10081
      %10083 = vmatmul.bf16.gmra.mxu0 %v8851
      %v10084 = vpop.f32.mrf.mxu0
      %v10085 = vadd.f32 %v9996, %v10084
      %v10086 = vpop.f32.mrf.mxu0
      %v10087 = vadd.f32 %v9998, %v10086
      %10088 = vmatmul.bf16.gmra.mxu0 %v8856
      %v10089 = vpop.f32.mrf.mxu0
      %v10090 = vadd.f32 %v10001, %v10089
      %v10091 = vpop.f32.mrf.mxu0
      %v10092 = vadd.f32 %v10003, %v10091
      %10093 = vmatmul.bf16.gmra.mxu0 %v8861
      %v10094 = vpop.f32.mrf.mxu0
      %v10095 = vadd.f32 %v10006, %v10094
      %v10096 = vpop.f32.mrf.mxu0
      %v10097 = vadd.f32 %v10008, %v10096
      %10098 = vmatmul.bf16.gmra.mxu0 %v8866
      %v10099 = vpop.f32.mrf.mxu0
      %v10100 = vadd.f32 %v10011, %v10099
      %v10101 = vpop.f32.mrf.mxu0
      %v10102 = vadd.f32 %v10013, %v10101
      %10103 = vmatmul.bf16.gmra.mxu0 %v8871
      %v10104 = vpop.f32.mrf.mxu0
      %v10105 = vadd.f32 %v10016, %v10104
      %v10106 = vpop.f32.mrf.mxu0
      %v10107 = vadd.f32 %v10018, %v10106
      %10108 = vdwg.mxu0
      %10109 = vmatpush.bf16.msra.mxu0 %v9589
      %10110 = vmatpush.bf16.msra.mxu0 %v9585
      %10111 = vmatpush.bf16.msra.mxu0 %v9581
      %10112 = vmatpush.bf16.msra.mxu0 %v9577
      %10113 = vmatpush.bf16.msra.mxu0 %v9573
      %10114 = vmatpush.bf16.msra.mxu0 %v9569
      %10115 = vmatpush.bf16.msra.mxu0 %v9565
      %10116 = vmatpush.bf16.msra.mxu0 %v9561
      %10117 = vmatmul.bf16.gmra.mxu0 %v8797
      %v10118 = vpop.f32.mrf.mxu0
      %v10119 = vadd.f32 %v10030, %v10118
      %v10120 = vpop.f32.mrf.mxu0
      %v10121 = vadd.f32 %v10032, %v10120
      %10122 = vmatmul.bf16.gmra.mxu0 %v8802
      %v10123 = vpop.f32.mrf.mxu0
      %v10124 = vadd.f32 %v10035, %v10123
      %v10125 = vpop.f32.mrf.mxu0
      %v10126 = vadd.f32 %v10037, %v10125
      %10127 = vmatmul.bf16.gmra.mxu0 %v8807
      %v10128 = vpop.f32.mrf.mxu0
      %v10129 = vadd.f32 %v10040, %v10128
      %v10130 = vpop.f32.mrf.mxu0
      %v10131 = vadd.f32 %v10042, %v10130
      %10132 = vmatmul.bf16.gmra.mxu0 %v8812
      %v10133 = vpop.f32.mrf.mxu0
      %v10134 = vadd.f32 %v10045, %v10133
      %v10135 = vpop.f32.mrf.mxu0
      %v10136 = vadd.f32 %v10047, %v10135
      %10137 = vmatmul.bf16.gmra.mxu0 %v8817
      %v10138 = vpop.f32.mrf.mxu0
      %v10139 = vadd.f32 %v10050, %v10138
      %v10140 = vpop.f32.mrf.mxu0
      %v10141 = vadd.f32 %v10052, %v10140
      %10142 = vmatmul.bf16.gmra.mxu0 %v8822
      %v10143 = vpop.f32.mrf.mxu0
      %v10144 = vadd.f32 %v10055, %v10143
      %v10145 = vpop.f32.mrf.mxu0
      %v10146 = vadd.f32 %v10057, %v10145
      %10147 = vmatmul.bf16.gmra.mxu0 %v8827
      %v10148 = vpop.f32.mrf.mxu0
      %v10149 = vadd.f32 %v10060, %v10148
      %v10150 = vpop.f32.mrf.mxu0
      %v10151 = vadd.f32 %v10062, %v10150
      %10152 = vmatmul.bf16.gmra.mxu0 %v8832
      %v10153 = vpop.f32.mrf.mxu0
      %v10154 = vadd.f32 %v10065, %v10153
      %v10155 = vpop.f32.mrf.mxu0
      %v10156 = vadd.f32 %v10067, %v10155
      %10157 = vmatmul.bf16.gmra.mxu0 %v8837
      %v10158 = vpop.f32.mrf.mxu0
      %v10159 = vadd.f32 %v10070, %v10158
      %v10160 = vpop.f32.mrf.mxu0
      %v10161 = vadd.f32 %v10072, %v10160
      %10162 = vmatmul.bf16.gmra.mxu0 %v8842
      %v10163 = vpop.f32.mrf.mxu0
      %v10164 = vadd.f32 %v10075, %v10163
      %v10165 = vpop.f32.mrf.mxu0
      %v10166 = vadd.f32 %v10077, %v10165
      %10167 = vmatmul.bf16.gmra.mxu0 %v8847
      %v10168 = vpop.f32.mrf.mxu0
      %v10169 = vadd.f32 %v10080, %v10168
      %v10170 = vpop.f32.mrf.mxu0
      %v10171 = vadd.f32 %v10082, %v10170
      %10172 = vmatmul.bf16.gmra.mxu0 %v8852
      %v10173 = vpop.f32.mrf.mxu0
      %v10174 = vadd.f32 %v10085, %v10173
      %v10175 = vpop.f32.mrf.mxu0
      %v10176 = vadd.f32 %v10087, %v10175
      %10177 = vmatmul.bf16.gmra.mxu0 %v8857
      %v10178 = vpop.f32.mrf.mxu0
      %v10179 = vadd.f32 %v10090, %v10178
      %v10180 = vpop.f32.mrf.mxu0
      %v10181 = vadd.f32 %v10092, %v10180
      %10182 = vmatmul.bf16.gmra.mxu0 %v8862
      %v10183 = vpop.f32.mrf.mxu0
      %v10184 = vadd.f32 %v10095, %v10183
      %v10185 = vpop.f32.mrf.mxu0
      %v10186 = vadd.f32 %v10097, %v10185
      %10187 = vmatmul.bf16.gmra.mxu0 %v8867
      %v10188 = vpop.f32.mrf.mxu0
      %v10189 = vadd.f32 %v10100, %v10188
      %v10190 = vpop.f32.mrf.mxu0
      %v10191 = vadd.f32 %v10102, %v10190
      %10192 = vmatmul.bf16.gmra.mxu0 %v8872
      %v10193 = vpop.f32.mrf.mxu0
      %v10194 = vadd.f32 %v10105, %v10193
      %v10195 = vpop.f32.mrf.mxu0
      %v10196 = vadd.f32 %v10107, %v10195
      %10197 = vdwg.mxu0
      %10198 = vmatpush.bf16.msra.mxu0 %v9462
      %10199 = vmatpush.bf16.msra.mxu0 %v9458
      %10200 = vmatpush.bf16.msra.mxu0 %v9454
      %10201 = vmatpush.bf16.msra.mxu0 %v9450
      %10202 = vmatpush.bf16.msra.mxu0 %v9446
      %10203 = vmatpush.bf16.msra.mxu0 %v9442
      %10204 = vmatpush.bf16.msra.mxu0 %v9438
      %10205 = vmatpush.bf16.msra.mxu0 %v9434
      %10206 = vmatmul.bf16.gmra.mxu0 %v8793
      %v10207 = vpop.f32.mrf.mxu0
      %v10208 = vadd.f32 %v8530, %v10207
      %v10209 = vpop.f32.mrf.mxu0
      %v10210 = vadd.f32 %v8530, %v10209
      %10211 = vmatmul.bf16.gmra.mxu0 %v8798
      %v10212 = vpop.f32.mrf.mxu0
      %v10213 = vadd.f32 %v8530, %v10212
      %v10214 = vpop.f32.mrf.mxu0
      %v10215 = vadd.f32 %v8530, %v10214
      %10216 = vmatmul.bf16.gmra.mxu0 %v8803
      %v10217 = vpop.f32.mrf.mxu0
      %v10218 = vadd.f32 %v8530, %v10217
      %v10219 = vpop.f32.mrf.mxu0
      %v10220 = vadd.f32 %v8530, %v10219
      %10221 = vmatmul.bf16.gmra.mxu0 %v8808
      %v10222 = vpop.f32.mrf.mxu0
      %v10223 = vadd.f32 %v8530, %v10222
      %v10224 = vpop.f32.mrf.mxu0
      %v10225 = vadd.f32 %v8530, %v10224
      %10226 = vmatmul.bf16.gmra.mxu0 %v8813
      %v10227 = vpop.f32.mrf.mxu0
      %v10228 = vadd.f32 %v8530, %v10227
      %v10229 = vpop.f32.mrf.mxu0
      %v10230 = vadd.f32 %v8530, %v10229
      %10231 = vmatmul.bf16.gmra.mxu0 %v8818
      %v10232 = vpop.f32.mrf.mxu0
      %v10233 = vadd.f32 %v8530, %v10232
      %v10234 = vpop.f32.mrf.mxu0
      %v10235 = vadd.f32 %v8530, %v10234
      %10236 = vmatmul.bf16.gmra.mxu0 %v8823
      %v10237 = vpop.f32.mrf.mxu0
      %v10238 = vadd.f32 %v8530, %v10237
      %v10239 = vpop.f32.mrf.mxu0
      %v10240 = vadd.f32 %v8530, %v10239
      %10241 = vmatmul.bf16.gmra.mxu0 %v8828
      %v10242 = vpop.f32.mrf.mxu0
      %v10243 = vadd.f32 %v8530, %v10242
      %v10244 = vpop.f32.mrf.mxu0
      %v10245 = vadd.f32 %v8530, %v10244
      %10246 = vmatmul.bf16.gmra.mxu0 %v8833
      %v10247 = vpop.f32.mrf.mxu0
      %v10248 = vadd.f32 %v8530, %v10247
      %v10249 = vpop.f32.mrf.mxu0
      %v10250 = vadd.f32 %v8530, %v10249
      %10251 = vmatmul.bf16.gmra.mxu0 %v8838
      %v10252 = vpop.f32.mrf.mxu0
      %v10253 = vadd.f32 %v8530, %v10252
      %v10254 = vpop.f32.mrf.mxu0
      %v10255 = vadd.f32 %v8530, %v10254
      %10256 = vmatmul.bf16.gmra.mxu0 %v8843
      %v10257 = vpop.f32.mrf.mxu0
      %v10258 = vadd.f32 %v8530, %v10257
      %v10259 = vpop.f32.mrf.mxu0
      %v10260 = vadd.f32 %v8530, %v10259
      %10261 = vmatmul.bf16.gmra.mxu0 %v8848
      %v10262 = vpop.f32.mrf.mxu0
      %v10263 = vadd.f32 %v8530, %v10262
      %v10264 = vpop.f32.mrf.mxu0
      %v10265 = vadd.f32 %v8530, %v10264
      %10266 = vmatmul.bf16.gmra.mxu0 %v8853
      %v10267 = vpop.f32.mrf.mxu0
      %v10268 = vadd.f32 %v8530, %v10267
      %v10269 = vpop.f32.mrf.mxu0
      %v10270 = vadd.f32 %v8530, %v10269
      %10271 = vmatmul.bf16.gmra.mxu0 %v8858
      %v10272 = vpop.f32.mrf.mxu0
      %v10273 = vadd.f32 %v8530, %v10272
      %v10274 = vpop.f32.mrf.mxu0
      %v10275 = vadd.f32 %v8530, %v10274
      %10276 = vmatmul.bf16.gmra.mxu0 %v8863
      %v10277 = vpop.f32.mrf.mxu0
      %v10278 = vadd.f32 %v8530, %v10277
      %v10279 = vpop.f32.mrf.mxu0
      %v10280 = vadd.f32 %v8530, %v10279
      %10281 = vmatmul.bf16.gmra.mxu0 %v8868
      %v10282 = vpop.f32.mrf.mxu0
      %v10283 = vadd.f32 %v8530, %v10282
      %v10284 = vpop.f32.mrf.mxu0
      %v10285 = vadd.f32 %v8530, %v10284
      %10286 = vdwg.mxu0
      %10287 = vmatpush.bf16.msra.mxu0 %v9494
      %10288 = vmatpush.bf16.msra.mxu0 %v9490
      %10289 = vmatpush.bf16.msra.mxu0 %v9486
      %10290 = vmatpush.bf16.msra.mxu0 %v9482
      %10291 = vmatpush.bf16.msra.mxu0 %v9478
      %10292 = vmatpush.bf16.msra.mxu0 %v9474
      %10293 = vmatpush.bf16.msra.mxu0 %v9470
      %10294 = vmatpush.bf16.msra.mxu0 %v9466
      %10295 = vmatmul.bf16.gmra.mxu0 %v8794
      %v10296 = vpop.f32.mrf.mxu0
      %v10297 = vadd.f32 %v10208, %v10296
      %v10298 = vpop.f32.mrf.mxu0
      %v10299 = vadd.f32 %v10210, %v10298
      %10300 = vmatmul.bf16.gmra.mxu0 %v8799
      %v10301 = vpop.f32.mrf.mxu0
      %v10302 = vadd.f32 %v10213, %v10301
      %v10303 = vpop.f32.mrf.mxu0
      %v10304 = vadd.f32 %v10215, %v10303
      %10305 = vmatmul.bf16.gmra.mxu0 %v8804
      %v10306 = vpop.f32.mrf.mxu0
      %v10307 = vadd.f32 %v10218, %v10306
      %v10308 = vpop.f32.mrf.mxu0
      %v10309 = vadd.f32 %v10220, %v10308
      %10310 = vmatmul.bf16.gmra.mxu0 %v8809
      %v10311 = vpop.f32.mrf.mxu0
      %v10312 = vadd.f32 %v10223, %v10311
      %v10313 = vpop.f32.mrf.mxu0
      %v10314 = vadd.f32 %v10225, %v10313
      %10315 = vmatmul.bf16.gmra.mxu0 %v8814
      %v10316 = vpop.f32.mrf.mxu0
      %v10317 = vadd.f32 %v10228, %v10316
      %v10318 = vpop.f32.mrf.mxu0
      %v10319 = vadd.f32 %v10230, %v10318
      %10320 = vmatmul.bf16.gmra.mxu0 %v8819
      %v10321 = vpop.f32.mrf.mxu0
      %v10322 = vadd.f32 %v10233, %v10321
      %v10323 = vpop.f32.mrf.mxu0
      %v10324 = vadd.f32 %v10235, %v10323
      %10325 = vmatmul.bf16.gmra.mxu0 %v8824
      %v10326 = vpop.f32.mrf.mxu0
      %v10327 = vadd.f32 %v10238, %v10326
      %v10328 = vpop.f32.mrf.mxu0
      %v10329 = vadd.f32 %v10240, %v10328
      %10330 = vmatmul.bf16.gmra.mxu0 %v8829
      %v10331 = vpop.f32.mrf.mxu0
      %v10332 = vadd.f32 %v10243, %v10331
      %v10333 = vpop.f32.mrf.mxu0
      %v10334 = vadd.f32 %v10245, %v10333
      %10335 = vmatmul.bf16.gmra.mxu0 %v8834
      %v10336 = vpop.f32.mrf.mxu0
      %v10337 = vadd.f32 %v10248, %v10336
      %v10338 = vpop.f32.mrf.mxu0
      %v10339 = vadd.f32 %v10250, %v10338
      %10340 = vmatmul.bf16.gmra.mxu0 %v8839
      %v10341 = vpop.f32.mrf.mxu0
      %v10342 = vadd.f32 %v10253, %v10341
      %v10343 = vpop.f32.mrf.mxu0
      %v10344 = vadd.f32 %v10255, %v10343
      %10345 = vmatmul.bf16.gmra.mxu0 %v8844
      %v10346 = vpop.f32.mrf.mxu0
      %v10347 = vadd.f32 %v10258, %v10346
      %v10348 = vpop.f32.mrf.mxu0
      %v10349 = vadd.f32 %v10260, %v10348
      %10350 = vmatmul.bf16.gmra.mxu0 %v8849
      %v10351 = vpop.f32.mrf.mxu0
      %v10352 = vadd.f32 %v10263, %v10351
      %v10353 = vpop.f32.mrf.mxu0
      %v10354 = vadd.f32 %v10265, %v10353
      %10355 = vmatmul.bf16.gmra.mxu0 %v8854
      %v10356 = vpop.f32.mrf.mxu0
      %v10357 = vadd.f32 %v10268, %v10356
      %v10358 = vpop.f32.mrf.mxu0
      %v10359 = vadd.f32 %v10270, %v10358
      %10360 = vmatmul.bf16.gmra.mxu0 %v8859
      %v10361 = vpop.f32.mrf.mxu0
      %v10362 = vadd.f32 %v10273, %v10361
      %v10363 = vpop.f32.mrf.mxu0
      %v10364 = vadd.f32 %v10275, %v10363
      %10365 = vmatmul.bf16.gmra.mxu0 %v8864
      %v10366 = vpop.f32.mrf.mxu0
      %v10367 = vadd.f32 %v10278, %v10366
      %v10368 = vpop.f32.mrf.mxu0
      %v10369 = vadd.f32 %v10280, %v10368
      %10370 = vmatmul.bf16.gmra.mxu0 %v8869
      %v10371 = vpop.f32.mrf.mxu0
      %v10372 = vadd.f32 %v10283, %v10371
      %v10373 = vpop.f32.mrf.mxu0
      %v10374 = vadd.f32 %v10285, %v10373
      %10375 = vdwg.mxu0
      %10376 = vmatpush.bf16.msra.mxu0 %v9526
      %10377 = vmatpush.bf16.msra.mxu0 %v9522
      %10378 = vmatpush.bf16.msra.mxu0 %v9518
      %10379 = vmatpush.bf16.msra.mxu0 %v9514
      %10380 = vmatpush.bf16.msra.mxu0 %v9510
      %10381 = vmatpush.bf16.msra.mxu0 %v9506
      %10382 = vmatpush.bf16.msra.mxu0 %v9502
      %10383 = vmatpush.bf16.msra.mxu0 %v9498
      %10384 = vmatmul.bf16.gmra.mxu0 %v8795
      %v10385 = vpop.f32.mrf.mxu0
      %v10386 = vadd.f32 %v10297, %v10385
      %v10387 = vpop.f32.mrf.mxu0
      %v10388 = vadd.f32 %v10299, %v10387
      %10389 = vmatmul.bf16.gmra.mxu0 %v8800
      %v10390 = vpop.f32.mrf.mxu0
      %v10391 = vadd.f32 %v10302, %v10390
      %v10392 = vpop.f32.mrf.mxu0
      %v10393 = vadd.f32 %v10304, %v10392
      %10394 = vmatmul.bf16.gmra.mxu0 %v8805
      %v10395 = vpop.f32.mrf.mxu0
      %v10396 = vadd.f32 %v10307, %v10395
      %v10397 = vpop.f32.mrf.mxu0
      %v10398 = vadd.f32 %v10309, %v10397
      %10399 = vmatmul.bf16.gmra.mxu0 %v8810
      %v10400 = vpop.f32.mrf.mxu0
      %v10401 = vadd.f32 %v10312, %v10400
      %v10402 = vpop.f32.mrf.mxu0
      %v10403 = vadd.f32 %v10314, %v10402
      %10404 = vmatmul.bf16.gmra.mxu0 %v8815
      %v10405 = vpop.f32.mrf.mxu0
      %v10406 = vadd.f32 %v10317, %v10405
      %v10407 = vpop.f32.mrf.mxu0
      %v10408 = vadd.f32 %v10319, %v10407
      %10409 = vmatmul.bf16.gmra.mxu0 %v8820
      %v10410 = vpop.f32.mrf.mxu0
      %v10411 = vadd.f32 %v10322, %v10410
      %v10412 = vpop.f32.mrf.mxu0
      %v10413 = vadd.f32 %v10324, %v10412
      %10414 = vmatmul.bf16.gmra.mxu0 %v8825
      %v10415 = vpop.f32.mrf.mxu0
      %v10416 = vadd.f32 %v10327, %v10415
      %v10417 = vpop.f32.mrf.mxu0
      %v10418 = vadd.f32 %v10329, %v10417
      %10419 = vmatmul.bf16.gmra.mxu0 %v8830
      %v10420 = vpop.f32.mrf.mxu0
      %v10421 = vadd.f32 %v10332, %v10420
      %v10422 = vpop.f32.mrf.mxu0
      %v10423 = vadd.f32 %v10334, %v10422
      %10424 = vmatmul.bf16.gmra.mxu0 %v8835
      %v10425 = vpop.f32.mrf.mxu0
      %v10426 = vadd.f32 %v10337, %v10425
      %v10427 = vpop.f32.mrf.mxu0
      %v10428 = vadd.f32 %v10339, %v10427
      %10429 = vmatmul.bf16.gmra.mxu0 %v8840
      %v10430 = vpop.f32.mrf.mxu0
      %v10431 = vadd.f32 %v10342, %v10430
      %v10432 = vpop.f32.mrf.mxu0
      %v10433 = vadd.f32 %v10344, %v10432
      %10434 = vmatmul.bf16.gmra.mxu0 %v8845
      %v10435 = vpop.f32.mrf.mxu0
      %v10436 = vadd.f32 %v10347, %v10435
      %v10437 = vpop.f32.mrf.mxu0
      %v10438 = vadd.f32 %v10349, %v10437
      %10439 = vmatmul.bf16.gmra.mxu0 %v8850
      %v10440 = vpop.f32.mrf.mxu0
      %v10441 = vadd.f32 %v10352, %v10440
      %v10442 = vpop.f32.mrf.mxu0
      %v10443 = vadd.f32 %v10354, %v10442
      %10444 = vmatmul.bf16.gmra.mxu0 %v8855
      %v10445 = vpop.f32.mrf.mxu0
      %v10446 = vadd.f32 %v10357, %v10445
      %v10447 = vpop.f32.mrf.mxu0
      %v10448 = vadd.f32 %v10359, %v10447
      %10449 = vmatmul.bf16.gmra.mxu0 %v8860
      %v10450 = vpop.f32.mrf.mxu0
      %v10451 = vadd.f32 %v10362, %v10450
      %v10452 = vpop.f32.mrf.mxu0
      %v10453 = vadd.f32 %v10364, %v10452
      %10454 = vmatmul.bf16.gmra.mxu0 %v8865
      %v10455 = vpop.f32.mrf.mxu0
      %v10456 = vadd.f32 %v10367, %v10455
      %v10457 = vpop.f32.mrf.mxu0
      %v10458 = vadd.f32 %v10369, %v10457
      %10459 = vmatmul.bf16.gmra.mxu0 %v8870
      %v10460 = vpop.f32.mrf.mxu0
      %v10461 = vadd.f32 %v10372, %v10460
      %v10462 = vpop.f32.mrf.mxu0
      %v10463 = vadd.f32 %v10374, %v10462
      %10464 = vdwg.mxu0
      %10465 = vmatpush.bf16.msra.mxu0 %v9558
      %10466 = vmatpush.bf16.msra.mxu0 %v9554
      %10467 = vmatpush.bf16.msra.mxu0 %v9550
      %10468 = vmatpush.bf16.msra.mxu0 %v9546
      %10469 = vmatpush.bf16.msra.mxu0 %v9542
      %10470 = vmatpush.bf16.msra.mxu0 %v9538
      %10471 = vmatpush.bf16.msra.mxu0 %v9534
      %10472 = vmatpush.bf16.msra.mxu0 %v9530
      %10473 = vmatmul.bf16.gmra.mxu0 %v8796
      %v10474 = vpop.f32.mrf.mxu0
      %v10475 = vadd.f32 %v10386, %v10474
      %v10476 = vpop.f32.mrf.mxu0
      %v10477 = vadd.f32 %v10388, %v10476
      %10478 = vmatmul.bf16.gmra.mxu0 %v8801
      %v10479 = vpop.f32.mrf.mxu0
      %v10480 = vadd.f32 %v10391, %v10479
      %v10481 = vpop.f32.mrf.mxu0
      %v10482 = vadd.f32 %v10393, %v10481
      %10483 = vmatmul.bf16.gmra.mxu0 %v8806
      %v10484 = vpop.f32.mrf.mxu0
      %v10485 = vadd.f32 %v10396, %v10484
      %v10486 = vpop.f32.mrf.mxu0
      %v10487 = vadd.f32 %v10398, %v10486
      %10488 = vmatmul.bf16.gmra.mxu0 %v8811
      %v10489 = vpop.f32.mrf.mxu0
      %v10490 = vadd.f32 %v10401, %v10489
      %v10491 = vpop.f32.mrf.mxu0
      %v10492 = vadd.f32 %v10403, %v10491
      %10493 = vmatmul.bf16.gmra.mxu0 %v8816
      %v10494 = vpop.f32.mrf.mxu0
      %v10495 = vadd.f32 %v10406, %v10494
      %v10496 = vpop.f32.mrf.mxu0
      %v10497 = vadd.f32 %v10408, %v10496
      %10498 = vmatmul.bf16.gmra.mxu0 %v8821
      %v10499 = vpop.f32.mrf.mxu0
      %v10500 = vadd.f32 %v10411, %v10499
      %v10501 = vpop.f32.mrf.mxu0
      %v10502 = vadd.f32 %v10413, %v10501
      %10503 = vmatmul.bf16.gmra.mxu0 %v8826
      %v10504 = vpop.f32.mrf.mxu0
      %v10505 = vadd.f32 %v10416, %v10504
      %v10506 = vpop.f32.mrf.mxu0
      %v10507 = vadd.f32 %v10418, %v10506
      %10508 = vmatmul.bf16.gmra.mxu0 %v8831
      %v10509 = vpop.f32.mrf.mxu0
      %v10510 = vadd.f32 %v10421, %v10509
      %v10511 = vpop.f32.mrf.mxu0
      %v10512 = vadd.f32 %v10423, %v10511
      %10513 = vmatmul.bf16.gmra.mxu0 %v8836
      %v10514 = vpop.f32.mrf.mxu0
      %v10515 = vadd.f32 %v10426, %v10514
      %v10516 = vpop.f32.mrf.mxu0
      %v10517 = vadd.f32 %v10428, %v10516
      %10518 = vmatmul.bf16.gmra.mxu0 %v8841
      %v10519 = vpop.f32.mrf.mxu0
      %v10520 = vadd.f32 %v10431, %v10519
      %v10521 = vpop.f32.mrf.mxu0
      %v10522 = vadd.f32 %v10433, %v10521
      %10523 = vmatmul.bf16.gmra.mxu0 %v8846
      %v10524 = vpop.f32.mrf.mxu0
      %v10525 = vadd.f32 %v10436, %v10524
      %v10526 = vpop.f32.mrf.mxu0
      %v10527 = vadd.f32 %v10438, %v10526
      %10528 = vmatmul.bf16.gmra.mxu0 %v8851
      %v10529 = vpop.f32.mrf.mxu0
      %v10530 = vadd.f32 %v10441, %v10529
      %v10531 = vpop.f32.mrf.mxu0
      %v10532 = vadd.f32 %v10443, %v10531
      %10533 = vmatmul.bf16.gmra.mxu0 %v8856
      %v10534 = vpop.f32.mrf.mxu0
      %v10535 = vadd.f32 %v10446, %v10534
      %v10536 = vpop.f32.mrf.mxu0
      %v10537 = vadd.f32 %v10448, %v10536
      %10538 = vmatmul.bf16.gmra.mxu0 %v8861
      %v10539 = vpop.f32.mrf.mxu0
      %v10540 = vadd.f32 %v10451, %v10539
      %v10541 = vpop.f32.mrf.mxu0
      %v10542 = vadd.f32 %v10453, %v10541
      %10543 = vmatmul.bf16.gmra.mxu0 %v8866
      %v10544 = vpop.f32.mrf.mxu0
      %v10545 = vadd.f32 %v10456, %v10544
      %v10546 = vpop.f32.mrf.mxu0
      %v10547 = vadd.f32 %v10458, %v10546
      %10548 = vmatmul.bf16.gmra.mxu0 %v8871
      %v10549 = vpop.f32.mrf.mxu0
      %v10550 = vadd.f32 %v10461, %v10549
      %v10551 = vpop.f32.mrf.mxu0
      %v10552 = vadd.f32 %v10463, %v10551
      %10553 = vdwg.mxu0
      %10554 = vmatpush.bf16.msra.mxu0 %v9590
      %10555 = vmatpush.bf16.msra.mxu0 %v9586
      %10556 = vmatpush.bf16.msra.mxu0 %v9582
      %10557 = vmatpush.bf16.msra.mxu0 %v9578
      %10558 = vmatpush.bf16.msra.mxu0 %v9574
      %10559 = vmatpush.bf16.msra.mxu0 %v9570
      %10560 = vmatpush.bf16.msra.mxu0 %v9566
      %10561 = vmatpush.bf16.msra.mxu0 %v9562
      %10562 = vmatmul.bf16.gmra.mxu0 %v8797
      %v10563 = vpop.f32.mrf.mxu0
      %v10564 = vadd.f32 %v10475, %v10563
      %v10565 = vpop.f32.mrf.mxu0
      %v10566 = vadd.f32 %v10477, %v10565
      %10567 = vmatmul.bf16.gmra.mxu0 %v8802
      %v10568 = vpop.f32.mrf.mxu0
      %v10569 = vadd.f32 %v10480, %v10568
      %v10570 = vpop.f32.mrf.mxu0
      %v10571 = vadd.f32 %v10482, %v10570
      %10572 = vmatmul.bf16.gmra.mxu0 %v8807
      %v10573 = vpop.f32.mrf.mxu0
      %v10574 = vadd.f32 %v10485, %v10573
      %v10575 = vpop.f32.mrf.mxu0
      %v10576 = vadd.f32 %v10487, %v10575
      %10577 = vmatmul.bf16.gmra.mxu0 %v8812
      %v10578 = vpop.f32.mrf.mxu0
      %v10579 = vadd.f32 %v10490, %v10578
      %v10580 = vpop.f32.mrf.mxu0
      %v10581 = vadd.f32 %v10492, %v10580
      %10582 = vmatmul.bf16.gmra.mxu0 %v8817
      %v10583 = vpop.f32.mrf.mxu0
      %v10584 = vadd.f32 %v10495, %v10583
      %v10585 = vpop.f32.mrf.mxu0
      %v10586 = vadd.f32 %v10497, %v10585
      %10587 = vmatmul.bf16.gmra.mxu0 %v8822
      %v10588 = vpop.f32.mrf.mxu0
      %v10589 = vadd.f32 %v10500, %v10588
      %v10590 = vpop.f32.mrf.mxu0
      %v10591 = vadd.f32 %v10502, %v10590
      %10592 = vmatmul.bf16.gmra.mxu0 %v8827
      %v10593 = vpop.f32.mrf.mxu0
      %v10594 = vadd.f32 %v10505, %v10593
      %v10595 = vpop.f32.mrf.mxu0
      %v10596 = vadd.f32 %v10507, %v10595
      %10597 = vmatmul.bf16.gmra.mxu0 %v8832
      %v10598 = vpop.f32.mrf.mxu0
      %v10599 = vadd.f32 %v10510, %v10598
      %v10600 = vpop.f32.mrf.mxu0
      %v10601 = vadd.f32 %v10512, %v10600
      %10602 = vmatmul.bf16.gmra.mxu0 %v8837
      %v10603 = vpop.f32.mrf.mxu0
      %v10604 = vadd.f32 %v10515, %v10603
      %v10605 = vpop.f32.mrf.mxu0
      %v10606 = vadd.f32 %v10517, %v10605
      %10607 = vmatmul.bf16.gmra.mxu0 %v8842
      %v10608 = vpop.f32.mrf.mxu0
      %v10609 = vadd.f32 %v10520, %v10608
      %v10610 = vpop.f32.mrf.mxu0
      %v10611 = vadd.f32 %v10522, %v10610
      %10612 = vmatmul.bf16.gmra.mxu0 %v8847
      %v10613 = vpop.f32.mrf.mxu0
      %v10614 = vadd.f32 %v10525, %v10613
      %v10615 = vpop.f32.mrf.mxu0
      %v10616 = vadd.f32 %v10527, %v10615
      %10617 = vmatmul.bf16.gmra.mxu0 %v8852
      %v10618 = vpop.f32.mrf.mxu0
      %v10619 = vadd.f32 %v10530, %v10618
      %v10620 = vpop.f32.mrf.mxu0
      %v10621 = vadd.f32 %v10532, %v10620
      %10622 = vmatmul.bf16.gmra.mxu0 %v8857
      %v10623 = vpop.f32.mrf.mxu0
      %v10624 = vadd.f32 %v10535, %v10623
      %v10625 = vpop.f32.mrf.mxu0
      %v10626 = vadd.f32 %v10537, %v10625
      %10627 = vmatmul.bf16.gmra.mxu0 %v8862
      %v10628 = vpop.f32.mrf.mxu0
      %v10629 = vadd.f32 %v10540, %v10628
      %v10630 = vpop.f32.mrf.mxu0
      %v10631 = vadd.f32 %v10542, %v10630
      %10632 = vmatmul.bf16.gmra.mxu0 %v8867
      %v10633 = vpop.f32.mrf.mxu0
      %v10634 = vadd.f32 %v10545, %v10633
      %v10635 = vpop.f32.mrf.mxu0
      %v10636 = vadd.f32 %v10547, %v10635
      %10637 = vmatmul.bf16.gmra.mxu0 %v8872
      %v10638 = vpop.f32.mrf.mxu0
      %v10639 = vadd.f32 %v10550, %v10638
      %v10640 = vpop.f32.mrf.mxu0
      %v10641 = vadd.f32 %v10552, %v10640
      %10642 = vdwg.mxu0
      %10643 = vmatpush.bf16.msra.mxu0 %v9463
      %10644 = vmatpush.bf16.msra.mxu0 %v9459
      %10645 = vmatpush.bf16.msra.mxu0 %v9455
      %10646 = vmatpush.bf16.msra.mxu0 %v9451
      %10647 = vmatpush.bf16.msra.mxu0 %v9447
      %10648 = vmatpush.bf16.msra.mxu0 %v9443
      %10649 = vmatpush.bf16.msra.mxu0 %v9439
      %10650 = vmatpush.bf16.msra.mxu0 %v9435
      %10651 = vmatmul.bf16.gmra.mxu0 %v8793
      %v10652 = vpop.f32.mrf.mxu0
      %v10653 = vadd.f32 %v8531, %v10652
      %v10654 = vpop.f32.mrf.mxu0
      %v10655 = vadd.f32 %v8531, %v10654
      %10656 = vmatmul.bf16.gmra.mxu0 %v8798
      %v10657 = vpop.f32.mrf.mxu0
      %v10658 = vadd.f32 %v8531, %v10657
      %v10659 = vpop.f32.mrf.mxu0
      %v10660 = vadd.f32 %v8531, %v10659
      %10661 = vmatmul.bf16.gmra.mxu0 %v8803
      %v10662 = vpop.f32.mrf.mxu0
      %v10663 = vadd.f32 %v8531, %v10662
      %v10664 = vpop.f32.mrf.mxu0
      %v10665 = vadd.f32 %v8531, %v10664
      %10666 = vmatmul.bf16.gmra.mxu0 %v8808
      %v10667 = vpop.f32.mrf.mxu0
      %v10668 = vadd.f32 %v8531, %v10667
      %v10669 = vpop.f32.mrf.mxu0
      %v10670 = vadd.f32 %v8531, %v10669
      %10671 = vmatmul.bf16.gmra.mxu0 %v8813
      %v10672 = vpop.f32.mrf.mxu0
      %v10673 = vadd.f32 %v8531, %v10672
      %v10674 = vpop.f32.mrf.mxu0
      %v10675 = vadd.f32 %v8531, %v10674
      %10676 = vmatmul.bf16.gmra.mxu0 %v8818
      %v10677 = vpop.f32.mrf.mxu0
      %v10678 = vadd.f32 %v8531, %v10677
      %v10679 = vpop.f32.mrf.mxu0
      %v10680 = vadd.f32 %v8531, %v10679
      %10681 = vmatmul.bf16.gmra.mxu0 %v8823
      %v10682 = vpop.f32.mrf.mxu0
      %v10683 = vadd.f32 %v8531, %v10682
      %v10684 = vpop.f32.mrf.mxu0
      %v10685 = vadd.f32 %v8531, %v10684
      %10686 = vmatmul.bf16.gmra.mxu0 %v8828
      %v10687 = vpop.f32.mrf.mxu0
      %v10688 = vadd.f32 %v8531, %v10687
      %v10689 = vpop.f32.mrf.mxu0
      %v10690 = vadd.f32 %v8531, %v10689
      %10691 = vmatmul.bf16.gmra.mxu0 %v8833
      %v10692 = vpop.f32.mrf.mxu0
      %v10693 = vadd.f32 %v8531, %v10692
      %v10694 = vpop.f32.mrf.mxu0
      %v10695 = vadd.f32 %v8531, %v10694
      %10696 = vmatmul.bf16.gmra.mxu0 %v8838
      %v10697 = vpop.f32.mrf.mxu0
      %v10698 = vadd.f32 %v8531, %v10697
      %v10699 = vpop.f32.mrf.mxu0
      %v10700 = vadd.f32 %v8531, %v10699
      %10701 = vmatmul.bf16.gmra.mxu0 %v8843
      %v10702 = vpop.f32.mrf.mxu0
      %v10703 = vadd.f32 %v8531, %v10702
      %v10704 = vpop.f32.mrf.mxu0
      %v10705 = vadd.f32 %v8531, %v10704
      %10706 = vmatmul.bf16.gmra.mxu0 %v8848
      %v10707 = vpop.f32.mrf.mxu0
      %v10708 = vadd.f32 %v8531, %v10707
      %v10709 = vpop.f32.mrf.mxu0
      %v10710 = vadd.f32 %v8531, %v10709
      %10711 = vmatmul.bf16.gmra.mxu0 %v8853
      %v10712 = vpop.f32.mrf.mxu0
      %v10713 = vadd.f32 %v8531, %v10712
      %v10714 = vpop.f32.mrf.mxu0
      %v10715 = vadd.f32 %v8531, %v10714
      %10716 = vmatmul.bf16.gmra.mxu0 %v8858
      %v10717 = vpop.f32.mrf.mxu0
      %v10718 = vadd.f32 %v8531, %v10717
      %v10719 = vpop.f32.mrf.mxu0
      %v10720 = vadd.f32 %v8531, %v10719
      %10721 = vmatmul.bf16.gmra.mxu0 %v8863
      %v10722 = vpop.f32.mrf.mxu0
      %v10723 = vadd.f32 %v8531, %v10722
      %v10724 = vpop.f32.mrf.mxu0
      %v10725 = vadd.f32 %v8531, %v10724
      %10726 = vmatmul.bf16.gmra.mxu0 %v8868
      %v10727 = vpop.f32.mrf.mxu0
      %v10728 = vadd.f32 %v8531, %v10727
      %v10729 = vpop.f32.mrf.mxu0
      %v10730 = vadd.f32 %v8531, %v10729
      %10731 = vdwg.mxu0
      %10732 = vmatpush.bf16.msra.mxu0 %v9495
      %10733 = vmatpush.bf16.msra.mxu0 %v9491
      %10734 = vmatpush.bf16.msra.mxu0 %v9487
      %10735 = vmatpush.bf16.msra.mxu0 %v9483
      %10736 = vmatpush.bf16.msra.mxu0 %v9479
      %10737 = vmatpush.bf16.msra.mxu0 %v9475
      %10738 = vmatpush.bf16.msra.mxu0 %v9471
      %10739 = vmatpush.bf16.msra.mxu0 %v9467
      %10740 = vmatmul.bf16.gmra.mxu0 %v8794
      %v10741 = vpop.f32.mrf.mxu0
      %v10742 = vadd.f32 %v10653, %v10741
      %v10743 = vpop.f32.mrf.mxu0
      %v10744 = vadd.f32 %v10655, %v10743
      %10745 = vmatmul.bf16.gmra.mxu0 %v8799
      %v10746 = vpop.f32.mrf.mxu0
      %v10747 = vadd.f32 %v10658, %v10746
      %v10748 = vpop.f32.mrf.mxu0
      %v10749 = vadd.f32 %v10660, %v10748
      %10750 = vmatmul.bf16.gmra.mxu0 %v8804
      %v10751 = vpop.f32.mrf.mxu0
      %v10752 = vadd.f32 %v10663, %v10751
      %v10753 = vpop.f32.mrf.mxu0
      %v10754 = vadd.f32 %v10665, %v10753
      %10755 = vmatmul.bf16.gmra.mxu0 %v8809
      %v10756 = vpop.f32.mrf.mxu0
      %v10757 = vadd.f32 %v10668, %v10756
      %v10758 = vpop.f32.mrf.mxu0
      %v10759 = vadd.f32 %v10670, %v10758
      %10760 = vmatmul.bf16.gmra.mxu0 %v8814
      %v10761 = vpop.f32.mrf.mxu0
      %v10762 = vadd.f32 %v10673, %v10761
      %v10763 = vpop.f32.mrf.mxu0
      %v10764 = vadd.f32 %v10675, %v10763
      %10765 = vmatmul.bf16.gmra.mxu0 %v8819
      %v10766 = vpop.f32.mrf.mxu0
      %v10767 = vadd.f32 %v10678, %v10766
      %v10768 = vpop.f32.mrf.mxu0
      %v10769 = vadd.f32 %v10680, %v10768
      %10770 = vmatmul.bf16.gmra.mxu0 %v8824
      %v10771 = vpop.f32.mrf.mxu0
      %v10772 = vadd.f32 %v10683, %v10771
      %v10773 = vpop.f32.mrf.mxu0
      %v10774 = vadd.f32 %v10685, %v10773
      %10775 = vmatmul.bf16.gmra.mxu0 %v8829
      %v10776 = vpop.f32.mrf.mxu0
      %v10777 = vadd.f32 %v10688, %v10776
      %v10778 = vpop.f32.mrf.mxu0
      %v10779 = vadd.f32 %v10690, %v10778
      %10780 = vmatmul.bf16.gmra.mxu0 %v8834
      %v10781 = vpop.f32.mrf.mxu0
      %v10782 = vadd.f32 %v10693, %v10781
      %v10783 = vpop.f32.mrf.mxu0
      %v10784 = vadd.f32 %v10695, %v10783
      %10785 = vmatmul.bf16.gmra.mxu0 %v8839
      %v10786 = vpop.f32.mrf.mxu0
      %v10787 = vadd.f32 %v10698, %v10786
      %v10788 = vpop.f32.mrf.mxu0
      %v10789 = vadd.f32 %v10700, %v10788
      %10790 = vmatmul.bf16.gmra.mxu0 %v8844
      %v10791 = vpop.f32.mrf.mxu0
      %v10792 = vadd.f32 %v10703, %v10791
      %v10793 = vpop.f32.mrf.mxu0
      %v10794 = vadd.f32 %v10705, %v10793
      %10795 = vmatmul.bf16.gmra.mxu0 %v8849
      %v10796 = vpop.f32.mrf.mxu0
      %v10797 = vadd.f32 %v10708, %v10796
      %v10798 = vpop.f32.mrf.mxu0
      %v10799 = vadd.f32 %v10710, %v10798
      %10800 = vmatmul.bf16.gmra.mxu0 %v8854
      %v10801 = vpop.f32.mrf.mxu0
      %v10802 = vadd.f32 %v10713, %v10801
      %v10803 = vpop.f32.mrf.mxu0
      %v10804 = vadd.f32 %v10715, %v10803
      %10805 = vmatmul.bf16.gmra.mxu0 %v8859
      %v10806 = vpop.f32.mrf.mxu0
      %v10807 = vadd.f32 %v10718, %v10806
      %v10808 = vpop.f32.mrf.mxu0
      %v10809 = vadd.f32 %v10720, %v10808
      %10810 = vmatmul.bf16.gmra.mxu0 %v8864
      %v10811 = vpop.f32.mrf.mxu0
      %v10812 = vadd.f32 %v10723, %v10811
      %v10813 = vpop.f32.mrf.mxu0
      %v10814 = vadd.f32 %v10725, %v10813
      %10815 = vmatmul.bf16.gmra.mxu0 %v8869
      %v10816 = vpop.f32.mrf.mxu0
      %v10817 = vadd.f32 %v10728, %v10816
      %v10818 = vpop.f32.mrf.mxu0
      %v10819 = vadd.f32 %v10730, %v10818
      %10820 = vdwg.mxu0
      %10821 = vmatpush.bf16.msra.mxu0 %v9527
      %10822 = vmatpush.bf16.msra.mxu0 %v9523
      %10823 = vmatpush.bf16.msra.mxu0 %v9519
      %10824 = vmatpush.bf16.msra.mxu0 %v9515
      %10825 = vmatpush.bf16.msra.mxu0 %v9511
      %10826 = vmatpush.bf16.msra.mxu0 %v9507
      %10827 = vmatpush.bf16.msra.mxu0 %v9503
      %10828 = vmatpush.bf16.msra.mxu0 %v9499
      %10829 = vmatmul.bf16.gmra.mxu0 %v8795
      %v10830 = vpop.f32.mrf.mxu0
      %v10831 = vadd.f32 %v10742, %v10830
      %v10832 = vpop.f32.mrf.mxu0
      %v10833 = vadd.f32 %v10744, %v10832
      %10834 = vmatmul.bf16.gmra.mxu0 %v8800
      %v10835 = vpop.f32.mrf.mxu0
      %v10836 = vadd.f32 %v10747, %v10835
      %v10837 = vpop.f32.mrf.mxu0
      %v10838 = vadd.f32 %v10749, %v10837
      %10839 = vmatmul.bf16.gmra.mxu0 %v8805
      %v10840 = vpop.f32.mrf.mxu0
      %v10841 = vadd.f32 %v10752, %v10840
      %v10842 = vpop.f32.mrf.mxu0
      %v10843 = vadd.f32 %v10754, %v10842
      %10844 = vmatmul.bf16.gmra.mxu0 %v8810
      %v10845 = vpop.f32.mrf.mxu0
      %v10846 = vadd.f32 %v10757, %v10845
      %v10847 = vpop.f32.mrf.mxu0
      %v10848 = vadd.f32 %v10759, %v10847
      %10849 = vmatmul.bf16.gmra.mxu0 %v8815
      %v10850 = vpop.f32.mrf.mxu0
      %v10851 = vadd.f32 %v10762, %v10850
      %v10852 = vpop.f32.mrf.mxu0
      %v10853 = vadd.f32 %v10764, %v10852
      %10854 = vmatmul.bf16.gmra.mxu0 %v8820
      %v10855 = vpop.f32.mrf.mxu0
      %v10856 = vadd.f32 %v10767, %v10855
      %v10857 = vpop.f32.mrf.mxu0
      %v10858 = vadd.f32 %v10769, %v10857
      %10859 = vmatmul.bf16.gmra.mxu0 %v8825
      %v10860 = vpop.f32.mrf.mxu0
      %v10861 = vadd.f32 %v10772, %v10860
      %v10862 = vpop.f32.mrf.mxu0
      %v10863 = vadd.f32 %v10774, %v10862
      %10864 = vmatmul.bf16.gmra.mxu0 %v8830
      %v10865 = vpop.f32.mrf.mxu0
      %v10866 = vadd.f32 %v10777, %v10865
      %v10867 = vpop.f32.mrf.mxu0
      %v10868 = vadd.f32 %v10779, %v10867
      %10869 = vmatmul.bf16.gmra.mxu0 %v8835
      %v10870 = vpop.f32.mrf.mxu0
      %v10871 = vadd.f32 %v10782, %v10870
      %v10872 = vpop.f32.mrf.mxu0
      %v10873 = vadd.f32 %v10784, %v10872
      %10874 = vmatmul.bf16.gmra.mxu0 %v8840
      %v10875 = vpop.f32.mrf.mxu0
      %v10876 = vadd.f32 %v10787, %v10875
      %v10877 = vpop.f32.mrf.mxu0
      %v10878 = vadd.f32 %v10789, %v10877
      %10879 = vmatmul.bf16.gmra.mxu0 %v8845
      %v10880 = vpop.f32.mrf.mxu0
      %v10881 = vadd.f32 %v10792, %v10880
      %v10882 = vpop.f32.mrf.mxu0
      %v10883 = vadd.f32 %v10794, %v10882
      %10884 = vmatmul.bf16.gmra.mxu0 %v8850
      %v10885 = vpop.f32.mrf.mxu0
      %v10886 = vadd.f32 %v10797, %v10885
      %v10887 = vpop.f32.mrf.mxu0
      %v10888 = vadd.f32 %v10799, %v10887
      %10889 = vmatmul.bf16.gmra.mxu0 %v8855
      %v10890 = vpop.f32.mrf.mxu0
      %v10891 = vadd.f32 %v10802, %v10890
      %v10892 = vpop.f32.mrf.mxu0
      %v10893 = vadd.f32 %v10804, %v10892
      %10894 = vmatmul.bf16.gmra.mxu0 %v8860
      %v10895 = vpop.f32.mrf.mxu0
      %v10896 = vadd.f32 %v10807, %v10895
      %v10897 = vpop.f32.mrf.mxu0
      %v10898 = vadd.f32 %v10809, %v10897
      %10899 = vmatmul.bf16.gmra.mxu0 %v8865
      %v10900 = vpop.f32.mrf.mxu0
      %v10901 = vadd.f32 %v10812, %v10900
      %v10902 = vpop.f32.mrf.mxu0
      %v10903 = vadd.f32 %v10814, %v10902
      %10904 = vmatmul.bf16.gmra.mxu0 %v8870
      %v10905 = vpop.f32.mrf.mxu0
      %v10906 = vadd.f32 %v10817, %v10905
      %v10907 = vpop.f32.mrf.mxu0
      %v10908 = vadd.f32 %v10819, %v10907
      %10909 = vdwg.mxu0
      %10910 = vmatpush.bf16.msra.mxu0 %v9559
      %10911 = vmatpush.bf16.msra.mxu0 %v9555
      %10912 = vmatpush.bf16.msra.mxu0 %v9551
      %10913 = vmatpush.bf16.msra.mxu0 %v9547
      %10914 = vmatpush.bf16.msra.mxu0 %v9543
      %10915 = vmatpush.bf16.msra.mxu0 %v9539
      %10916 = vmatpush.bf16.msra.mxu0 %v9535
      %10917 = vmatpush.bf16.msra.mxu0 %v9531
      %10918 = vmatmul.bf16.gmra.mxu0 %v8796
      %v10919 = vpop.f32.mrf.mxu0
      %v10920 = vadd.f32 %v10831, %v10919
      %v10921 = vpop.f32.mrf.mxu0
      %v10922 = vadd.f32 %v10833, %v10921
      %10923 = vmatmul.bf16.gmra.mxu0 %v8801
      %v10924 = vpop.f32.mrf.mxu0
      %v10925 = vadd.f32 %v10836, %v10924
      %v10926 = vpop.f32.mrf.mxu0
      %v10927 = vadd.f32 %v10838, %v10926
      %10928 = vmatmul.bf16.gmra.mxu0 %v8806
      %v10929 = vpop.f32.mrf.mxu0
      %v10930 = vadd.f32 %v10841, %v10929
      %v10931 = vpop.f32.mrf.mxu0
      %v10932 = vadd.f32 %v10843, %v10931
      %10933 = vmatmul.bf16.gmra.mxu0 %v8811
      %v10934 = vpop.f32.mrf.mxu0
      %v10935 = vadd.f32 %v10846, %v10934
      %v10936 = vpop.f32.mrf.mxu0
      %v10937 = vadd.f32 %v10848, %v10936
      %10938 = vmatmul.bf16.gmra.mxu0 %v8816
      %v10939 = vpop.f32.mrf.mxu0
      %v10940 = vadd.f32 %v10851, %v10939
      %v10941 = vpop.f32.mrf.mxu0
      %v10942 = vadd.f32 %v10853, %v10941
      %10943 = vmatmul.bf16.gmra.mxu0 %v8821
      %v10944 = vpop.f32.mrf.mxu0
      %v10945 = vadd.f32 %v10856, %v10944
      %v10946 = vpop.f32.mrf.mxu0
      %v10947 = vadd.f32 %v10858, %v10946
      %10948 = vmatmul.bf16.gmra.mxu0 %v8826
      %v10949 = vpop.f32.mrf.mxu0
      %v10950 = vadd.f32 %v10861, %v10949
      %v10951 = vpop.f32.mrf.mxu0
      %v10952 = vadd.f32 %v10863, %v10951
      %10953 = vmatmul.bf16.gmra.mxu0 %v8831
      %v10954 = vpop.f32.mrf.mxu0
      %v10955 = vadd.f32 %v10866, %v10954
      %v10956 = vpop.f32.mrf.mxu0
      %v10957 = vadd.f32 %v10868, %v10956
      %10958 = vmatmul.bf16.gmra.mxu0 %v8836
      %v10959 = vpop.f32.mrf.mxu0
      %v10960 = vadd.f32 %v10871, %v10959
      %v10961 = vpop.f32.mrf.mxu0
      %v10962 = vadd.f32 %v10873, %v10961
      %10963 = vmatmul.bf16.gmra.mxu0 %v8841
      %v10964 = vpop.f32.mrf.mxu0
      %v10965 = vadd.f32 %v10876, %v10964
      %v10966 = vpop.f32.mrf.mxu0
      %v10967 = vadd.f32 %v10878, %v10966
      %10968 = vmatmul.bf16.gmra.mxu0 %v8846
      %v10969 = vpop.f32.mrf.mxu0
      %v10970 = vadd.f32 %v10881, %v10969
      %v10971 = vpop.f32.mrf.mxu0
      %v10972 = vadd.f32 %v10883, %v10971
      %10973 = vmatmul.bf16.gmra.mxu0 %v8851
      %v10974 = vpop.f32.mrf.mxu0
      %v10975 = vadd.f32 %v10886, %v10974
      %v10976 = vpop.f32.mrf.mxu0
      %v10977 = vadd.f32 %v10888, %v10976
      %10978 = vmatmul.bf16.gmra.mxu0 %v8856
      %v10979 = vpop.f32.mrf.mxu0
      %v10980 = vadd.f32 %v10891, %v10979
      %v10981 = vpop.f32.mrf.mxu0
      %v10982 = vadd.f32 %v10893, %v10981
      %10983 = vmatmul.bf16.gmra.mxu0 %v8861
      %v10984 = vpop.f32.mrf.mxu0
      %v10985 = vadd.f32 %v10896, %v10984
      %v10986 = vpop.f32.mrf.mxu0
      %v10987 = vadd.f32 %v10898, %v10986
      %10988 = vmatmul.bf16.gmra.mxu0 %v8866
      %v10989 = vpop.f32.mrf.mxu0
      %v10990 = vadd.f32 %v10901, %v10989
      %v10991 = vpop.f32.mrf.mxu0
      %v10992 = vadd.f32 %v10903, %v10991
      %10993 = vmatmul.bf16.gmra.mxu0 %v8871
      %v10994 = vpop.f32.mrf.mxu0
      %v10995 = vadd.f32 %v10906, %v10994
      %v10996 = vpop.f32.mrf.mxu0
      %v10997 = vadd.f32 %v10908, %v10996
      %10998 = vdwg.mxu0
      %10999 = vmatpush.bf16.msra.mxu0 %v9591
      %11000 = vmatpush.bf16.msra.mxu0 %v9587
      %11001 = vmatpush.bf16.msra.mxu0 %v9583
      %11002 = vmatpush.bf16.msra.mxu0 %v9579
      %11003 = vmatpush.bf16.msra.mxu0 %v9575
      %11004 = vmatpush.bf16.msra.mxu0 %v9571
      %11005 = vmatpush.bf16.msra.mxu0 %v9567
      %11006 = vmatpush.bf16.msra.mxu0 %v9563
      %11007 = vmatmul.bf16.gmra.mxu0 %v8797
      %v11008 = vpop.f32.mrf.mxu0
      %v11009 = vadd.f32 %v10920, %v11008
      %v11010 = vpop.f32.mrf.mxu0
      %v11011 = vadd.f32 %v10922, %v11010
      %11012 = vmatmul.bf16.gmra.mxu0 %v8802
      %v11013 = vpop.f32.mrf.mxu0
      %v11014 = vadd.f32 %v10925, %v11013
      %v11015 = vpop.f32.mrf.mxu0
      %v11016 = vadd.f32 %v10927, %v11015
      %11017 = vmatmul.bf16.gmra.mxu0 %v8807
      %v11018 = vpop.f32.mrf.mxu0
      %v11019 = vadd.f32 %v10930, %v11018
      %v11020 = vpop.f32.mrf.mxu0
      %v11021 = vadd.f32 %v10932, %v11020
      %11022 = vmatmul.bf16.gmra.mxu0 %v8812
      %v11023 = vpop.f32.mrf.mxu0
      %v11024 = vadd.f32 %v10935, %v11023
      %v11025 = vpop.f32.mrf.mxu0
      %v11026 = vadd.f32 %v10937, %v11025
      %11027 = vmatmul.bf16.gmra.mxu0 %v8817
      %v11028 = vpop.f32.mrf.mxu0
      %v11029 = vadd.f32 %v10940, %v11028
      %v11030 = vpop.f32.mrf.mxu0
      %v11031 = vadd.f32 %v10942, %v11030
      %11032 = vmatmul.bf16.gmra.mxu0 %v8822
      %v11033 = vpop.f32.mrf.mxu0
      %v11034 = vadd.f32 %v10945, %v11033
      %v11035 = vpop.f32.mrf.mxu0
      %v11036 = vadd.f32 %v10947, %v11035
      %11037 = vmatmul.bf16.gmra.mxu0 %v8827
      %v11038 = vpop.f32.mrf.mxu0
      %v11039 = vadd.f32 %v10950, %v11038
      %v11040 = vpop.f32.mrf.mxu0
      %v11041 = vadd.f32 %v10952, %v11040
      %11042 = vmatmul.bf16.gmra.mxu0 %v8832
      %v11043 = vpop.f32.mrf.mxu0
      %v11044 = vadd.f32 %v10955, %v11043
      %v11045 = vpop.f32.mrf.mxu0
      %v11046 = vadd.f32 %v10957, %v11045
      %11047 = vmatmul.bf16.gmra.mxu0 %v8837
      %v11048 = vpop.f32.mrf.mxu0
      %v11049 = vadd.f32 %v10960, %v11048
      %v11050 = vpop.f32.mrf.mxu0
      %v11051 = vadd.f32 %v10962, %v11050
      %11052 = vmatmul.bf16.gmra.mxu0 %v8842
      %v11053 = vpop.f32.mrf.mxu0
      %v11054 = vadd.f32 %v10965, %v11053
      %v11055 = vpop.f32.mrf.mxu0
      %v11056 = vadd.f32 %v10967, %v11055
      %11057 = vmatmul.bf16.gmra.mxu0 %v8847
      %v11058 = vpop.f32.mrf.mxu0
      %v11059 = vadd.f32 %v10970, %v11058
      %v11060 = vpop.f32.mrf.mxu0
      %v11061 = vadd.f32 %v10972, %v11060
      %11062 = vmatmul.bf16.gmra.mxu0 %v8852
      %v11063 = vpop.f32.mrf.mxu0
      %v11064 = vadd.f32 %v10975, %v11063
      %v11065 = vpop.f32.mrf.mxu0
      %v11066 = vadd.f32 %v10977, %v11065
      %11067 = vmatmul.bf16.gmra.mxu0 %v8857
      %v11068 = vpop.f32.mrf.mxu0
      %v11069 = vadd.f32 %v10980, %v11068
      %v11070 = vpop.f32.mrf.mxu0
      %v11071 = vadd.f32 %v10982, %v11070
      %11072 = vmatmul.bf16.gmra.mxu0 %v8862
      %v11073 = vpop.f32.mrf.mxu0
      %v11074 = vadd.f32 %v10985, %v11073
      %v11075 = vpop.f32.mrf.mxu0
      %v11076 = vadd.f32 %v10987, %v11075
      %11077 = vmatmul.bf16.gmra.mxu0 %v8867
      %v11078 = vpop.f32.mrf.mxu0
      %v11079 = vadd.f32 %v10990, %v11078
      %v11080 = vpop.f32.mrf.mxu0
      %v11081 = vadd.f32 %v10992, %v11080
      %11082 = vmatmul.bf16.gmra.mxu0 %v8872
      %v11083 = vpop.f32.mrf.mxu0
      %v11084 = vadd.f32 %v10995, %v11083
      %v11085 = vpop.f32.mrf.mxu0
      %v11086 = vadd.f32 %v10997, %v11085
      %11087 = vdwg.mxu0
      %11088 = vmatpush.bf16.msra.mxu0 %v9464
      %11089 = vmatpush.bf16.msra.mxu0 %v9460
      %11090 = vmatpush.bf16.msra.mxu0 %v9456
      %11091 = vmatpush.bf16.msra.mxu0 %v9452
      %11092 = vmatpush.bf16.msra.mxu0 %v9448
      %11093 = vmatpush.bf16.msra.mxu0 %v9444
      %11094 = vmatpush.bf16.msra.mxu0 %v9440
      %11095 = vmatpush.bf16.msra.mxu0 %v9436
      %11096 = vmatmul.bf16.gmra.mxu0 %v8793
      %v11097 = vpop.f32.mrf.mxu0
      %v11098 = vadd.f32 %v8532, %v11097
      %v11099 = vpop.f32.mrf.mxu0
      %v11100 = vadd.f32 %v8532, %v11099
      %11101 = vmatmul.bf16.gmra.mxu0 %v8798
      %v11102 = vpop.f32.mrf.mxu0
      %v11103 = vadd.f32 %v8532, %v11102
      %v11104 = vpop.f32.mrf.mxu0
      %v11105 = vadd.f32 %v8532, %v11104
      %11106 = vmatmul.bf16.gmra.mxu0 %v8803
      %v11107 = vpop.f32.mrf.mxu0
      %v11108 = vadd.f32 %v8532, %v11107
      %v11109 = vpop.f32.mrf.mxu0
      %v11110 = vadd.f32 %v8532, %v11109
      %11111 = vmatmul.bf16.gmra.mxu0 %v8808
      %v11112 = vpop.f32.mrf.mxu0
      %v11113 = vadd.f32 %v8532, %v11112
      %v11114 = vpop.f32.mrf.mxu0
      %v11115 = vadd.f32 %v8532, %v11114
      %11116 = vmatmul.bf16.gmra.mxu0 %v8813
      %v11117 = vpop.f32.mrf.mxu0
      %v11118 = vadd.f32 %v8532, %v11117
      %v11119 = vpop.f32.mrf.mxu0
      %v11120 = vadd.f32 %v8532, %v11119
      %11121 = vmatmul.bf16.gmra.mxu0 %v8818
      %v11122 = vpop.f32.mrf.mxu0
      %v11123 = vadd.f32 %v8532, %v11122
      %v11124 = vpop.f32.mrf.mxu0
      %v11125 = vadd.f32 %v8532, %v11124
      %11126 = vmatmul.bf16.gmra.mxu0 %v8823
      %v11127 = vpop.f32.mrf.mxu0
      %v11128 = vadd.f32 %v8532, %v11127
      %v11129 = vpop.f32.mrf.mxu0
      %v11130 = vadd.f32 %v8532, %v11129
      %11131 = vmatmul.bf16.gmra.mxu0 %v8828
      %v11132 = vpop.f32.mrf.mxu0
      %v11133 = vadd.f32 %v8532, %v11132
      %v11134 = vpop.f32.mrf.mxu0
      %v11135 = vadd.f32 %v8532, %v11134
      %11136 = vmatmul.bf16.gmra.mxu0 %v8833
      %v11137 = vpop.f32.mrf.mxu0
      %v11138 = vadd.f32 %v8532, %v11137
      %v11139 = vpop.f32.mrf.mxu0
      %v11140 = vadd.f32 %v8532, %v11139
      %11141 = vmatmul.bf16.gmra.mxu0 %v8838
      %v11142 = vpop.f32.mrf.mxu0
      %v11143 = vadd.f32 %v8532, %v11142
      %v11144 = vpop.f32.mrf.mxu0
      %v11145 = vadd.f32 %v8532, %v11144
      %11146 = vmatmul.bf16.gmra.mxu0 %v8843
      %v11147 = vpop.f32.mrf.mxu0
      %v11148 = vadd.f32 %v8532, %v11147
      %v11149 = vpop.f32.mrf.mxu0
      %v11150 = vadd.f32 %v8532, %v11149
      %11151 = vmatmul.bf16.gmra.mxu0 %v8848
      %v11152 = vpop.f32.mrf.mxu0
      %v11153 = vadd.f32 %v8532, %v11152
      %v11154 = vpop.f32.mrf.mxu0
      %v11155 = vadd.f32 %v8532, %v11154
      %11156 = vmatmul.bf16.gmra.mxu0 %v8853
      %v11157 = vpop.f32.mrf.mxu0
      %v11158 = vadd.f32 %v8532, %v11157
      %v11159 = vpop.f32.mrf.mxu0
      %v11160 = vadd.f32 %v8532, %v11159
      %11161 = vmatmul.bf16.gmra.mxu0 %v8858
      %v11162 = vpop.f32.mrf.mxu0
      %v11163 = vadd.f32 %v8532, %v11162
      %v11164 = vpop.f32.mrf.mxu0
      %v11165 = vadd.f32 %v8532, %v11164
      %11166 = vmatmul.bf16.gmra.mxu0 %v8863
      %v11167 = vpop.f32.mrf.mxu0
      %v11168 = vadd.f32 %v8532, %v11167
      %v11169 = vpop.f32.mrf.mxu0
      %v11170 = vadd.f32 %v8532, %v11169
      %11171 = vmatmul.bf16.gmra.mxu0 %v8868
      %v11172 = vpop.f32.mrf.mxu0
      %v11173 = vadd.f32 %v8532, %v11172
      %v11174 = vpop.f32.mrf.mxu0
      %v11175 = vadd.f32 %v8532, %v11174
      %11176 = vdwg.mxu0
      %11177 = vmatpush.bf16.msra.mxu0 %v9496
      %11178 = vmatpush.bf16.msra.mxu0 %v9492
      %11179 = vmatpush.bf16.msra.mxu0 %v9488
      %11180 = vmatpush.bf16.msra.mxu0 %v9484
      %11181 = vmatpush.bf16.msra.mxu0 %v9480
      %11182 = vmatpush.bf16.msra.mxu0 %v9476
      %11183 = vmatpush.bf16.msra.mxu0 %v9472
      %11184 = vmatpush.bf16.msra.mxu0 %v9468
      %11185 = vmatmul.bf16.gmra.mxu0 %v8794
      %v11186 = vpop.f32.mrf.mxu0
      %v11187 = vadd.f32 %v11098, %v11186
      %v11188 = vpop.f32.mrf.mxu0
      %v11189 = vadd.f32 %v11100, %v11188
      %11190 = vmatmul.bf16.gmra.mxu0 %v8799
      %v11191 = vpop.f32.mrf.mxu0
      %v11192 = vadd.f32 %v11103, %v11191
      %v11193 = vpop.f32.mrf.mxu0
      %v11194 = vadd.f32 %v11105, %v11193
      %11195 = vmatmul.bf16.gmra.mxu0 %v8804
      %v11196 = vpop.f32.mrf.mxu0
      %v11197 = vadd.f32 %v11108, %v11196
      %v11198 = vpop.f32.mrf.mxu0
      %v11199 = vadd.f32 %v11110, %v11198
      %11200 = vmatmul.bf16.gmra.mxu0 %v8809
      %v11201 = vpop.f32.mrf.mxu0
      %v11202 = vadd.f32 %v11113, %v11201
      %v11203 = vpop.f32.mrf.mxu0
      %v11204 = vadd.f32 %v11115, %v11203
      %11205 = vmatmul.bf16.gmra.mxu0 %v8814
      %v11206 = vpop.f32.mrf.mxu0
      %v11207 = vadd.f32 %v11118, %v11206
      %v11208 = vpop.f32.mrf.mxu0
      %v11209 = vadd.f32 %v11120, %v11208
      %11210 = vmatmul.bf16.gmra.mxu0 %v8819
      %v11211 = vpop.f32.mrf.mxu0
      %v11212 = vadd.f32 %v11123, %v11211
      %v11213 = vpop.f32.mrf.mxu0
      %v11214 = vadd.f32 %v11125, %v11213
      %11215 = vmatmul.bf16.gmra.mxu0 %v8824
      %v11216 = vpop.f32.mrf.mxu0
      %v11217 = vadd.f32 %v11128, %v11216
      %v11218 = vpop.f32.mrf.mxu0
      %v11219 = vadd.f32 %v11130, %v11218
      %11220 = vmatmul.bf16.gmra.mxu0 %v8829
      %v11221 = vpop.f32.mrf.mxu0
      %v11222 = vadd.f32 %v11133, %v11221
      %v11223 = vpop.f32.mrf.mxu0
      %v11224 = vadd.f32 %v11135, %v11223
      %11225 = vmatmul.bf16.gmra.mxu0 %v8834
      %v11226 = vpop.f32.mrf.mxu0
      %v11227 = vadd.f32 %v11138, %v11226
      %v11228 = vpop.f32.mrf.mxu0
      %v11229 = vadd.f32 %v11140, %v11228
      %11230 = vmatmul.bf16.gmra.mxu0 %v8839
      %v11231 = vpop.f32.mrf.mxu0
      %v11232 = vadd.f32 %v11143, %v11231
      %v11233 = vpop.f32.mrf.mxu0
      %v11234 = vadd.f32 %v11145, %v11233
      %11235 = vmatmul.bf16.gmra.mxu0 %v8844
      %v11236 = vpop.f32.mrf.mxu0
      %v11237 = vadd.f32 %v11148, %v11236
      %v11238 = vpop.f32.mrf.mxu0
      %v11239 = vadd.f32 %v11150, %v11238
      %11240 = vmatmul.bf16.gmra.mxu0 %v8849
      %v11241 = vpop.f32.mrf.mxu0
      %v11242 = vadd.f32 %v11153, %v11241
      %v11243 = vpop.f32.mrf.mxu0
      %v11244 = vadd.f32 %v11155, %v11243
      %11245 = vmatmul.bf16.gmra.mxu0 %v8854
      %v11246 = vpop.f32.mrf.mxu0
      %v11247 = vadd.f32 %v11158, %v11246
      %v11248 = vpop.f32.mrf.mxu0
      %v11249 = vadd.f32 %v11160, %v11248
      %11250 = vmatmul.bf16.gmra.mxu0 %v8859
      %v11251 = vpop.f32.mrf.mxu0
      %v11252 = vadd.f32 %v11163, %v11251
      %v11253 = vpop.f32.mrf.mxu0
      %v11254 = vadd.f32 %v11165, %v11253
      %11255 = vmatmul.bf16.gmra.mxu0 %v8864
      %v11256 = vpop.f32.mrf.mxu0
      %v11257 = vadd.f32 %v11168, %v11256
      %v11258 = vpop.f32.mrf.mxu0
      %v11259 = vadd.f32 %v11170, %v11258
      %11260 = vmatmul.bf16.gmra.mxu0 %v8869
      %v11261 = vpop.f32.mrf.mxu0
      %v11262 = vadd.f32 %v11173, %v11261
      %v11263 = vpop.f32.mrf.mxu0
      %v11264 = vadd.f32 %v11175, %v11263
      %11265 = vdwg.mxu0
      %11266 = vmatpush.bf16.msra.mxu0 %v9528
      %11267 = vmatpush.bf16.msra.mxu0 %v9524
      %11268 = vmatpush.bf16.msra.mxu0 %v9520
      %11269 = vmatpush.bf16.msra.mxu0 %v9516
      %11270 = vmatpush.bf16.msra.mxu0 %v9512
      %11271 = vmatpush.bf16.msra.mxu0 %v9508
      %11272 = vmatpush.bf16.msra.mxu0 %v9504
      %11273 = vmatpush.bf16.msra.mxu0 %v9500
      %11274 = vmatmul.bf16.gmra.mxu0 %v8795
      %v11275 = vpop.f32.mrf.mxu0
      %v11276 = vadd.f32 %v11187, %v11275
      %v11277 = vpop.f32.mrf.mxu0
      %v11278 = vadd.f32 %v11189, %v11277
      %11279 = vmatmul.bf16.gmra.mxu0 %v8800
      %v11280 = vpop.f32.mrf.mxu0
      %v11281 = vadd.f32 %v11192, %v11280
      %v11282 = vpop.f32.mrf.mxu0
      %v11283 = vadd.f32 %v11194, %v11282
      %11284 = vmatmul.bf16.gmra.mxu0 %v8805
      %v11285 = vpop.f32.mrf.mxu0
      %v11286 = vadd.f32 %v11197, %v11285
      %v11287 = vpop.f32.mrf.mxu0
      %v11288 = vadd.f32 %v11199, %v11287
      %11289 = vmatmul.bf16.gmra.mxu0 %v8810
      %v11290 = vpop.f32.mrf.mxu0
      %v11291 = vadd.f32 %v11202, %v11290
      %v11292 = vpop.f32.mrf.mxu0
      %v11293 = vadd.f32 %v11204, %v11292
      %11294 = vmatmul.bf16.gmra.mxu0 %v8815
      %v11295 = vpop.f32.mrf.mxu0
      %v11296 = vadd.f32 %v11207, %v11295
      %v11297 = vpop.f32.mrf.mxu0
      %v11298 = vadd.f32 %v11209, %v11297
      %11299 = vmatmul.bf16.gmra.mxu0 %v8820
      %v11300 = vpop.f32.mrf.mxu0
      %v11301 = vadd.f32 %v11212, %v11300
      %v11302 = vpop.f32.mrf.mxu0
      %v11303 = vadd.f32 %v11214, %v11302
      %11304 = vmatmul.bf16.gmra.mxu0 %v8825
      %v11305 = vpop.f32.mrf.mxu0
      %v11306 = vadd.f32 %v11217, %v11305
      %v11307 = vpop.f32.mrf.mxu0
      %v11308 = vadd.f32 %v11219, %v11307
      %11309 = vmatmul.bf16.gmra.mxu0 %v8830
      %v11310 = vpop.f32.mrf.mxu0
      %v11311 = vadd.f32 %v11222, %v11310
      %v11312 = vpop.f32.mrf.mxu0
      %v11313 = vadd.f32 %v11224, %v11312
      %11314 = vmatmul.bf16.gmra.mxu0 %v8835
      %v11315 = vpop.f32.mrf.mxu0
      %v11316 = vadd.f32 %v11227, %v11315
      %v11317 = vpop.f32.mrf.mxu0
      %v11318 = vadd.f32 %v11229, %v11317
      %11319 = vmatmul.bf16.gmra.mxu0 %v8840
      %v11320 = vpop.f32.mrf.mxu0
      %v11321 = vadd.f32 %v11232, %v11320
      %v11322 = vpop.f32.mrf.mxu0
      %v11323 = vadd.f32 %v11234, %v11322
      %11324 = vmatmul.bf16.gmra.mxu0 %v8845
      %v11325 = vpop.f32.mrf.mxu0
      %v11326 = vadd.f32 %v11237, %v11325
      %v11327 = vpop.f32.mrf.mxu0
      %v11328 = vadd.f32 %v11239, %v11327
      %11329 = vmatmul.bf16.gmra.mxu0 %v8850
      %v11330 = vpop.f32.mrf.mxu0
      %v11331 = vadd.f32 %v11242, %v11330
      %v11332 = vpop.f32.mrf.mxu0
      %v11333 = vadd.f32 %v11244, %v11332
      %11334 = vmatmul.bf16.gmra.mxu0 %v8855
      %v11335 = vpop.f32.mrf.mxu0
      %v11336 = vadd.f32 %v11247, %v11335
      %v11337 = vpop.f32.mrf.mxu0
      %v11338 = vadd.f32 %v11249, %v11337
      %11339 = vmatmul.bf16.gmra.mxu0 %v8860
      %v11340 = vpop.f32.mrf.mxu0
      %v11341 = vadd.f32 %v11252, %v11340
      %v11342 = vpop.f32.mrf.mxu0
      %v11343 = vadd.f32 %v11254, %v11342
      %11344 = vmatmul.bf16.gmra.mxu0 %v8865
      %v11345 = vpop.f32.mrf.mxu0
      %v11346 = vadd.f32 %v11257, %v11345
      %v11347 = vpop.f32.mrf.mxu0
      %v11348 = vadd.f32 %v11259, %v11347
      %11349 = vmatmul.bf16.gmra.mxu0 %v8870
      %v11350 = vpop.f32.mrf.mxu0
      %v11351 = vadd.f32 %v11262, %v11350
      %v11352 = vpop.f32.mrf.mxu0
      %v11353 = vadd.f32 %v11264, %v11352
      %11354 = vdwg.mxu0
      %11355 = vmatpush.bf16.msra.mxu0 %v9560
      %11356 = vmatpush.bf16.msra.mxu0 %v9556
      %11357 = vmatpush.bf16.msra.mxu0 %v9552
      %11358 = vmatpush.bf16.msra.mxu0 %v9548
      %11359 = vmatpush.bf16.msra.mxu0 %v9544
      %11360 = vmatpush.bf16.msra.mxu0 %v9540
      %11361 = vmatpush.bf16.msra.mxu0 %v9536
      %11362 = vmatpush.bf16.msra.mxu0 %v9532
      %11363 = vmatmul.bf16.gmra.mxu0 %v8796
      %v11364 = vpop.f32.mrf.mxu0
      %v11365 = vadd.f32 %v11276, %v11364
      %v11366 = vpop.f32.mrf.mxu0
      %v11367 = vadd.f32 %v11278, %v11366
      %11368 = vmatmul.bf16.gmra.mxu0 %v8801
      %v11369 = vpop.f32.mrf.mxu0
      %v11370 = vadd.f32 %v11281, %v11369
      %v11371 = vpop.f32.mrf.mxu0
      %v11372 = vadd.f32 %v11283, %v11371
      %11373 = vmatmul.bf16.gmra.mxu0 %v8806
      %v11374 = vpop.f32.mrf.mxu0
      %v11375 = vadd.f32 %v11286, %v11374
      %v11376 = vpop.f32.mrf.mxu0
      %v11377 = vadd.f32 %v11288, %v11376
      %11378 = vmatmul.bf16.gmra.mxu0 %v8811
      %v11379 = vpop.f32.mrf.mxu0
      %v11380 = vadd.f32 %v11291, %v11379
      %v11381 = vpop.f32.mrf.mxu0
      %v11382 = vadd.f32 %v11293, %v11381
      %11383 = vmatmul.bf16.gmra.mxu0 %v8816
      %v11384 = vpop.f32.mrf.mxu0
      %v11385 = vadd.f32 %v11296, %v11384
      %v11386 = vpop.f32.mrf.mxu0
      %v11387 = vadd.f32 %v11298, %v11386
      %11388 = vmatmul.bf16.gmra.mxu0 %v8821
      %v11389 = vpop.f32.mrf.mxu0
      %v11390 = vadd.f32 %v11301, %v11389
      %v11391 = vpop.f32.mrf.mxu0
      %v11392 = vadd.f32 %v11303, %v11391
      %11393 = vmatmul.bf16.gmra.mxu0 %v8826
      %v11394 = vpop.f32.mrf.mxu0
      %v11395 = vadd.f32 %v11306, %v11394
      %v11396 = vpop.f32.mrf.mxu0
      %v11397 = vadd.f32 %v11308, %v11396
      %11398 = vmatmul.bf16.gmra.mxu0 %v8831
      %v11399 = vpop.f32.mrf.mxu0
      %v11400 = vadd.f32 %v11311, %v11399
      %v11401 = vpop.f32.mrf.mxu0
      %v11402 = vadd.f32 %v11313, %v11401
      %11403 = vmatmul.bf16.gmra.mxu0 %v8836
      %v11404 = vpop.f32.mrf.mxu0
      %v11405 = vadd.f32 %v11316, %v11404
      %v11406 = vpop.f32.mrf.mxu0
      %v11407 = vadd.f32 %v11318, %v11406
      %11408 = vmatmul.bf16.gmra.mxu0 %v8841
      %v11409 = vpop.f32.mrf.mxu0
      %v11410 = vadd.f32 %v11321, %v11409
      %v11411 = vpop.f32.mrf.mxu0
      %v11412 = vadd.f32 %v11323, %v11411
      %11413 = vmatmul.bf16.gmra.mxu0 %v8846
      %v11414 = vpop.f32.mrf.mxu0
      %v11415 = vadd.f32 %v11326, %v11414
      %v11416 = vpop.f32.mrf.mxu0
      %v11417 = vadd.f32 %v11328, %v11416
      %11418 = vmatmul.bf16.gmra.mxu0 %v8851
      %v11419 = vpop.f32.mrf.mxu0
      %v11420 = vadd.f32 %v11331, %v11419
      %v11421 = vpop.f32.mrf.mxu0
      %v11422 = vadd.f32 %v11333, %v11421
      %11423 = vmatmul.bf16.gmra.mxu0 %v8856
      %v11424 = vpop.f32.mrf.mxu0
      %v11425 = vadd.f32 %v11336, %v11424
      %v11426 = vpop.f32.mrf.mxu0
      %v11427 = vadd.f32 %v11338, %v11426
      %11428 = vmatmul.bf16.gmra.mxu0 %v8861
      %v11429 = vpop.f32.mrf.mxu0
      %v11430 = vadd.f32 %v11341, %v11429
      %v11431 = vpop.f32.mrf.mxu0
      %v11432 = vadd.f32 %v11343, %v11431
      %11433 = vmatmul.bf16.gmra.mxu0 %v8866
      %v11434 = vpop.f32.mrf.mxu0
      %v11435 = vadd.f32 %v11346, %v11434
      %v11436 = vpop.f32.mrf.mxu0
      %v11437 = vadd.f32 %v11348, %v11436
      %11438 = vmatmul.bf16.gmra.mxu0 %v8871
      %v11439 = vpop.f32.mrf.mxu0
      %v11440 = vadd.f32 %v11351, %v11439
      %v11441 = vpop.f32.mrf.mxu0
      %v11442 = vadd.f32 %v11353, %v11441
      %11443 = vdwg.mxu0
      %11444 = vmatpush.bf16.msra.mxu0 %v9592
      %11445 = vmatpush.bf16.msra.mxu0 %v9588
      %11446 = vmatpush.bf16.msra.mxu0 %v9584
      %11447 = vmatpush.bf16.msra.mxu0 %v9580
      %11448 = vmatpush.bf16.msra.mxu0 %v9576
      %11449 = vmatpush.bf16.msra.mxu0 %v9572
      %11450 = vmatpush.bf16.msra.mxu0 %v9568
      %11451 = vmatpush.bf16.msra.mxu0 %v9564
      %11452 = vmatmul.bf16.gmra.mxu0 %v8797
      %v11453 = vpop.f32.mrf.mxu0
      %v11454 = vadd.f32 %v11365, %v11453
      %v11455 = vpop.f32.mrf.mxu0
      %v11456 = vadd.f32 %v11367, %v11455
      %11457 = vmatmul.bf16.gmra.mxu0 %v8802
      %v11458 = vpop.f32.mrf.mxu0
      %v11459 = vadd.f32 %v11370, %v11458
      %v11460 = vpop.f32.mrf.mxu0
      %v11461 = vadd.f32 %v11372, %v11460
      %11462 = vmatmul.bf16.gmra.mxu0 %v8807
      %v11463 = vpop.f32.mrf.mxu0
      %v11464 = vadd.f32 %v11375, %v11463
      %v11465 = vpop.f32.mrf.mxu0
      %v11466 = vadd.f32 %v11377, %v11465
      %11467 = vmatmul.bf16.gmra.mxu0 %v8812
      %v11468 = vpop.f32.mrf.mxu0
      %v11469 = vadd.f32 %v11380, %v11468
      %v11470 = vpop.f32.mrf.mxu0
      %v11471 = vadd.f32 %v11382, %v11470
      %11472 = vmatmul.bf16.gmra.mxu0 %v8817
      %v11473 = vpop.f32.mrf.mxu0
      %v11474 = vadd.f32 %v11385, %v11473
      %v11475 = vpop.f32.mrf.mxu0
      %v11476 = vadd.f32 %v11387, %v11475
      %11477 = vmatmul.bf16.gmra.mxu0 %v8822
      %v11478 = vpop.f32.mrf.mxu0
      %v11479 = vadd.f32 %v11390, %v11478
      %v11480 = vpop.f32.mrf.mxu0
      %v11481 = vadd.f32 %v11392, %v11480
      %11482 = vmatmul.bf16.gmra.mxu0 %v8827
      %v11483 = vpop.f32.mrf.mxu0
      %v11484 = vadd.f32 %v11395, %v11483
      %v11485 = vpop.f32.mrf.mxu0
      %v11486 = vadd.f32 %v11397, %v11485
      %11487 = vmatmul.bf16.gmra.mxu0 %v8832
      %v11488 = vpop.f32.mrf.mxu0
      %v11489 = vadd.f32 %v11400, %v11488
      %v11490 = vpop.f32.mrf.mxu0
      %v11491 = vadd.f32 %v11402, %v11490
      %11492 = vmatmul.bf16.gmra.mxu0 %v8837
      %v11493 = vpop.f32.mrf.mxu0
      %v11494 = vadd.f32 %v11405, %v11493
      %v11495 = vpop.f32.mrf.mxu0
      %v11496 = vadd.f32 %v11407, %v11495
      %11497 = vmatmul.bf16.gmra.mxu0 %v8842
      %v11498 = vpop.f32.mrf.mxu0
      %v11499 = vadd.f32 %v11410, %v11498
      %v11500 = vpop.f32.mrf.mxu0
      %v11501 = vadd.f32 %v11412, %v11500
      %11502 = vmatmul.bf16.gmra.mxu0 %v8847
      %v11503 = vpop.f32.mrf.mxu0
      %v11504 = vadd.f32 %v11415, %v11503
      %v11505 = vpop.f32.mrf.mxu0
      %v11506 = vadd.f32 %v11417, %v11505
      %11507 = vmatmul.bf16.gmra.mxu0 %v8852
      %v11508 = vpop.f32.mrf.mxu0
      %v11509 = vadd.f32 %v11420, %v11508
      %v11510 = vpop.f32.mrf.mxu0
      %v11511 = vadd.f32 %v11422, %v11510
      %11512 = vmatmul.bf16.gmra.mxu0 %v8857
      %v11513 = vpop.f32.mrf.mxu0
      %v11514 = vadd.f32 %v11425, %v11513
      %v11515 = vpop.f32.mrf.mxu0
      %v11516 = vadd.f32 %v11427, %v11515
      %11517 = vmatmul.bf16.gmra.mxu0 %v8862
      %v11518 = vpop.f32.mrf.mxu0
      %v11519 = vadd.f32 %v11430, %v11518
      %v11520 = vpop.f32.mrf.mxu0
      %v11521 = vadd.f32 %v11432, %v11520
      %11522 = vmatmul.bf16.gmra.mxu0 %v8867
      %v11523 = vpop.f32.mrf.mxu0
      %v11524 = vadd.f32 %v11435, %v11523
      %v11525 = vpop.f32.mrf.mxu0
      %v11526 = vadd.f32 %v11437, %v11525
      %11527 = vmatmul.bf16.gmra.mxu0 %v8872
      %v11528 = vpop.f32.mrf.mxu0
      %v11529 = vadd.f32 %v11440, %v11528
      %v11530 = vpop.f32.mrf.mxu0
      %v11531 = vadd.f32 %v11442, %v11530
      %11532 = vdwg.mxu0
      %11533 = vst [vmem:[%s413] sm:$0xff] %v10119
      %11534 = vst [vmem:[%s413 + $0x8] sm:$0xff] %v10564
      %11535 = vst [vmem:[%s413 + $0x10] sm:$0xff] %v11009
      %vm11536 = vcmask 130048
      %11537 = vst.msk [vmem:[%s413 + $0x18] sm:$0xff] %vm11536, %v11454
      %11538 = vst [vmem:[%s413 + $0x20] sm:$0xff] %v10121
      %11539 = vst [vmem:[%s413 + $0x28] sm:$0xff] %v10566
      %11540 = vst [vmem:[%s413 + $0x30] sm:$0xff] %v11011
      %11541 = vst.msk [vmem:[%s413 + $0x38] sm:$0xff] %vm11536, %v11456
      %11542 = vst [vmem:[%s413 + $0x40] sm:$0xff] %v10124
      %11543 = vst [vmem:[%s413 + $0x48] sm:$0xff] %v10569
      %11544 = vst [vmem:[%s413 + $0x50] sm:$0xff] %v11014
      %11545 = vst.msk [vmem:[%s413 + $0x58] sm:$0xff] %vm11536, %v11459
      %11546 = vst [vmem:[%s413 + $0x60] sm:$0xff] %v10126
      %11547 = vst [vmem:[%s413 + $0x68] sm:$0xff] %v10571
      %11548 = vst [vmem:[%s413 + $0x70] sm:$0xff] %v11016
      %11549 = vst.msk [vmem:[%s413 + $0x78] sm:$0xff] %vm11536, %v11461
      %11550 = vst [vmem:[%s413 + $0x80] sm:$0xff] %v10129
      %11551 = vst [vmem:[%s413 + $0x88] sm:$0xff] %v10574
      %11552 = vst [vmem:[%s413 + $0x90] sm:$0xff] %v11019
      %11553 = vst.msk [vmem:[%s413 + $0x98] sm:$0xff] %vm11536, %v11464
      %11554 = vst [vmem:[%s413 + $0xa0] sm:$0xff] %v10131
      %11555 = vst [vmem:[%s413 + $0xa8] sm:$0xff] %v10576
      %11556 = vst [vmem:[%s413 + $0xb0] sm:$0xff] %v11021
      %11557 = vst.msk [vmem:[%s413 + $0xb8] sm:$0xff] %vm11536, %v11466
      %11558 = vst [vmem:[%s413 + $0xc0] sm:$0xff] %v10134
      %11559 = vst [vmem:[%s413 + $0xc8] sm:$0xff] %v10579
      %11560 = vst [vmem:[%s413 + $0xd0] sm:$0xff] %v11024
      %11561 = vst.msk [vmem:[%s413 + $0xd8] sm:$0xff] %vm11536, %v11469
      %11562 = vst [vmem:[%s413 + $0xe0] sm:$0xff] %v10136
      %11563 = vst [vmem:[%s413 + $0xe8] sm:$0xff] %v10581
      %11564 = vst [vmem:[%s413 + $0xf0] sm:$0xff] %v11026
      %11565 = vst.msk [vmem:[%s413 + $0xf8] sm:$0xff] %vm11536, %v11471
      %11566 = vst [vmem:[%s413 + $0x100] sm:$0xff] %v10139
      %11567 = vst [vmem:[%s413 + $0x108] sm:$0xff] %v10584
      %11568 = vst [vmem:[%s413 + $0x110] sm:$0xff] %v11029
      %11569 = vst.msk [vmem:[%s413 + $0x118] sm:$0xff] %vm11536, %v11474
      %11570 = vst [vmem:[%s413 + $0x120] sm:$0xff] %v10141
      %11571 = vst [vmem:[%s413 + $0x128] sm:$0xff] %v10586
      %11572 = vst [vmem:[%s413 + $0x130] sm:$0xff] %v11031
      %11573 = vst.msk [vmem:[%s413 + $0x138] sm:$0xff] %vm11536, %v11476
      %11574 = vst [vmem:[%s413 + $0x140] sm:$0xff] %v10144
      %11575 = vst [vmem:[%s413 + $0x148] sm:$0xff] %v10589
      %11576 = vst [vmem:[%s413 + $0x150] sm:$0xff] %v11034
      %11577 = vst.msk [vmem:[%s413 + $0x158] sm:$0xff] %vm11536, %v11479
      %11578 = vst [vmem:[%s413 + $0x160] sm:$0xff] %v10146
      %11579 = vst [vmem:[%s413 + $0x168] sm:$0xff] %v10591
      %11580 = vst [vmem:[%s413 + $0x170] sm:$0xff] %v11036
      %11581 = vst.msk [vmem:[%s413 + $0x178] sm:$0xff] %vm11536, %v11481
      %11582 = vst [vmem:[%s413 + $0x180] sm:$0xff] %v10149
      %11583 = vst [vmem:[%s413 + $0x188] sm:$0xff] %v10594
      %11584 = vst [vmem:[%s413 + $0x190] sm:$0xff] %v11039
      %11585 = vst.msk [vmem:[%s413 + $0x198] sm:$0xff] %vm11536, %v11484
      %11586 = vst [vmem:[%s413 + $0x1a0] sm:$0xff] %v10151
      %11587 = vst [vmem:[%s413 + $0x1a8] sm:$0xff] %v10596
      %11588 = vst [vmem:[%s413 + $0x1b0] sm:$0xff] %v11041
      %11589 = vst.msk [vmem:[%s413 + $0x1b8] sm:$0xff] %vm11536, %v11486
      %11590 = vst [vmem:[%s413 + $0x1c0] sm:$0xff] %v10154
      %11591 = vst [vmem:[%s413 + $0x1c8] sm:$0xff] %v10599
      %11592 = vst [vmem:[%s413 + $0x1d0] sm:$0xff] %v11044
      %11593 = vst.msk [vmem:[%s413 + $0x1d8] sm:$0xff] %vm11536, %v11489
      %11594 = vst [vmem:[%s413 + $0x1e0] sm:$0xff] %v10156
      %11595 = vst [vmem:[%s413 + $0x1e8] sm:$0xff] %v10601
      %11596 = vst [vmem:[%s413 + $0x1f0] sm:$0xff] %v11046
      %11597 = vst.msk [vmem:[%s413 + $0x1f8] sm:$0xff] %vm11536, %v11491
      %11598 = vst [vmem:[%s413 + $0x200] sm:$0xff] %v10159
      %11599 = vst [vmem:[%s413 + $0x208] sm:$0xff] %v10604
      %11600 = vst [vmem:[%s413 + $0x210] sm:$0xff] %v11049
      %11601 = vst.msk [vmem:[%s413 + $0x218] sm:$0xff] %vm11536, %v11494
      %11602 = vst [vmem:[%s413 + $0x220] sm:$0xff] %v10161
      %11603 = vst [vmem:[%s413 + $0x228] sm:$0xff] %v10606
      %11604 = vst [vmem:[%s413 + $0x230] sm:$0xff] %v11051
      %11605 = vst.msk [vmem:[%s413 + $0x238] sm:$0xff] %vm11536, %v11496
      %11606 = vst [vmem:[%s413 + $0x240] sm:$0xff] %v10164
      %11607 = vst [vmem:[%s413 + $0x248] sm:$0xff] %v10609
      %11608 = vst [vmem:[%s413 + $0x250] sm:$0xff] %v11054
      %11609 = vst.msk [vmem:[%s413 + $0x258] sm:$0xff] %vm11536, %v11499
      %11610 = vst [vmem:[%s413 + $0x260] sm:$0xff] %v10166
      %11611 = vst [vmem:[%s413 + $0x268] sm:$0xff] %v10611
      %11612 = vst [vmem:[%s413 + $0x270] sm:$0xff] %v11056
      %11613 = vst.msk [vmem:[%s413 + $0x278] sm:$0xff] %vm11536, %v11501
      %11614 = vst [vmem:[%s413 + $0x280] sm:$0xff] %v10169
      %11615 = vst [vmem:[%s413 + $0x288] sm:$0xff] %v10614
      %11616 = vst [vmem:[%s413 + $0x290] sm:$0xff] %v11059
      %11617 = vst.msk [vmem:[%s413 + $0x298] sm:$0xff] %vm11536, %v11504
      %11618 = vst [vmem:[%s413 + $0x2a0] sm:$0xff] %v10171
      %11619 = vst [vmem:[%s413 + $0x2a8] sm:$0xff] %v10616
      %11620 = vst [vmem:[%s413 + $0x2b0] sm:$0xff] %v11061
      %11621 = vst.msk [vmem:[%s413 + $0x2b8] sm:$0xff] %vm11536, %v11506
      %11622 = vst [vmem:[%s413 + $0x2c0] sm:$0xff] %v10174
      %11623 = vst [vmem:[%s413 + $0x2c8] sm:$0xff] %v10619
      %11624 = vst [vmem:[%s413 + $0x2d0] sm:$0xff] %v11064
      %11625 = vst.msk [vmem:[%s413 + $0x2d8] sm:$0xff] %vm11536, %v11509
      %11626 = vst [vmem:[%s413 + $0x2e0] sm:$0xff] %v10176
      %11627 = vst [vmem:[%s413 + $0x2e8] sm:$0xff] %v10621
      %11628 = vst [vmem:[%s413 + $0x2f0] sm:$0xff] %v11066
      %11629 = vst.msk [vmem:[%s413 + $0x2f8] sm:$0xff] %vm11536, %v11511
      %11630 = vst [vmem:[%s413 + $0x300] sm:$0xff] %v10179
      %11631 = vst [vmem:[%s413 + $0x308] sm:$0xff] %v10624
      %11632 = vst [vmem:[%s413 + $0x310] sm:$0xff] %v11069
      %11633 = vst.msk [vmem:[%s413 + $0x318] sm:$0xff] %vm11536, %v11514
      %11634 = vst [vmem:[%s413 + $0x320] sm:$0xff] %v10181
      %11635 = vst [vmem:[%s413 + $0x328] sm:$0xff] %v10626
      %11636 = vst [vmem:[%s413 + $0x330] sm:$0xff] %v11071
      %11637 = vst.msk [vmem:[%s413 + $0x338] sm:$0xff] %vm11536, %v11516
      %11638 = vst [vmem:[%s413 + $0x340] sm:$0xff] %v10184
      %11639 = vst [vmem:[%s413 + $0x348] sm:$0xff] %v10629
      %11640 = vst [vmem:[%s413 + $0x350] sm:$0xff] %v11074
      %11641 = vst.msk [vmem:[%s413 + $0x358] sm:$0xff] %vm11536, %v11519
      %11642 = vst [vmem:[%s413 + $0x360] sm:$0xff] %v10186
      %11643 = vst [vmem:[%s413 + $0x368] sm:$0xff] %v10631
      %11644 = vst [vmem:[%s413 + $0x370] sm:$0xff] %v11076
      %11645 = vst.msk [vmem:[%s413 + $0x378] sm:$0xff] %vm11536, %v11521
      %11646 = vst [vmem:[%s413 + $0x380] sm:$0xff] %v10189
      %11647 = vst [vmem:[%s413 + $0x388] sm:$0xff] %v10634
      %11648 = vst [vmem:[%s413 + $0x390] sm:$0xff] %v11079
      %11649 = vst.msk [vmem:[%s413 + $0x398] sm:$0xff] %vm11536, %v11524
      %11650 = vst [vmem:[%s413 + $0x3a0] sm:$0xff] %v10191
      %11651 = vst [vmem:[%s413 + $0x3a8] sm:$0xff] %v10636
      %11652 = vst [vmem:[%s413 + $0x3b0] sm:$0xff] %v11081
      %11653 = vst.msk [vmem:[%s413 + $0x3b8] sm:$0xff] %vm11536, %v11526
      %11654 = vst [vmem:[%s413 + $0x3c0] sm:$0xff] %v10194
      %11655 = vst [vmem:[%s413 + $0x3c8] sm:$0xff] %v10639
      %11656 = vst [vmem:[%s413 + $0x3d0] sm:$0xff] %v11084
      %11657 = vst.msk [vmem:[%s413 + $0x3d8] sm:$0xff] %vm11536, %v11529
      %11658 = vst [vmem:[%s413 + $0x3e0] sm:$0xff] %v10196
      %11659 = vst [vmem:[%s413 + $0x3e8] sm:$0xff] %v10641
      %11660 = vst [vmem:[%s413 + $0x3f0] sm:$0xff] %v11086
      %11661 = vst.msk [vmem:[%s413 + $0x3f8] sm:$0xff] %vm11536, %v11531
      %p11662 = scmp.lt.s32.totalorder %s23, 1
      %s11663 = scalar_select %p11662, %s23, 1
      %s11664 = smul.addr %s11663, 128
      %s11665 = smul.addr %s11664, 8
      %s11666 = scalar_lea.vmem %s12, %s11665
      // Predicated region
      $region69: #{tpu_custom_call.1} parent=67 // pred_check
        %p11667 = pneg %p298
      $region70: #{tpu_custom_call.1} parent=67 // pred_check_branch
        %11669 = sbr.rel (%p11667) target = $region72
      $region71: #{tpu_custom_call.1} parent=67 // pred_region
        _
      $region72: #{tpu_custom_call.1} parent=67 // pred_fallthru
        _
    $region68: #{tpu_custom_call.1} parent=5 // pred_fallthru
      _
    %p11670 = scmp.le.s32.totalorder 2, %s18
    // Predicated region
    $region73: #{tpu_custom_call.1} parent=5 // pred_check
      %p11671 = pneg %p11670
    $region74: #{tpu_custom_call.1} parent=5 // pred_check_branch
      %11673 = sbr.rel (%p11671) target = $region76
    $region75: #{tpu_custom_call.1} parent=5 // pred_region
      %s11674 = ssub.s32 %s18, 2
      // Predicated region
      $region77: #{tpu_custom_call.1} parent=75 // pred_check
        %p11675 = pneg %p304
      $region78: #{tpu_custom_call.1} parent=75 // pred_check_branch
        %11677 = sbr.rel (%p11675) target = $region80
      $region79: #{tpu_custom_call.1} parent=75 // pred_region
        %p11678 = scmp.lt.s32.totalorder %s24, 1
        %s11679 = scalar_select %p11678, %s24, 1
        %s11680 = smul.addr %s11679, 128
        %s11681 = smul.addr %s11680, 8
        %s11682 = scalar_lea.vmem %s12, %s11681
      $region80: #{tpu_custom_call.1} parent=75 // pred_fallthru
        _
    $region76: #{tpu_custom_call.1} parent=5 // pred_fallthru
      _
  $region6: #{tpu_custom_call.1} parent=0 // loop_footer
    %s22 = sadd.s32 1, %s18
  $region7: #{tpu_custom_call.1} parent=0 // loop_footer_branch
    %17 = sbr.rel target = $region3
  $region8: #{tpu_custom_call.1} parent=0 // loop_exit
    _

</llo_original>
